<compile_context>
chip_gen: v5e
topology: v5e:2x2
jax: 0.10.0
libtpu: 0.0.40
codegen_flags: <defaults>
</compile_context>

<pallas_src>
import functools

import jax
import jax.numpy as jnp
from jax.experimental import pallas as pl
from jax.experimental.pallas import tpu as pltpu


_VMEM_SPEC = pl.BlockSpec(memory_space=pltpu.MemorySpace.VMEM)

_N_SELF = 12                      # params per SelfAttention block
_N_CROSS = 16                     # params per CrossAttention branch
_N_PARAMS = 2 * _N_SELF + 2 * _N_CROSS


# ----------------------------------------------------------------------------
# In-kernel helpers (VMEM-resident values; f32 elementwise, bf16 MXU operands)
# ----------------------------------------------------------------------------
def _gelu(y):
    # TODO(synk): tanh approximation; PyTorch nn.GELU() default is exact erf,
    #             expect ~1e-3 relative divergence.
    return 0.5 * y * (1.0 + jnp.tanh(0.7978845608028654 * (y + 0.044715 * y * y * y)))


def _layernorm(x, g, b):
    mean = jnp.mean(x, axis=-1, keepdims=True)
    var = jnp.mean((x - mean) ** 2, axis=-1, keepdims=True)
    return (x - mean) * jax.lax.rsqrt(var + 1e-5) * g + b


def _mm(a, w_bf16):
    # Weights are pre-cast to bf16 on the host; activations cast once here.
    return jnp.dot(a.astype(jnp.bfloat16), w_bf16, preferred_element_type=jnp.float32)


def _mha(q3, k3, v3, bias, *, num_heads):
    """Multi-head attention with batch handled by 3-D batched dot_general.

    q3: (B, Lq, C) f32 (softmax scale already folded into the Q projection)
    k3, v3: (B, Lk, C) f32;  bias: (H, Lq, Lk) f32  ->  (B, Lq, C) f32
    """
    C = q3.shape[-1]
    dh = C // num_heads
    qb = q3.astype(jnp.bfloat16)            # single cast per tensor
    kb = k3.astype(jnp.bfloat16)
    vb = v3.astype(jnp.bfloat16)
    head_outs = []
    for h in range(num_heads):              # short static loop (H only, not B*H)
        sl = slice(h * dh, (h + 1) * dh)
        s = jax.lax.dot_general(            # (B, Lq, Lk), f32 accumulation
            qb[..., sl], kb[..., sl],
            (((2,), (2,)), ((0,), (0,))),
            preferred_element_type=jnp.float32)
        s = s + bias[h][None]
        m = jnp.max(s, axis=-1, keepdims=True)
        p = jnp.exp(s - m)
        inv = pl.reciprocal(jnp.sum(p, axis=-1, keepdims=True), approx=True)
        o = jax.lax.dot_general(            # (B, Lq, dh), f32 accumulation
            p.astype(jnp.bfloat16), vb[..., sl],
            (((2,), (1,)), ((0,), (0,))),
            preferred_element_type=jnp.float32) * inv
        head_outs.append(o)
    return jnp.concatenate(head_outs, axis=-1)          # (B, Lq, C)


def _self_block(x2d, bias, prm, *, batch, seq, num_heads):
    (n1g, n1b, qkv_w, qkv_b, proj_w, proj_b,
     n2g, n2b, fc1_w, fc1_b, fc2_w, fc2_b) = prm
    C = x2d.shape[-1]
    xn = _layernorm(x2d, n1g, n1b)
    qkv = _mm(xn, qkv_w) + qkv_b                          # (B*L, 3C)
    q = qkv[:, 0:C].reshape(batch, seq, C)
    k = qkv[:, C:2 * C].reshape(batch, seq, C)
    v = qkv[:, 2 * C:3 * C].reshape(batch, seq, C)
    attn = _mha(q, k, v, bias, num_heads=num_heads).reshape(batch * seq, C)
    x2d = x2d + _mm(attn, proj_w) + proj_b                # drop_path == identity
    xn = _layernorm(x2d, n2g, n2b)
    h = _gelu(_mm(xn, fc1_w) + fc1_b)
    return x2d + _mm(h, fc2_w) + fc2_b


def _cross_block(q2d, kv2d, bias, prm, *, batch, lq, lk, num_heads):
    (nqg, nqb, nkvg, nkvb, q_w, q_b, kv_w, kv_b, proj_w, proj_b,
     n2g, n2b, fc1_w, fc1_b, fc2_w, fc2_b) = prm
    C = q2d.shape[-1]
    qn = _layernorm(q2d, nqg, nqb)
    kvn = _layernorm(kv2d, nkvg, nkvb)
    q = (_mm(qn, q_w) + q_b).reshape(batch, lq, C)
    kv = _mm(kvn, kv_w) + kv_b                            # (B*Lk, 2C)
    k = kv[:, 0:C].reshape(batch, lk, C)
    v = kv[:, C:2 * C].reshape(batch, lk, C)
    attn = _mha(q, k, v, bias, num_heads=num_heads).reshape(batch * lq, C)
    out = q2d + _mm(attn, proj_w) + proj_b                # drop_path == identity
    on = _layernorm(out, n2g, n2b)
    h = _gelu(_mm(on, fc1_w) + fc1_b)
    return out + _mm(h, fc2_w) + fc2_b


# ----------------------------------------------------------------------------
# ONE fused kernel for the whole Encoder (z/x stay in VMEM across all blocks)
# ----------------------------------------------------------------------------
def encoder_kernel(*refs, batch, lz, lx, num_heads):
    z_ref, x_ref, bz_ref, bx_ref, bzx_ref, bxz_ref = refs[:6]
    prm = [r[...] for r in refs[6:6 + _N_PARAMS]]
    zo_ref, xo_ref = refs[6 + _N_PARAMS], refs[7 + _N_PARAMS]

    z_prm = prm[0:_N_SELF]
    x_prm = prm[_N_SELF:2 * _N_SELF]
    cz_prm = prm[2 * _N_SELF:2 * _N_SELF + _N_CROSS]
    cx_prm = prm[2 * _N_SELF + _N_CROSS:]

    z = z_ref[...].astype(jnp.float32)                    # (B*Lz, C)
    x = x_ref[...].astype(jnp.float32)                    # (B*Lx, C)

    z = _self_block(z, bz_ref[...], z_prm, batch=batch, seq=lz, num_heads=num_heads)
    x = _self_block(x, bx_ref[...], x_prm, batch=batch, seq=lx, num_heads=num_heads)
    z_new = _cross_block(z, x, bzx_ref[...], cz_prm,
                         batch=batch, lq=lz, lk=lx, num_heads=num_heads)
    x_new = _cross_block(x, z, bxz_ref[...], cx_prm,
                         batch=batch, lq=lx, lk=lz, num_heads=num_heads)

    zo_ref[...] = z_new.astype(zo_ref.dtype)
    xo_ref[...] = x_new.astype(xo_ref.dtype)


@functools.partial(jax.jit, static_argnames=("num_heads",))
def encoder_forward(flat_params, biases, z, x, *, num_heads):
    B, Lz, C = z.shape
    Lx = x.shape[1]
    assert len(flat_params) == _N_PARAMS
    kern = functools.partial(encoder_kernel, batch=B, lz=Lz, lx=Lx,
                             num_heads=num_heads)
    n_in = 6 + _N_PARAMS
    zo, xo = pl.pallas_call(
        kern,
        in_specs=[_VMEM_SPEC] * n_in,
        out_specs=(_VMEM_SPEC, _VMEM_SPEC),
        out_shape=(jax.ShapeDtypeStruct((B * Lz, C), jnp.float32),
                   jax.ShapeDtypeStruct((B * Lx, C), jnp.float32)),
    )(z.reshape(B * Lz, C), x.reshape(B * Lx, C),
      biases["z"], biases["x"], biases["zx"], biases["xz"], *flat_params)
    return zo.reshape(B, Lz, C), xo.reshape(B, Lx, C)


# ----------------------------------------------------------------------------
# Host-side parameter prep (done ONCE): bf16 weight pre-cast, scale folding,
# relative-position bias gather/transpose.
# ----------------------------------------------------------------------------
def _vec(v):
    return jnp.asarray(v, jnp.float32).reshape(1, -1)


def prepare_self_params(p, num_heads):
    C = p["qkv_w"].shape[0]
    scale = (C // num_heads) ** -0.5
    qkv_w = p["qkv_w"].at[:, 0:C].multiply(scale)         # fold softmax scale into Q
    qkv_b = p["qkv_b"].at[0:C].multiply(scale)
    return (
        _vec(p["norm1_g"]), _vec(p["norm1_b"]),
        qkv_w.astype(jnp.bfloat16), _vec(qkv_b),
        p["proj_w"].astype(jnp.bfloat16), _vec(p["proj_b"]),
        _vec(p["norm2_g"]), _vec(p["norm2_b"]),
        p["fc1_w"].astype(jnp.bfloat16), _vec(p["fc1_b"]),
        p["fc2_w"].astype(jnp.bfloat16), _vec(p["fc2_b"]),
    )


def prepare_cross_params(p, num_heads):
    C = p["q_w"].shape[0]
    scale = (C // num_heads) ** -0.5
    return (
        _vec(p["norm_q_g"]), _vec(p["norm_q_b"]),
        _vec(p["norm_kv_g"]), _vec(p["norm_kv_b"]),
        (p["q_w"] * scale).astype(jnp.bfloat16), _vec(p["q_b"] * scale),
        p["kv_w"].astype(jnp.bfloat16), _vec(p["kv_b"]),
        p["proj_w"].astype(jnp.bfloat16), _vec(p["proj_b"]),
        _vec(p["norm2_g"]), _vec(p["norm2_b"]),
        p["fc1_w"].astype(jnp.bfloat16), _vec(p["fc1_b"]),
        p["fc2_w"].astype(jnp.bfloat16), _vec(p["fc2_b"]),
    )


def _self_rel_index(H, W):
    coords = jnp.stack(jnp.meshgrid(jnp.arange(H), jnp.arange(W), indexing="ij"))
    coords = coords.reshape(2, -1)
    rel = coords[:, :, None] - coords[:, None, :]
    rel = rel.transpose(1, 2, 0) + jnp.array([H - 1, W - 1])
    return rel[..., 0] * (2 * W - 1) + rel[..., 1]


def _cross_rel_index(Hq, Wq, Hk, Wk):
    cq = jnp.stack(jnp.meshgrid(jnp.arange(Hq), jnp.arange(Wq), indexing="ij")).reshape(2, -1)
    ck = jnp.stack(jnp.meshgrid(jnp.arange(Hk), jnp.arange(Wk), indexing="ij")).reshape(2, -1)
    rel = cq[:, :, None] - ck[:, None, :]
    rel = rel.transpose(1, 2, 0) + jnp.array([Hk - 1, Wk - 1])
    return rel[..., 0] * (Wq + Wk - 1) + rel[..., 1]


def make_self_bias(table, size, num_heads):
    H, W = size
    idx = _self_rel_index(H, W)
    bias = table[idx.reshape(-1)].reshape(H * W, H * W, num_heads)
    return bias.transpose(2, 0, 1).astype(jnp.float32)     # (nH, L, L)


def make_cross_bias(table, q_size, k_size, num_heads):
    Hq, Wq = q_size
    Hk, Wk = k_size
    idx = _cross_rel_index(Hq, Wq, Hk, Wk)
    bias = table[idx.reshape(-1)].reshape(Hq * Wq, Hk * Wk, num_heads)
    return bias.transpose(2, 0, 1).astype(jnp.float32)     # (nH, Lq, Lk)


def precompute(params, num_heads, z_size, x_size):
    flat = (prepare_self_params(params["z_self"], num_heads)
            + prepare_self_params(params["x_self"], num_heads)
            + prepare_cross_params(params["cross_z"], num_heads)
            + prepare_cross_params(params["cross_x"], num_heads))
    biases = {
        "z": make_self_bias(params["z_self"]["rpb_table"], z_size, num_heads),
        "x": make_self_bias(params["x_self"]["rpb_table"], x_size, num_heads),
        "zx": make_cross_bias(params["cross_z"]["rpb_table"], z_size, x_size, num_heads),
        "xz": make_cross_bias(params["cross_x"]["rpb_table"], x_size, z_size, num_heads),
    }
    return flat, biases


# ----------------------------------------------------------------------------
# Pure-JAX f32 reference (matches PyTorch module semantics; for validation)
# ----------------------------------------------------------------------------
def _ref_mha(q, k, v, bias, num_heads, scale):
    B, Lq, C = q.shape
    Lk = k.shape[1]
    dh = C // num_heads
    qh = q.reshape(B, Lq, num_heads, dh).transpose(0, 2, 1, 3)
    kh = k.reshape(B, Lk, num_heads, dh).transpose(0, 2, 1, 3)
    vh = v.reshape(B, Lk, num_heads, dh).transpose(0, 2, 1, 3)
    s = jnp.einsum("bhqd,bhkd->bhqk", qh, kh) * scale + bias[None]
    p = jax.nn.softmax(s, axis=-1)
    o = jnp.einsum("bhqk,bhkd->bhqd", p, vh)
    return o.transpose(0, 2, 1, 3).reshape(B, Lq, C)


def _ref_self(p, x, bias, num_heads):
    C = x.shape[-1]
    scale = (C // num_heads) ** -0.5
    xn = _layernorm(x, p["norm1_g"], p["norm1_b"])
    qkv = xn @ p["qkv_w"] + p["qkv_b"]
    a = _ref_mha(qkv[..., 0:C], qkv[..., C:2 * C], qkv[..., 2 * C:3 * C],
                 bias, num_heads, scale)
    x = x + a @ p["proj_w"] + p["proj_b"]
    xn = _layernorm(x, p["norm2_g"], p["norm2_b"])
    return x + _gelu(xn @ p["fc1_w"] + p["fc1_b"]) @ p["fc2_w"] + p["fc2_b"]


def _ref_cross(p, qin, kvin, bias, num_heads):
    C = qin.shape[-1]
    scale = (C // num_heads) ** -0.5
    qn = _layernorm(qin, p["norm_q_g"], p["norm_q_b"])
    kvn = _layernorm(kvin, p["norm_kv_g"], p["norm_kv_b"])
    q = qn @ p["q_w"] + p["q_b"]
    kv = kvn @ p["kv_w"] + p["kv_b"]
    a = _ref_mha(q, kv[..., 0:C], kv[..., C:2 * C], bias, num_heads, scale)
    out = qin + a @ p["proj_w"] + p["proj_b"]
    on = _layernorm(out, p["norm2_g"], p["norm2_b"])
    return out + _gelu(on @ p["fc1_w"] + p["fc1_b"]) @ p["fc2_w"] + p["fc2_b"]


def reference_forward(params, biases, z, x, num_heads):
    z = _ref_self(params["z_self"], z, biases["z"], num_heads)
    x = _ref_self(params["x_self"], x, biases["x"], num_heads)
    z_new = _ref_cross(params["cross_z"], z, x, biases["zx"], num_heads)
    x_new = _ref_cross(params["cross_x"], x, z, biases["xz"], num_heads)
    return z_new, x_new


# ----------------------------------------------------------------------------
# Deterministic parameter init (trunc_normal, like the module's init)
# ----------------------------------------------------------------------------
def _tn(key, shape, std=0.02):
    return std * jax.random.truncated_normal(key, -2.0, 2.0, shape, jnp.float32)


def init_self_attn(key, dim, num_heads, size, mlp_ratio=4):
    H, W = size
    ks = jax.random.split(key, 5)
    hidden = dim * mlp_ratio
    return {
        "norm1_g": jnp.ones((dim,), jnp.float32), "norm1_b": jnp.zeros((dim,), jnp.float32),
        "qkv_w": _tn(ks[0], (dim, 3 * dim)), "qkv_b": jnp.zeros((3 * dim,), jnp.float32),
        "proj_w": _tn(ks[1], (dim, dim)), "proj_b": jnp.zeros((dim,), jnp.float32),
        "rpb_table": _tn(ks[2], ((2 * H - 1) * (2 * W - 1), num_heads)),
        "norm2_g": jnp.ones((dim,), jnp.float32), "norm2_b": jnp.zeros((dim,), jnp.float32),
        "fc1_w": _tn(ks[3], (dim, hidden)), "fc1_b": jnp.zeros((hidden,), jnp.float32),
        "fc2_w": _tn(ks[4], (hidden, dim)), "fc2_b": jnp.zeros((dim,), jnp.float32),
    }


def init_cross_branch(key, dim, num_heads, q_size, k_size, mlp_ratio=4):
    Hq, Wq = q_size
    Hk, Wk = k_size
    ks = jax.random.split(key, 6)
    hidden = dim * mlp_ratio
    return {
        "norm_q_g": jnp.ones((dim,), jnp.float32), "norm_q_b": jnp.zeros((dim,), jnp.float32),
        "norm_kv_g": jnp.ones((dim,), jnp.float32), "norm_kv_b": jnp.zeros((dim,), jnp.float32),
        "q_w": _tn(ks[0], (dim, dim)), "q_b": jnp.zeros((dim,), jnp.float32),
        "kv_w": _tn(ks[1], (dim, 2 * dim)), "kv_b": jnp.zeros((2 * dim,), jnp.float32),
        "proj_w": _tn(ks[2], (dim, dim)), "proj_b": jnp.zeros((dim,), jnp.float32),
        "rpb_table": _tn(ks[3], ((Hq + Hk - 1) * (Wq + Wk - 1), num_heads)),
        "norm2_g": jnp.ones((dim,), jnp.float32), "norm2_b": jnp.zeros((dim,), jnp.float32),
        "fc1_w": _tn(ks[4], (dim, hidden)), "fc1_b": jnp.zeros((hidden,), jnp.float32),
        "fc2_w": _tn(ks[5], (hidden, dim)), "fc2_b": jnp.zeros((dim,), jnp.float32),
    }


def init_encoder(key, dim, num_heads, z_size, x_size):
    k1, k2, k3, k4 = jax.random.split(key, 4)
    return {
        "z_self": init_self_attn(k1, dim, num_heads, z_size),
        "x_self": init_self_attn(k2, dim, num_heads, x_size),
        "cross_z": init_cross_branch(k3, dim, num_heads, z_size, x_size),
        "cross_x": init_cross_branch(k4, dim, num_heads, x_size, z_size),
    }


# ----------------------------------------------------------------------------
if __name__ == "__main__":
    dim, num_heads = 32, 4
    z_size, x_size = (4, 4), (8, 8)          # Lz = 16, Lx = 64
    B = 2

    key = jax.random.PRNGKey(0)
    kp, kz, kx = jax.random.split(key, 3)
    params = init_encoder(kp, dim, num_heads, z_size, x_size)

    # One-time host prep: bf16 weight cast, scale folding, bias gather/transpose.
    flat_params, biases = precompute(params, num_heads, z_size, x_size)
    flat_params, biases = jax.block_until_ready((flat_params, biases))

    z = jax.random.normal(kz, (B, z_size[0] * z_size[1], dim), jnp.float32)
    x = jax.random.normal(kx, (B, x_size[0] * x_size[1], dim), jnp.float32)

    z_out, x_out = encoder_forward(flat_params, biases, z, x, num_heads=num_heads)
    jax.block_until_ready((z_out, x_out))

    assert z_out.shape == z.shape and x_out.shape == x.shape
    assert bool(jnp.isfinite(z_out).all()) and bool(jnp.isfinite(x_out).all())

    # Loose numerical check vs. f32 reference (kernel uses bf16 MXU operands,
    # tanh-GELU and approx reciprocal -> not bit-exact).
    z_ref, x_ref = reference_forward(params, biases, z, x, num_heads)
    err = max(float(jnp.max(jnp.abs(z_out - z_ref))),
              float(jnp.max(jnp.abs(x_out - x_ref))))
    assert err < 0.1, f"mismatch vs reference: max abs err = {err}"

    print("KERNEL_OK")
</pallas_src>

<mosaic_0001>
module attributes {stable_mosaic.version = 11 : i64} {
  func.func @encoder_kernel(%arg0: memref<32x32xf32, #tpu.memory_space<vmem>>, %arg1: memref<128x32xf32, #tpu.memory_space<vmem>>, %arg2: memref<4x16x16xf32, #tpu.memory_space<vmem>>, %arg3: memref<4x64x64xf32, #tpu.memory_space<vmem>>, %arg4: memref<4x16x64xf32, #tpu.memory_space<vmem>>, %arg5: memref<4x64x16xf32, #tpu.memory_space<vmem>>, %arg6: memref<1x32xf32, #tpu.memory_space<vmem>>, %arg7: memref<1x32xf32, #tpu.memory_space<vmem>>, %arg8: memref<32x96xbf16, #tpu.memory_space<vmem>>, %arg9: memref<1x96xf32, #tpu.memory_space<vmem>>, %arg10: memref<32x32xbf16, #tpu.memory_space<vmem>>, %arg11: memref<1x32xf32, #tpu.memory_space<vmem>>, %arg12: memref<1x32xf32, #tpu.memory_space<vmem>>, %arg13: memref<1x32xf32, #tpu.memory_space<vmem>>, %arg14: memref<32x128xbf16, #tpu.memory_space<vmem>>, %arg15: memref<1x128xf32, #tpu.memory_space<vmem>>, %arg16: memref<128x32xbf16, #tpu.memory_space<vmem>>, %arg17: memref<1x32xf32, #tpu.memory_space<vmem>>, %arg18: memref<1x32xf32, #tpu.memory_space<vmem>>, %arg19: memref<1x32xf32, #tpu.memory_space<vmem>>, %arg20: memref<32x96xbf16, #tpu.memory_space<vmem>>, %arg21: memref<1x96xf32, #tpu.memory_space<vmem>>, %arg22: memref<32x32xbf16, #tpu.memory_space<vmem>>, %arg23: memref<1x32xf32, #tpu.memory_space<vmem>>, %arg24: memref<1x32xf32, #tpu.memory_space<vmem>>, %arg25: memref<1x32xf32, #tpu.memory_space<vmem>>, %arg26: memref<32x128xbf16, #tpu.memory_space<vmem>>, %arg27: memref<1x128xf32, #tpu.memory_space<vmem>>, %arg28: memref<128x32xbf16, #tpu.memory_space<vmem>>, %arg29: memref<1x32xf32, #tpu.memory_space<vmem>>, %arg30: memref<1x32xf32, #tpu.memory_space<vmem>>, %arg31: memref<1x32xf32, #tpu.memory_space<vmem>>, %arg32: memref<1x32xf32, #tpu.memory_space<vmem>>, %arg33: memref<1x32xf32, #tpu.memory_space<vmem>>, %arg34: memref<32x32xbf16, #tpu.memory_space<vmem>>, %arg35: memref<1x32xf32, #tpu.memory_space<vmem>>, %arg36: memref<32x64xbf16, #tpu.memory_space<vmem>>, %arg37: memref<1x64xf32, #tpu.memory_space<vmem>>, %arg38: memref<32x32xbf16, #tpu.memory_space<vmem>>, %arg39: memref<1x32xf32, #tpu.memory_space<vmem>>, %arg40: memref<1x32xf32, #tpu.memory_space<vmem>>, %arg41: memref<1x32xf32, #tpu.memory_space<vmem>>, %arg42: memref<32x128xbf16, #tpu.memory_space<vmem>>, %arg43: memref<1x128xf32, #tpu.memory_space<vmem>>, %arg44: memref<128x32xbf16, #tpu.memory_space<vmem>>, %arg45: memref<1x32xf32, #tpu.memory_space<vmem>>, %arg46: memref<1x32xf32, #tpu.memory_space<vmem>>, %arg47: memref<1x32xf32, #tpu.memory_space<vmem>>, %arg48: memref<1x32xf32, #tpu.memory_space<vmem>>, %arg49: memref<1x32xf32, #tpu.memory_space<vmem>>, %arg50: memref<32x32xbf16, #tpu.memory_space<vmem>>, %arg51: memref<1x32xf32, #tpu.memory_space<vmem>>, %arg52: memref<32x64xbf16, #tpu.memory_space<vmem>>, %arg53: memref<1x64xf32, #tpu.memory_space<vmem>>, %arg54: memref<32x32xbf16, #tpu.memory_space<vmem>>, %arg55: memref<1x32xf32, #tpu.memory_space<vmem>>, %arg56: memref<1x32xf32, #tpu.memory_space<vmem>>, %arg57: memref<1x32xf32, #tpu.memory_space<vmem>>, %arg58: memref<32x128xbf16, #tpu.memory_space<vmem>>, %arg59: memref<1x128xf32, #tpu.memory_space<vmem>>, %arg60: memref<128x32xbf16, #tpu.memory_space<vmem>>, %arg61: memref<1x32xf32, #tpu.memory_space<vmem>>, %arg62: memref<32x32xf32, #tpu.memory_space<vmem>>, %arg63: memref<128x32xf32, #tpu.memory_space<vmem>>) attributes {dimension_semantics = [], scalar_prefetch = 0 : i64, scratch_operands = 0 : i64, tpu.core_type = #tpu.core_type<tc>} {
    %c0 = arith.constant 0 : index
    %c0_0 = arith.constant 0 : index
    %0 = vector.load %arg6[%c0, %c0_0] : memref<1x32xf32, #tpu.memory_space<vmem>>, vector<1x32xf32>
    %c0_1 = arith.constant 0 : index
    %c0_2 = arith.constant 0 : index
    %1 = vector.load %arg7[%c0_1, %c0_2] : memref<1x32xf32, #tpu.memory_space<vmem>>, vector<1x32xf32>
    %c0_3 = arith.constant 0 : index
    %c0_4 = arith.constant 0 : index
    %2 = vector.load %arg8[%c0_3, %c0_4] : memref<32x96xbf16, #tpu.memory_space<vmem>>, vector<32x96xbf16>
    %c0_5 = arith.constant 0 : index
    %c0_6 = arith.constant 0 : index
    %3 = vector.load %arg9[%c0_5, %c0_6] : memref<1x96xf32, #tpu.memory_space<vmem>>, vector<1x96xf32>
    %c0_7 = arith.constant 0 : index
    %c0_8 = arith.constant 0 : index
    %4 = vector.load %arg10[%c0_7, %c0_8] : memref<32x32xbf16, #tpu.memory_space<vmem>>, vector<32x32xbf16>
    %c0_9 = arith.constant 0 : index
    %c0_10 = arith.constant 0 : index
    %5 = vector.load %arg11[%c0_9, %c0_10] : memref<1x32xf32, #tpu.memory_space<vmem>>, vector<1x32xf32>
    %c0_11 = arith.constant 0 : index
    %c0_12 = arith.constant 0 : index
    %6 = vector.load %arg12[%c0_11, %c0_12] : memref<1x32xf32, #tpu.memory_space<vmem>>, vector<1x32xf32>
    %c0_13 = arith.constant 0 : index
    %c0_14 = arith.constant 0 : index
    %7 = vector.load %arg13[%c0_13, %c0_14] : memref<1x32xf32, #tpu.memory_space<vmem>>, vector<1x32xf32>
    %c0_15 = arith.constant 0 : index
    %c0_16 = arith.constant 0 : index
    %8 = vector.load %arg14[%c0_15, %c0_16] : memref<32x128xbf16, #tpu.memory_space<vmem>>, vector<32x128xbf16>
    %c0_17 = arith.constant 0 : index
    %c0_18 = arith.constant 0 : index
    %9 = vector.load %arg15[%c0_17, %c0_18] : memref<1x128xf32, #tpu.memory_space<vmem>>, vector<1x128xf32>
    %c0_19 = arith.constant 0 : index
    %c0_20 = arith.constant 0 : index
    %10 = vector.load %arg16[%c0_19, %c0_20] : memref<128x32xbf16, #tpu.memory_space<vmem>>, vector<128x32xbf16>
    %c0_21 = arith.constant 0 : index
    %c0_22 = arith.constant 0 : index
    %11 = vector.load %arg17[%c0_21, %c0_22] : memref<1x32xf32, #tpu.memory_space<vmem>>, vector<1x32xf32>
    %c0_23 = arith.constant 0 : index
    %c0_24 = arith.constant 0 : index
    %12 = vector.load %arg18[%c0_23, %c0_24] : memref<1x32xf32, #tpu.memory_space<vmem>>, vector<1x32xf32>
    %c0_25 = arith.constant 0 : index
    %c0_26 = arith.constant 0 : index
    %13 = vector.load %arg19[%c0_25, %c0_26] : memref<1x32xf32, #tpu.memory_space<vmem>>, vector<1x32xf32>
    %c0_27 = arith.constant 0 : index
    %c0_28 = arith.constant 0 : index
    %14 = vector.load %arg20[%c0_27, %c0_28] : memref<32x96xbf16, #tpu.memory_space<vmem>>, vector<32x96xbf16>
    %c0_29 = arith.constant 0 : index
    %c0_30 = arith.constant 0 : index
    %15 = vector.load %arg21[%c0_29, %c0_30] : memref<1x96xf32, #tpu.memory_space<vmem>>, vector<1x96xf32>
    %c0_31 = arith.constant 0 : index
    %c0_32 = arith.constant 0 : index
    %16 = vector.load %arg22[%c0_31, %c0_32] : memref<32x32xbf16, #tpu.memory_space<vmem>>, vector<32x32xbf16>
    %c0_33 = arith.constant 0 : index
    %c0_34 = arith.constant 0 : index
    %17 = vector.load %arg23[%c0_33, %c0_34] : memref<1x32xf32, #tpu.memory_space<vmem>>, vector<1x32xf32>
    %c0_35 = arith.constant 0 : index
    %c0_36 = arith.constant 0 : index
    %18 = vector.load %arg24[%c0_35, %c0_36] : memref<1x32xf32, #tpu.memory_space<vmem>>, vector<1x32xf32>
    %c0_37 = arith.constant 0 : index
    %c0_38 = arith.constant 0 : index
    %19 = vector.load %arg25[%c0_37, %c0_38] : memref<1x32xf32, #tpu.memory_space<vmem>>, vector<1x32xf32>
    %c0_39 = arith.constant 0 : index
    %c0_40 = arith.constant 0 : index
    %20 = vector.load %arg26[%c0_39, %c0_40] : memref<32x128xbf16, #tpu.memory_space<vmem>>, vector<32x128xbf16>
    %c0_41 = arith.constant 0 : index
    %c0_42 = arith.constant 0 : index
    %21 = vector.load %arg27[%c0_41, %c0_42] : memref<1x128xf32, #tpu.memory_space<vmem>>, vector<1x128xf32>
    %c0_43 = arith.constant 0 : index
    %c0_44 = arith.constant 0 : index
    %22 = vector.load %arg28[%c0_43, %c0_44] : memref<128x32xbf16, #tpu.memory_space<vmem>>, vector<128x32xbf16>
    %c0_45 = arith.constant 0 : index
    %c0_46 = arith.constant 0 : index
    %23 = vector.load %arg29[%c0_45, %c0_46] : memref<1x32xf32, #tpu.memory_space<vmem>>, vector<1x32xf32>
    %c0_47 = arith.constant 0 : index
    %c0_48 = arith.constant 0 : index
    %24 = vector.load %arg30[%c0_47, %c0_48] : memref<1x32xf32, #tpu.memory_space<vmem>>, vector<1x32xf32>
    %c0_49 = arith.constant 0 : index
    %c0_50 = arith.constant 0 : index
    %25 = vector.load %arg31[%c0_49, %c0_50] : memref<1x32xf32, #tpu.memory_space<vmem>>, vector<1x32xf32>
    %c0_51 = arith.constant 0 : index
    %c0_52 = arith.constant 0 : index
    %26 = vector.load %arg32[%c0_51, %c0_52] : memref<1x32xf32, #tpu.memory_space<vmem>>, vector<1x32xf32>
    %c0_53 = arith.constant 0 : index
    %c0_54 = arith.constant 0 : index
    %27 = vector.load %arg33[%c0_53, %c0_54] : memref<1x32xf32, #tpu.memory_space<vmem>>, vector<1x32xf32>
    %c0_55 = arith.constant 0 : index
    %c0_56 = arith.constant 0 : index
    %28 = vector.load %arg34[%c0_55, %c0_56] : memref<32x32xbf16, #tpu.memory_space<vmem>>, vector<32x32xbf16>
    %c0_57 = arith.constant 0 : index
    %c0_58 = arith.constant 0 : index
    %29 = vector.load %arg35[%c0_57, %c0_58] : memref<1x32xf32, #tpu.memory_space<vmem>>, vector<1x32xf32>
    %c0_59 = arith.constant 0 : index
    %c0_60 = arith.constant 0 : index
    %30 = vector.load %arg36[%c0_59, %c0_60] : memref<32x64xbf16, #tpu.memory_space<vmem>>, vector<32x64xbf16>
    %c0_61 = arith.constant 0 : index
    %c0_62 = arith.constant 0 : index
    %31 = vector.load %arg37[%c0_61, %c0_62] : memref<1x64xf32, #tpu.memory_space<vmem>>, vector<1x64xf32>
    %c0_63 = arith.constant 0 : index
    %c0_64 = arith.constant 0 : index
    %32 = vector.load %arg38[%c0_63, %c0_64] : memref<32x32xbf16, #tpu.memory_space<vmem>>, vector<32x32xbf16>
    %c0_65 = arith.constant 0 : index
    %c0_66 = arith.constant 0 : index
    %33 = vector.load %arg39[%c0_65, %c0_66] : memref<1x32xf32, #tpu.memory_space<vmem>>, vector<1x32xf32>
    %c0_67 = arith.constant 0 : index
    %c0_68 = arith.constant 0 : index
    %34 = vector.load %arg40[%c0_67, %c0_68] : memref<1x32xf32, #tpu.memory_space<vmem>>, vector<1x32xf32>
    %c0_69 = arith.constant 0 : index
    %c0_70 = arith.constant 0 : index
    %35 = vector.load %arg41[%c0_69, %c0_70] : memref<1x32xf32, #tpu.memory_space<vmem>>, vector<1x32xf32>
    %c0_71 = arith.constant 0 : index
    %c0_72 = arith.constant 0 : index
    %36 = vector.load %arg42[%c0_71, %c0_72] : memref<32x128xbf16, #tpu.memory_space<vmem>>, vector<32x128xbf16>
    %c0_73 = arith.constant 0 : index
    %c0_74 = arith.constant 0 : index
    %37 = vector.load %arg43[%c0_73, %c0_74] : memref<1x128xf32, #tpu.memory_space<vmem>>, vector<1x128xf32>
    %c0_75 = arith.constant 0 : index
    %c0_76 = arith.constant 0 : index
    %38 = vector.load %arg44[%c0_75, %c0_76] : memref<128x32xbf16, #tpu.memory_space<vmem>>, vector<128x32xbf16>
    %c0_77 = arith.constant 0 : index
    %c0_78 = arith.constant 0 : index
    %39 = vector.load %arg45[%c0_77, %c0_78] : memref<1x32xf32, #tpu.memory_space<vmem>>, vector<1x32xf32>
    %c0_79 = arith.constant 0 : index
    %c0_80 = arith.constant 0 : index
    %40 = vector.load %arg46[%c0_79, %c0_80] : memref<1x32xf32, #tpu.memory_space<vmem>>, vector<1x32xf32>
    %c0_81 = arith.constant 0 : index
    %c0_82 = arith.constant 0 : index
    %41 = vector.load %arg47[%c0_81, %c0_82] : memref<1x32xf32, #tpu.memory_space<vmem>>, vector<1x32xf32>
    %c0_83 = arith.constant 0 : index
    %c0_84 = arith.constant 0 : index
    %42 = vector.load %arg48[%c0_83, %c0_84] : memref<1x32xf32, #tpu.memory_space<vmem>>, vector<1x32xf32>
    %c0_85 = arith.constant 0 : index
    %c0_86 = arith.constant 0 : index
    %43 = vector.load %arg49[%c0_85, %c0_86] : memref<1x32xf32, #tpu.memory_space<vmem>>, vector<1x32xf32>
    %c0_87 = arith.constant 0 : index
    %c0_88 = arith.constant 0 : index
    %44 = vector.load %arg50[%c0_87, %c0_88] : memref<32x32xbf16, #tpu.memory_space<vmem>>, vector<32x32xbf16>
    %c0_89 = arith.constant 0 : index
    %c0_90 = arith.constant 0 : index
    %45 = vector.load %arg51[%c0_89, %c0_90] : memref<1x32xf32, #tpu.memory_space<vmem>>, vector<1x32xf32>
    %c0_91 = arith.constant 0 : index
    %c0_92 = arith.constant 0 : index
    %46 = vector.load %arg52[%c0_91, %c0_92] : memref<32x64xbf16, #tpu.memory_space<vmem>>, vector<32x64xbf16>
    %c0_93 = arith.constant 0 : index
    %c0_94 = arith.constant 0 : index
    %47 = vector.load %arg53[%c0_93, %c0_94] : memref<1x64xf32, #tpu.memory_space<vmem>>, vector<1x64xf32>
    %c0_95 = arith.constant 0 : index
    %c0_96 = arith.constant 0 : index
    %48 = vector.load %arg54[%c0_95, %c0_96] : memref<32x32xbf16, #tpu.memory_space<vmem>>, vector<32x32xbf16>
    %c0_97 = arith.constant 0 : index
    %c0_98 = arith.constant 0 : index
    %49 = vector.load %arg55[%c0_97, %c0_98] : memref<1x32xf32, #tpu.memory_space<vmem>>, vector<1x32xf32>
    %c0_99 = arith.constant 0 : index
    %c0_100 = arith.constant 0 : index
    %50 = vector.load %arg56[%c0_99, %c0_100] : memref<1x32xf32, #tpu.memory_space<vmem>>, vector<1x32xf32>
    %c0_101 = arith.constant 0 : index
    %c0_102 = arith.constant 0 : index
    %51 = vector.load %arg57[%c0_101, %c0_102] : memref<1x32xf32, #tpu.memory_space<vmem>>, vector<1x32xf32>
    %c0_103 = arith.constant 0 : index
    %c0_104 = arith.constant 0 : index
    %52 = vector.load %arg58[%c0_103, %c0_104] : memref<32x128xbf16, #tpu.memory_space<vmem>>, vector<32x128xbf16>
    %c0_105 = arith.constant 0 : index
    %c0_106 = arith.constant 0 : index
    %53 = vector.load %arg59[%c0_105, %c0_106] : memref<1x128xf32, #tpu.memory_space<vmem>>, vector<1x128xf32>
    %c0_107 = arith.constant 0 : index
    %c0_108 = arith.constant 0 : index
    %54 = vector.load %arg60[%c0_107, %c0_108] : memref<128x32xbf16, #tpu.memory_space<vmem>>, vector<128x32xbf16>
    %c0_109 = arith.constant 0 : index
    %c0_110 = arith.constant 0 : index
    %55 = vector.load %arg61[%c0_109, %c0_110] : memref<1x32xf32, #tpu.memory_space<vmem>>, vector<1x32xf32>
    %c0_111 = arith.constant 0 : index
    %c0_112 = arith.constant 0 : index
    %56 = vector.load %arg0[%c0_111, %c0_112] : memref<32x32xf32, #tpu.memory_space<vmem>>, vector<32x32xf32>
    %c0_113 = arith.constant 0 : index
    %c0_114 = arith.constant 0 : index
    %57 = vector.load %arg1[%c0_113, %c0_114] : memref<128x32xf32, #tpu.memory_space<vmem>>, vector<128x32xf32>
    %c0_115 = arith.constant 0 : index
    %c0_116 = arith.constant 0 : index
    %c0_117 = arith.constant 0 : index
    %58 = vector.load %arg2[%c0_115, %c0_116, %c0_117] : memref<4x16x16xf32, #tpu.memory_space<vmem>>, vector<4x16x16xf32>
    %cst = arith.constant dense<0.000000e+00> : vector<32xf32>
    %59 = vector.multi_reduction <add>, %56, %cst [1] : vector<32x32xf32> to vector<32xf32>
    %60 = vector.shape_cast %59 : vector<32xf32> to vector<32x1xf32>
    %cst_118 = arith.constant 3.200000e+01 : f32
    %61 = vector.broadcast %cst_118 : f32 to vector<32x1xf32>
    %62 = arith.divf %60, %61 : vector<32x1xf32>
    %63 = vector.broadcast %62 : vector<32x1xf32> to vector<32x32xf32>
    %64 = arith.subf %56, %63 : vector<32x32xf32>
    %65 = arith.mulf %64, %64 : vector<32x32xf32>
    %cst_119 = arith.constant dense<0.000000e+00> : vector<32xf32>
    %66 = vector.multi_reduction <add>, %65, %cst_119 [1] : vector<32x32xf32> to vector<32xf32>
    %67 = vector.shape_cast %66 : vector<32xf32> to vector<32x1xf32>
    %cst_120 = arith.constant 3.200000e+01 : f32
    %68 = vector.broadcast %cst_120 : f32 to vector<32x1xf32>
    %69 = arith.divf %67, %68 : vector<32x1xf32>
    %70 = vector.broadcast %62 : vector<32x1xf32> to vector<32x32xf32>
    %71 = arith.subf %56, %70 : vector<32x32xf32>
    %cst_121 = arith.constant 9.99999974E-6 : f32
    %72 = vector.broadcast %cst_121 : f32 to vector<32x1xf32>
    %73 = arith.addf %69, %72 : vector<32x1xf32>
    %74 = math.rsqrt %73 : vector<32x1xf32>
    %75 = vector.broadcast %74 : vector<32x1xf32> to vector<32x32xf32>
    %76 = arith.mulf %71, %75 : vector<32x32xf32>
    %77 = vector.broadcast %0 : vector<1x32xf32> to vector<32x32xf32>
    %78 = arith.mulf %76, %77 : vector<32x32xf32>
    %79 = vector.broadcast %1 : vector<1x32xf32> to vector<32x32xf32>
    %80 = arith.addf %78, %79 : vector<32x32xf32>
    %81 = arith.truncf %80 : vector<32x32xf32> to vector<32x32xbf16>
    %cst_122 = arith.constant dense<0.000000e+00> : vector<32x96xf32>
    %82 = tpu.matmul %81, %2, %cst_122 {dimension_numbers = #tpu.dot_dimension_numbers<[1], [0], [0], [1], [0, 0, 1, 1], [], []>} : vector<32x32xbf16>, vector<32x96xbf16>, vector<32x96xf32> -> vector<32x96xf32>
    %83 = vector.broadcast %3 : vector<1x96xf32> to vector<32x96xf32>
    %84 = arith.addf %82, %83 : vector<32x96xf32>
    %85 = vector.extract_strided_slice %84 {offsets = [0, 0], sizes = [32, 32], strides = [1, 1]} : vector<32x96xf32> to vector<32x32xf32>
    %86 = vector.shape_cast %85 : vector<32x32xf32> to vector<2x16x32xf32>
    %87 = vector.extract_strided_slice %84 {offsets = [0, 32], sizes = [32, 32], strides = [1, 1]} : vector<32x96xf32> to vector<32x32xf32>
    %88 = vector.shape_cast %87 : vector<32x32xf32> to vector<2x16x32xf32>
    %89 = vector.extract_strided_slice %84 {offsets = [0, 64], sizes = [32, 32], strides = [1, 1]} : vector<32x96xf32> to vector<32x32xf32>
    %90 = vector.shape_cast %89 : vector<32x32xf32> to vector<2x16x32xf32>
    %91 = arith.truncf %86 : vector<2x16x32xf32> to vector<2x16x32xbf16>
    %92 = arith.truncf %88 : vector<2x16x32xf32> to vector<2x16x32xbf16>
    %93 = arith.truncf %90 : vector<2x16x32xf32> to vector<2x16x32xbf16>
    %94 = vector.extract_strided_slice %91 {offsets = [0, 0, 0], sizes = [2, 16, 8], strides = [1, 1, 1]} : vector<2x16x32xbf16> to vector<2x16x8xbf16>
    %95 = vector.extract_strided_slice %92 {offsets = [0, 0, 0], sizes = [2, 16, 8], strides = [1, 1, 1]} : vector<2x16x32xbf16> to vector<2x16x8xbf16>
    %cst_123 = arith.constant dense<0.000000e+00> : vector<2x16x16xf32>
    %96 = tpu.matmul %94, %95, %cst_123 {dimension_numbers = #tpu.dot_dimension_numbers<[2], [2], [1], [1], [0, 0, 0, 1, 1, 1], [0], [0]>} : vector<2x16x8xbf16>, vector<2x16x8xbf16>, vector<2x16x16xf32> -> vector<2x16x16xf32>
    %97 = vector.extract_strided_slice %58 {offsets = [0, 0, 0], sizes = [1, 16, 16], strides = [1, 1, 1]} : vector<4x16x16xf32> to vector<1x16x16xf32>
    %98 = vector.shape_cast %97 : vector<1x16x16xf32> to vector<16x16xf32>
    %99 = vector.shape_cast %98 : vector<16x16xf32> to vector<1x16x16xf32>
    %100 = vector.broadcast %99 : vector<1x16x16xf32> to vector<2x16x16xf32>
    %101 = arith.addf %96, %100 : vector<2x16x16xf32>
    %cst_124 = arith.constant dense<0xFF800000> : vector<2x16xf32>
    %102 = vector.multi_reduction <maximumf>, %101, %cst_124 [2] : vector<2x16x16xf32> to vector<2x16xf32>
    %103 = vector.shape_cast %102 : vector<2x16xf32> to vector<2x16x1xf32>
    %104 = vector.broadcast %103 : vector<2x16x1xf32> to vector<2x16x16xf32>
    %105 = arith.subf %101, %104 : vector<2x16x16xf32>
    %106 = math.exp %105 : vector<2x16x16xf32>
    %cst_125 = arith.constant dense<0.000000e+00> : vector<2x16xf32>
    %107 = vector.multi_reduction <add>, %106, %cst_125 [2] : vector<2x16x16xf32> to vector<2x16xf32>
    %108 = vector.shape_cast %107 : vector<2x16xf32> to vector<2x16x1xf32>
    %109 = tpu.reciprocal %108 {approx = true} : vector<2x16x1xf32> -> vector<2x16x1xf32>
    %110 = arith.truncf %106 : vector<2x16x16xf32> to vector<2x16x16xbf16>
    %111 = vector.extract_strided_slice %93 {offsets = [0, 0, 0], sizes = [2, 16, 8], strides = [1, 1, 1]} : vector<2x16x32xbf16> to vector<2x16x8xbf16>
    %cst_126 = arith.constant dense<0.000000e+00> : vector<2x16x8xf32>
    %112 = tpu.matmul %110, %111, %cst_126 {dimension_numbers = #tpu.dot_dimension_numbers<[2], [1], [1], [2], [0, 0, 0, 1, 1, 2], [0], [0]>} : vector<2x16x16xbf16>, vector<2x16x8xbf16>, vector<2x16x8xf32> -> vector<2x16x8xf32>
    %113 = vector.broadcast %109 : vector<2x16x1xf32> to vector<2x16x8xf32>
    %114 = arith.mulf %112, %113 : vector<2x16x8xf32>
    %115 = vector.extract_strided_slice %91 {offsets = [0, 0, 8], sizes = [2, 16, 8], strides = [1, 1, 1]} : vector<2x16x32xbf16> to vector<2x16x8xbf16>
    %116 = vector.extract_strided_slice %92 {offsets = [0, 0, 8], sizes = [2, 16, 8], strides = [1, 1, 1]} : vector<2x16x32xbf16> to vector<2x16x8xbf16>
    %cst_127 = arith.constant dense<0.000000e+00> : vector<2x16x16xf32>
    %117 = tpu.matmul %115, %116, %cst_127 {dimension_numbers = #tpu.dot_dimension_numbers<[2], [2], [1], [1], [0, 0, 0, 1, 1, 1], [0], [0]>} : vector<2x16x8xbf16>, vector<2x16x8xbf16>, vector<2x16x16xf32> -> vector<2x16x16xf32>
    %118 = vector.extract_strided_slice %58 {offsets = [1, 0, 0], sizes = [1, 16, 16], strides = [1, 1, 1]} : vector<4x16x16xf32> to vector<1x16x16xf32>
    %119 = vector.shape_cast %118 : vector<1x16x16xf32> to vector<16x16xf32>
    %120 = vector.shape_cast %119 : vector<16x16xf32> to vector<1x16x16xf32>
    %121 = vector.broadcast %120 : vector<1x16x16xf32> to vector<2x16x16xf32>
    %122 = arith.addf %117, %121 : vector<2x16x16xf32>
    %cst_128 = arith.constant dense<0xFF800000> : vector<2x16xf32>
    %123 = vector.multi_reduction <maximumf>, %122, %cst_128 [2] : vector<2x16x16xf32> to vector<2x16xf32>
    %124 = vector.shape_cast %123 : vector<2x16xf32> to vector<2x16x1xf32>
    %125 = vector.broadcast %124 : vector<2x16x1xf32> to vector<2x16x16xf32>
    %126 = arith.subf %122, %125 : vector<2x16x16xf32>
    %127 = math.exp %126 : vector<2x16x16xf32>
    %cst_129 = arith.constant dense<0.000000e+00> : vector<2x16xf32>
    %128 = vector.multi_reduction <add>, %127, %cst_129 [2] : vector<2x16x16xf32> to vector<2x16xf32>
    %129 = vector.shape_cast %128 : vector<2x16xf32> to vector<2x16x1xf32>
    %130 = tpu.reciprocal %129 {approx = true} : vector<2x16x1xf32> -> vector<2x16x1xf32>
    %131 = arith.truncf %127 : vector<2x16x16xf32> to vector<2x16x16xbf16>
    %132 = vector.extract_strided_slice %93 {offsets = [0, 0, 8], sizes = [2, 16, 8], strides = [1, 1, 1]} : vector<2x16x32xbf16> to vector<2x16x8xbf16>
    %cst_130 = arith.constant dense<0.000000e+00> : vector<2x16x8xf32>
    %133 = tpu.matmul %131, %132, %cst_130 {dimension_numbers = #tpu.dot_dimension_numbers<[2], [1], [1], [2], [0, 0, 0, 1, 1, 2], [0], [0]>} : vector<2x16x16xbf16>, vector<2x16x8xbf16>, vector<2x16x8xf32> -> vector<2x16x8xf32>
    %134 = vector.broadcast %130 : vector<2x16x1xf32> to vector<2x16x8xf32>
    %135 = arith.mulf %133, %134 : vector<2x16x8xf32>
    %136 = vector.extract_strided_slice %91 {offsets = [0, 0, 16], sizes = [2, 16, 8], strides = [1, 1, 1]} : vector<2x16x32xbf16> to vector<2x16x8xbf16>
    %137 = vector.extract_strided_slice %92 {offsets = [0, 0, 16], sizes = [2, 16, 8], strides = [1, 1, 1]} : vector<2x16x32xbf16> to vector<2x16x8xbf16>
    %cst_131 = arith.constant dense<0.000000e+00> : vector<2x16x16xf32>
    %138 = tpu.matmul %136, %137, %cst_131 {dimension_numbers = #tpu.dot_dimension_numbers<[2], [2], [1], [1], [0, 0, 0, 1, 1, 1], [0], [0]>} : vector<2x16x8xbf16>, vector<2x16x8xbf16>, vector<2x16x16xf32> -> vector<2x16x16xf32>
    %139 = vector.extract_strided_slice %58 {offsets = [2, 0, 0], sizes = [1, 16, 16], strides = [1, 1, 1]} : vector<4x16x16xf32> to vector<1x16x16xf32>
    %140 = vector.shape_cast %139 : vector<1x16x16xf32> to vector<16x16xf32>
    %141 = vector.shape_cast %140 : vector<16x16xf32> to vector<1x16x16xf32>
    %142 = vector.broadcast %141 : vector<1x16x16xf32> to vector<2x16x16xf32>
    %143 = arith.addf %138, %142 : vector<2x16x16xf32>
    %cst_132 = arith.constant dense<0xFF800000> : vector<2x16xf32>
    %144 = vector.multi_reduction <maximumf>, %143, %cst_132 [2] : vector<2x16x16xf32> to vector<2x16xf32>
    %145 = vector.shape_cast %144 : vector<2x16xf32> to vector<2x16x1xf32>
    %146 = vector.broadcast %145 : vector<2x16x1xf32> to vector<2x16x16xf32>
    %147 = arith.subf %143, %146 : vector<2x16x16xf32>
    %148 = math.exp %147 : vector<2x16x16xf32>
    %cst_133 = arith.constant dense<0.000000e+00> : vector<2x16xf32>
    %149 = vector.multi_reduction <add>, %148, %cst_133 [2] : vector<2x16x16xf32> to vector<2x16xf32>
    %150 = vector.shape_cast %149 : vector<2x16xf32> to vector<2x16x1xf32>
    %151 = tpu.reciprocal %150 {approx = true} : vector<2x16x1xf32> -> vector<2x16x1xf32>
    %152 = arith.truncf %148 : vector<2x16x16xf32> to vector<2x16x16xbf16>
    %153 = vector.extract_strided_slice %93 {offsets = [0, 0, 16], sizes = [2, 16, 8], strides = [1, 1, 1]} : vector<2x16x32xbf16> to vector<2x16x8xbf16>
    %cst_134 = arith.constant dense<0.000000e+00> : vector<2x16x8xf32>
    %154 = tpu.matmul %152, %153, %cst_134 {dimension_numbers = #tpu.dot_dimension_numbers<[2], [1], [1], [2], [0, 0, 0, 1, 1, 2], [0], [0]>} : vector<2x16x16xbf16>, vector<2x16x8xbf16>, vector<2x16x8xf32> -> vector<2x16x8xf32>
    %155 = vector.broadcast %151 : vector<2x16x1xf32> to vector<2x16x8xf32>
    %156 = arith.mulf %154, %155 : vector<2x16x8xf32>
    %157 = vector.extract_strided_slice %91 {offsets = [0, 0, 24], sizes = [2, 16, 8], strides = [1, 1, 1]} : vector<2x16x32xbf16> to vector<2x16x8xbf16>
    %158 = vector.extract_strided_slice %92 {offsets = [0, 0, 24], sizes = [2, 16, 8], strides = [1, 1, 1]} : vector<2x16x32xbf16> to vector<2x16x8xbf16>
    %cst_135 = arith.constant dense<0.000000e+00> : vector<2x16x16xf32>
    %159 = tpu.matmul %157, %158, %cst_135 {dimension_numbers = #tpu.dot_dimension_numbers<[2], [2], [1], [1], [0, 0, 0, 1, 1, 1], [0], [0]>} : vector<2x16x8xbf16>, vector<2x16x8xbf16>, vector<2x16x16xf32> -> vector<2x16x16xf32>
    %160 = vector.extract_strided_slice %58 {offsets = [3, 0, 0], sizes = [1, 16, 16], strides = [1, 1, 1]} : vector<4x16x16xf32> to vector<1x16x16xf32>
    %161 = vector.shape_cast %160 : vector<1x16x16xf32> to vector<16x16xf32>
    %162 = vector.shape_cast %161 : vector<16x16xf32> to vector<1x16x16xf32>
    %163 = vector.broadcast %162 : vector<1x16x16xf32> to vector<2x16x16xf32>
    %164 = arith.addf %159, %163 : vector<2x16x16xf32>
    %cst_136 = arith.constant dense<0xFF800000> : vector<2x16xf32>
    %165 = vector.multi_reduction <maximumf>, %164, %cst_136 [2] : vector<2x16x16xf32> to vector<2x16xf32>
    %166 = vector.shape_cast %165 : vector<2x16xf32> to vector<2x16x1xf32>
    %167 = vector.broadcast %166 : vector<2x16x1xf32> to vector<2x16x16xf32>
    %168 = arith.subf %164, %167 : vector<2x16x16xf32>
    %169 = math.exp %168 : vector<2x16x16xf32>
    %cst_137 = arith.constant dense<0.000000e+00> : vector<2x16xf32>
    %170 = vector.multi_reduction <add>, %169, %cst_137 [2] : vector<2x16x16xf32> to vector<2x16xf32>
    %171 = vector.shape_cast %170 : vector<2x16xf32> to vector<2x16x1xf32>
    %172 = tpu.reciprocal %171 {approx = true} : vector<2x16x1xf32> -> vector<2x16x1xf32>
    %173 = arith.truncf %169 : vector<2x16x16xf32> to vector<2x16x16xbf16>
    %174 = vector.extract_strided_slice %93 {offsets = [0, 0, 24], sizes = [2, 16, 8], strides = [1, 1, 1]} : vector<2x16x32xbf16> to vector<2x16x8xbf16>
    %cst_138 = arith.constant dense<0.000000e+00> : vector<2x16x8xf32>
    %175 = tpu.matmul %173, %174, %cst_138 {dimension_numbers = #tpu.dot_dimension_numbers<[2], [1], [1], [2], [0, 0, 0, 1, 1, 2], [0], [0]>} : vector<2x16x16xbf16>, vector<2x16x8xbf16>, vector<2x16x8xf32> -> vector<2x16x8xf32>
    %176 = vector.broadcast %172 : vector<2x16x1xf32> to vector<2x16x8xf32>
    %177 = arith.mulf %175, %176 : vector<2x16x8xf32>
    %178 = tpu.concatenate %114, %135, %156, %177 in 2 : vector<2x16x8xf32>, vector<2x16x8xf32>, vector<2x16x8xf32>, vector<2x16x8xf32> -> vector<2x16x32xf32>
    %179 = vector.shape_cast %178 : vector<2x16x32xf32> to vector<32x32xf32>
    %180 = arith.truncf %179 : vector<32x32xf32> to vector<32x32xbf16>
    %cst_139 = arith.constant dense<0.000000e+00> : vector<32x32xf32>
    %181 = tpu.matmul %180, %4, %cst_139 {dimension_numbers = #tpu.dot_dimension_numbers<[1], [0], [0], [1], [0, 0, 1, 1], [], []>} : vector<32x32xbf16>, vector<32x32xbf16>, vector<32x32xf32> -> vector<32x32xf32>
    %182 = arith.addf %56, %181 : vector<32x32xf32>
    %183 = vector.broadcast %5 : vector<1x32xf32> to vector<32x32xf32>
    %184 = arith.addf %182, %183 : vector<32x32xf32>
    %cst_140 = arith.constant dense<0.000000e+00> : vector<32xf32>
    %185 = vector.multi_reduction <add>, %184, %cst_140 [1] : vector<32x32xf32> to vector<32xf32>
    %186 = vector.shape_cast %185 : vector<32xf32> to vector<32x1xf32>
    %cst_141 = arith.constant 3.200000e+01 : f32
    %187 = vector.broadcast %cst_141 : f32 to vector<32x1xf32>
    %188 = arith.divf %186, %187 : vector<32x1xf32>
    %189 = vector.broadcast %188 : vector<32x1xf32> to vector<32x32xf32>
    %190 = arith.subf %184, %189 : vector<32x32xf32>
    %191 = arith.mulf %190, %190 : vector<32x32xf32>
    %cst_142 = arith.constant dense<0.000000e+00> : vector<32xf32>
    %192 = vector.multi_reduction <add>, %191, %cst_142 [1] : vector<32x32xf32> to vector<32xf32>
    %193 = vector.shape_cast %192 : vector<32xf32> to vector<32x1xf32>
    %cst_143 = arith.constant 3.200000e+01 : f32
    %194 = vector.broadcast %cst_143 : f32 to vector<32x1xf32>
    %195 = arith.divf %193, %194 : vector<32x1xf32>
    %196 = vector.broadcast %188 : vector<32x1xf32> to vector<32x32xf32>
    %197 = arith.subf %184, %196 : vector<32x32xf32>
    %cst_144 = arith.constant 9.99999974E-6 : f32
    %198 = vector.broadcast %cst_144 : f32 to vector<32x1xf32>
    %199 = arith.addf %195, %198 : vector<32x1xf32>
    %200 = math.rsqrt %199 : vector<32x1xf32>
    %201 = vector.broadcast %200 : vector<32x1xf32> to vector<32x32xf32>
    %202 = arith.mulf %197, %201 : vector<32x32xf32>
    %203 = vector.broadcast %6 : vector<1x32xf32> to vector<32x32xf32>
    %204 = arith.mulf %202, %203 : vector<32x32xf32>
    %205 = vector.broadcast %7 : vector<1x32xf32> to vector<32x32xf32>
    %206 = arith.addf %204, %205 : vector<32x32xf32>
    %207 = arith.truncf %206 : vector<32x32xf32> to vector<32x32xbf16>
    %cst_145 = arith.constant dense<0.000000e+00> : vector<32x128xf32>
    %208 = tpu.matmul %207, %8, %cst_145 {dimension_numbers = #tpu.dot_dimension_numbers<[1], [0], [0], [1], [0, 0, 1, 1], [], []>} : vector<32x32xbf16>, vector<32x128xbf16>, vector<32x128xf32> -> vector<32x128xf32>
    %209 = vector.broadcast %9 : vector<1x128xf32> to vector<32x128xf32>
    %210 = arith.addf %208, %209 : vector<32x128xf32>
    %cst_146 = arith.constant 5.000000e-01 : f32
    %211 = vector.broadcast %cst_146 : f32 to vector<32x128xf32>
    %212 = arith.mulf %211, %210 : vector<32x128xf32>
    %cst_147 = arith.constant 4.471500e-02 : f32
    %213 = vector.broadcast %cst_147 : f32 to vector<32x128xf32>
    %214 = arith.mulf %213, %210 : vector<32x128xf32>
    %215 = arith.mulf %214, %210 : vector<32x128xf32>
    %216 = arith.mulf %215, %210 : vector<32x128xf32>
    %217 = arith.addf %210, %216 : vector<32x128xf32>
    %cst_148 = arith.constant 0.797884583 : f32
    %218 = vector.broadcast %cst_148 : f32 to vector<32x128xf32>
    %219 = arith.mulf %218, %217 : vector<32x128xf32>
    %220 = math.tanh %219 : vector<32x128xf32>
    %cst_149 = arith.constant 1.000000e+00 : f32
    %221 = vector.broadcast %cst_149 : f32 to vector<32x128xf32>
    %222 = arith.addf %221, %220 : vector<32x128xf32>
    %223 = arith.mulf %212, %222 : vector<32x128xf32>
    %224 = arith.truncf %223 : vector<32x128xf32> to vector<32x128xbf16>
    %cst_150 = arith.constant dense<0.000000e+00> : vector<32x32xf32>
    %225 = tpu.matmul %224, %10, %cst_150 {dimension_numbers = #tpu.dot_dimension_numbers<[1], [0], [0], [1], [0, 0, 1, 1], [], []>} : vector<32x128xbf16>, vector<128x32xbf16>, vector<32x32xf32> -> vector<32x32xf32>
    %226 = arith.addf %184, %225 : vector<32x32xf32>
    %227 = vector.broadcast %11 : vector<1x32xf32> to vector<32x32xf32>
    %228 = arith.addf %226, %227 : vector<32x32xf32>
    %c0_151 = arith.constant 0 : index
    %c0_152 = arith.constant 0 : index
    %c0_153 = arith.constant 0 : index
    %229 = vector.load %arg3[%c0_151, %c0_152, %c0_153] : memref<4x64x64xf32, #tpu.memory_space<vmem>>, vector<4x64x64xf32>
    %cst_154 = arith.constant dense<0.000000e+00> : vector<128xf32>
    %230 = vector.multi_reduction <add>, %57, %cst_154 [1] : vector<128x32xf32> to vector<128xf32>
    %231 = vector.shape_cast %230 : vector<128xf32> to vector<128x1xf32>
    %cst_155 = arith.constant 3.200000e+01 : f32
    %232 = vector.broadcast %cst_155 : f32 to vector<128x1xf32>
    %233 = arith.divf %231, %232 : vector<128x1xf32>
    %234 = vector.broadcast %233 : vector<128x1xf32> to vector<128x32xf32>
    %235 = arith.subf %57, %234 : vector<128x32xf32>
    %236 = arith.mulf %235, %235 : vector<128x32xf32>
    %cst_156 = arith.constant dense<0.000000e+00> : vector<128xf32>
    %237 = vector.multi_reduction <add>, %236, %cst_156 [1] : vector<128x32xf32> to vector<128xf32>
    %238 = vector.shape_cast %237 : vector<128xf32> to vector<128x1xf32>
    %cst_157 = arith.constant 3.200000e+01 : f32
    %239 = vector.broadcast %cst_157 : f32 to vector<128x1xf32>
    %240 = arith.divf %238, %239 : vector<128x1xf32>
    %241 = vector.broadcast %233 : vector<128x1xf32> to vector<128x32xf32>
    %242 = arith.subf %57, %241 : vector<128x32xf32>
    %cst_158 = arith.constant 9.99999974E-6 : f32
    %243 = vector.broadcast %cst_158 : f32 to vector<128x1xf32>
    %244 = arith.addf %240, %243 : vector<128x1xf32>
    %245 = math.rsqrt %244 : vector<128x1xf32>
    %246 = vector.broadcast %245 : vector<128x1xf32> to vector<128x32xf32>
    %247 = arith.mulf %242, %246 : vector<128x32xf32>
    %248 = vector.broadcast %12 : vector<1x32xf32> to vector<128x32xf32>
    %249 = arith.mulf %247, %248 : vector<128x32xf32>
    %250 = vector.broadcast %13 : vector<1x32xf32> to vector<128x32xf32>
    %251 = arith.addf %249, %250 : vector<128x32xf32>
    %252 = arith.truncf %251 : vector<128x32xf32> to vector<128x32xbf16>
    %cst_159 = arith.constant dense<0.000000e+00> : vector<128x96xf32>
    %253 = tpu.matmul %252, %14, %cst_159 {dimension_numbers = #tpu.dot_dimension_numbers<[1], [0], [0], [1], [0, 0, 1, 1], [], []>} : vector<128x32xbf16>, vector<32x96xbf16>, vector<128x96xf32> -> vector<128x96xf32>
    %254 = vector.broadcast %15 : vector<1x96xf32> to vector<128x96xf32>
    %255 = arith.addf %253, %254 : vector<128x96xf32>
    %256 = vector.extract_strided_slice %255 {offsets = [0, 0], sizes = [128, 32], strides = [1, 1]} : vector<128x96xf32> to vector<128x32xf32>
    %257 = vector.shape_cast %256 : vector<128x32xf32> to vector<2x64x32xf32>
    %258 = vector.extract_strided_slice %255 {offsets = [0, 32], sizes = [128, 32], strides = [1, 1]} : vector<128x96xf32> to vector<128x32xf32>
    %259 = vector.shape_cast %258 : vector<128x32xf32> to vector<2x64x32xf32>
    %260 = vector.extract_strided_slice %255 {offsets = [0, 64], sizes = [128, 32], strides = [1, 1]} : vector<128x96xf32> to vector<128x32xf32>
    %261 = vector.shape_cast %260 : vector<128x32xf32> to vector<2x64x32xf32>
    %262 = arith.truncf %257 : vector<2x64x32xf32> to vector<2x64x32xbf16>
    %263 = arith.truncf %259 : vector<2x64x32xf32> to vector<2x64x32xbf16>
    %264 = arith.truncf %261 : vector<2x64x32xf32> to vector<2x64x32xbf16>
    %265 = vector.extract_strided_slice %262 {offsets = [0, 0, 0], sizes = [2, 64, 8], strides = [1, 1, 1]} : vector<2x64x32xbf16> to vector<2x64x8xbf16>
    %266 = vector.extract_strided_slice %263 {offsets = [0, 0, 0], sizes = [2, 64, 8], strides = [1, 1, 1]} : vector<2x64x32xbf16> to vector<2x64x8xbf16>
    %cst_160 = arith.constant dense<0.000000e+00> : vector<2x64x64xf32>
    %267 = tpu.matmul %265, %266, %cst_160 {dimension_numbers = #tpu.dot_dimension_numbers<[2], [2], [1], [1], [0, 0, 0, 1, 1, 1], [0], [0]>} : vector<2x64x8xbf16>, vector<2x64x8xbf16>, vector<2x64x64xf32> -> vector<2x64x64xf32>
    %268 = vector.extract_strided_slice %229 {offsets = [0, 0, 0], sizes = [1, 64, 64], strides = [1, 1, 1]} : vector<4x64x64xf32> to vector<1x64x64xf32>
    %269 = vector.shape_cast %268 : vector<1x64x64xf32> to vector<64x64xf32>
    %270 = vector.shape_cast %269 : vector<64x64xf32> to vector<1x64x64xf32>
    %271 = vector.broadcast %270 : vector<1x64x64xf32> to vector<2x64x64xf32>
    %272 = arith.addf %267, %271 : vector<2x64x64xf32>
    %cst_161 = arith.constant dense<0xFF800000> : vector<2x64xf32>
    %273 = vector.multi_reduction <maximumf>, %272, %cst_161 [2] : vector<2x64x64xf32> to vector<2x64xf32>
    %274 = vector.shape_cast %273 : vector<2x64xf32> to vector<2x64x1xf32>
    %275 = vector.broadcast %274 : vector<2x64x1xf32> to vector<2x64x64xf32>
    %276 = arith.subf %272, %275 : vector<2x64x64xf32>
    %277 = math.exp %276 : vector<2x64x64xf32>
    %cst_162 = arith.constant dense<0.000000e+00> : vector<2x64xf32>
    %278 = vector.multi_reduction <add>, %277, %cst_162 [2] : vector<2x64x64xf32> to vector<2x64xf32>
    %279 = vector.shape_cast %278 : vector<2x64xf32> to vector<2x64x1xf32>
    %280 = tpu.reciprocal %279 {approx = true} : vector<2x64x1xf32> -> vector<2x64x1xf32>
    %281 = arith.truncf %277 : vector<2x64x64xf32> to vector<2x64x64xbf16>
    %282 = vector.extract_strided_slice %264 {offsets = [0, 0, 0], sizes = [2, 64, 8], strides = [1, 1, 1]} : vector<2x64x32xbf16> to vector<2x64x8xbf16>
    %cst_163 = arith.constant dense<0.000000e+00> : vector<2x64x8xf32>
    %283 = tpu.matmul %281, %282, %cst_163 {dimension_numbers = #tpu.dot_dimension_numbers<[2], [1], [1], [2], [0, 0, 0, 1, 1, 2], [0], [0]>} : vector<2x64x64xbf16>, vector<2x64x8xbf16>, vector<2x64x8xf32> -> vector<2x64x8xf32>
    %284 = vector.broadcast %280 : vector<2x64x1xf32> to vector<2x64x8xf32>
    %285 = arith.mulf %283, %284 : vector<2x64x8xf32>
    %286 = vector.extract_strided_slice %262 {offsets = [0, 0, 8], sizes = [2, 64, 8], strides = [1, 1, 1]} : vector<2x64x32xbf16> to vector<2x64x8xbf16>
    %287 = vector.extract_strided_slice %263 {offsets = [0, 0, 8], sizes = [2, 64, 8], strides = [1, 1, 1]} : vector<2x64x32xbf16> to vector<2x64x8xbf16>
    %cst_164 = arith.constant dense<0.000000e+00> : vector<2x64x64xf32>
    %288 = tpu.matmul %286, %287, %cst_164 {dimension_numbers = #tpu.dot_dimension_numbers<[2], [2], [1], [1], [0, 0, 0, 1, 1, 1], [0], [0]>} : vector<2x64x8xbf16>, vector<2x64x8xbf16>, vector<2x64x64xf32> -> vector<2x64x64xf32>
    %289 = vector.extract_strided_slice %229 {offsets = [1, 0, 0], sizes = [1, 64, 64], strides = [1, 1, 1]} : vector<4x64x64xf32> to vector<1x64x64xf32>
    %290 = vector.shape_cast %289 : vector<1x64x64xf32> to vector<64x64xf32>
    %291 = vector.shape_cast %290 : vector<64x64xf32> to vector<1x64x64xf32>
    %292 = vector.broadcast %291 : vector<1x64x64xf32> to vector<2x64x64xf32>
    %293 = arith.addf %288, %292 : vector<2x64x64xf32>
    %cst_165 = arith.constant dense<0xFF800000> : vector<2x64xf32>
    %294 = vector.multi_reduction <maximumf>, %293, %cst_165 [2] : vector<2x64x64xf32> to vector<2x64xf32>
    %295 = vector.shape_cast %294 : vector<2x64xf32> to vector<2x64x1xf32>
    %296 = vector.broadcast %295 : vector<2x64x1xf32> to vector<2x64x64xf32>
    %297 = arith.subf %293, %296 : vector<2x64x64xf32>
    %298 = math.exp %297 : vector<2x64x64xf32>
    %cst_166 = arith.constant dense<0.000000e+00> : vector<2x64xf32>
    %299 = vector.multi_reduction <add>, %298, %cst_166 [2] : vector<2x64x64xf32> to vector<2x64xf32>
    %300 = vector.shape_cast %299 : vector<2x64xf32> to vector<2x64x1xf32>
    %301 = tpu.reciprocal %300 {approx = true} : vector<2x64x1xf32> -> vector<2x64x1xf32>
    %302 = arith.truncf %298 : vector<2x64x64xf32> to vector<2x64x64xbf16>
    %303 = vector.extract_strided_slice %264 {offsets = [0, 0, 8], sizes = [2, 64, 8], strides = [1, 1, 1]} : vector<2x64x32xbf16> to vector<2x64x8xbf16>
    %cst_167 = arith.constant dense<0.000000e+00> : vector<2x64x8xf32>
    %304 = tpu.matmul %302, %303, %cst_167 {dimension_numbers = #tpu.dot_dimension_numbers<[2], [1], [1], [2], [0, 0, 0, 1, 1, 2], [0], [0]>} : vector<2x64x64xbf16>, vector<2x64x8xbf16>, vector<2x64x8xf32> -> vector<2x64x8xf32>
    %305 = vector.broadcast %301 : vector<2x64x1xf32> to vector<2x64x8xf32>
    %306 = arith.mulf %304, %305 : vector<2x64x8xf32>
    %307 = vector.extract_strided_slice %262 {offsets = [0, 0, 16], sizes = [2, 64, 8], strides = [1, 1, 1]} : vector<2x64x32xbf16> to vector<2x64x8xbf16>
    %308 = vector.extract_strided_slice %263 {offsets = [0, 0, 16], sizes = [2, 64, 8], strides = [1, 1, 1]} : vector<2x64x32xbf16> to vector<2x64x8xbf16>
    %cst_168 = arith.constant dense<0.000000e+00> : vector<2x64x64xf32>
    %309 = tpu.matmul %307, %308, %cst_168 {dimension_numbers = #tpu.dot_dimension_numbers<[2], [2], [1], [1], [0, 0, 0, 1, 1, 1], [0], [0]>} : vector<2x64x8xbf16>, vector<2x64x8xbf16>, vector<2x64x64xf32> -> vector<2x64x64xf32>
    %310 = vector.extract_strided_slice %229 {offsets = [2, 0, 0], sizes = [1, 64, 64], strides = [1, 1, 1]} : vector<4x64x64xf32> to vector<1x64x64xf32>
    %311 = vector.shape_cast %310 : vector<1x64x64xf32> to vector<64x64xf32>
    %312 = vector.shape_cast %311 : vector<64x64xf32> to vector<1x64x64xf32>
    %313 = vector.broadcast %312 : vector<1x64x64xf32> to vector<2x64x64xf32>
    %314 = arith.addf %309, %313 : vector<2x64x64xf32>
    %cst_169 = arith.constant dense<0xFF800000> : vector<2x64xf32>
    %315 = vector.multi_reduction <maximumf>, %314, %cst_169 [2] : vector<2x64x64xf32> to vector<2x64xf32>
    %316 = vector.shape_cast %315 : vector<2x64xf32> to vector<2x64x1xf32>
    %317 = vector.broadcast %316 : vector<2x64x1xf32> to vector<2x64x64xf32>
    %318 = arith.subf %314, %317 : vector<2x64x64xf32>
    %319 = math.exp %318 : vector<2x64x64xf32>
    %cst_170 = arith.constant dense<0.000000e+00> : vector<2x64xf32>
    %320 = vector.multi_reduction <add>, %319, %cst_170 [2] : vector<2x64x64xf32> to vector<2x64xf32>
    %321 = vector.shape_cast %320 : vector<2x64xf32> to vector<2x64x1xf32>
    %322 = tpu.reciprocal %321 {approx = true} : vector<2x64x1xf32> -> vector<2x64x1xf32>
    %323 = arith.truncf %319 : vector<2x64x64xf32> to vector<2x64x64xbf16>
    %324 = vector.extract_strided_slice %264 {offsets = [0, 0, 16], sizes = [2, 64, 8], strides = [1, 1, 1]} : vector<2x64x32xbf16> to vector<2x64x8xbf16>
    %cst_171 = arith.constant dense<0.000000e+00> : vector<2x64x8xf32>
    %325 = tpu.matmul %323, %324, %cst_171 {dimension_numbers = #tpu.dot_dimension_numbers<[2], [1], [1], [2], [0, 0, 0, 1, 1, 2], [0], [0]>} : vector<2x64x64xbf16>, vector<2x64x8xbf16>, vector<2x64x8xf32> -> vector<2x64x8xf32>
    %326 = vector.broadcast %322 : vector<2x64x1xf32> to vector<2x64x8xf32>
    %327 = arith.mulf %325, %326 : vector<2x64x8xf32>
    %328 = vector.extract_strided_slice %262 {offsets = [0, 0, 24], sizes = [2, 64, 8], strides = [1, 1, 1]} : vector<2x64x32xbf16> to vector<2x64x8xbf16>
    %329 = vector.extract_strided_slice %263 {offsets = [0, 0, 24], sizes = [2, 64, 8], strides = [1, 1, 1]} : vector<2x64x32xbf16> to vector<2x64x8xbf16>
    %cst_172 = arith.constant dense<0.000000e+00> : vector<2x64x64xf32>
    %330 = tpu.matmul %328, %329, %cst_172 {dimension_numbers = #tpu.dot_dimension_numbers<[2], [2], [1], [1], [0, 0, 0, 1, 1, 1], [0], [0]>} : vector<2x64x8xbf16>, vector<2x64x8xbf16>, vector<2x64x64xf32> -> vector<2x64x64xf32>
    %331 = vector.extract_strided_slice %229 {offsets = [3, 0, 0], sizes = [1, 64, 64], strides = [1, 1, 1]} : vector<4x64x64xf32> to vector<1x64x64xf32>
    %332 = vector.shape_cast %331 : vector<1x64x64xf32> to vector<64x64xf32>
    %333 = vector.shape_cast %332 : vector<64x64xf32> to vector<1x64x64xf32>
    %334 = vector.broadcast %333 : vector<1x64x64xf32> to vector<2x64x64xf32>
    %335 = arith.addf %330, %334 : vector<2x64x64xf32>
    %cst_173 = arith.constant dense<0xFF800000> : vector<2x64xf32>
    %336 = vector.multi_reduction <maximumf>, %335, %cst_173 [2] : vector<2x64x64xf32> to vector<2x64xf32>
    %337 = vector.shape_cast %336 : vector<2x64xf32> to vector<2x64x1xf32>
    %338 = vector.broadcast %337 : vector<2x64x1xf32> to vector<2x64x64xf32>
    %339 = arith.subf %335, %338 : vector<2x64x64xf32>
    %340 = math.exp %339 : vector<2x64x64xf32>
    %cst_174 = arith.constant dense<0.000000e+00> : vector<2x64xf32>
    %341 = vector.multi_reduction <add>, %340, %cst_174 [2] : vector<2x64x64xf32> to vector<2x64xf32>
    %342 = vector.shape_cast %341 : vector<2x64xf32> to vector<2x64x1xf32>
    %343 = tpu.reciprocal %342 {approx = true} : vector<2x64x1xf32> -> vector<2x64x1xf32>
    %344 = arith.truncf %340 : vector<2x64x64xf32> to vector<2x64x64xbf16>
    %345 = vector.extract_strided_slice %264 {offsets = [0, 0, 24], sizes = [2, 64, 8], strides = [1, 1, 1]} : vector<2x64x32xbf16> to vector<2x64x8xbf16>
    %cst_175 = arith.constant dense<0.000000e+00> : vector<2x64x8xf32>
    %346 = tpu.matmul %344, %345, %cst_175 {dimension_numbers = #tpu.dot_dimension_numbers<[2], [1], [1], [2], [0, 0, 0, 1, 1, 2], [0], [0]>} : vector<2x64x64xbf16>, vector<2x64x8xbf16>, vector<2x64x8xf32> -> vector<2x64x8xf32>
    %347 = vector.broadcast %343 : vector<2x64x1xf32> to vector<2x64x8xf32>
    %348 = arith.mulf %346, %347 : vector<2x64x8xf32>
    %349 = tpu.concatenate %285, %306, %327, %348 in 2 : vector<2x64x8xf32>, vector<2x64x8xf32>, vector<2x64x8xf32>, vector<2x64x8xf32> -> vector<2x64x32xf32>
    %350 = vector.shape_cast %349 : vector<2x64x32xf32> to vector<128x32xf32>
    %351 = arith.truncf %350 : vector<128x32xf32> to vector<128x32xbf16>
    %cst_176 = arith.constant dense<0.000000e+00> : vector<128x32xf32>
    %352 = tpu.matmul %351, %16, %cst_176 {dimension_numbers = #tpu.dot_dimension_numbers<[1], [0], [0], [1], [0, 0, 1, 1], [], []>} : vector<128x32xbf16>, vector<32x32xbf16>, vector<128x32xf32> -> vector<128x32xf32>
    %353 = arith.addf %57, %352 : vector<128x32xf32>
    %354 = vector.broadcast %17 : vector<1x32xf32> to vector<128x32xf32>
    %355 = arith.addf %353, %354 : vector<128x32xf32>
    %cst_177 = arith.constant dense<0.000000e+00> : vector<128xf32>
    %356 = vector.multi_reduction <add>, %355, %cst_177 [1] : vector<128x32xf32> to vector<128xf32>
    %357 = vector.shape_cast %356 : vector<128xf32> to vector<128x1xf32>
    %cst_178 = arith.constant 3.200000e+01 : f32
    %358 = vector.broadcast %cst_178 : f32 to vector<128x1xf32>
    %359 = arith.divf %357, %358 : vector<128x1xf32>
    %360 = vector.broadcast %359 : vector<128x1xf32> to vector<128x32xf32>
    %361 = arith.subf %355, %360 : vector<128x32xf32>
    %362 = arith.mulf %361, %361 : vector<128x32xf32>
    %cst_179 = arith.constant dense<0.000000e+00> : vector<128xf32>
    %363 = vector.multi_reduction <add>, %362, %cst_179 [1] : vector<128x32xf32> to vector<128xf32>
    %364 = vector.shape_cast %363 : vector<128xf32> to vector<128x1xf32>
    %cst_180 = arith.constant 3.200000e+01 : f32
    %365 = vector.broadcast %cst_180 : f32 to vector<128x1xf32>
    %366 = arith.divf %364, %365 : vector<128x1xf32>
    %367 = vector.broadcast %359 : vector<128x1xf32> to vector<128x32xf32>
    %368 = arith.subf %355, %367 : vector<128x32xf32>
    %cst_181 = arith.constant 9.99999974E-6 : f32
    %369 = vector.broadcast %cst_181 : f32 to vector<128x1xf32>
    %370 = arith.addf %366, %369 : vector<128x1xf32>
    %371 = math.rsqrt %370 : vector<128x1xf32>
    %372 = vector.broadcast %371 : vector<128x1xf32> to vector<128x32xf32>
    %373 = arith.mulf %368, %372 : vector<128x32xf32>
    %374 = vector.broadcast %18 : vector<1x32xf32> to vector<128x32xf32>
    %375 = arith.mulf %373, %374 : vector<128x32xf32>
    %376 = vector.broadcast %19 : vector<1x32xf32> to vector<128x32xf32>
    %377 = arith.addf %375, %376 : vector<128x32xf32>
    %378 = arith.truncf %377 : vector<128x32xf32> to vector<128x32xbf16>
    %cst_182 = arith.constant dense<0.000000e+00> : vector<128x128xf32>
    %379 = tpu.matmul %378, %20, %cst_182 {dimension_numbers = #tpu.dot_dimension_numbers<[1], [0], [0], [1], [0, 0, 1, 1], [], []>} : vector<128x32xbf16>, vector<32x128xbf16>, vector<128x128xf32> -> vector<128x128xf32>
    %380 = vector.broadcast %21 : vector<1x128xf32> to vector<128x128xf32>
    %381 = arith.addf %379, %380 : vector<128x128xf32>
    %cst_183 = arith.constant 5.000000e-01 : f32
    %382 = vector.broadcast %cst_183 : f32 to vector<128x128xf32>
    %383 = arith.mulf %382, %381 : vector<128x128xf32>
    %cst_184 = arith.constant 4.471500e-02 : f32
    %384 = vector.broadcast %cst_184 : f32 to vector<128x128xf32>
    %385 = arith.mulf %384, %381 : vector<128x128xf32>
    %386 = arith.mulf %385, %381 : vector<128x128xf32>
    %387 = arith.mulf %386, %381 : vector<128x128xf32>
    %388 = arith.addf %381, %387 : vector<128x128xf32>
    %cst_185 = arith.constant 0.797884583 : f32
    %389 = vector.broadcast %cst_185 : f32 to vector<128x128xf32>
    %390 = arith.mulf %389, %388 : vector<128x128xf32>
    %391 = math.tanh %390 : vector<128x128xf32>
    %cst_186 = arith.constant 1.000000e+00 : f32
    %392 = vector.broadcast %cst_186 : f32 to vector<128x128xf32>
    %393 = arith.addf %392, %391 : vector<128x128xf32>
    %394 = arith.mulf %383, %393 : vector<128x128xf32>
    %395 = arith.truncf %394 : vector<128x128xf32> to vector<128x128xbf16>
    %cst_187 = arith.constant dense<0.000000e+00> : vector<128x32xf32>
    %396 = tpu.matmul %395, %22, %cst_187 {dimension_numbers = #tpu.dot_dimension_numbers<[1], [0], [0], [1], [0, 0, 1, 1], [], []>} : vector<128x128xbf16>, vector<128x32xbf16>, vector<128x32xf32> -> vector<128x32xf32>
    %397 = arith.addf %355, %396 : vector<128x32xf32>
    %398 = vector.broadcast %23 : vector<1x32xf32> to vector<128x32xf32>
    %399 = arith.addf %397, %398 : vector<128x32xf32>
    %c0_188 = arith.constant 0 : index
    %c0_189 = arith.constant 0 : index
    %c0_190 = arith.constant 0 : index
    %400 = vector.load %arg4[%c0_188, %c0_189, %c0_190] : memref<4x16x64xf32, #tpu.memory_space<vmem>>, vector<4x16x64xf32>
    %cst_191 = arith.constant dense<0.000000e+00> : vector<32xf32>
    %401 = vector.multi_reduction <add>, %228, %cst_191 [1] : vector<32x32xf32> to vector<32xf32>
    %402 = vector.shape_cast %401 : vector<32xf32> to vector<32x1xf32>
    %cst_192 = arith.constant 3.200000e+01 : f32
    %403 = vector.broadcast %cst_192 : f32 to vector<32x1xf32>
    %404 = arith.divf %402, %403 : vector<32x1xf32>
    %405 = vector.broadcast %404 : vector<32x1xf32> to vector<32x32xf32>
    %406 = arith.subf %228, %405 : vector<32x32xf32>
    %407 = arith.mulf %406, %406 : vector<32x32xf32>
    %cst_193 = arith.constant dense<0.000000e+00> : vector<32xf32>
    %408 = vector.multi_reduction <add>, %407, %cst_193 [1] : vector<32x32xf32> to vector<32xf32>
    %409 = vector.shape_cast %408 : vector<32xf32> to vector<32x1xf32>
    %cst_194 = arith.constant 3.200000e+01 : f32
    %410 = vector.broadcast %cst_194 : f32 to vector<32x1xf32>
    %411 = arith.divf %409, %410 : vector<32x1xf32>
    %412 = vector.broadcast %404 : vector<32x1xf32> to vector<32x32xf32>
    %413 = arith.subf %228, %412 : vector<32x32xf32>
    %cst_195 = arith.constant 9.99999974E-6 : f32
    %414 = vector.broadcast %cst_195 : f32 to vector<32x1xf32>
    %415 = arith.addf %411, %414 : vector<32x1xf32>
    %416 = math.rsqrt %415 : vector<32x1xf32>
    %417 = vector.broadcast %416 : vector<32x1xf32> to vector<32x32xf32>
    %418 = arith.mulf %413, %417 : vector<32x32xf32>
    %419 = vector.broadcast %24 : vector<1x32xf32> to vector<32x32xf32>
    %420 = arith.mulf %418, %419 : vector<32x32xf32>
    %421 = vector.broadcast %25 : vector<1x32xf32> to vector<32x32xf32>
    %422 = arith.addf %420, %421 : vector<32x32xf32>
    %cst_196 = arith.constant dense<0.000000e+00> : vector<128xf32>
    %423 = vector.multi_reduction <add>, %399, %cst_196 [1] : vector<128x32xf32> to vector<128xf32>
    %424 = vector.shape_cast %423 : vector<128xf32> to vector<128x1xf32>
    %cst_197 = arith.constant 3.200000e+01 : f32
    %425 = vector.broadcast %cst_197 : f32 to vector<128x1xf32>
    %426 = arith.divf %424, %425 : vector<128x1xf32>
    %427 = vector.broadcast %426 : vector<128x1xf32> to vector<128x32xf32>
    %428 = arith.subf %399, %427 : vector<128x32xf32>
    %429 = arith.mulf %428, %428 : vector<128x32xf32>
    %cst_198 = arith.constant dense<0.000000e+00> : vector<128xf32>
    %430 = vector.multi_reduction <add>, %429, %cst_198 [1] : vector<128x32xf32> to vector<128xf32>
    %431 = vector.shape_cast %430 : vector<128xf32> to vector<128x1xf32>
    %cst_199 = arith.constant 3.200000e+01 : f32
    %432 = vector.broadcast %cst_199 : f32 to vector<128x1xf32>
    %433 = arith.divf %431, %432 : vector<128x1xf32>
    %434 = vector.broadcast %426 : vector<128x1xf32> to vector<128x32xf32>
    %435 = arith.subf %399, %434 : vector<128x32xf32>
    %cst_200 = arith.constant 9.99999974E-6 : f32
    %436 = vector.broadcast %cst_200 : f32 to vector<128x1xf32>
    %437 = arith.addf %433, %436 : vector<128x1xf32>
    %438 = math.rsqrt %437 : vector<128x1xf32>
    %439 = vector.broadcast %438 : vector<128x1xf32> to vector<128x32xf32>
    %440 = arith.mulf %435, %439 : vector<128x32xf32>
    %441 = vector.broadcast %26 : vector<1x32xf32> to vector<128x32xf32>
    %442 = arith.mulf %440, %441 : vector<128x32xf32>
    %443 = vector.broadcast %27 : vector<1x32xf32> to vector<128x32xf32>
    %444 = arith.addf %442, %443 : vector<128x32xf32>
    %445 = arith.truncf %422 : vector<32x32xf32> to vector<32x32xbf16>
    %cst_201 = arith.constant dense<0.000000e+00> : vector<32x32xf32>
    %446 = tpu.matmul %445, %28, %cst_201 {dimension_numbers = #tpu.dot_dimension_numbers<[1], [0], [0], [1], [0, 0, 1, 1], [], []>} : vector<32x32xbf16>, vector<32x32xbf16>, vector<32x32xf32> -> vector<32x32xf32>
    %447 = vector.broadcast %29 : vector<1x32xf32> to vector<32x32xf32>
    %448 = arith.addf %446, %447 : vector<32x32xf32>
    %449 = vector.shape_cast %448 : vector<32x32xf32> to vector<2x16x32xf32>
    %450 = arith.truncf %444 : vector<128x32xf32> to vector<128x32xbf16>
    %cst_202 = arith.constant dense<0.000000e+00> : vector<128x64xf32>
    %451 = tpu.matmul %450, %30, %cst_202 {dimension_numbers = #tpu.dot_dimension_numbers<[1], [0], [0], [1], [0, 0, 1, 1], [], []>} : vector<128x32xbf16>, vector<32x64xbf16>, vector<128x64xf32> -> vector<128x64xf32>
    %452 = vector.broadcast %31 : vector<1x64xf32> to vector<128x64xf32>
    %453 = arith.addf %451, %452 : vector<128x64xf32>
    %454 = vector.extract_strided_slice %453 {offsets = [0, 0], sizes = [128, 32], strides = [1, 1]} : vector<128x64xf32> to vector<128x32xf32>
    %455 = vector.shape_cast %454 : vector<128x32xf32> to vector<2x64x32xf32>
    %456 = vector.extract_strided_slice %453 {offsets = [0, 32], sizes = [128, 32], strides = [1, 1]} : vector<128x64xf32> to vector<128x32xf32>
    %457 = vector.shape_cast %456 : vector<128x32xf32> to vector<2x64x32xf32>
    %458 = arith.truncf %449 : vector<2x16x32xf32> to vector<2x16x32xbf16>
    %459 = arith.truncf %455 : vector<2x64x32xf32> to vector<2x64x32xbf16>
    %460 = arith.truncf %457 : vector<2x64x32xf32> to vector<2x64x32xbf16>
    %461 = vector.extract_strided_slice %458 {offsets = [0, 0, 0], sizes = [2, 16, 8], strides = [1, 1, 1]} : vector<2x16x32xbf16> to vector<2x16x8xbf16>
    %462 = vector.extract_strided_slice %459 {offsets = [0, 0, 0], sizes = [2, 64, 8], strides = [1, 1, 1]} : vector<2x64x32xbf16> to vector<2x64x8xbf16>
    %cst_203 = arith.constant dense<0.000000e+00> : vector<2x16x64xf32>
    %463 = tpu.matmul %461, %462, %cst_203 {dimension_numbers = #tpu.dot_dimension_numbers<[2], [2], [1], [1], [0, 0, 0, 1, 1, 1], [0], [0]>} : vector<2x16x8xbf16>, vector<2x64x8xbf16>, vector<2x16x64xf32> -> vector<2x16x64xf32>
    %464 = vector.extract_strided_slice %400 {offsets = [0, 0, 0], sizes = [1, 16, 64], strides = [1, 1, 1]} : vector<4x16x64xf32> to vector<1x16x64xf32>
    %465 = vector.shape_cast %464 : vector<1x16x64xf32> to vector<16x64xf32>
    %466 = vector.shape_cast %465 : vector<16x64xf32> to vector<1x16x64xf32>
    %467 = vector.broadcast %466 : vector<1x16x64xf32> to vector<2x16x64xf32>
    %468 = arith.addf %463, %467 : vector<2x16x64xf32>
    %cst_204 = arith.constant dense<0xFF800000> : vector<2x16xf32>
    %469 = vector.multi_reduction <maximumf>, %468, %cst_204 [2] : vector<2x16x64xf32> to vector<2x16xf32>
    %470 = vector.shape_cast %469 : vector<2x16xf32> to vector<2x16x1xf32>
    %471 = vector.broadcast %470 : vector<2x16x1xf32> to vector<2x16x64xf32>
    %472 = arith.subf %468, %471 : vector<2x16x64xf32>
    %473 = math.exp %472 : vector<2x16x64xf32>
    %cst_205 = arith.constant dense<0.000000e+00> : vector<2x16xf32>
    %474 = vector.multi_reduction <add>, %473, %cst_205 [2] : vector<2x16x64xf32> to vector<2x16xf32>
    %475 = vector.shape_cast %474 : vector<2x16xf32> to vector<2x16x1xf32>
    %476 = tpu.reciprocal %475 {approx = true} : vector<2x16x1xf32> -> vector<2x16x1xf32>
    %477 = arith.truncf %473 : vector<2x16x64xf32> to vector<2x16x64xbf16>
    %478 = vector.extract_strided_slice %460 {offsets = [0, 0, 0], sizes = [2, 64, 8], strides = [1, 1, 1]} : vector<2x64x32xbf16> to vector<2x64x8xbf16>
    %cst_206 = arith.constant dense<0.000000e+00> : vector<2x16x8xf32>
    %479 = tpu.matmul %477, %478, %cst_206 {dimension_numbers = #tpu.dot_dimension_numbers<[2], [1], [1], [2], [0, 0, 0, 1, 1, 2], [0], [0]>} : vector<2x16x64xbf16>, vector<2x64x8xbf16>, vector<2x16x8xf32> -> vector<2x16x8xf32>
    %480 = vector.broadcast %476 : vector<2x16x1xf32> to vector<2x16x8xf32>
    %481 = arith.mulf %479, %480 : vector<2x16x8xf32>
    %482 = vector.extract_strided_slice %458 {offsets = [0, 0, 8], sizes = [2, 16, 8], strides = [1, 1, 1]} : vector<2x16x32xbf16> to vector<2x16x8xbf16>
    %483 = vector.extract_strided_slice %459 {offsets = [0, 0, 8], sizes = [2, 64, 8], strides = [1, 1, 1]} : vector<2x64x32xbf16> to vector<2x64x8xbf16>
    %cst_207 = arith.constant dense<0.000000e+00> : vector<2x16x64xf32>
    %484 = tpu.matmul %482, %483, %cst_207 {dimension_numbers = #tpu.dot_dimension_numbers<[2], [2], [1], [1], [0, 0, 0, 1, 1, 1], [0], [0]>} : vector<2x16x8xbf16>, vector<2x64x8xbf16>, vector<2x16x64xf32> -> vector<2x16x64xf32>
    %485 = vector.extract_strided_slice %400 {offsets = [1, 0, 0], sizes = [1, 16, 64], strides = [1, 1, 1]} : vector<4x16x64xf32> to vector<1x16x64xf32>
    %486 = vector.shape_cast %485 : vector<1x16x64xf32> to vector<16x64xf32>
    %487 = vector.shape_cast %486 : vector<16x64xf32> to vector<1x16x64xf32>
    %488 = vector.broadcast %487 : vector<1x16x64xf32> to vector<2x16x64xf32>
    %489 = arith.addf %484, %488 : vector<2x16x64xf32>
    %cst_208 = arith.constant dense<0xFF800000> : vector<2x16xf32>
    %490 = vector.multi_reduction <maximumf>, %489, %cst_208 [2] : vector<2x16x64xf32> to vector<2x16xf32>
    %491 = vector.shape_cast %490 : vector<2x16xf32> to vector<2x16x1xf32>
    %492 = vector.broadcast %491 : vector<2x16x1xf32> to vector<2x16x64xf32>
    %493 = arith.subf %489, %492 : vector<2x16x64xf32>
    %494 = math.exp %493 : vector<2x16x64xf32>
    %cst_209 = arith.constant dense<0.000000e+00> : vector<2x16xf32>
    %495 = vector.multi_reduction <add>, %494, %cst_209 [2] : vector<2x16x64xf32> to vector<2x16xf32>
    %496 = vector.shape_cast %495 : vector<2x16xf32> to vector<2x16x1xf32>
    %497 = tpu.reciprocal %496 {approx = true} : vector<2x16x1xf32> -> vector<2x16x1xf32>
    %498 = arith.truncf %494 : vector<2x16x64xf32> to vector<2x16x64xbf16>
    %499 = vector.extract_strided_slice %460 {offsets = [0, 0, 8], sizes = [2, 64, 8], strides = [1, 1, 1]} : vector<2x64x32xbf16> to vector<2x64x8xbf16>
    %cst_210 = arith.constant dense<0.000000e+00> : vector<2x16x8xf32>
    %500 = tpu.matmul %498, %499, %cst_210 {dimension_numbers = #tpu.dot_dimension_numbers<[2], [1], [1], [2], [0, 0, 0, 1, 1, 2], [0], [0]>} : vector<2x16x64xbf16>, vector<2x64x8xbf16>, vector<2x16x8xf32> -> vector<2x16x8xf32>
    %501 = vector.broadcast %497 : vector<2x16x1xf32> to vector<2x16x8xf32>
    %502 = arith.mulf %500, %501 : vector<2x16x8xf32>
    %503 = vector.extract_strided_slice %458 {offsets = [0, 0, 16], sizes = [2, 16, 8], strides = [1, 1, 1]} : vector<2x16x32xbf16> to vector<2x16x8xbf16>
    %504 = vector.extract_strided_slice %459 {offsets = [0, 0, 16], sizes = [2, 64, 8], strides = [1, 1, 1]} : vector<2x64x32xbf16> to vector<2x64x8xbf16>
    %cst_211 = arith.constant dense<0.000000e+00> : vector<2x16x64xf32>
    %505 = tpu.matmul %503, %504, %cst_211 {dimension_numbers = #tpu.dot_dimension_numbers<[2], [2], [1], [1], [0, 0, 0, 1, 1, 1], [0], [0]>} : vector<2x16x8xbf16>, vector<2x64x8xbf16>, vector<2x16x64xf32> -> vector<2x16x64xf32>
    %506 = vector.extract_strided_slice %400 {offsets = [2, 0, 0], sizes = [1, 16, 64], strides = [1, 1, 1]} : vector<4x16x64xf32> to vector<1x16x64xf32>
    %507 = vector.shape_cast %506 : vector<1x16x64xf32> to vector<16x64xf32>
    %508 = vector.shape_cast %507 : vector<16x64xf32> to vector<1x16x64xf32>
    %509 = vector.broadcast %508 : vector<1x16x64xf32> to vector<2x16x64xf32>
    %510 = arith.addf %505, %509 : vector<2x16x64xf32>
    %cst_212 = arith.constant dense<0xFF800000> : vector<2x16xf32>
    %511 = vector.multi_reduction <maximumf>, %510, %cst_212 [2] : vector<2x16x64xf32> to vector<2x16xf32>
    %512 = vector.shape_cast %511 : vector<2x16xf32> to vector<2x16x1xf32>
    %513 = vector.broadcast %512 : vector<2x16x1xf32> to vector<2x16x64xf32>
    %514 = arith.subf %510, %513 : vector<2x16x64xf32>
    %515 = math.exp %514 : vector<2x16x64xf32>
    %cst_213 = arith.constant dense<0.000000e+00> : vector<2x16xf32>
    %516 = vector.multi_reduction <add>, %515, %cst_213 [2] : vector<2x16x64xf32> to vector<2x16xf32>
    %517 = vector.shape_cast %516 : vector<2x16xf32> to vector<2x16x1xf32>
    %518 = tpu.reciprocal %517 {approx = true} : vector<2x16x1xf32> -> vector<2x16x1xf32>
    %519 = arith.truncf %515 : vector<2x16x64xf32> to vector<2x16x64xbf16>
    %520 = vector.extract_strided_slice %460 {offsets = [0, 0, 16], sizes = [2, 64, 8], strides = [1, 1, 1]} : vector<2x64x32xbf16> to vector<2x64x8xbf16>
    %cst_214 = arith.constant dense<0.000000e+00> : vector<2x16x8xf32>
    %521 = tpu.matmul %519, %520, %cst_214 {dimension_numbers = #tpu.dot_dimension_numbers<[2], [1], [1], [2], [0, 0, 0, 1, 1, 2], [0], [0]>} : vector<2x16x64xbf16>, vector<2x64x8xbf16>, vector<2x16x8xf32> -> vector<2x16x8xf32>
    %522 = vector.broadcast %518 : vector<2x16x1xf32> to vector<2x16x8xf32>
    %523 = arith.mulf %521, %522 : vector<2x16x8xf32>
    %524 = vector.extract_strided_slice %458 {offsets = [0, 0, 24], sizes = [2, 16, 8], strides = [1, 1, 1]} : vector<2x16x32xbf16> to vector<2x16x8xbf16>
    %525 = vector.extract_strided_slice %459 {offsets = [0, 0, 24], sizes = [2, 64, 8], strides = [1, 1, 1]} : vector<2x64x32xbf16> to vector<2x64x8xbf16>
    %cst_215 = arith.constant dense<0.000000e+00> : vector<2x16x64xf32>
    %526 = tpu.matmul %524, %525, %cst_215 {dimension_numbers = #tpu.dot_dimension_numbers<[2], [2], [1], [1], [0, 0, 0, 1, 1, 1], [0], [0]>} : vector<2x16x8xbf16>, vector<2x64x8xbf16>, vector<2x16x64xf32> -> vector<2x16x64xf32>
    %527 = vector.extract_strided_slice %400 {offsets = [3, 0, 0], sizes = [1, 16, 64], strides = [1, 1, 1]} : vector<4x16x64xf32> to vector<1x16x64xf32>
    %528 = vector.shape_cast %527 : vector<1x16x64xf32> to vector<16x64xf32>
    %529 = vector.shape_cast %528 : vector<16x64xf32> to vector<1x16x64xf32>
    %530 = vector.broadcast %529 : vector<1x16x64xf32> to vector<2x16x64xf32>
    %531 = arith.addf %526, %530 : vector<2x16x64xf32>
    %cst_216 = arith.constant dense<0xFF800000> : vector<2x16xf32>
    %532 = vector.multi_reduction <maximumf>, %531, %cst_216 [2] : vector<2x16x64xf32> to vector<2x16xf32>
    %533 = vector.shape_cast %532 : vector<2x16xf32> to vector<2x16x1xf32>
    %534 = vector.broadcast %533 : vector<2x16x1xf32> to vector<2x16x64xf32>
    %535 = arith.subf %531, %534 : vector<2x16x64xf32>
    %536 = math.exp %535 : vector<2x16x64xf32>
    %cst_217 = arith.constant dense<0.000000e+00> : vector<2x16xf32>
    %537 = vector.multi_reduction <add>, %536, %cst_217 [2] : vector<2x16x64xf32> to vector<2x16xf32>
    %538 = vector.shape_cast %537 : vector<2x16xf32> to vector<2x16x1xf32>
    %539 = tpu.reciprocal %538 {approx = true} : vector<2x16x1xf32> -> vector<2x16x1xf32>
    %540 = arith.truncf %536 : vector<2x16x64xf32> to vector<2x16x64xbf16>
    %541 = vector.extract_strided_slice %460 {offsets = [0, 0, 24], sizes = [2, 64, 8], strides = [1, 1, 1]} : vector<2x64x32xbf16> to vector<2x64x8xbf16>
    %cst_218 = arith.constant dense<0.000000e+00> : vector<2x16x8xf32>
    %542 = tpu.matmul %540, %541, %cst_218 {dimension_numbers = #tpu.dot_dimension_numbers<[2], [1], [1], [2], [0, 0, 0, 1, 1, 2], [0], [0]>} : vector<2x16x64xbf16>, vector<2x64x8xbf16>, vector<2x16x8xf32> -> vector<2x16x8xf32>
    %543 = vector.broadcast %539 : vector<2x16x1xf32> to vector<2x16x8xf32>
    %544 = arith.mulf %542, %543 : vector<2x16x8xf32>
    %545 = tpu.concatenate %481, %502, %523, %544 in 2 : vector<2x16x8xf32>, vector<2x16x8xf32>, vector<2x16x8xf32>, vector<2x16x8xf32> -> vector<2x16x32xf32>
    %546 = vector.shape_cast %545 : vector<2x16x32xf32> to vector<32x32xf32>
    %547 = arith.truncf %546 : vector<32x32xf32> to vector<32x32xbf16>
    %cst_219 = arith.constant dense<0.000000e+00> : vector<32x32xf32>
    %548 = tpu.matmul %547, %32, %cst_219 {dimension_numbers = #tpu.dot_dimension_numbers<[1], [0], [0], [1], [0, 0, 1, 1], [], []>} : vector<32x32xbf16>, vector<32x32xbf16>, vector<32x32xf32> -> vector<32x32xf32>
    %549 = arith.addf %228, %548 : vector<32x32xf32>
    %550 = vector.broadcast %33 : vector<1x32xf32> to vector<32x32xf32>
    %551 = arith.addf %549, %550 : vector<32x32xf32>
    %cst_220 = arith.constant dense<0.000000e+00> : vector<32xf32>
    %552 = vector.multi_reduction <add>, %551, %cst_220 [1] : vector<32x32xf32> to vector<32xf32>
    %553 = vector.shape_cast %552 : vector<32xf32> to vector<32x1xf32>
    %cst_221 = arith.constant 3.200000e+01 : f32
    %554 = vector.broadcast %cst_221 : f32 to vector<32x1xf32>
    %555 = arith.divf %553, %554 : vector<32x1xf32>
    %556 = vector.broadcast %555 : vector<32x1xf32> to vector<32x32xf32>
    %557 = arith.subf %551, %556 : vector<32x32xf32>
    %558 = arith.mulf %557, %557 : vector<32x32xf32>
    %cst_222 = arith.constant dense<0.000000e+00> : vector<32xf32>
    %559 = vector.multi_reduction <add>, %558, %cst_222 [1] : vector<32x32xf32> to vector<32xf32>
    %560 = vector.shape_cast %559 : vector<32xf32> to vector<32x1xf32>
    %cst_223 = arith.constant 3.200000e+01 : f32
    %561 = vector.broadcast %cst_223 : f32 to vector<32x1xf32>
    %562 = arith.divf %560, %561 : vector<32x1xf32>
    %563 = vector.broadcast %555 : vector<32x1xf32> to vector<32x32xf32>
    %564 = arith.subf %551, %563 : vector<32x32xf32>
    %cst_224 = arith.constant 9.99999974E-6 : f32
    %565 = vector.broadcast %cst_224 : f32 to vector<32x1xf32>
    %566 = arith.addf %562, %565 : vector<32x1xf32>
    %567 = math.rsqrt %566 : vector<32x1xf32>
    %568 = vector.broadcast %567 : vector<32x1xf32> to vector<32x32xf32>
    %569 = arith.mulf %564, %568 : vector<32x32xf32>
    %570 = vector.broadcast %34 : vector<1x32xf32> to vector<32x32xf32>
    %571 = arith.mulf %569, %570 : vector<32x32xf32>
    %572 = vector.broadcast %35 : vector<1x32xf32> to vector<32x32xf32>
    %573 = arith.addf %571, %572 : vector<32x32xf32>
    %574 = arith.truncf %573 : vector<32x32xf32> to vector<32x32xbf16>
    %cst_225 = arith.constant dense<0.000000e+00> : vector<32x128xf32>
    %575 = tpu.matmul %574, %36, %cst_225 {dimension_numbers = #tpu.dot_dimension_numbers<[1], [0], [0], [1], [0, 0, 1, 1], [], []>} : vector<32x32xbf16>, vector<32x128xbf16>, vector<32x128xf32> -> vector<32x128xf32>
    %576 = vector.broadcast %37 : vector<1x128xf32> to vector<32x128xf32>
    %577 = arith.addf %575, %576 : vector<32x128xf32>
    %cst_226 = arith.constant 5.000000e-01 : f32
    %578 = vector.broadcast %cst_226 : f32 to vector<32x128xf32>
    %579 = arith.mulf %578, %577 : vector<32x128xf32>
    %cst_227 = arith.constant 4.471500e-02 : f32
    %580 = vector.broadcast %cst_227 : f32 to vector<32x128xf32>
    %581 = arith.mulf %580, %577 : vector<32x128xf32>
    %582 = arith.mulf %581, %577 : vector<32x128xf32>
    %583 = arith.mulf %582, %577 : vector<32x128xf32>
    %584 = arith.addf %577, %583 : vector<32x128xf32>
    %cst_228 = arith.constant 0.797884583 : f32
    %585 = vector.broadcast %cst_228 : f32 to vector<32x128xf32>
    %586 = arith.mulf %585, %584 : vector<32x128xf32>
    %587 = math.tanh %586 : vector<32x128xf32>
    %cst_229 = arith.constant 1.000000e+00 : f32
    %588 = vector.broadcast %cst_229 : f32 to vector<32x128xf32>
    %589 = arith.addf %588, %587 : vector<32x128xf32>
    %590 = arith.mulf %579, %589 : vector<32x128xf32>
    %591 = arith.truncf %590 : vector<32x128xf32> to vector<32x128xbf16>
    %cst_230 = arith.constant dense<0.000000e+00> : vector<32x32xf32>
    %592 = tpu.matmul %591, %38, %cst_230 {dimension_numbers = #tpu.dot_dimension_numbers<[1], [0], [0], [1], [0, 0, 1, 1], [], []>} : vector<32x128xbf16>, vector<128x32xbf16>, vector<32x32xf32> -> vector<32x32xf32>
    %593 = arith.addf %551, %592 : vector<32x32xf32>
    %594 = vector.broadcast %39 : vector<1x32xf32> to vector<32x32xf32>
    %595 = arith.addf %593, %594 : vector<32x32xf32>
    %c0_231 = arith.constant 0 : index
    %c0_232 = arith.constant 0 : index
    %c0_233 = arith.constant 0 : index
    %596 = vector.load %arg5[%c0_231, %c0_232, %c0_233] : memref<4x64x16xf32, #tpu.memory_space<vmem>>, vector<4x64x16xf32>
    %cst_234 = arith.constant dense<0.000000e+00> : vector<128xf32>
    %597 = vector.multi_reduction <add>, %399, %cst_234 [1] : vector<128x32xf32> to vector<128xf32>
    %598 = vector.shape_cast %597 : vector<128xf32> to vector<128x1xf32>
    %cst_235 = arith.constant 3.200000e+01 : f32
    %599 = vector.broadcast %cst_235 : f32 to vector<128x1xf32>
    %600 = arith.divf %598, %599 : vector<128x1xf32>
    %601 = vector.broadcast %600 : vector<128x1xf32> to vector<128x32xf32>
    %602 = arith.subf %399, %601 : vector<128x32xf32>
    %603 = arith.mulf %602, %602 : vector<128x32xf32>
    %cst_236 = arith.constant dense<0.000000e+00> : vector<128xf32>
    %604 = vector.multi_reduction <add>, %603, %cst_236 [1] : vector<128x32xf32> to vector<128xf32>
    %605 = vector.shape_cast %604 : vector<128xf32> to vector<128x1xf32>
    %cst_237 = arith.constant 3.200000e+01 : f32
    %606 = vector.broadcast %cst_237 : f32 to vector<128x1xf32>
    %607 = arith.divf %605, %606 : vector<128x1xf32>
    %608 = vector.broadcast %600 : vector<128x1xf32> to vector<128x32xf32>
    %609 = arith.subf %399, %608 : vector<128x32xf32>
    %cst_238 = arith.constant 9.99999974E-6 : f32
    %610 = vector.broadcast %cst_238 : f32 to vector<128x1xf32>
    %611 = arith.addf %607, %610 : vector<128x1xf32>
    %612 = math.rsqrt %611 : vector<128x1xf32>
    %613 = vector.broadcast %612 : vector<128x1xf32> to vector<128x32xf32>
    %614 = arith.mulf %609, %613 : vector<128x32xf32>
    %615 = vector.broadcast %40 : vector<1x32xf32> to vector<128x32xf32>
    %616 = arith.mulf %614, %615 : vector<128x32xf32>
    %617 = vector.broadcast %41 : vector<1x32xf32> to vector<128x32xf32>
    %618 = arith.addf %616, %617 : vector<128x32xf32>
    %cst_239 = arith.constant dense<0.000000e+00> : vector<32xf32>
    %619 = vector.multi_reduction <add>, %228, %cst_239 [1] : vector<32x32xf32> to vector<32xf32>
    %620 = vector.shape_cast %619 : vector<32xf32> to vector<32x1xf32>
    %cst_240 = arith.constant 3.200000e+01 : f32
    %621 = vector.broadcast %cst_240 : f32 to vector<32x1xf32>
    %622 = arith.divf %620, %621 : vector<32x1xf32>
    %623 = vector.broadcast %622 : vector<32x1xf32> to vector<32x32xf32>
    %624 = arith.subf %228, %623 : vector<32x32xf32>
    %625 = arith.mulf %624, %624 : vector<32x32xf32>
    %cst_241 = arith.constant dense<0.000000e+00> : vector<32xf32>
    %626 = vector.multi_reduction <add>, %625, %cst_241 [1] : vector<32x32xf32> to vector<32xf32>
    %627 = vector.shape_cast %626 : vector<32xf32> to vector<32x1xf32>
    %cst_242 = arith.constant 3.200000e+01 : f32
    %628 = vector.broadcast %cst_242 : f32 to vector<32x1xf32>
    %629 = arith.divf %627, %628 : vector<32x1xf32>
    %630 = vector.broadcast %622 : vector<32x1xf32> to vector<32x32xf32>
    %631 = arith.subf %228, %630 : vector<32x32xf32>
    %cst_243 = arith.constant 9.99999974E-6 : f32
    %632 = vector.broadcast %cst_243 : f32 to vector<32x1xf32>
    %633 = arith.addf %629, %632 : vector<32x1xf32>
    %634 = math.rsqrt %633 : vector<32x1xf32>
    %635 = vector.broadcast %634 : vector<32x1xf32> to vector<32x32xf32>
    %636 = arith.mulf %631, %635 : vector<32x32xf32>
    %637 = vector.broadcast %42 : vector<1x32xf32> to vector<32x32xf32>
    %638 = arith.mulf %636, %637 : vector<32x32xf32>
    %639 = vector.broadcast %43 : vector<1x32xf32> to vector<32x32xf32>
    %640 = arith.addf %638, %639 : vector<32x32xf32>
    %641 = arith.truncf %618 : vector<128x32xf32> to vector<128x32xbf16>
    %cst_244 = arith.constant dense<0.000000e+00> : vector<128x32xf32>
    %642 = tpu.matmul %641, %44, %cst_244 {dimension_numbers = #tpu.dot_dimension_numbers<[1], [0], [0], [1], [0, 0, 1, 1], [], []>} : vector<128x32xbf16>, vector<32x32xbf16>, vector<128x32xf32> -> vector<128x32xf32>
    %643 = vector.broadcast %45 : vector<1x32xf32> to vector<128x32xf32>
    %644 = arith.addf %642, %643 : vector<128x32xf32>
    %645 = vector.shape_cast %644 : vector<128x32xf32> to vector<2x64x32xf32>
    %646 = arith.truncf %640 : vector<32x32xf32> to vector<32x32xbf16>
    %cst_245 = arith.constant dense<0.000000e+00> : vector<32x64xf32>
    %647 = tpu.matmul %646, %46, %cst_245 {dimension_numbers = #tpu.dot_dimension_numbers<[1], [0], [0], [1], [0, 0, 1, 1], [], []>} : vector<32x32xbf16>, vector<32x64xbf16>, vector<32x64xf32> -> vector<32x64xf32>
    %648 = vector.broadcast %47 : vector<1x64xf32> to vector<32x64xf32>
    %649 = arith.addf %647, %648 : vector<32x64xf32>
    %650 = vector.extract_strided_slice %649 {offsets = [0, 0], sizes = [32, 32], strides = [1, 1]} : vector<32x64xf32> to vector<32x32xf32>
    %651 = vector.shape_cast %650 : vector<32x32xf32> to vector<2x16x32xf32>
    %652 = vector.extract_strided_slice %649 {offsets = [0, 32], sizes = [32, 32], strides = [1, 1]} : vector<32x64xf32> to vector<32x32xf32>
    %653 = vector.shape_cast %652 : vector<32x32xf32> to vector<2x16x32xf32>
    %654 = arith.truncf %645 : vector<2x64x32xf32> to vector<2x64x32xbf16>
    %655 = arith.truncf %651 : vector<2x16x32xf32> to vector<2x16x32xbf16>
    %656 = arith.truncf %653 : vector<2x16x32xf32> to vector<2x16x32xbf16>
    %657 = vector.extract_strided_slice %654 {offsets = [0, 0, 0], sizes = [2, 64, 8], strides = [1, 1, 1]} : vector<2x64x32xbf16> to vector<2x64x8xbf16>
    %658 = vector.extract_strided_slice %655 {offsets = [0, 0, 0], sizes = [2, 16, 8], strides = [1, 1, 1]} : vector<2x16x32xbf16> to vector<2x16x8xbf16>
    %cst_246 = arith.constant dense<0.000000e+00> : vector<2x64x16xf32>
    %659 = tpu.matmul %657, %658, %cst_246 {dimension_numbers = #tpu.dot_dimension_numbers<[2], [2], [1], [1], [0, 0, 0, 1, 1, 1], [0], [0]>} : vector<2x64x8xbf16>, vector<2x16x8xbf16>, vector<2x64x16xf32> -> vector<2x64x16xf32>
    %660 = vector.extract_strided_slice %596 {offsets = [0, 0, 0], sizes = [1, 64, 16], strides = [1, 1, 1]} : vector<4x64x16xf32> to vector<1x64x16xf32>
    %661 = vector.shape_cast %660 : vector<1x64x16xf32> to vector<64x16xf32>
    %662 = vector.shape_cast %661 : vector<64x16xf32> to vector<1x64x16xf32>
    %663 = vector.broadcast %662 : vector<1x64x16xf32> to vector<2x64x16xf32>
    %664 = arith.addf %659, %663 : vector<2x64x16xf32>
    %cst_247 = arith.constant dense<0xFF800000> : vector<2x64xf32>
    %665 = vector.multi_reduction <maximumf>, %664, %cst_247 [2] : vector<2x64x16xf32> to vector<2x64xf32>
    %666 = vector.shape_cast %665 : vector<2x64xf32> to vector<2x64x1xf32>
    %667 = vector.broadcast %666 : vector<2x64x1xf32> to vector<2x64x16xf32>
    %668 = arith.subf %664, %667 : vector<2x64x16xf32>
    %669 = math.exp %668 : vector<2x64x16xf32>
    %cst_248 = arith.constant dense<0.000000e+00> : vector<2x64xf32>
    %670 = vector.multi_reduction <add>, %669, %cst_248 [2] : vector<2x64x16xf32> to vector<2x64xf32>
    %671 = vector.shape_cast %670 : vector<2x64xf32> to vector<2x64x1xf32>
    %672 = tpu.reciprocal %671 {approx = true} : vector<2x64x1xf32> -> vector<2x64x1xf32>
    %673 = arith.truncf %669 : vector<2x64x16xf32> to vector<2x64x16xbf16>
    %674 = vector.extract_strided_slice %656 {offsets = [0, 0, 0], sizes = [2, 16, 8], strides = [1, 1, 1]} : vector<2x16x32xbf16> to vector<2x16x8xbf16>
    %cst_249 = arith.constant dense<0.000000e+00> : vector<2x64x8xf32>
    %675 = tpu.matmul %673, %674, %cst_249 {dimension_numbers = #tpu.dot_dimension_numbers<[2], [1], [1], [2], [0, 0, 0, 1, 1, 2], [0], [0]>} : vector<2x64x16xbf16>, vector<2x16x8xbf16>, vector<2x64x8xf32> -> vector<2x64x8xf32>
    %676 = vector.broadcast %672 : vector<2x64x1xf32> to vector<2x64x8xf32>
    %677 = arith.mulf %675, %676 : vector<2x64x8xf32>
    %678 = vector.extract_strided_slice %654 {offsets = [0, 0, 8], sizes = [2, 64, 8], strides = [1, 1, 1]} : vector<2x64x32xbf16> to vector<2x64x8xbf16>
    %679 = vector.extract_strided_slice %655 {offsets = [0, 0, 8], sizes = [2, 16, 8], strides = [1, 1, 1]} : vector<2x16x32xbf16> to vector<2x16x8xbf16>
    %cst_250 = arith.constant dense<0.000000e+00> : vector<2x64x16xf32>
    %680 = tpu.matmul %678, %679, %cst_250 {dimension_numbers = #tpu.dot_dimension_numbers<[2], [2], [1], [1], [0, 0, 0, 1, 1, 1], [0], [0]>} : vector<2x64x8xbf16>, vector<2x16x8xbf16>, vector<2x64x16xf32> -> vector<2x64x16xf32>
    %681 = vector.extract_strided_slice %596 {offsets = [1, 0, 0], sizes = [1, 64, 16], strides = [1, 1, 1]} : vector<4x64x16xf32> to vector<1x64x16xf32>
    %682 = vector.shape_cast %681 : vector<1x64x16xf32> to vector<64x16xf32>
    %683 = vector.shape_cast %682 : vector<64x16xf32> to vector<1x64x16xf32>
    %684 = vector.broadcast %683 : vector<1x64x16xf32> to vector<2x64x16xf32>
    %685 = arith.addf %680, %684 : vector<2x64x16xf32>
    %cst_251 = arith.constant dense<0xFF800000> : vector<2x64xf32>
    %686 = vector.multi_reduction <maximumf>, %685, %cst_251 [2] : vector<2x64x16xf32> to vector<2x64xf32>
    %687 = vector.shape_cast %686 : vector<2x64xf32> to vector<2x64x1xf32>
    %688 = vector.broadcast %687 : vector<2x64x1xf32> to vector<2x64x16xf32>
    %689 = arith.subf %685, %688 : vector<2x64x16xf32>
    %690 = math.exp %689 : vector<2x64x16xf32>
    %cst_252 = arith.constant dense<0.000000e+00> : vector<2x64xf32>
    %691 = vector.multi_reduction <add>, %690, %cst_252 [2] : vector<2x64x16xf32> to vector<2x64xf32>
    %692 = vector.shape_cast %691 : vector<2x64xf32> to vector<2x64x1xf32>
    %693 = tpu.reciprocal %692 {approx = true} : vector<2x64x1xf32> -> vector<2x64x1xf32>
    %694 = arith.truncf %690 : vector<2x64x16xf32> to vector<2x64x16xbf16>
    %695 = vector.extract_strided_slice %656 {offsets = [0, 0, 8], sizes = [2, 16, 8], strides = [1, 1, 1]} : vector<2x16x32xbf16> to vector<2x16x8xbf16>
    %cst_253 = arith.constant dense<0.000000e+00> : vector<2x64x8xf32>
    %696 = tpu.matmul %694, %695, %cst_253 {dimension_numbers = #tpu.dot_dimension_numbers<[2], [1], [1], [2], [0, 0, 0, 1, 1, 2], [0], [0]>} : vector<2x64x16xbf16>, vector<2x16x8xbf16>, vector<2x64x8xf32> -> vector<2x64x8xf32>
    %697 = vector.broadcast %693 : vector<2x64x1xf32> to vector<2x64x8xf32>
    %698 = arith.mulf %696, %697 : vector<2x64x8xf32>
    %699 = vector.extract_strided_slice %654 {offsets = [0, 0, 16], sizes = [2, 64, 8], strides = [1, 1, 1]} : vector<2x64x32xbf16> to vector<2x64x8xbf16>
    %700 = vector.extract_strided_slice %655 {offsets = [0, 0, 16], sizes = [2, 16, 8], strides = [1, 1, 1]} : vector<2x16x32xbf16> to vector<2x16x8xbf16>
    %cst_254 = arith.constant dense<0.000000e+00> : vector<2x64x16xf32>
    %701 = tpu.matmul %699, %700, %cst_254 {dimension_numbers = #tpu.dot_dimension_numbers<[2], [2], [1], [1], [0, 0, 0, 1, 1, 1], [0], [0]>} : vector<2x64x8xbf16>, vector<2x16x8xbf16>, vector<2x64x16xf32> -> vector<2x64x16xf32>
    %702 = vector.extract_strided_slice %596 {offsets = [2, 0, 0], sizes = [1, 64, 16], strides = [1, 1, 1]} : vector<4x64x16xf32> to vector<1x64x16xf32>
    %703 = vector.shape_cast %702 : vector<1x64x16xf32> to vector<64x16xf32>
    %704 = vector.shape_cast %703 : vector<64x16xf32> to vector<1x64x16xf32>
    %705 = vector.broadcast %704 : vector<1x64x16xf32> to vector<2x64x16xf32>
    %706 = arith.addf %701, %705 : vector<2x64x16xf32>
    %cst_255 = arith.constant dense<0xFF800000> : vector<2x64xf32>
    %707 = vector.multi_reduction <maximumf>, %706, %cst_255 [2] : vector<2x64x16xf32> to vector<2x64xf32>
    %708 = vector.shape_cast %707 : vector<2x64xf32> to vector<2x64x1xf32>
    %709 = vector.broadcast %708 : vector<2x64x1xf32> to vector<2x64x16xf32>
    %710 = arith.subf %706, %709 : vector<2x64x16xf32>
    %711 = math.exp %710 : vector<2x64x16xf32>
    %cst_256 = arith.constant dense<0.000000e+00> : vector<2x64xf32>
    %712 = vector.multi_reduction <add>, %711, %cst_256 [2] : vector<2x64x16xf32> to vector<2x64xf32>
    %713 = vector.shape_cast %712 : vector<2x64xf32> to vector<2x64x1xf32>
    %714 = tpu.reciprocal %713 {approx = true} : vector<2x64x1xf32> -> vector<2x64x1xf32>
    %715 = arith.truncf %711 : vector<2x64x16xf32> to vector<2x64x16xbf16>
    %716 = vector.extract_strided_slice %656 {offsets = [0, 0, 16], sizes = [2, 16, 8], strides = [1, 1, 1]} : vector<2x16x32xbf16> to vector<2x16x8xbf16>
    %cst_257 = arith.constant dense<0.000000e+00> : vector<2x64x8xf32>
    %717 = tpu.matmul %715, %716, %cst_257 {dimension_numbers = #tpu.dot_dimension_numbers<[2], [1], [1], [2], [0, 0, 0, 1, 1, 2], [0], [0]>} : vector<2x64x16xbf16>, vector<2x16x8xbf16>, vector<2x64x8xf32> -> vector<2x64x8xf32>
    %718 = vector.broadcast %714 : vector<2x64x1xf32> to vector<2x64x8xf32>
    %719 = arith.mulf %717, %718 : vector<2x64x8xf32>
    %720 = vector.extract_strided_slice %654 {offsets = [0, 0, 24], sizes = [2, 64, 8], strides = [1, 1, 1]} : vector<2x64x32xbf16> to vector<2x64x8xbf16>
    %721 = vector.extract_strided_slice %655 {offsets = [0, 0, 24], sizes = [2, 16, 8], strides = [1, 1, 1]} : vector<2x16x32xbf16> to vector<2x16x8xbf16>
    %cst_258 = arith.constant dense<0.000000e+00> : vector<2x64x16xf32>
    %722 = tpu.matmul %720, %721, %cst_258 {dimension_numbers = #tpu.dot_dimension_numbers<[2], [2], [1], [1], [0, 0, 0, 1, 1, 1], [0], [0]>} : vector<2x64x8xbf16>, vector<2x16x8xbf16>, vector<2x64x16xf32> -> vector<2x64x16xf32>
    %723 = vector.extract_strided_slice %596 {offsets = [3, 0, 0], sizes = [1, 64, 16], strides = [1, 1, 1]} : vector<4x64x16xf32> to vector<1x64x16xf32>
    %724 = vector.shape_cast %723 : vector<1x64x16xf32> to vector<64x16xf32>
    %725 = vector.shape_cast %724 : vector<64x16xf32> to vector<1x64x16xf32>
    %726 = vector.broadcast %725 : vector<1x64x16xf32> to vector<2x64x16xf32>
    %727 = arith.addf %722, %726 : vector<2x64x16xf32>
    %cst_259 = arith.constant dense<0xFF800000> : vector<2x64xf32>
    %728 = vector.multi_reduction <maximumf>, %727, %cst_259 [2] : vector<2x64x16xf32> to vector<2x64xf32>
    %729 = vector.shape_cast %728 : vector<2x64xf32> to vector<2x64x1xf32>
    %730 = vector.broadcast %729 : vector<2x64x1xf32> to vector<2x64x16xf32>
    %731 = arith.subf %727, %730 : vector<2x64x16xf32>
    %732 = math.exp %731 : vector<2x64x16xf32>
    %cst_260 = arith.constant dense<0.000000e+00> : vector<2x64xf32>
    %733 = vector.multi_reduction <add>, %732, %cst_260 [2] : vector<2x64x16xf32> to vector<2x64xf32>
    %734 = vector.shape_cast %733 : vector<2x64xf32> to vector<2x64x1xf32>
    %735 = tpu.reciprocal %734 {approx = true} : vector<2x64x1xf32> -> vector<2x64x1xf32>
    %736 = arith.truncf %732 : vector<2x64x16xf32> to vector<2x64x16xbf16>
    %737 = vector.extract_strided_slice %656 {offsets = [0, 0, 24], sizes = [2, 16, 8], strides = [1, 1, 1]} : vector<2x16x32xbf16> to vector<2x16x8xbf16>
    %cst_261 = arith.constant dense<0.000000e+00> : vector<2x64x8xf32>
    %738 = tpu.matmul %736, %737, %cst_261 {dimension_numbers = #tpu.dot_dimension_numbers<[2], [1], [1], [2], [0, 0, 0, 1, 1, 2], [0], [0]>} : vector<2x64x16xbf16>, vector<2x16x8xbf16>, vector<2x64x8xf32> -> vector<2x64x8xf32>
    %739 = vector.broadcast %735 : vector<2x64x1xf32> to vector<2x64x8xf32>
    %740 = arith.mulf %738, %739 : vector<2x64x8xf32>
    %741 = tpu.concatenate %677, %698, %719, %740 in 2 : vector<2x64x8xf32>, vector<2x64x8xf32>, vector<2x64x8xf32>, vector<2x64x8xf32> -> vector<2x64x32xf32>
    %742 = vector.shape_cast %741 : vector<2x64x32xf32> to vector<128x32xf32>
    %743 = arith.truncf %742 : vector<128x32xf32> to vector<128x32xbf16>
    %cst_262 = arith.constant dense<0.000000e+00> : vector<128x32xf32>
    %744 = tpu.matmul %743, %48, %cst_262 {dimension_numbers = #tpu.dot_dimension_numbers<[1], [0], [0], [1], [0, 0, 1, 1], [], []>} : vector<128x32xbf16>, vector<32x32xbf16>, vector<128x32xf32> -> vector<128x32xf32>
    %745 = arith.addf %399, %744 : vector<128x32xf32>
    %746 = vector.broadcast %49 : vector<1x32xf32> to vector<128x32xf32>
    %747 = arith.addf %745, %746 : vector<128x32xf32>
    %cst_263 = arith.constant dense<0.000000e+00> : vector<128xf32>
    %748 = vector.multi_reduction <add>, %747, %cst_263 [1] : vector<128x32xf32> to vector<128xf32>
    %749 = vector.shape_cast %748 : vector<128xf32> to vector<128x1xf32>
    %cst_264 = arith.constant 3.200000e+01 : f32
    %750 = vector.broadcast %cst_264 : f32 to vector<128x1xf32>
    %751 = arith.divf %749, %750 : vector<128x1xf32>
    %752 = vector.broadcast %751 : vector<128x1xf32> to vector<128x32xf32>
    %753 = arith.subf %747, %752 : vector<128x32xf32>
    %754 = arith.mulf %753, %753 : vector<128x32xf32>
    %cst_265 = arith.constant dense<0.000000e+00> : vector<128xf32>
    %755 = vector.multi_reduction <add>, %754, %cst_265 [1] : vector<128x32xf32> to vector<128xf32>
    %756 = vector.shape_cast %755 : vector<128xf32> to vector<128x1xf32>
    %cst_266 = arith.constant 3.200000e+01 : f32
    %757 = vector.broadcast %cst_266 : f32 to vector<128x1xf32>
    %758 = arith.divf %756, %757 : vector<128x1xf32>
    %759 = vector.broadcast %751 : vector<128x1xf32> to vector<128x32xf32>
    %760 = arith.subf %747, %759 : vector<128x32xf32>
    %cst_267 = arith.constant 9.99999974E-6 : f32
    %761 = vector.broadcast %cst_267 : f32 to vector<128x1xf32>
    %762 = arith.addf %758, %761 : vector<128x1xf32>
    %763 = math.rsqrt %762 : vector<128x1xf32>
    %764 = vector.broadcast %763 : vector<128x1xf32> to vector<128x32xf32>
    %765 = arith.mulf %760, %764 : vector<128x32xf32>
    %766 = vector.broadcast %50 : vector<1x32xf32> to vector<128x32xf32>
    %767 = arith.mulf %765, %766 : vector<128x32xf32>
    %768 = vector.broadcast %51 : vector<1x32xf32> to vector<128x32xf32>
    %769 = arith.addf %767, %768 : vector<128x32xf32>
    %770 = arith.truncf %769 : vector<128x32xf32> to vector<128x32xbf16>
    %cst_268 = arith.constant dense<0.000000e+00> : vector<128x128xf32>
    %771 = tpu.matmul %770, %52, %cst_268 {dimension_numbers = #tpu.dot_dimension_numbers<[1], [0], [0], [1], [0, 0, 1, 1], [], []>} : vector<128x32xbf16>, vector<32x128xbf16>, vector<128x128xf32> -> vector<128x128xf32>
    %772 = vector.broadcast %53 : vector<1x128xf32> to vector<128x128xf32>
    %773 = arith.addf %771, %772 : vector<128x128xf32>
    %cst_269 = arith.constant 5.000000e-01 : f32
    %774 = vector.broadcast %cst_269 : f32 to vector<128x128xf32>
    %775 = arith.mulf %774, %773 : vector<128x128xf32>
    %cst_270 = arith.constant 4.471500e-02 : f32
    %776 = vector.broadcast %cst_270 : f32 to vector<128x128xf32>
    %777 = arith.mulf %776, %773 : vector<128x128xf32>
    %778 = arith.mulf %777, %773 : vector<128x128xf32>
    %779 = arith.mulf %778, %773 : vector<128x128xf32>
    %780 = arith.addf %773, %779 : vector<128x128xf32>
    %cst_271 = arith.constant 0.797884583 : f32
    %781 = vector.broadcast %cst_271 : f32 to vector<128x128xf32>
    %782 = arith.mulf %781, %780 : vector<128x128xf32>
    %783 = math.tanh %782 : vector<128x128xf32>
    %cst_272 = arith.constant 1.000000e+00 : f32
    %784 = vector.broadcast %cst_272 : f32 to vector<128x128xf32>
    %785 = arith.addf %784, %783 : vector<128x128xf32>
    %786 = arith.mulf %775, %785 : vector<128x128xf32>
    %787 = arith.truncf %786 : vector<128x128xf32> to vector<128x128xbf16>
    %cst_273 = arith.constant dense<0.000000e+00> : vector<128x32xf32>
    %788 = tpu.matmul %787, %54, %cst_273 {dimension_numbers = #tpu.dot_dimension_numbers<[1], [0], [0], [1], [0, 0, 1, 1], [], []>} : vector<128x128xbf16>, vector<128x32xbf16>, vector<128x32xf32> -> vector<128x32xf32>
    %789 = arith.addf %747, %788 : vector<128x32xf32>
    %790 = vector.broadcast %55 : vector<1x32xf32> to vector<128x32xf32>
    %791 = arith.addf %789, %790 : vector<128x32xf32>
    %c0_274 = arith.constant 0 : index
    %c0_275 = arith.constant 0 : index
    %792 = vector.load %arg62[%c0_274, %c0_275] : memref<32x32xf32, #tpu.memory_space<vmem>>, vector<32x32xf32>
    tpu.vector_store %arg62[%c0_274, %c0_275], %595 {strides = array<i32>} : memref<32x32xf32, #tpu.memory_space<vmem>>, vector<32x32xf32>,
    %c0_276 = arith.constant 0 : index
    %c0_277 = arith.constant 0 : index
    %793 = vector.load %arg63[%c0_276, %c0_277] : memref<128x32xf32, #tpu.memory_space<vmem>>, vector<128x32xf32>
    tpu.vector_store %arg63[%c0_276, %c0_277], %791 {strides = array<i32>} : memref<128x32xf32, #tpu.memory_space<vmem>>, vector<128x32xf32>,
    return
  }
}

</mosaic_0001>

<llo_original>
// kernel: encoder_forward.1
$region0: #{encoder_forward.1}
  #allocation0 [shape = 'u32[]', space=smem, size = 0x4, offset = 0x4, fixed_abs, tag = 'smem constant byte address 0x4 - core index']
  #allocation1 [shape = 'u32[72,128]{1,0:T(1,128)}', space=vmem, size = 0x9000, scoped, tag = 'internal scratch']
  %s0 = inlined_call_operand.smem [shape: u32[64], index: -1, kind: input, shape index: {}]
  %s1 = sld [smem:[%s0]]
  %s2 = scalar_lea.smem %s0, 1
  %s3 = sld [smem:[%s2]]
  %s4 = scalar_lea.smem %s0, 2
  %s5 = sld [smem:[%s4]]
  %s6 = scalar_lea.smem %s0, 3
  %s7 = sld [smem:[%s6]]
  %s8 = scalar_lea.smem %s0, 4
  %s9 = sld [smem:[%s8]]
  %s10 = scalar_lea.smem %s0, 5
  %s11 = sld [smem:[%s10]]
  %s12 = scalar_lea.smem %s0, 6
  %s13 = sld [smem:[%s12]]
  %s14 = scalar_lea.smem %s0, 7
  %s15 = sld [smem:[%s14]]
  %s16 = scalar_lea.smem %s0, 8
  %s17 = sld [smem:[%s16]]
  %s18 = scalar_lea.smem %s0, 9
  %s19 = sld [smem:[%s18]]
  %s20 = scalar_lea.smem %s0, 10
  %s21 = sld [smem:[%s20]]
  %s22 = scalar_lea.smem %s0, 11
  %s23 = sld [smem:[%s22]]
  %s24 = scalar_lea.smem %s0, 12
  %s25 = sld [smem:[%s24]]
  %s26 = scalar_lea.smem %s0, 13
  %s27 = sld [smem:[%s26]]
  %s28 = scalar_lea.smem %s0, 14
  %s29 = sld [smem:[%s28]]
  %s30 = scalar_lea.smem %s0, 15
  %s31 = sld [smem:[%s30]]
  %s32 = scalar_lea.smem %s0, 16
  %s33 = sld [smem:[%s32]]
  %s34 = scalar_lea.smem %s0, 17
  %s35 = sld [smem:[%s34]]
  %s36 = scalar_lea.smem %s0, 18
  %s37 = sld [smem:[%s36]]
  %s38 = scalar_lea.smem %s0, 19
  %s39 = sld [smem:[%s38]]
  %s40 = scalar_lea.smem %s0, 20
  %s41 = sld [smem:[%s40]]
  %s42 = scalar_lea.smem %s0, 21
  %s43 = sld [smem:[%s42]]
  %s44 = scalar_lea.smem %s0, 22
  %s45 = sld [smem:[%s44]]
  %s46 = scalar_lea.smem %s0, 23
  %s47 = sld [smem:[%s46]]
  %s48 = scalar_lea.smem %s0, 24
  %s49 = sld [smem:[%s48]]
  %s50 = scalar_lea.smem %s0, 25
  %s51 = sld [smem:[%s50]]
  %s52 = scalar_lea.smem %s0, 26
  %s53 = sld [smem:[%s52]]
  %s54 = scalar_lea.smem %s0, 27
  %s55 = sld [smem:[%s54]]
  %s56 = scalar_lea.smem %s0, 28
  %s57 = sld [smem:[%s56]]
  %s58 = scalar_lea.smem %s0, 29
  %s59 = sld [smem:[%s58]]
  %s60 = scalar_lea.smem %s0, 30
  %s61 = sld [smem:[%s60]]
  %s62 = scalar_lea.smem %s0, 31
  %s63 = sld [smem:[%s62]]
  %s64 = scalar_lea.smem %s0, 32
  %s65 = sld [smem:[%s64]]
  %s66 = scalar_lea.smem %s0, 33
  %s67 = sld [smem:[%s66]]
  %s68 = scalar_lea.smem %s0, 34
  %s69 = sld [smem:[%s68]]
  %s70 = scalar_lea.smem %s0, 35
  %s71 = sld [smem:[%s70]]
  %s72 = scalar_lea.smem %s0, 36
  %s73 = sld [smem:[%s72]]
  %s74 = scalar_lea.smem %s0, 37
  %s75 = sld [smem:[%s74]]
  %s76 = scalar_lea.smem %s0, 38
  %s77 = sld [smem:[%s76]]
  %s78 = scalar_lea.smem %s0, 39
  %s79 = sld [smem:[%s78]]
  %s80 = scalar_lea.smem %s0, 40
  %s81 = sld [smem:[%s80]]
  %s82 = scalar_lea.smem %s0, 41
  %s83 = sld [smem:[%s82]]
  %s84 = scalar_lea.smem %s0, 42
  %s85 = sld [smem:[%s84]]
  %s86 = scalar_lea.smem %s0, 43
  %s87 = sld [smem:[%s86]]
  %s88 = scalar_lea.smem %s0, 44
  %s89 = sld [smem:[%s88]]
  %s90 = scalar_lea.smem %s0, 45
  %s91 = sld [smem:[%s90]]
  %s92 = scalar_lea.smem %s0, 46
  %s93 = sld [smem:[%s92]]
  %s94 = scalar_lea.smem %s0, 47
  %s95 = sld [smem:[%s94]]
  %s96 = scalar_lea.smem %s0, 48
  %s97 = sld [smem:[%s96]]
  %s98 = scalar_lea.smem %s0, 49
  %s99 = sld [smem:[%s98]]
  %s100 = scalar_lea.smem %s0, 50
  %s101 = sld [smem:[%s100]]
  %s102 = scalar_lea.smem %s0, 51
  %s103 = sld [smem:[%s102]]
  %s104 = scalar_lea.smem %s0, 52
  %s105 = sld [smem:[%s104]]
  %s106 = scalar_lea.smem %s0, 53
  %s107 = sld [smem:[%s106]]
  %s108 = scalar_lea.smem %s0, 54
  %s109 = sld [smem:[%s108]]
  %s110 = scalar_lea.smem %s0, 55
  %s111 = sld [smem:[%s110]]
  %s112 = scalar_lea.smem %s0, 56
  %s113 = sld [smem:[%s112]]
  %s114 = scalar_lea.smem %s0, 57
  %s115 = sld [smem:[%s114]]
  %s116 = scalar_lea.smem %s0, 58
  %s117 = sld [smem:[%s116]]
  %s118 = scalar_lea.smem %s0, 59
  %s119 = sld [smem:[%s118]]
  %s120 = scalar_lea.smem %s0, 60
  %s121 = sld [smem:[%s120]]
  %s122 = scalar_lea.smem %s0, 61
  %s123 = sld [smem:[%s122]]
  %s124 = scalar_lea.smem %s0, 62
  %s125 = sld [smem:[%s124]]
  %s126 = scalar_lea.smem %s0, 63
  %s127 = sld [smem:[%s126]]
  %128 = xla_tuple %s125, %s127
  %s129 = sld [smem:[#allocation0]]
  $region350: #{encoder_forward.1} parent=0
    _
  %s131 = ssub.s32 1, %s129
  %s132 = scalar_select 0, %s131, %s129
  $region1: #{encoder_forward.1} parent=0
    #allocation2 [shape = 'u8[512]{0}', space=vmem, size = 0x400, scoped, tag = 'input window, operand 31, single buffered']
    #allocation3 [shape = 's32[1]{0}', space=sflag, size = 0x4, scoped, tag = 'scoped memory for encoder_forward.1']
    #allocation4 [shape = 's32[1]{0}', space=sflag, size = 0x4, scoped, tag = 'scoped memory for encoder_forward.1']
    #allocation5 [shape = 'u8[512]{0}', space=vmem, size = 0x400, scoped, tag = 'input window, operand 32, single buffered']
    #allocation6 [shape = 's32[1]{0}', space=sflag, size = 0x4, scoped, tag = 'scoped memory for encoder_forward.1']
    #allocation7 [shape = 'u8[512]{0}', space=vmem, size = 0x400, scoped, tag = 'input window, operand 33, single buffered']
    #allocation8 [shape = 'u8[512]{0}', space=vmem, size = 0x400, scoped, tag = 'input window, operand 35, single buffered']
    #allocation9 [shape = 's32[1]{0}', space=sflag, size = 0x4, scoped, tag = 'scoped memory for encoder_forward.1']
    #allocation10 [shape = 'u8[512]{0}', space=vmem, size = 0x400, scoped, tag = 'input window, operand 37, single buffered']
    #allocation11 [shape = 'u8[512]{0}', space=vmem, size = 0x400, scoped, tag = 'input window, operand 39, single buffered']
    #allocation12 [shape = 's32[1]{0}', space=sflag, size = 0x4, scoped, tag = 'scoped memory for encoder_forward.1']
    #allocation13 [shape = 'u8[512]{0}', space=vmem, size = 0x400, scoped, tag = 'input window, operand 40, single buffered']
    #allocation14 [shape = 'u8[512]{0}', space=vmem, size = 0x400, scoped, tag = 'input window, operand 41, single buffered']
    #allocation15 [shape = 's32[1]{0}', space=sflag, size = 0x4, scoped, tag = 'scoped memory for encoder_forward.1']
    #allocation16 [shape = 'u8[512]{0}', space=vmem, size = 0x400, scoped, tag = 'input window, operand 43, single buffered']
    #allocation17 [shape = 'u8[512]{0}', space=vmem, size = 0x400, scoped, tag = 'input window, operand 45, single buffered']
    #allocation18 [shape = 's32[1]{0}', space=sflag, size = 0x4, scoped, tag = 'scoped memory for encoder_forward.1']
    #allocation19 [shape = 'u8[512]{0}', space=vmem, size = 0x400, scoped, tag = 'input window, operand 46, single buffered']
    #allocation20 [shape = 'u8[512]{0}', space=vmem, size = 0x400, scoped, tag = 'input window, operand 47, single buffered']
    #allocation21 [shape = 's32[1]{0}', space=sflag, size = 0x4, scoped, tag = 'scoped memory for encoder_forward.1']
    #allocation22 [shape = 'u8[512]{0}', space=vmem, size = 0x400, scoped, tag = 'input window, operand 48, single buffered']
    #allocation23 [shape = 'u8[512]{0}', space=vmem, size = 0x400, scoped, tag = 'input window, operand 49, single buffered']
    #allocation24 [shape = 's32[1]{0}', space=sflag, size = 0x4, scoped, tag = 'scoped memory for encoder_forward.1']
    #allocation25 [shape = 'u8[512]{0}', space=vmem, size = 0x400, scoped, tag = 'input window, operand 51, single buffered']
    #allocation26 [shape = 'u8[512]{0}', space=vmem, size = 0x400, scoped, tag = 'input window, operand 53, single buffered']
    #allocation27 [shape = 's32[1]{0}', space=sflag, size = 0x4, scoped, tag = 'scoped memory for encoder_forward.1']
    #allocation28 [shape = 'u8[512]{0}', space=vmem, size = 0x400, scoped, tag = 'input window, operand 55, single buffered']
    #allocation29 [shape = 'u8[512]{0}', space=vmem, size = 0x400, scoped, tag = 'input window, operand 56, single buffered']
    #allocation30 [shape = 's32[1]{0}', space=sflag, size = 0x4, scoped, tag = 'scoped memory for encoder_forward.1']
    #allocation31 [shape = 'u8[512]{0}', space=vmem, size = 0x400, scoped, tag = 'input window, operand 57, single buffered']
    #allocation32 [shape = 'u8[512]{0}', space=vmem, size = 0x400, scoped, tag = 'input window, operand 59, single buffered']
    #allocation33 [shape = 's32[1]{0}', space=sflag, size = 0x4, scoped, tag = 'scoped memory for encoder_forward.1']
    #allocation34 [shape = 'u8[512]{0}', space=vmem, size = 0x400, scoped, tag = 'input window, operand 61, single buffered']
    #allocation35 [shape = 'u8[16384]{0}', space=vmem, size = 0x4000, scoped, tag = 'output window, operand 0, single buffered']
    %133 = vsyncpa [#allocation3], 0
    %134 = vsyncpa [#allocation6], 0
    %135 = vsyncpa [#allocation9], 0
    %136 = vsyncpa [#allocation12], 0
    %137 = vsyncpa [#allocation15], 0
    %138 = vsyncpa [#allocation18], 0
    %139 = vsyncpa [#allocation21], 0
    %140 = vsyncpa [#allocation24], 0
    %141 = vsyncpa [#allocation27], 0
    %142 = vsyncpa [#allocation30], 0
    %143 = vsyncpa [#allocation33], 0
    %144 = vsyncpa [#allocation4], 0
    // Predicated region
    $region2: #{encoder_forward.1} parent=1 // pred_check
      _
    $region3: #{encoder_forward.1} parent=1 // pred_check_branch
      %146 = sbr.rel (0) target = $region5
    $region4: #{encoder_forward.1} parent=1 // pred_region
      _
    $region5: #{encoder_forward.1} parent=1 // pred_fallthru
      _
    // Predicated region
    $region6: #{encoder_forward.1} parent=1 // pred_check
      _
    $region7: #{encoder_forward.1} parent=1 // pred_check_branch
      %148 = sbr.rel (0) target = $region9
    $region8: #{encoder_forward.1} parent=1 // pred_region
      _
    $region9: #{encoder_forward.1} parent=1 // pred_fallthru
      _
    // Predicated region
    $region10: #{encoder_forward.1} parent=1 // pred_check
      _
    $region11: #{encoder_forward.1} parent=1 // pred_check_branch
      %150 = sbr.rel (0) target = $region13
    $region12: #{encoder_forward.1} parent=1 // pred_region
      _
    $region13: #{encoder_forward.1} parent=1 // pred_fallthru
      _
    // Predicated region
    $region14: #{encoder_forward.1} parent=1 // pred_check
      _
    $region15: #{encoder_forward.1} parent=1 // pred_check_branch
      %152 = sbr.rel (0) target = $region17
    $region16: #{encoder_forward.1} parent=1 // pred_region
      _
    $region17: #{encoder_forward.1} parent=1 // pred_fallthru
      _
    // Predicated region
    $region18: #{encoder_forward.1} parent=1 // pred_check
      _
    $region19: #{encoder_forward.1} parent=1 // pred_check_branch
      %154 = sbr.rel (0) target = $region21
    $region20: #{encoder_forward.1} parent=1 // pred_region
      _
    $region21: #{encoder_forward.1} parent=1 // pred_fallthru
      _
    // Predicated region
    $region22: #{encoder_forward.1} parent=1 // pred_check
      _
    $region23: #{encoder_forward.1} parent=1 // pred_check_branch
      %156 = sbr.rel (0) target = $region25
    $region24: #{encoder_forward.1} parent=1 // pred_region
      _
    $region25: #{encoder_forward.1} parent=1 // pred_fallthru
      _
    // Predicated region
    $region26: #{encoder_forward.1} parent=1 // pred_check
      _
    $region27: #{encoder_forward.1} parent=1 // pred_check_branch
      %158 = sbr.rel (0) target = $region29
    $region28: #{encoder_forward.1} parent=1 // pred_region
      _
    $region29: #{encoder_forward.1} parent=1 // pred_fallthru
      _
    // Predicated region
    $region30: #{encoder_forward.1} parent=1 // pred_check
      _
    $region31: #{encoder_forward.1} parent=1 // pred_check_branch
      %160 = sbr.rel (0) target = $region33
    $region32: #{encoder_forward.1} parent=1 // pred_region
      _
    $region33: #{encoder_forward.1} parent=1 // pred_fallthru
      _
    // Predicated region
    $region34: #{encoder_forward.1} parent=1 // pred_check
      _
    $region35: #{encoder_forward.1} parent=1 // pred_check_branch
      %162 = sbr.rel (0) target = $region37
    $region36: #{encoder_forward.1} parent=1 // pred_region
      _
    $region37: #{encoder_forward.1} parent=1 // pred_fallthru
      _
    // Predicated region
    $region38: #{encoder_forward.1} parent=1 // pred_check
      _
    $region39: #{encoder_forward.1} parent=1 // pred_check_branch
      %164 = sbr.rel (0) target = $region41
    $region40: #{encoder_forward.1} parent=1 // pred_region
      _
    $region41: #{encoder_forward.1} parent=1 // pred_fallthru
      _
    // Predicated region
    $region42: #{encoder_forward.1} parent=1 // pred_check
      _
    $region43: #{encoder_forward.1} parent=1 // pred_check_branch
      %166 = sbr.rel (0) target = $region45
    $region44: #{encoder_forward.1} parent=1 // pred_region
      _
    $region45: #{encoder_forward.1} parent=1 // pred_fallthru
      _
    // Predicated region
    $region46: #{encoder_forward.1} parent=1 // pred_check
      _
    $region47: #{encoder_forward.1} parent=1 // pred_check_branch
      %168 = sbr.rel (0) target = $region49
    $region48: #{encoder_forward.1} parent=1 // pred_region
      _
    $region49: #{encoder_forward.1} parent=1 // pred_fallthru
      _
    // Predicated region
    $region50: #{encoder_forward.1} parent=1 // pred_check
      _
    $region51: #{encoder_forward.1} parent=1 // pred_check_branch
      %170 = sbr.rel (0) target = $region53
    $region52: #{encoder_forward.1} parent=1 // pred_region
      _
    $region53: #{encoder_forward.1} parent=1 // pred_fallthru
      _
    // Predicated region
    $region54: #{encoder_forward.1} parent=1 // pred_check
      _
    $region55: #{encoder_forward.1} parent=1 // pred_check_branch
      %172 = sbr.rel (0) target = $region57
    $region56: #{encoder_forward.1} parent=1 // pred_region
      _
    $region57: #{encoder_forward.1} parent=1 // pred_fallthru
      _
    // Predicated region
    $region58: #{encoder_forward.1} parent=1 // pred_check
      _
    $region59: #{encoder_forward.1} parent=1 // pred_check_branch
      %174 = sbr.rel (0) target = $region61
    $region60: #{encoder_forward.1} parent=1 // pred_region
      _
    $region61: #{encoder_forward.1} parent=1 // pred_fallthru
      _
    // Predicated region
    $region62: #{encoder_forward.1} parent=1 // pred_check
      _
    $region63: #{encoder_forward.1} parent=1 // pred_check_branch
      %176 = sbr.rel (0) target = $region65
    $region64: #{encoder_forward.1} parent=1 // pred_region
      _
    $region65: #{encoder_forward.1} parent=1 // pred_fallthru
      _
    // Predicated region
    $region66: #{encoder_forward.1} parent=1 // pred_check
      _
    $region67: #{encoder_forward.1} parent=1 // pred_check_branch
      %178 = sbr.rel (0) target = $region69
    $region68: #{encoder_forward.1} parent=1 // pred_region
      _
    $region69: #{encoder_forward.1} parent=1 // pred_fallthru
      _
    // Predicated region
    $region70: #{encoder_forward.1} parent=1 // pred_check
      _
    $region71: #{encoder_forward.1} parent=1 // pred_check_branch
      %180 = sbr.rel (0) target = $region73
    $region72: #{encoder_forward.1} parent=1 // pred_region
      _
    $region73: #{encoder_forward.1} parent=1 // pred_fallthru
      _
    // Predicated region
    $region74: #{encoder_forward.1} parent=1 // pred_check
      _
    $region75: #{encoder_forward.1} parent=1 // pred_check_branch
      %182 = sbr.rel (0) target = $region77
    $region76: #{encoder_forward.1} parent=1 // pred_region
      _
    $region77: #{encoder_forward.1} parent=1 // pred_fallthru
      _
    // Predicated region
    $region78: #{encoder_forward.1} parent=1 // pred_check
      _
    $region79: #{encoder_forward.1} parent=1 // pred_check_branch
      %184 = sbr.rel (0) target = $region81
    $region80: #{encoder_forward.1} parent=1 // pred_region
      _
    $region81: #{encoder_forward.1} parent=1 // pred_fallthru
      _
    // Predicated region
    $region82: #{encoder_forward.1} parent=1 // pred_check
      _
    $region83: #{encoder_forward.1} parent=1 // pred_check_branch
      %186 = sbr.rel (0) target = $region85
    $region84: #{encoder_forward.1} parent=1 // pred_region
      _
    $region85: #{encoder_forward.1} parent=1 // pred_fallthru
      _
    // Predicated region
    $region86: #{encoder_forward.1} parent=1 // pred_check
      _
    $region87: #{encoder_forward.1} parent=1 // pred_check_branch
      %188 = sbr.rel (0) target = $region89
    $region88: #{encoder_forward.1} parent=1 // pred_region
      _
    $region89: #{encoder_forward.1} parent=1 // pred_fallthru
      _
    // Predicated region
    $region90: #{encoder_forward.1} parent=1 // pred_check
      _
    $region91: #{encoder_forward.1} parent=1 // pred_check_branch
      %190 = sbr.rel (0) target = $region93
    $region92: #{encoder_forward.1} parent=1 // pred_region
      _
    $region93: #{encoder_forward.1} parent=1 // pred_fallthru
      _
    // Predicated region
    $region94: #{encoder_forward.1} parent=1 // pred_check
      _
    $region95: #{encoder_forward.1} parent=1 // pred_check_branch
      %192 = sbr.rel (0) target = $region97
    $region96: #{encoder_forward.1} parent=1 // pred_region
      _
    $region97: #{encoder_forward.1} parent=1 // pred_fallthru
      _
    // Predicated region
    $region98: #{encoder_forward.1} parent=1 // pred_check
      _
    $region99: #{encoder_forward.1} parent=1 // pred_check_branch
      %194 = sbr.rel (0) target = $region101
    $region100: #{encoder_forward.1} parent=1 // pred_region
      _
    $region101: #{encoder_forward.1} parent=1 // pred_fallthru
      _
    // Predicated region
    $region102: #{encoder_forward.1} parent=1 // pred_check
      _
    $region103: #{encoder_forward.1} parent=1 // pred_check_branch
      %196 = sbr.rel (0) target = $region105
    $region104: #{encoder_forward.1} parent=1 // pred_region
      _
    $region105: #{encoder_forward.1} parent=1 // pred_fallthru
      _
    // Predicated region
    $region106: #{encoder_forward.1} parent=1 // pred_check
      _
    $region107: #{encoder_forward.1} parent=1 // pred_check_branch
      %198 = sbr.rel (0) target = $region109
    $region108: #{encoder_forward.1} parent=1 // pred_region
      _
    $region109: #{encoder_forward.1} parent=1 // pred_fallthru
      _
    // Predicated region
    $region110: #{encoder_forward.1} parent=1 // pred_check
      _
    $region111: #{encoder_forward.1} parent=1 // pred_check_branch
      %200 = sbr.rel (0) target = $region113
    $region112: #{encoder_forward.1} parent=1 // pred_region
      _
    $region113: #{encoder_forward.1} parent=1 // pred_fallthru
      _
    // Predicated region
    $region114: #{encoder_forward.1} parent=1 // pred_check
      _
    $region115: #{encoder_forward.1} parent=1 // pred_check_branch
      %202 = sbr.rel (0) target = $region117
    $region116: #{encoder_forward.1} parent=1 // pred_region
      _
    $region117: #{encoder_forward.1} parent=1 // pred_fallthru
      _
    // Predicated region
    $region118: #{encoder_forward.1} parent=1 // pred_check
      _
    $region119: #{encoder_forward.1} parent=1 // pred_check_branch
      %204 = sbr.rel (0) target = $region121
    $region120: #{encoder_forward.1} parent=1 // pred_region
      _
    $region121: #{encoder_forward.1} parent=1 // pred_fallthru
      _
    // Predicated region
    $region122: #{encoder_forward.1} parent=1 // pred_check
      _
    $region123: #{encoder_forward.1} parent=1 // pred_check_branch
      %206 = sbr.rel (0) target = $region125
    $region124: #{encoder_forward.1} parent=1 // pred_region
      _
    $region125: #{encoder_forward.1} parent=1 // pred_fallthru
      _
    // Predicated region
    $region126: #{encoder_forward.1} parent=1 // pred_check
      _
    $region127: #{encoder_forward.1} parent=1 // pred_check_branch
      %208 = sbr.rel (0) target = $region129
    $region128: #{encoder_forward.1} parent=1 // pred_region
      %210 = vsyncadd [#allocation3], 0
      %s212 = sshll.u32 %s63, 4
      %s213 = int_to_ptr.hbm [resolvable:$true] %s212
      %s214 = sshll.u32 [#allocation2], 4
      %s215 = int_to_ptr.vmem [resolvable:$true] %s214
      %217 = dma.hbm_to_vmem [thread:$0]  %s213, 16, %s215, [#allocation3]
    $region129: #{encoder_forward.1} parent=1 // pred_fallthru
      _
    // Predicated region
    $region130: #{encoder_forward.1} parent=1 // pred_check
      _
    $region131: #{encoder_forward.1} parent=1 // pred_check_branch
      %219 = sbr.rel (0) target = $region133
    $region132: #{encoder_forward.1} parent=1 // pred_region
      %221 = vsyncadd [#allocation6], 0
      %s223 = sshll.u32 %s65, 4
      %s224 = int_to_ptr.hbm [resolvable:$true] %s223
      %s225 = sshll.u32 [#allocation5], 4
      %s226 = int_to_ptr.vmem [resolvable:$true] %s225
      %228 = dma.hbm_to_vmem [thread:$0]  %s224, 16, %s226, [#allocation6]
    $region133: #{encoder_forward.1} parent=1 // pred_fallthru
      _
    // Predicated region
    $region134: #{encoder_forward.1} parent=1 // pred_check
      _
    $region135: #{encoder_forward.1} parent=1 // pred_check_branch
      %230 = sbr.rel (0) target = $region137
    $region136: #{encoder_forward.1} parent=1 // pred_region
      %232 = vsyncadd [#allocation6], 0
      %s234 = sshll.u32 %s67, 4
      %s235 = int_to_ptr.hbm [resolvable:$true] %s234
      %s236 = sshll.u32 [#allocation7], 4
      %s237 = int_to_ptr.vmem [resolvable:$true] %s236
      %239 = dma.hbm_to_vmem [thread:$0]  %s235, 16, %s237, [#allocation6]
    $region137: #{encoder_forward.1} parent=1 // pred_fallthru
      _
    // Predicated region
    $region138: #{encoder_forward.1} parent=1 // pred_check
      _
    $region139: #{encoder_forward.1} parent=1 // pred_check_branch
      %241 = sbr.rel (0) target = $region141
    $region140: #{encoder_forward.1} parent=1 // pred_region
      _
    $region141: #{encoder_forward.1} parent=1 // pred_fallthru
      _
    // Predicated region
    $region142: #{encoder_forward.1} parent=1 // pred_check
      _
    $region143: #{encoder_forward.1} parent=1 // pred_check_branch
      %243 = sbr.rel (0) target = $region145
    $region144: #{encoder_forward.1} parent=1 // pred_region
      %245 = vsyncadd [#allocation9], 0
      %s247 = sshll.u32 %s71, 4
      %s248 = int_to_ptr.hbm [resolvable:$true] %s247
      %s249 = sshll.u32 [#allocation8], 4
      %s250 = int_to_ptr.vmem [resolvable:$true] %s249
      %252 = dma.hbm_to_vmem [thread:$0]  %s248, 16, %s250, [#allocation9]
    $region145: #{encoder_forward.1} parent=1 // pred_fallthru
      _
    // Predicated region
    $region146: #{encoder_forward.1} parent=1 // pred_check
      _
    $region147: #{encoder_forward.1} parent=1 // pred_check_branch
      %254 = sbr.rel (0) target = $region149
    $region148: #{encoder_forward.1} parent=1 // pred_region
      _
    $region149: #{encoder_forward.1} parent=1 // pred_fallthru
      _
    // Predicated region
    $region150: #{encoder_forward.1} parent=1 // pred_check
      _
    $region151: #{encoder_forward.1} parent=1 // pred_check_branch
      %256 = sbr.rel (0) target = $region153
    $region152: #{encoder_forward.1} parent=1 // pred_region
      %258 = vsyncadd [#allocation9], 0
      %s260 = sshll.u32 %s75, 4
      %s261 = int_to_ptr.hbm [resolvable:$true] %s260
      %s262 = sshll.u32 [#allocation10], 4
      %s263 = int_to_ptr.vmem [resolvable:$true] %s262
      %265 = dma.hbm_to_vmem [thread:$0]  %s261, 16, %s263, [#allocation9]
    $region153: #{encoder_forward.1} parent=1 // pred_fallthru
      _
    // Predicated region
    $region154: #{encoder_forward.1} parent=1 // pred_check
      _
    $region155: #{encoder_forward.1} parent=1 // pred_check_branch
      %267 = sbr.rel (0) target = $region157
    $region156: #{encoder_forward.1} parent=1 // pred_region
      _
    $region157: #{encoder_forward.1} parent=1 // pred_fallthru
      _
    // Predicated region
    $region158: #{encoder_forward.1} parent=1 // pred_check
      _
    $region159: #{encoder_forward.1} parent=1 // pred_check_branch
      %269 = sbr.rel (0) target = $region161
    $region160: #{encoder_forward.1} parent=1 // pred_region
      %271 = vsyncadd [#allocation12], 0
      %s273 = sshll.u32 %s79, 4
      %s274 = int_to_ptr.hbm [resolvable:$true] %s273
      %s275 = sshll.u32 [#allocation11], 4
      %s276 = int_to_ptr.vmem [resolvable:$true] %s275
      %278 = dma.hbm_to_vmem [thread:$0]  %s274, 16, %s276, [#allocation12]
    $region161: #{encoder_forward.1} parent=1 // pred_fallthru
      _
    // Predicated region
    $region162: #{encoder_forward.1} parent=1 // pred_check
      _
    $region163: #{encoder_forward.1} parent=1 // pred_check_branch
      %280 = sbr.rel (0) target = $region165
    $region164: #{encoder_forward.1} parent=1 // pred_region
      %282 = vsyncadd [#allocation12], 0
      %s284 = sshll.u32 %s81, 4
      %s285 = int_to_ptr.hbm [resolvable:$true] %s284
      %s286 = sshll.u32 [#allocation13], 4
      %s287 = int_to_ptr.vmem [resolvable:$true] %s286
      %289 = dma.hbm_to_vmem [thread:$0]  %s285, 16, %s287, [#allocation12]
    $region165: #{encoder_forward.1} parent=1 // pred_fallthru
      _
    // Predicated region
    $region166: #{encoder_forward.1} parent=1 // pred_check
      _
    $region167: #{encoder_forward.1} parent=1 // pred_check_branch
      %291 = sbr.rel (0) target = $region169
    $region168: #{encoder_forward.1} parent=1 // pred_region
      %293 = vsyncadd [#allocation15], 0
      %s295 = sshll.u32 %s83, 4
      %s296 = int_to_ptr.hbm [resolvable:$true] %s295
      %s297 = sshll.u32 [#allocation14], 4
      %s298 = int_to_ptr.vmem [resolvable:$true] %s297
      %300 = dma.hbm_to_vmem [thread:$0]  %s296, 16, %s298, [#allocation15]
    $region169: #{encoder_forward.1} parent=1 // pred_fallthru
      _
    // Predicated region
    $region170: #{encoder_forward.1} parent=1 // pred_check
      _
    $region171: #{encoder_forward.1} parent=1 // pred_check_branch
      %302 = sbr.rel (0) target = $region173
    $region172: #{encoder_forward.1} parent=1 // pred_region
      _
    $region173: #{encoder_forward.1} parent=1 // pred_fallthru
      _
    // Predicated region
    $region174: #{encoder_forward.1} parent=1 // pred_check
      _
    $region175: #{encoder_forward.1} parent=1 // pred_check_branch
      %304 = sbr.rel (0) target = $region177
    $region176: #{encoder_forward.1} parent=1 // pred_region
      %306 = vsyncadd [#allocation15], 0
      %s308 = sshll.u32 %s87, 4
      %s309 = int_to_ptr.hbm [resolvable:$true] %s308
      %s310 = sshll.u32 [#allocation16], 4
      %s311 = int_to_ptr.vmem [resolvable:$true] %s310
      %313 = dma.hbm_to_vmem [thread:$0]  %s309, 16, %s311, [#allocation15]
    $region177: #{encoder_forward.1} parent=1 // pred_fallthru
      _
    // Predicated region
    $region178: #{encoder_forward.1} parent=1 // pred_check
      _
    $region179: #{encoder_forward.1} parent=1 // pred_check_branch
      %315 = sbr.rel (0) target = $region181
    $region180: #{encoder_forward.1} parent=1 // pred_region
      _
    $region181: #{encoder_forward.1} parent=1 // pred_fallthru
      _
    // Predicated region
    $region182: #{encoder_forward.1} parent=1 // pred_check
      _
    $region183: #{encoder_forward.1} parent=1 // pred_check_branch
      %317 = sbr.rel (0) target = $region185
    $region184: #{encoder_forward.1} parent=1 // pred_region
      %319 = vsyncadd [#allocation18], 0
      %s321 = sshll.u32 %s91, 4
      %s322 = int_to_ptr.hbm [resolvable:$true] %s321
      %s323 = sshll.u32 [#allocation17], 4
      %s324 = int_to_ptr.vmem [resolvable:$true] %s323
      %326 = dma.hbm_to_vmem [thread:$0]  %s322, 16, %s324, [#allocation18]
    $region185: #{encoder_forward.1} parent=1 // pred_fallthru
      _
    // Predicated region
    $region186: #{encoder_forward.1} parent=1 // pred_check
      _
    $region187: #{encoder_forward.1} parent=1 // pred_check_branch
      %328 = sbr.rel (0) target = $region189
    $region188: #{encoder_forward.1} parent=1 // pred_region
      %330 = vsyncadd [#allocation18], 0
      %s332 = sshll.u32 %s93, 4
      %s333 = int_to_ptr.hbm [resolvable:$true] %s332
      %s334 = sshll.u32 [#allocation19], 4
      %s335 = int_to_ptr.vmem [resolvable:$true] %s334
      %337 = dma.hbm_to_vmem [thread:$0]  %s333, 16, %s335, [#allocation18]
    $region189: #{encoder_forward.1} parent=1 // pred_fallthru
      _
    // Predicated region
    $region190: #{encoder_forward.1} parent=1 // pred_check
      _
    $region191: #{encoder_forward.1} parent=1 // pred_check_branch
      %339 = sbr.rel (0) target = $region193
    $region192: #{encoder_forward.1} parent=1 // pred_region
      %341 = vsyncadd [#allocation21], 0
      %s343 = sshll.u32 %s95, 4
      %s344 = int_to_ptr.hbm [resolvable:$true] %s343
      %s345 = sshll.u32 [#allocation20], 4
      %s346 = int_to_ptr.vmem [resolvable:$true] %s345
      %348 = dma.hbm_to_vmem [thread:$0]  %s344, 16, %s346, [#allocation21]
    $region193: #{encoder_forward.1} parent=1 // pred_fallthru
      _
    // Predicated region
    $region194: #{encoder_forward.1} parent=1 // pred_check
      _
    $region195: #{encoder_forward.1} parent=1 // pred_check_branch
      %350 = sbr.rel (0) target = $region197
    $region196: #{encoder_forward.1} parent=1 // pred_region
      %352 = vsyncadd [#allocation21], 0
      %s354 = sshll.u32 %s97, 4
      %s355 = int_to_ptr.hbm [resolvable:$true] %s354
      %s356 = sshll.u32 [#allocation22], 4
      %s357 = int_to_ptr.vmem [resolvable:$true] %s356
      %359 = dma.hbm_to_vmem [thread:$0]  %s355, 16, %s357, [#allocation21]
    $region197: #{encoder_forward.1} parent=1 // pred_fallthru
      _
    // Predicated region
    $region198: #{encoder_forward.1} parent=1 // pred_check
      _
    $region199: #{encoder_forward.1} parent=1 // pred_check_branch
      %361 = sbr.rel (0) target = $region201
    $region200: #{encoder_forward.1} parent=1 // pred_region
      %363 = vsyncadd [#allocation24], 0
      %s365 = sshll.u32 %s99, 4
      %s366 = int_to_ptr.hbm [resolvable:$true] %s365
      %s367 = sshll.u32 [#allocation23], 4
      %s368 = int_to_ptr.vmem [resolvable:$true] %s367
      %370 = dma.hbm_to_vmem [thread:$0]  %s366, 16, %s368, [#allocation24]
    $region201: #{encoder_forward.1} parent=1 // pred_fallthru
      _
    // Predicated region
    $region202: #{encoder_forward.1} parent=1 // pred_check
      _
    $region203: #{encoder_forward.1} parent=1 // pred_check_branch
      %372 = sbr.rel (0) target = $region205
    $region204: #{encoder_forward.1} parent=1 // pred_region
      _
    $region205: #{encoder_forward.1} parent=1 // pred_fallthru
      _
    // Predicated region
    $region206: #{encoder_forward.1} parent=1 // pred_check
      _
    $region207: #{encoder_forward.1} parent=1 // pred_check_branch
      %374 = sbr.rel (0) target = $region209
    $region208: #{encoder_forward.1} parent=1 // pred_region
      %376 = vsyncadd [#allocation24], 0
      %s378 = sshll.u32 %s103, 4
      %s379 = int_to_ptr.hbm [resolvable:$true] %s378
      %s380 = sshll.u32 [#allocation25], 4
      %s381 = int_to_ptr.vmem [resolvable:$true] %s380
      %383 = dma.hbm_to_vmem [thread:$0]  %s379, 16, %s381, [#allocation24]
    $region209: #{encoder_forward.1} parent=1 // pred_fallthru
      _
    // Predicated region
    $region210: #{encoder_forward.1} parent=1 // pred_check
      _
    $region211: #{encoder_forward.1} parent=1 // pred_check_branch
      %385 = sbr.rel (0) target = $region213
    $region212: #{encoder_forward.1} parent=1 // pred_region
      _
    $region213: #{encoder_forward.1} parent=1 // pred_fallthru
      _
    // Predicated region
    $region214: #{encoder_forward.1} parent=1 // pred_check
      _
    $region215: #{encoder_forward.1} parent=1 // pred_check_branch
      %387 = sbr.rel (0) target = $region217
    $region216: #{encoder_forward.1} parent=1 // pred_region
      %389 = vsyncadd [#allocation27], 0
      %s391 = sshll.u32 %s107, 4
      %s392 = int_to_ptr.hbm [resolvable:$true] %s391
      %s393 = sshll.u32 [#allocation26], 4
      %s394 = int_to_ptr.vmem [resolvable:$true] %s393
      %396 = dma.hbm_to_vmem [thread:$0]  %s392, 16, %s394, [#allocation27]
    $region217: #{encoder_forward.1} parent=1 // pred_fallthru
      _
    // Predicated region
    $region218: #{encoder_forward.1} parent=1 // pred_check
      _
    $region219: #{encoder_forward.1} parent=1 // pred_check_branch
      %398 = sbr.rel (0) target = $region221
    $region220: #{encoder_forward.1} parent=1 // pred_region
      _
    $region221: #{encoder_forward.1} parent=1 // pred_fallthru
      _
    // Predicated region
    $region222: #{encoder_forward.1} parent=1 // pred_check
      _
    $region223: #{encoder_forward.1} parent=1 // pred_check_branch
      %400 = sbr.rel (0) target = $region225
    $region224: #{encoder_forward.1} parent=1 // pred_region
      %402 = vsyncadd [#allocation27], 0
      %s404 = sshll.u32 %s111, 4
      %s405 = int_to_ptr.hbm [resolvable:$true] %s404
      %s406 = sshll.u32 [#allocation28], 4
      %s407 = int_to_ptr.vmem [resolvable:$true] %s406
      %409 = dma.hbm_to_vmem [thread:$0]  %s405, 16, %s407, [#allocation27]
    $region225: #{encoder_forward.1} parent=1 // pred_fallthru
      _
    // Predicated region
    $region226: #{encoder_forward.1} parent=1 // pred_check
      _
    $region227: #{encoder_forward.1} parent=1 // pred_check_branch
      %411 = sbr.rel (0) target = $region229
    $region228: #{encoder_forward.1} parent=1 // pred_region
      %413 = vsyncadd [#allocation30], 0
      %s415 = sshll.u32 %s113, 4
      %s416 = int_to_ptr.hbm [resolvable:$true] %s415
      %s417 = sshll.u32 [#allocation29], 4
      %s418 = int_to_ptr.vmem [resolvable:$true] %s417
      %420 = dma.hbm_to_vmem [thread:$0]  %s416, 16, %s418, [#allocation30]
    $region229: #{encoder_forward.1} parent=1 // pred_fallthru
      _
    // Predicated region
    $region230: #{encoder_forward.1} parent=1 // pred_check
      _
    $region231: #{encoder_forward.1} parent=1 // pred_check_branch
      %422 = sbr.rel (0) target = $region233
    $region232: #{encoder_forward.1} parent=1 // pred_region
      %424 = vsyncadd [#allocation30], 0
      %s426 = sshll.u32 %s115, 4
      %s427 = int_to_ptr.hbm [resolvable:$true] %s426
      %s428 = sshll.u32 [#allocation31], 4
      %s429 = int_to_ptr.vmem [resolvable:$true] %s428
      %431 = dma.hbm_to_vmem [thread:$0]  %s427, 16, %s429, [#allocation30]
    $region233: #{encoder_forward.1} parent=1 // pred_fallthru
      _
    // Predicated region
    $region234: #{encoder_forward.1} parent=1 // pred_check
      _
    $region235: #{encoder_forward.1} parent=1 // pred_check_branch
      %433 = sbr.rel (0) target = $region237
    $region236: #{encoder_forward.1} parent=1 // pred_region
      _
    $region237: #{encoder_forward.1} parent=1 // pred_fallthru
      _
    // Predicated region
    $region238: #{encoder_forward.1} parent=1 // pred_check
      _
    $region239: #{encoder_forward.1} parent=1 // pred_check_branch
      %435 = sbr.rel (0) target = $region241
    $region240: #{encoder_forward.1} parent=1 // pred_region
      %437 = vsyncadd [#allocation33], 0
      %s439 = sshll.u32 %s119, 4
      %s440 = int_to_ptr.hbm [resolvable:$true] %s439
      %s441 = sshll.u32 [#allocation32], 4
      %s442 = int_to_ptr.vmem [resolvable:$true] %s441
      %444 = dma.hbm_to_vmem [thread:$0]  %s440, 16, %s442, [#allocation33]
    $region241: #{encoder_forward.1} parent=1 // pred_fallthru
      _
    // Predicated region
    $region242: #{encoder_forward.1} parent=1 // pred_check
      _
    $region243: #{encoder_forward.1} parent=1 // pred_check_branch
      %446 = sbr.rel (0) target = $region245
    $region244: #{encoder_forward.1} parent=1 // pred_region
      _
    $region245: #{encoder_forward.1} parent=1 // pred_fallthru
      _
    // Predicated region
    $region246: #{encoder_forward.1} parent=1 // pred_check
      _
    $region247: #{encoder_forward.1} parent=1 // pred_check_branch
      %448 = sbr.rel (0) target = $region249
    $region248: #{encoder_forward.1} parent=1 // pred_region
      %450 = vsyncadd [#allocation33], 0
      %s452 = sshll.u32 %s123, 4
      %s453 = int_to_ptr.hbm [resolvable:$true] %s452
      %s454 = sshll.u32 [#allocation34], 4
      %s455 = int_to_ptr.vmem [resolvable:$true] %s454
      %457 = dma.hbm_to_vmem [thread:$0]  %s453, 16, %s455, [#allocation33]
    $region249: #{encoder_forward.1} parent=1 // pred_fallthru
      _
    // Predicated region
    $region250: #{encoder_forward.1} parent=1 // pred_check
      _
    $region251: #{encoder_forward.1} parent=1 // pred_check_branch
      %459 = sbr.rel (0) target = $region253
    $region252: #{encoder_forward.1} parent=1 // pred_region
      %461 = dma.done [#allocation3], 16
    $region253: #{encoder_forward.1} parent=1 // pred_fallthru
      _
    // Predicated region
    $region254: #{encoder_forward.1} parent=1 // pred_check
      _
    $region255: #{encoder_forward.1} parent=1 // pred_check_branch
      %463 = sbr.rel (0) target = $region257
    $region256: #{encoder_forward.1} parent=1 // pred_region
      %465 = dma.done [#allocation6], 16
    $region257: #{encoder_forward.1} parent=1 // pred_fallthru
      _
    // Predicated region
    $region258: #{encoder_forward.1} parent=1 // pred_check
      _
    $region259: #{encoder_forward.1} parent=1 // pred_check_branch
      %467 = sbr.rel (0) target = $region261
    $region260: #{encoder_forward.1} parent=1 // pred_region
      %469 = dma.done [#allocation6], 16
    $region261: #{encoder_forward.1} parent=1 // pred_fallthru
      _
    // Predicated region
    $region262: #{encoder_forward.1} parent=1 // pred_check
      _
    $region263: #{encoder_forward.1} parent=1 // pred_check_branch
      %471 = sbr.rel (0) target = $region265
    $region264: #{encoder_forward.1} parent=1 // pred_region
      %473 = dma.done [#allocation9], 16
    $region265: #{encoder_forward.1} parent=1 // pred_fallthru
      _
    // Predicated region
    $region266: #{encoder_forward.1} parent=1 // pred_check
      _
    $region267: #{encoder_forward.1} parent=1 // pred_check_branch
      %475 = sbr.rel (0) target = $region269
    $region268: #{encoder_forward.1} parent=1 // pred_region
      %477 = dma.done [#allocation9], 16
    $region269: #{encoder_forward.1} parent=1 // pred_fallthru
      _
    // Predicated region
    $region270: #{encoder_forward.1} parent=1 // pred_check
      _
    $region271: #{encoder_forward.1} parent=1 // pred_check_branch
      %479 = sbr.rel (0) target = $region273
    $region272: #{encoder_forward.1} parent=1 // pred_region
      %481 = dma.done [#allocation12], 16
    $region273: #{encoder_forward.1} parent=1 // pred_fallthru
      _
    // Predicated region
    $region274: #{encoder_forward.1} parent=1 // pred_check
      _
    $region275: #{encoder_forward.1} parent=1 // pred_check_branch
      %483 = sbr.rel (0) target = $region277
    $region276: #{encoder_forward.1} parent=1 // pred_region
      %485 = dma.done [#allocation12], 16
    $region277: #{encoder_forward.1} parent=1 // pred_fallthru
      _
    // Predicated region
    $region278: #{encoder_forward.1} parent=1 // pred_check
      _
    $region279: #{encoder_forward.1} parent=1 // pred_check_branch
      %487 = sbr.rel (0) target = $region281
    $region280: #{encoder_forward.1} parent=1 // pred_region
      %489 = dma.done [#allocation15], 16
    $region281: #{encoder_forward.1} parent=1 // pred_fallthru
      _
    // Predicated region
    $region282: #{encoder_forward.1} parent=1 // pred_check
      _
    $region283: #{encoder_forward.1} parent=1 // pred_check_branch
      %491 = sbr.rel (0) target = $region285
    $region284: #{encoder_forward.1} parent=1 // pred_region
      %493 = dma.done [#allocation15], 16
    $region285: #{encoder_forward.1} parent=1 // pred_fallthru
      _
    // Predicated region
    $region286: #{encoder_forward.1} parent=1 // pred_check
      _
    $region287: #{encoder_forward.1} parent=1 // pred_check_branch
      %495 = sbr.rel (0) target = $region289
    $region288: #{encoder_forward.1} parent=1 // pred_region
      %497 = dma.done [#allocation18], 16
    $region289: #{encoder_forward.1} parent=1 // pred_fallthru
      _
    // Predicated region
    $region290: #{encoder_forward.1} parent=1 // pred_check
      _
    $region291: #{encoder_forward.1} parent=1 // pred_check_branch
      %499 = sbr.rel (0) target = $region293
    $region292: #{encoder_forward.1} parent=1 // pred_region
      %501 = dma.done [#allocation18], 16
    $region293: #{encoder_forward.1} parent=1 // pred_fallthru
      _
    // Predicated region
    $region294: #{encoder_forward.1} parent=1 // pred_check
      _
    $region295: #{encoder_forward.1} parent=1 // pred_check_branch
      %503 = sbr.rel (0) target = $region297
    $region296: #{encoder_forward.1} parent=1 // pred_region
      %505 = dma.done [#allocation21], 16
    $region297: #{encoder_forward.1} parent=1 // pred_fallthru
      _
    // Predicated region
    $region298: #{encoder_forward.1} parent=1 // pred_check
      _
    $region299: #{encoder_forward.1} parent=1 // pred_check_branch
      %507 = sbr.rel (0) target = $region301
    $region300: #{encoder_forward.1} parent=1 // pred_region
      %509 = dma.done [#allocation21], 16
    $region301: #{encoder_forward.1} parent=1 // pred_fallthru
      _
    // Predicated region
    $region302: #{encoder_forward.1} parent=1 // pred_check
      _
    $region303: #{encoder_forward.1} parent=1 // pred_check_branch
      %511 = sbr.rel (0) target = $region305
    $region304: #{encoder_forward.1} parent=1 // pred_region
      %513 = dma.done [#allocation24], 16
    $region305: #{encoder_forward.1} parent=1 // pred_fallthru
      _
    // Predicated region
    $region306: #{encoder_forward.1} parent=1 // pred_check
      _
    $region307: #{encoder_forward.1} parent=1 // pred_check_branch
      %515 = sbr.rel (0) target = $region309
    $region308: #{encoder_forward.1} parent=1 // pred_region
      %517 = dma.done [#allocation24], 16
    $region309: #{encoder_forward.1} parent=1 // pred_fallthru
      _
    // Predicated region
    $region310: #{encoder_forward.1} parent=1 // pred_check
      _
    $region311: #{encoder_forward.1} parent=1 // pred_check_branch
      %519 = sbr.rel (0) target = $region313
    $region312: #{encoder_forward.1} parent=1 // pred_region
      %521 = dma.done [#allocation27], 16
    $region313: #{encoder_forward.1} parent=1 // pred_fallthru
      _
    // Predicated region
    $region314: #{encoder_forward.1} parent=1 // pred_check
      _
    $region315: #{encoder_forward.1} parent=1 // pred_check_branch
      %523 = sbr.rel (0) target = $region317
    $region316: #{encoder_forward.1} parent=1 // pred_region
      %525 = dma.done [#allocation27], 16
    $region317: #{encoder_forward.1} parent=1 // pred_fallthru
      _
    // Predicated region
    $region318: #{encoder_forward.1} parent=1 // pred_check
      _
    $region319: #{encoder_forward.1} parent=1 // pred_check_branch
      %527 = sbr.rel (0) target = $region321
    $region320: #{encoder_forward.1} parent=1 // pred_region
      %529 = dma.done [#allocation30], 16
    $region321: #{encoder_forward.1} parent=1 // pred_fallthru
      _
    // Predicated region
    $region322: #{encoder_forward.1} parent=1 // pred_check
      _
    $region323: #{encoder_forward.1} parent=1 // pred_check_branch
      %531 = sbr.rel (0) target = $region325
    $region324: #{encoder_forward.1} parent=1 // pred_region
      %533 = dma.done [#allocation30], 16
    $region325: #{encoder_forward.1} parent=1 // pred_fallthru
      _
    // Predicated region
    $region326: #{encoder_forward.1} parent=1 // pred_check
      _
    $region327: #{encoder_forward.1} parent=1 // pred_check_branch
      %535 = sbr.rel (0) target = $region329
    $region328: #{encoder_forward.1} parent=1 // pred_region
      %537 = dma.done [#allocation33], 16
    $region329: #{encoder_forward.1} parent=1 // pred_fallthru
      _
    // Predicated region
    $region330: #{encoder_forward.1} parent=1 // pred_check
      _
    $region331: #{encoder_forward.1} parent=1 // pred_check_branch
      %539 = sbr.rel (0) target = $region333
    $region332: #{encoder_forward.1} parent=1 // pred_region
      %541 = dma.done [#allocation33], 16
    $region333: #{encoder_forward.1} parent=1 // pred_fallthru
      _
    %v543 = vld [vmem:[%s13] sm:$0x1]
    %v544 = vld [vmem:[%s15] sm:$0x1]
    %v545 = vld [vmem:[%s17] sm:$0xf]
    %v546 = vld [vmem:[%s17 + $0x4] sm:$0xf]
    %v547 = vld [vmem:[%s17 + $0x8] sm:$0xf]
    %v548 = vld [vmem:[%s17 + $0xc] sm:$0xf]
    %v549 = vld [vmem:[%s19] sm:$0x1]
    %v550 = vld [vmem:[%s21] sm:$0xf]
    %v551 = vld [vmem:[%s21 + $0x4] sm:$0xf]
    %v552 = vld [vmem:[%s21 + $0x8] sm:$0xf]
    %v553 = vld [vmem:[%s21 + $0xc] sm:$0xf]
    %v554 = vld [vmem:[%s23] sm:$0x1]
    %v555 = vld [vmem:[%s25] sm:$0x1]
    %v556 = vld [vmem:[%s27] sm:$0x1]
    %v557 = vld [vmem:[%s29] sm:$0xf]
    %v558 = vld [vmem:[%s29 + $0x4] sm:$0xf]
    %v559 = vld [vmem:[%s29 + $0x8] sm:$0xf]
    %v560 = vld [vmem:[%s29 + $0xc] sm:$0xf]
    %v561 = vld [vmem:[%s31] sm:$0x1]
    %v562 = vld [vmem:[%s33] sm:$0xf]
    %v563 = vld [vmem:[%s33 + $0x4] sm:$0xf]
    %v564 = vld [vmem:[%s33 + $0x8] sm:$0xf]
    %v565 = vld [vmem:[%s33 + $0xc] sm:$0xf]
    %v566 = vld [vmem:[%s33 + $0x10] sm:$0xf]
    %v567 = vld [vmem:[%s33 + $0x14] sm:$0xf]
    %v568 = vld [vmem:[%s33 + $0x18] sm:$0xf]
    %v569 = vld [vmem:[%s33 + $0x1c] sm:$0xf]
    %v570 = vld [vmem:[%s33 + $0x20] sm:$0xf]
    %v571 = vld [vmem:[%s33 + $0x24] sm:$0xf]
    %v572 = vld [vmem:[%s33 + $0x28] sm:$0xf]
    %v573 = vld [vmem:[%s33 + $0x2c] sm:$0xf]
    %v574 = vld [vmem:[%s33 + $0x30] sm:$0xf]
    %v575 = vld [vmem:[%s33 + $0x34] sm:$0xf]
    %v576 = vld [vmem:[%s33 + $0x38] sm:$0xf]
    %v577 = vld [vmem:[%s33 + $0x3c] sm:$0xf]
    %v578 = vld [vmem:[%s35] sm:$0x1]
    %v579 = vld [vmem:[%s37] sm:$0x1]
    %v580 = vld [vmem:[%s39] sm:$0x1]
    %v581 = vld [vmem:[%s41] sm:$0xf]
    %v582 = vld [vmem:[%s41 + $0x4] sm:$0xf]
    %v583 = vld [vmem:[%s41 + $0x8] sm:$0xf]
    %v584 = vld [vmem:[%s41 + $0xc] sm:$0xf]
    %v585 = vld [vmem:[%s43] sm:$0x1]
    %v586 = vld [vmem:[%s45] sm:$0xf]
    %v587 = vld [vmem:[%s45 + $0x4] sm:$0xf]
    %v588 = vld [vmem:[%s45 + $0x8] sm:$0xf]
    %v589 = vld [vmem:[%s45 + $0xc] sm:$0xf]
    %v590 = vld [vmem:[%s47] sm:$0x1]
    %v591 = vld [vmem:[%s49] sm:$0x1]
    %v592 = vld [vmem:[%s51] sm:$0x1]
    %v593 = vld [vmem:[%s53] sm:$0xf]
    %v594 = vld [vmem:[%s53 + $0x4] sm:$0xf]
    %v595 = vld [vmem:[%s53 + $0x8] sm:$0xf]
    %v596 = vld [vmem:[%s53 + $0xc] sm:$0xf]
    %v597 = vld [vmem:[%s55] sm:$0x1]
    %v598 = vld [vmem:[%s57] sm:$0xf]
    %v599 = vld [vmem:[%s57 + $0x4] sm:$0xf]
    %v600 = vld [vmem:[%s57 + $0x8] sm:$0xf]
    %v601 = vld [vmem:[%s57 + $0xc] sm:$0xf]
    %v602 = vld [vmem:[%s57 + $0x10] sm:$0xf]
    %v603 = vld [vmem:[%s57 + $0x14] sm:$0xf]
    %v604 = vld [vmem:[%s57 + $0x18] sm:$0xf]
    %v605 = vld [vmem:[%s57 + $0x1c] sm:$0xf]
    %v606 = vld [vmem:[%s57 + $0x20] sm:$0xf]
    %v607 = vld [vmem:[%s57 + $0x24] sm:$0xf]
    %v608 = vld [vmem:[%s57 + $0x28] sm:$0xf]
    %v609 = vld [vmem:[%s57 + $0x2c] sm:$0xf]
    %v610 = vld [vmem:[%s57 + $0x30] sm:$0xf]
    %v611 = vld [vmem:[%s57 + $0x34] sm:$0xf]
    %v612 = vld [vmem:[%s57 + $0x38] sm:$0xf]
    %v613 = vld [vmem:[%s57 + $0x3c] sm:$0xf]
    %v614 = vld [vmem:[%s59] sm:$0x1]
    %v615 = vld [vmem:[%s61] sm:$0x1]
    %v616 = vld [vmem:[#allocation2] sm:$0x1]
    %v617 = vld [vmem:[#allocation5] sm:$0x1]
    %v618 = vld [vmem:[#allocation7] sm:$0x1]
    %v619 = vld [vmem:[%s69] sm:$0xf]
    %v620 = vld [vmem:[%s69 + $0x4] sm:$0xf]
    %v621 = vld [vmem:[%s69 + $0x8] sm:$0xf]
    %v622 = vld [vmem:[%s69 + $0xc] sm:$0xf]
    %v623 = vld [vmem:[#allocation8] sm:$0x1]
    %v624 = vld [vmem:[%s73] sm:$0xf]
    %v625 = vld [vmem:[%s73 + $0x4] sm:$0xf]
    %v626 = vld [vmem:[%s73 + $0x8] sm:$0xf]
    %v627 = vld [vmem:[%s73 + $0xc] sm:$0xf]
    %v628 = vld [vmem:[#allocation10] sm:$0x1]
    %v629 = vld [vmem:[%s77] sm:$0xf]
    %v630 = vld [vmem:[%s77 + $0x4] sm:$0xf]
    %v631 = vld [vmem:[%s77 + $0x8] sm:$0xf]
    %v632 = vld [vmem:[%s77 + $0xc] sm:$0xf]
    %v633 = vld [vmem:[#allocation11] sm:$0x1]
    %v634 = vld [vmem:[#allocation13] sm:$0x1]
    %v635 = vld [vmem:[#allocation14] sm:$0x1]
    %v636 = vld [vmem:[%s85] sm:$0xf]
    %v637 = vld [vmem:[%s85 + $0x4] sm:$0xf]
    %v638 = vld [vmem:[%s85 + $0x8] sm:$0xf]
    %v639 = vld [vmem:[%s85 + $0xc] sm:$0xf]
    %v640 = vld [vmem:[#allocation16] sm:$0x1]
    %v641 = vld [vmem:[%s89] sm:$0xf]
    %v642 = vld [vmem:[%s89 + $0x4] sm:$0xf]
    %v643 = vld [vmem:[%s89 + $0x8] sm:$0xf]
    %v644 = vld [vmem:[%s89 + $0xc] sm:$0xf]
    %v645 = vld [vmem:[%s89 + $0x10] sm:$0xf]
    %v646 = vld [vmem:[%s89 + $0x14] sm:$0xf]
    %v647 = vld [vmem:[%s89 + $0x18] sm:$0xf]
    %v648 = vld [vmem:[%s89 + $0x1c] sm:$0xf]
    %v649 = vld [vmem:[%s89 + $0x20] sm:$0xf]
    %v650 = vld [vmem:[%s89 + $0x24] sm:$0xf]
    %v651 = vld [vmem:[%s89 + $0x28] sm:$0xf]
    %v652 = vld [vmem:[%s89 + $0x2c] sm:$0xf]
    %v653 = vld [vmem:[%s89 + $0x30] sm:$0xf]
    %v654 = vld [vmem:[%s89 + $0x34] sm:$0xf]
    %v655 = vld [vmem:[%s89 + $0x38] sm:$0xf]
    %v656 = vld [vmem:[%s89 + $0x3c] sm:$0xf]
    %v657 = vld [vmem:[#allocation17] sm:$0x1]
    %v658 = vld [vmem:[#allocation19] sm:$0x1]
    %v659 = vld [vmem:[#allocation20] sm:$0x1]
    %v660 = vld [vmem:[#allocation22] sm:$0x1]
    %v661 = vld [vmem:[#allocation23] sm:$0x1]
    %v662 = vld [vmem:[%s101] sm:$0xf]
    %v663 = vld [vmem:[%s101 + $0x4] sm:$0xf]
    %v664 = vld [vmem:[%s101 + $0x8] sm:$0xf]
    %v665 = vld [vmem:[%s101 + $0xc] sm:$0xf]
    %v666 = vld [vmem:[#allocation25] sm:$0x1]
    %v667 = vld [vmem:[%s105] sm:$0xf]
    %v668 = vld [vmem:[%s105 + $0x4] sm:$0xf]
    %v669 = vld [vmem:[%s105 + $0x8] sm:$0xf]
    %v670 = vld [vmem:[%s105 + $0xc] sm:$0xf]
    %v671 = vld [vmem:[#allocation26] sm:$0x1]
    %v672 = vld [vmem:[%s109] sm:$0xf]
    %v673 = vld [vmem:[%s109 + $0x4] sm:$0xf]
    %v674 = vld [vmem:[%s109 + $0x8] sm:$0xf]
    %v675 = vld [vmem:[%s109 + $0xc] sm:$0xf]
    %v676 = vld [vmem:[#allocation28] sm:$0x1]
    %v677 = vld [vmem:[#allocation29] sm:$0x1]
    %v678 = vld [vmem:[#allocation31] sm:$0x1]
    %v679 = vld [vmem:[%s117] sm:$0xf]
    %v680 = vld [vmem:[%s117 + $0x4] sm:$0xf]
    %v681 = vld [vmem:[%s117 + $0x8] sm:$0xf]
    %v682 = vld [vmem:[%s117 + $0xc] sm:$0xf]
    %v683 = vld [vmem:[#allocation32] sm:$0x1]
    %v684 = vld [vmem:[%s121] sm:$0xf]
    %v685 = vld [vmem:[%s121 + $0x4] sm:$0xf]
    %v686 = vld [vmem:[%s121 + $0x8] sm:$0xf]
    %v687 = vld [vmem:[%s121 + $0xc] sm:$0xf]
    %v688 = vld [vmem:[%s121 + $0x10] sm:$0xf]
    %v689 = vld [vmem:[%s121 + $0x14] sm:$0xf]
    %v690 = vld [vmem:[%s121 + $0x18] sm:$0xf]
    %v691 = vld [vmem:[%s121 + $0x1c] sm:$0xf]
    %v692 = vld [vmem:[%s121 + $0x20] sm:$0xf]
    %v693 = vld [vmem:[%s121 + $0x24] sm:$0xf]
    %v694 = vld [vmem:[%s121 + $0x28] sm:$0xf]
    %v695 = vld [vmem:[%s121 + $0x2c] sm:$0xf]
    %v696 = vld [vmem:[%s121 + $0x30] sm:$0xf]
    %v697 = vld [vmem:[%s121 + $0x34] sm:$0xf]
    %v698 = vld [vmem:[%s121 + $0x38] sm:$0xf]
    %v699 = vld [vmem:[%s121 + $0x3c] sm:$0xf]
    %v700 = vld [vmem:[#allocation34] sm:$0x1]
    %v701 = vld [vmem:[%s1] sm:$0xff]
    %v702 = vld [vmem:[%s1 + $0x8] sm:$0xff]
    %v703 = vld [vmem:[%s1 + $0x10] sm:$0xff]
    %v704 = vld [vmem:[%s1 + $0x18] sm:$0xff]
    %v705 = vld [vmem:[%s3] sm:$0xff]
    %v706 = vld [vmem:[%s3 + $0x8] sm:$0xff]
    %v707 = vld [vmem:[%s3 + $0x10] sm:$0xff]
    %v708 = vld [vmem:[%s3 + $0x18] sm:$0xff]
    %v709 = vld [vmem:[%s3 + $0x20] sm:$0xff]
    %v710 = vld [vmem:[%s3 + $0x28] sm:$0xff]
    %v711 = vld [vmem:[%s3 + $0x30] sm:$0xff]
    %v712 = vld [vmem:[%s3 + $0x38] sm:$0xff]
    %v713 = vld [vmem:[%s3 + $0x40] sm:$0xff]
    %v714 = vld [vmem:[%s3 + $0x48] sm:$0xff]
    %v715 = vld [vmem:[%s3 + $0x50] sm:$0xff]
    %v716 = vld [vmem:[%s3 + $0x58] sm:$0xff]
    %v717 = vld [vmem:[%s3 + $0x60] sm:$0xff]
    %v718 = vld [vmem:[%s3 + $0x68] sm:$0xff]
    %v719 = vld [vmem:[%s3 + $0x70] sm:$0xff]
    %v720 = vld [vmem:[%s3 + $0x78] sm:$0xff]
    %v721 = vld [vmem:[%s5] sm:$0xff]
    %v722 = vld [vmem:[%s5 + $0x8] sm:$0xff]
    %v723 = vld [vmem:[%s5 + $0x10] sm:$0xff]
    %v724 = vld [vmem:[%s5 + $0x18] sm:$0xff]
    %v725 = vld [vmem:[%s5 + $0x20] sm:$0xff]
    %v726 = vld [vmem:[%s5 + $0x28] sm:$0xff]
    %v727 = vld [vmem:[%s5 + $0x30] sm:$0xff]
    %v728 = vld [vmem:[%s5 + $0x38] sm:$0xff]
    %vm729 = vcmask 261120
    %v730 = vsel %vm729, %v701, 0.0
    %731 = vadd.xlane.f32.xlu0 %v730
    %v732 = vpop.xlane.xlu0 %731
    %v733 = vsel %vm729, %v702, 0.0
    %734 = vadd.xlane.f32.xlu0 %v733
    %v735 = vpop.xlane.xlu0 %734
    %v736 = vsel %vm729, %v703, 0.0
    %737 = vadd.xlane.f32.xlu0 %v736
    %v738 = vpop.xlane.xlu0 %737
    %v739 = vsel %vm729, %v704, 0.0
    %740 = vadd.xlane.f32.xlu0 %v739
    %v741 = vpop.xlane.xlu0 %740
    %v742 = vrcp.pop 32.0
    %v743 = vmul.f32 32.0, %v742
    %v744 = vsub.f32 1.0, %v743
    %v745 = vmul.f32 %v742, %v744
    %v746 = vadd.f32 %v742, %v745
    %vm747 = vweird.f32 %v742
    %v748 = vsel %vm747, %v742, %v746
    %v749 = vmul.f32 %v732, %v748
    %v750 = vmul.f32 %v735, %v748
    %v751 = vmul.f32 %v738, %v748
    %v752 = vmul.f32 %v741, %v748
    %v753 = vsub.f32 %v701, %v749
    %v754 = vsub.f32 %v702, %v750
    %v755 = vsub.f32 %v703, %v751
    %v756 = vsub.f32 %v704, %v752
    %v757 = vmul.f32 %v753, %v753
    %v758 = vmul.f32 %v754, %v754
    %v759 = vmul.f32 %v755, %v755
    %v760 = vmul.f32 %v756, %v756
    %v761 = vsel %vm729, %v757, 0.0
    %762 = vadd.xlane.f32.xlu0 %v761
    %v763 = vpop.xlane.xlu0 %762
    %v764 = vsel %vm729, %v758, 0.0
    %765 = vadd.xlane.f32.xlu0 %v764
    %v766 = vpop.xlane.xlu0 %765
    %v767 = vsel %vm729, %v759, 0.0
    %768 = vadd.xlane.f32.xlu0 %v767
    %v769 = vpop.xlane.xlu0 %768
    %v770 = vsel %vm729, %v760, 0.0
    %771 = vadd.xlane.f32.xlu0 %v770
    %v772 = vpop.xlane.xlu0 %771
    %v773 = vmul.f32 %v763, %v748
    %v774 = vmul.f32 %v766, %v748
    %v775 = vmul.f32 %v769, %v748
    %v776 = vmul.f32 %v772, %v748
    %v777 = vadd.f32 %v773, 1e-05
    %v778 = vadd.f32 %v774, 1e-05
    %v779 = vadd.f32 %v775, 1e-05
    %v780 = vadd.f32 %v776, 1e-05
    %v781 = vrsqrt.pop %v777
    %v782 = vmul.f32 %v781, %v777
    %v783 = vmul.f32 %v782, %v781
    %v784 = vmul.f32 0.5, %v783
    %v785 = vsub.f32 1.5, %v784
    %v786 = vmul.f32 %v781, %v785
    %vm787 = vweird.f32 %v777
    %vm788 = vweird.f32 %v781
    %vm789 = vmor %vm787, %vm788
    %v790 = vsel %vm789, %v781, %v786
    %v791 = vrsqrt.pop %v778
    %v792 = vmul.f32 %v791, %v778
    %v793 = vmul.f32 %v792, %v791
    %v794 = vmul.f32 0.5, %v793
    %v795 = vsub.f32 1.5, %v794
    %v796 = vmul.f32 %v791, %v795
    %vm797 = vweird.f32 %v778
    %vm798 = vweird.f32 %v791
    %vm799 = vmor %vm797, %vm798
    %v800 = vsel %vm799, %v791, %v796
    %v801 = vrsqrt.pop %v779
    %v802 = vmul.f32 %v801, %v779
    %v803 = vmul.f32 %v802, %v801
    %v804 = vmul.f32 0.5, %v803
    %v805 = vsub.f32 1.5, %v804
    %v806 = vmul.f32 %v801, %v805
    %vm807 = vweird.f32 %v779
    %vm808 = vweird.f32 %v801
    %vm809 = vmor %vm807, %vm808
    %v810 = vsel %vm809, %v801, %v806
    %v811 = vrsqrt.pop %v780
    %v812 = vmul.f32 %v811, %v780
    %v813 = vmul.f32 %v812, %v811
    %v814 = vmul.f32 0.5, %v813
    %v815 = vsub.f32 1.5, %v814
    %v816 = vmul.f32 %v811, %v815
    %vm817 = vweird.f32 %v780
    %vm818 = vweird.f32 %v811
    %vm819 = vmor %vm817, %vm818
    %v820 = vsel %vm819, %v811, %v816
    %v821 = vmul.f32 %v753, %v790
    %v822 = vmul.f32 %v754, %v800
    %v823 = vmul.f32 %v755, %v810
    %v824 = vmul.f32 %v756, %v820
    %v826 = vperm.slane %v543, 0
    %v828 = vmul.f32 %v821, %v826
    %v829 = vmul.f32 %v822, %v826
    %v830 = vmul.f32 %v823, %v826
    %v831 = vmul.f32 %v824, %v826
    %v833 = vperm.slane %v544, 0
    %v835 = vadd.f32 %v828, %v833
    %v836 = vadd.f32 %v829, %v833
    %v837 = vadd.f32 %v830, %v833
    %v838 = vadd.f32 %v831, %v833
    %v839 = vpack.c.bf16 %v836, %v835
    %v840 = vpack.c.bf16 %v838, %v837
    %v842 = vperm.slane %v549, 0
    %v848 = vunpack.c.l.b16 %v545
    %v849 = vunpack.c.l.b16 %v546
    %v850 = vunpack.c.l.b16 %v547
    %v851 = vunpack.c.l.b16 %v548
    %v852 = vpack.c.b16 %v849, %v848
    %v853 = vpack.c.b16 %v851, %v850
    %v857 = vsel %vm729, %v839, 0
    %v860 = vsel %vm729, %v840, 0
    %862 = vmatpush.bf16.msra.mxu0 0
    %863 = vmatpush.bf16.msra.mxu0 0
    %864 = vmatpush.bf16.msra.mxu0 0
    %865 = vmatpush.bf16.msra.mxu0 0
    %866 = vmatpush.bf16.msra.mxu0 0
    %867 = vmatpush.bf16.msra.mxu0 0
    %868 = vmatpush.bf16.msra.mxu0 %v853
    %869 = vmatpush.bf16.msra.mxu0 %v852
    %870 = vmatmul.bf16.gmra.mxu0 %v857
    %v871 = vpop.f32.mrf.mxu0
    %v872 = vadd.f32 %v842, %v871
    %v873 = vpop.f32.mrf.mxu0
    %v874 = vadd.f32 %v842, %v873
    %875 = vmatmul.bf16.gmra.mxu0 %v860
    %v876 = vpop.f32.mrf.mxu0
    %v877 = vadd.f32 %v842, %v876
    %v878 = vpop.f32.mrf.mxu0
    %v879 = vadd.f32 %v842, %v878
    %880 = vdwg.mxu0
    %v881 = vpack.c.bf16 %v872, %v872
    %v882 = vpack.c.bf16 %v874, %v874
    %v883 = vpack.c.bf16 %v877, %v877
    %v884 = vpack.c.bf16 %v879, %v879
    %v887 = vunpack.c.l.b16 %v881
    %v888 = vunpack.c.l.b16 %v882
    %v889 = vpack.c.b16 %v888, %v887
    %890 = vrot.lane.b32.xlu0 %v889, 96
    %v891 = vpop.permute.xlu0 %890
    %vm892 = vcmask 64512
    %v894 = vsel %vm892, %v889, 0
    %v897 = vsel %vm892, %v891, 0
    %899 = vmatpush.bf16.xpose.msra.mxu0 0
    %900 = vmatpush.bf16.xpose.msra.mxu0 0
    %901 = vmatpush.bf16.xpose.msra.mxu0 0
    %902 = vmatpush.bf16.xpose.msra.mxu0 0
    %903 = vmatpush.bf16.xpose.msra.mxu0 0
    %904 = vmatpush.bf16.xpose.msra.mxu0 0
    %905 = vmatpush.bf16.xpose.msra.mxu0 0
    %906 = vmatpush.bf16.xpose.msra.mxu0 %v897
    %907 = vmatmul.bf16.gmra.mxu0 %v894
    %v908 = vpop.f32.mrf.mxu0
    %v909 = vadd.f32 %v721, %v908
    %v910 = vpop.f32.mrf.mxu0
    %v911 = vadd.f32 %v722, %v910
    %912 = vdwg.mxu0
    %v915 = vunpack.c.l.b16 %v883
    %v916 = vunpack.c.l.b16 %v884
    %v917 = vpack.c.b16 %v916, %v915
    %918 = vrot.lane.b32.xlu0 %v917, 96
    %v919 = vpop.permute.xlu0 %918
    %v921 = vsel %vm892, %v917, 0
    %v924 = vsel %vm892, %v919, 0
    %926 = vmatpush.bf16.xpose.msra.mxu0 0
    %927 = vmatpush.bf16.xpose.msra.mxu0 0
    %928 = vmatpush.bf16.xpose.msra.mxu0 0
    %929 = vmatpush.bf16.xpose.msra.mxu0 0
    %930 = vmatpush.bf16.xpose.msra.mxu0 0
    %931 = vmatpush.bf16.xpose.msra.mxu0 0
    %932 = vmatpush.bf16.xpose.msra.mxu0 0
    %933 = vmatpush.bf16.xpose.msra.mxu0 %v924
    %934 = vmatmul.bf16.gmra.mxu0 %v921
    %v935 = vpop.f32.mrf.mxu0
    %v936 = vadd.f32 %v721, %v935
    %v937 = vpop.f32.mrf.mxu0
    %v938 = vadd.f32 %v722, %v937
    %939 = vdwg.mxu0
    %vm940 = vcmask 130048
    %v941 = vsel %vm940, %v909, -inf
    %942 = vmax.xlane.f32.xlu0 %v941
    %v943 = vpop.xlane.xlu0 %942
    %v944 = vsel %vm940, %v911, -inf
    %945 = vmax.xlane.f32.xlu0 %v944
    %v946 = vpop.xlane.xlu0 %945
    %v947 = vsel %vm940, %v936, -inf
    %948 = vmax.xlane.f32.xlu0 %v947
    %v949 = vpop.xlane.xlu0 %948
    %v950 = vsel %vm940, %v938, -inf
    %951 = vmax.xlane.f32.xlu0 %v950
    %v952 = vpop.xlane.xlu0 %951
    %v953 = vsub.f32 %v909, %v943
    %v954 = vsub.f32 %v911, %v946
    %v955 = vsub.f32 %v936, %v949
    %v956 = vsub.f32 %v938, %v952
    %v957 = vmul.f32 %v953, 1.442695
    %v958 = vpow.pop %v957
    %v959 = vmul.f32 %v954, 1.442695
    %v960 = vpow.pop %v959
    %v961 = vmul.f32 %v955, 1.442695
    %v962 = vpow.pop %v961
    %v963 = vmul.f32 %v956, 1.442695
    %v964 = vpow.pop %v963
    %v965 = vsel %vm940, %v958, 0.0
    %966 = vadd.xlane.f32.xlu0 %v965
    %v967 = vpop.xlane.xlu0 %966
    %v968 = vsel %vm940, %v960, 0.0
    %969 = vadd.xlane.f32.xlu0 %v968
    %v970 = vpop.xlane.xlu0 %969
    %v971 = vsel %vm940, %v962, 0.0
    %972 = vadd.xlane.f32.xlu0 %v971
    %v973 = vpop.xlane.xlu0 %972
    %v974 = vsel %vm940, %v964, 0.0
    %975 = vadd.xlane.f32.xlu0 %v974
    %v976 = vpop.xlane.xlu0 %975
    %v977 = vrcp.pop %v967
    %v978 = vrcp.pop %v970
    %v979 = vrcp.pop %v973
    %v980 = vrcp.pop %v976
    %v981 = vpack.c.bf16 %v958, %v958
    %v982 = vpack.c.bf16 %v960, %v960
    %v983 = vpack.c.bf16 %v962, %v962
    %v984 = vpack.c.bf16 %v964, %v964
    %v987 = vunpack.c.l.b16 %v981
    %v988 = vunpack.c.l.b16 %v982
    %v989 = vpack.c.b16 %v988, %v987
    %990 = vrot.lane.b32.xlu0 %v889, 64
    %v991 = vpop.permute.xlu0 %990
    %v994 = vsel %vm940, %v989, 0
    %996 = vmatpush.bf16.msra.mxu0 0
    %997 = vmatpush.bf16.msra.mxu0 0
    %998 = vmatpush.bf16.msra.mxu0 0
    %999 = vmatpush.bf16.msra.mxu0 0
    %1000 = vmatpush.bf16.msra.mxu0 0
    %1001 = vmatpush.bf16.msra.mxu0 0
    %1002 = vmatpush.bf16.msra.mxu0 0
    %1003 = vmatpush.bf16.msra.mxu0 %v991
    %1004 = vmatmul.bf16.gmra.mxu0 %v994
    %v1005 = vpop.f32.mrf.mxu0
    %v1006 = vadd.f32 0.0, %v1005
    %v1007 = vpop.f32.mrf.mxu0
    %v1008 = vadd.f32 0.0, %v1007
    %1009 = vdwg.mxu0
    %v1012 = vunpack.c.l.b16 %v983
    %v1013 = vunpack.c.l.b16 %v984
    %v1014 = vpack.c.b16 %v1013, %v1012
    %1015 = vrot.lane.b32.xlu0 %v917, 64
    %v1016 = vpop.permute.xlu0 %1015
    %v1019 = vsel %vm940, %v1014, 0
    %1021 = vmatpush.bf16.msra.mxu0 0
    %1022 = vmatpush.bf16.msra.mxu0 0
    %1023 = vmatpush.bf16.msra.mxu0 0
    %1024 = vmatpush.bf16.msra.mxu0 0
    %1025 = vmatpush.bf16.msra.mxu0 0
    %1026 = vmatpush.bf16.msra.mxu0 0
    %1027 = vmatpush.bf16.msra.mxu0 0
    %1028 = vmatpush.bf16.msra.mxu0 %v1016
    %1029 = vmatmul.bf16.gmra.mxu0 %v1019
    %v1030 = vpop.f32.mrf.mxu0
    %v1031 = vadd.f32 0.0, %v1030
    %v1032 = vpop.f32.mrf.mxu0
    %v1033 = vadd.f32 0.0, %v1032
    %1034 = vdwg.mxu0
    %v1035 = vmul.f32 %v1006, %v977
    %v1036 = vmul.f32 %v1008, %v978
    %v1037 = vmul.f32 %v1031, %v979
    %v1038 = vmul.f32 %v1033, %v980
    %1039 = vrot.lane.b32.xlu0 %v889, 120
    %v1040 = vpop.permute.xlu0 %1039
    %1041 = vrot.lane.b32.xlu0 %v889, 88
    %v1042 = vpop.permute.xlu0 %1041
    %v1044 = vsel %vm892, %v1040, 0
    %v1047 = vsel %vm892, %v1042, 0
    %1049 = vmatpush.bf16.xpose.msra.mxu0 0
    %1050 = vmatpush.bf16.xpose.msra.mxu0 0
    %1051 = vmatpush.bf16.xpose.msra.mxu0 0
    %1052 = vmatpush.bf16.xpose.msra.mxu0 0
    %1053 = vmatpush.bf16.xpose.msra.mxu0 0
    %1054 = vmatpush.bf16.xpose.msra.mxu0 0
    %1055 = vmatpush.bf16.xpose.msra.mxu0 0
    %1056 = vmatpush.bf16.xpose.msra.mxu0 %v1047
    %1057 = vmatmul.bf16.gmra.mxu0 %v1044
    %v1058 = vpop.f32.mrf.mxu0
    %v1059 = vadd.f32 %v723, %v1058
    %v1060 = vpop.f32.mrf.mxu0
    %v1061 = vadd.f32 %v724, %v1060
    %1062 = vdwg.mxu0
    %1063 = vrot.lane.b32.xlu0 %v917, 120
    %v1064 = vpop.permute.xlu0 %1063
    %1065 = vrot.lane.b32.xlu0 %v917, 88
    %v1066 = vpop.permute.xlu0 %1065
    %v1068 = vsel %vm892, %v1064, 0
    %v1071 = vsel %vm892, %v1066, 0
    %1073 = vmatpush.bf16.xpose.msra.mxu0 0
    %1074 = vmatpush.bf16.xpose.msra.mxu0 0
    %1075 = vmatpush.bf16.xpose.msra.mxu0 0
    %1076 = vmatpush.bf16.xpose.msra.mxu0 0
    %1077 = vmatpush.bf16.xpose.msra.mxu0 0
    %1078 = vmatpush.bf16.xpose.msra.mxu0 0
    %1079 = vmatpush.bf16.xpose.msra.mxu0 0
    %1080 = vmatpush.bf16.xpose.msra.mxu0 %v1071
    %1081 = vmatmul.bf16.gmra.mxu0 %v1068
    %v1082 = vpop.f32.mrf.mxu0
    %v1083 = vadd.f32 %v723, %v1082
    %v1084 = vpop.f32.mrf.mxu0
    %v1085 = vadd.f32 %v724, %v1084
    %1086 = vdwg.mxu0
    %v1087 = vsel %vm940, %v1059, -inf
    %1088 = vmax.xlane.f32.xlu0 %v1087
    %v1089 = vpop.xlane.xlu0 %1088
    %v1090 = vsel %vm940, %v1061, -inf
    %1091 = vmax.xlane.f32.xlu0 %v1090
    %v1092 = vpop.xlane.xlu0 %1091
    %v1093 = vsel %vm940, %v1083, -inf
    %1094 = vmax.xlane.f32.xlu0 %v1093
    %v1095 = vpop.xlane.xlu0 %1094
    %v1096 = vsel %vm940, %v1085, -inf
    %1097 = vmax.xlane.f32.xlu0 %v1096
    %v1098 = vpop.xlane.xlu0 %1097
    %v1099 = vsub.f32 %v1059, %v1089
    %v1100 = vsub.f32 %v1061, %v1092
    %v1101 = vsub.f32 %v1083, %v1095
    %v1102 = vsub.f32 %v1085, %v1098
    %v1103 = vmul.f32 %v1099, 1.442695
    %v1104 = vpow.pop %v1103
    %v1105 = vmul.f32 %v1100, 1.442695
    %v1106 = vpow.pop %v1105
    %v1107 = vmul.f32 %v1101, 1.442695
    %v1108 = vpow.pop %v1107
    %v1109 = vmul.f32 %v1102, 1.442695
    %v1110 = vpow.pop %v1109
    %v1111 = vsel %vm940, %v1104, 0.0
    %1112 = vadd.xlane.f32.xlu0 %v1111
    %v1113 = vpop.xlane.xlu0 %1112
    %v1114 = vsel %vm940, %v1106, 0.0
    %1115 = vadd.xlane.f32.xlu0 %v1114
    %v1116 = vpop.xlane.xlu0 %1115
    %v1117 = vsel %vm940, %v1108, 0.0
    %1118 = vadd.xlane.f32.xlu0 %v1117
    %v1119 = vpop.xlane.xlu0 %1118
    %v1120 = vsel %vm940, %v1110, 0.0
    %1121 = vadd.xlane.f32.xlu0 %v1120
    %v1122 = vpop.xlane.xlu0 %1121
    %v1123 = vrcp.pop %v1113
    %v1124 = vrcp.pop %v1116
    %v1125 = vrcp.pop %v1119
    %v1126 = vrcp.pop %v1122
    %v1127 = vpack.c.bf16 %v1104, %v1104
    %v1128 = vpack.c.bf16 %v1106, %v1106
    %v1129 = vpack.c.bf16 %v1108, %v1108
    %v1130 = vpack.c.bf16 %v1110, %v1110
    %v1133 = vunpack.c.l.b16 %v1127
    %v1134 = vunpack.c.l.b16 %v1128
    %v1135 = vpack.c.b16 %v1134, %v1133
    %1136 = vrot.lane.b32.xlu0 %v889, 56
    %v1137 = vpop.permute.xlu0 %1136
    %v1140 = vsel %vm940, %v1135, 0
    %1142 = vmatpush.bf16.msra.mxu0 0
    %1143 = vmatpush.bf16.msra.mxu0 0
    %1144 = vmatpush.bf16.msra.mxu0 0
    %1145 = vmatpush.bf16.msra.mxu0 0
    %1146 = vmatpush.bf16.msra.mxu0 0
    %1147 = vmatpush.bf16.msra.mxu0 0
    %1148 = vmatpush.bf16.msra.mxu0 0
    %1149 = vmatpush.bf16.msra.mxu0 %v1137
    %1150 = vmatmul.bf16.gmra.mxu0 %v1140
    %v1151 = vpop.f32.mrf.mxu0
    %v1152 = vadd.f32 0.0, %v1151
    %v1153 = vpop.f32.mrf.mxu0
    %v1154 = vadd.f32 0.0, %v1153
    %1155 = vdwg.mxu0
    %v1158 = vunpack.c.l.b16 %v1129
    %v1159 = vunpack.c.l.b16 %v1130
    %v1160 = vpack.c.b16 %v1159, %v1158
    %1161 = vrot.lane.b32.xlu0 %v917, 56
    %v1162 = vpop.permute.xlu0 %1161
    %v1165 = vsel %vm940, %v1160, 0
    %1167 = vmatpush.bf16.msra.mxu0 0
    %1168 = vmatpush.bf16.msra.mxu0 0
    %1169 = vmatpush.bf16.msra.mxu0 0
    %1170 = vmatpush.bf16.msra.mxu0 0
    %1171 = vmatpush.bf16.msra.mxu0 0
    %1172 = vmatpush.bf16.msra.mxu0 0
    %1173 = vmatpush.bf16.msra.mxu0 0
    %1174 = vmatpush.bf16.msra.mxu0 %v1162
    %1175 = vmatmul.bf16.gmra.mxu0 %v1165
    %v1176 = vpop.f32.mrf.mxu0
    %v1177 = vadd.f32 0.0, %v1176
    %v1178 = vpop.f32.mrf.mxu0
    %v1179 = vadd.f32 0.0, %v1178
    %1180 = vdwg.mxu0
    %v1181 = vmul.f32 %v1152, %v1123
    %v1182 = vmul.f32 %v1154, %v1124
    %v1183 = vmul.f32 %v1177, %v1125
    %v1184 = vmul.f32 %v1179, %v1126
    %1185 = vrot.lane.b32.xlu0 %v889, 112
    %v1186 = vpop.permute.xlu0 %1185
    %1187 = vrot.lane.b32.xlu0 %v889, 80
    %v1188 = vpop.permute.xlu0 %1187
    %v1190 = vsel %vm892, %v1186, 0
    %v1193 = vsel %vm892, %v1188, 0
    %1195 = vmatpush.bf16.xpose.msra.mxu0 0
    %1196 = vmatpush.bf16.xpose.msra.mxu0 0
    %1197 = vmatpush.bf16.xpose.msra.mxu0 0
    %1198 = vmatpush.bf16.xpose.msra.mxu0 0
    %1199 = vmatpush.bf16.xpose.msra.mxu0 0
    %1200 = vmatpush.bf16.xpose.msra.mxu0 0
    %1201 = vmatpush.bf16.xpose.msra.mxu0 0
    %1202 = vmatpush.bf16.xpose.msra.mxu0 %v1193
    %1203 = vmatmul.bf16.gmra.mxu0 %v1190
    %v1204 = vpop.f32.mrf.mxu0
    %v1205 = vadd.f32 %v725, %v1204
    %v1206 = vpop.f32.mrf.mxu0
    %v1207 = vadd.f32 %v726, %v1206
    %1208 = vdwg.mxu0
    %1209 = vrot.lane.b32.xlu0 %v917, 112
    %v1210 = vpop.permute.xlu0 %1209
    %1211 = vrot.lane.b32.xlu0 %v917, 80
    %v1212 = vpop.permute.xlu0 %1211
    %v1214 = vsel %vm892, %v1210, 0
    %v1217 = vsel %vm892, %v1212, 0
    %1219 = vmatpush.bf16.xpose.msra.mxu0 0
    %1220 = vmatpush.bf16.xpose.msra.mxu0 0
    %1221 = vmatpush.bf16.xpose.msra.mxu0 0
    %1222 = vmatpush.bf16.xpose.msra.mxu0 0
    %1223 = vmatpush.bf16.xpose.msra.mxu0 0
    %1224 = vmatpush.bf16.xpose.msra.mxu0 0
    %1225 = vmatpush.bf16.xpose.msra.mxu0 0
    %1226 = vmatpush.bf16.xpose.msra.mxu0 %v1217
    %1227 = vmatmul.bf16.gmra.mxu0 %v1214
    %v1228 = vpop.f32.mrf.mxu0
    %v1229 = vadd.f32 %v725, %v1228
    %v1230 = vpop.f32.mrf.mxu0
    %v1231 = vadd.f32 %v726, %v1230
    %1232 = vdwg.mxu0
    %v1233 = vsel %vm940, %v1205, -inf
    %1234 = vmax.xlane.f32.xlu0 %v1233
    %v1235 = vpop.xlane.xlu0 %1234
    %v1236 = vsel %vm940, %v1207, -inf
    %1237 = vmax.xlane.f32.xlu0 %v1236
    %v1238 = vpop.xlane.xlu0 %1237
    %v1239 = vsel %vm940, %v1229, -inf
    %1240 = vmax.xlane.f32.xlu0 %v1239
    %v1241 = vpop.xlane.xlu0 %1240
    %v1242 = vsel %vm940, %v1231, -inf
    %1243 = vmax.xlane.f32.xlu0 %v1242
    %v1244 = vpop.xlane.xlu0 %1243
    %v1245 = vsub.f32 %v1205, %v1235
    %v1246 = vsub.f32 %v1207, %v1238
    %v1247 = vsub.f32 %v1229, %v1241
    %v1248 = vsub.f32 %v1231, %v1244
    %v1249 = vmul.f32 %v1245, 1.442695
    %v1250 = vpow.pop %v1249
    %v1251 = vmul.f32 %v1246, 1.442695
    %v1252 = vpow.pop %v1251
    %v1253 = vmul.f32 %v1247, 1.442695
    %v1254 = vpow.pop %v1253
    %v1255 = vmul.f32 %v1248, 1.442695
    %v1256 = vpow.pop %v1255
    %v1257 = vsel %vm940, %v1250, 0.0
    %1258 = vadd.xlane.f32.xlu0 %v1257
    %v1259 = vpop.xlane.xlu0 %1258
    %v1260 = vsel %vm940, %v1252, 0.0
    %1261 = vadd.xlane.f32.xlu0 %v1260
    %v1262 = vpop.xlane.xlu0 %1261
    %v1263 = vsel %vm940, %v1254, 0.0
    %1264 = vadd.xlane.f32.xlu0 %v1263
    %v1265 = vpop.xlane.xlu0 %1264
    %v1266 = vsel %vm940, %v1256, 0.0
    %1267 = vadd.xlane.f32.xlu0 %v1266
    %v1268 = vpop.xlane.xlu0 %1267
    %v1269 = vrcp.pop %v1259
    %v1270 = vrcp.pop %v1262
    %v1271 = vrcp.pop %v1265
    %v1272 = vrcp.pop %v1268
    %v1273 = vpack.c.bf16 %v1250, %v1250
    %v1274 = vpack.c.bf16 %v1252, %v1252
    %v1275 = vpack.c.bf16 %v1254, %v1254
    %v1276 = vpack.c.bf16 %v1256, %v1256
    %v1279 = vunpack.c.l.b16 %v1273
    %v1280 = vunpack.c.l.b16 %v1274
    %v1281 = vpack.c.b16 %v1280, %v1279
    %1282 = vrot.lane.b32.xlu0 %v889, 48
    %v1283 = vpop.permute.xlu0 %1282
    %v1286 = vsel %vm940, %v1281, 0
    %1288 = vmatpush.bf16.msra.mxu0 0
    %1289 = vmatpush.bf16.msra.mxu0 0
    %1290 = vmatpush.bf16.msra.mxu0 0
    %1291 = vmatpush.bf16.msra.mxu0 0
    %1292 = vmatpush.bf16.msra.mxu0 0
    %1293 = vmatpush.bf16.msra.mxu0 0
    %1294 = vmatpush.bf16.msra.mxu0 0
    %1295 = vmatpush.bf16.msra.mxu0 %v1283
    %1296 = vmatmul.bf16.gmra.mxu0 %v1286
    %v1297 = vpop.f32.mrf.mxu0
    %v1298 = vadd.f32 0.0, %v1297
    %v1299 = vpop.f32.mrf.mxu0
    %v1300 = vadd.f32 0.0, %v1299
    %1301 = vdwg.mxu0
    %v1304 = vunpack.c.l.b16 %v1275
    %v1305 = vunpack.c.l.b16 %v1276
    %v1306 = vpack.c.b16 %v1305, %v1304
    %1307 = vrot.lane.b32.xlu0 %v917, 48
    %v1308 = vpop.permute.xlu0 %1307
    %v1311 = vsel %vm940, %v1306, 0
    %1313 = vmatpush.bf16.msra.mxu0 0
    %1314 = vmatpush.bf16.msra.mxu0 0
    %1315 = vmatpush.bf16.msra.mxu0 0
    %1316 = vmatpush.bf16.msra.mxu0 0
    %1317 = vmatpush.bf16.msra.mxu0 0
    %1318 = vmatpush.bf16.msra.mxu0 0
    %1319 = vmatpush.bf16.msra.mxu0 0
    %1320 = vmatpush.bf16.msra.mxu0 %v1308
    %1321 = vmatmul.bf16.gmra.mxu0 %v1311
    %v1322 = vpop.f32.mrf.mxu0
    %v1323 = vadd.f32 0.0, %v1322
    %v1324 = vpop.f32.mrf.mxu0
    %v1325 = vadd.f32 0.0, %v1324
    %1326 = vdwg.mxu0
    %v1327 = vmul.f32 %v1298, %v1269
    %v1328 = vmul.f32 %v1300, %v1270
    %v1329 = vmul.f32 %v1323, %v1271
    %v1330 = vmul.f32 %v1325, %v1272
    %1331 = vrot.lane.b32.xlu0 %v889, 104
    %v1332 = vpop.permute.xlu0 %1331
    %1333 = vrot.lane.b32.xlu0 %v889, 72
    %v1334 = vpop.permute.xlu0 %1333
    %v1336 = vsel %vm892, %v1332, 0
    %v1339 = vsel %vm892, %v1334, 0
    %1341 = vmatpush.bf16.xpose.msra.mxu0 0
    %1342 = vmatpush.bf16.xpose.msra.mxu0 0
    %1343 = vmatpush.bf16.xpose.msra.mxu0 0
    %1344 = vmatpush.bf16.xpose.msra.mxu0 0
    %1345 = vmatpush.bf16.xpose.msra.mxu0 0
    %1346 = vmatpush.bf16.xpose.msra.mxu0 0
    %1347 = vmatpush.bf16.xpose.msra.mxu0 0
    %1348 = vmatpush.bf16.xpose.msra.mxu0 %v1339
    %1349 = vmatmul.bf16.gmra.mxu0 %v1336
    %v1350 = vpop.f32.mrf.mxu0
    %v1351 = vadd.f32 %v727, %v1350
    %v1352 = vpop.f32.mrf.mxu0
    %v1353 = vadd.f32 %v728, %v1352
    %1354 = vdwg.mxu0
    %1355 = vrot.lane.b32.xlu0 %v917, 104
    %v1356 = vpop.permute.xlu0 %1355
    %1357 = vrot.lane.b32.xlu0 %v917, 72
    %v1358 = vpop.permute.xlu0 %1357
    %v1360 = vsel %vm892, %v1356, 0
    %v1363 = vsel %vm892, %v1358, 0
    %1365 = vmatpush.bf16.xpose.msra.mxu0 0
    %1366 = vmatpush.bf16.xpose.msra.mxu0 0
    %1367 = vmatpush.bf16.xpose.msra.mxu0 0
    %1368 = vmatpush.bf16.xpose.msra.mxu0 0
    %1369 = vmatpush.bf16.xpose.msra.mxu0 0
    %1370 = vmatpush.bf16.xpose.msra.mxu0 0
    %1371 = vmatpush.bf16.xpose.msra.mxu0 0
    %1372 = vmatpush.bf16.xpose.msra.mxu0 %v1363
    %1373 = vmatmul.bf16.gmra.mxu0 %v1360
    %v1374 = vpop.f32.mrf.mxu0
    %v1375 = vadd.f32 %v727, %v1374
    %v1376 = vpop.f32.mrf.mxu0
    %v1377 = vadd.f32 %v728, %v1376
    %1378 = vdwg.mxu0
    %v1379 = vsel %vm940, %v1351, -inf
    %1380 = vmax.xlane.f32.xlu0 %v1379
    %v1381 = vpop.xlane.xlu0 %1380
    %v1382 = vsel %vm940, %v1353, -inf
    %1383 = vmax.xlane.f32.xlu0 %v1382
    %v1384 = vpop.xlane.xlu0 %1383
    %v1385 = vsel %vm940, %v1375, -inf
    %1386 = vmax.xlane.f32.xlu0 %v1385
    %v1387 = vpop.xlane.xlu0 %1386
    %v1388 = vsel %vm940, %v1377, -inf
    %1389 = vmax.xlane.f32.xlu0 %v1388
    %v1390 = vpop.xlane.xlu0 %1389
    %v1391 = vsub.f32 %v1351, %v1381
    %v1392 = vsub.f32 %v1353, %v1384
    %v1393 = vsub.f32 %v1375, %v1387
    %v1394 = vsub.f32 %v1377, %v1390
    %v1395 = vmul.f32 %v1391, 1.442695
    %v1396 = vpow.pop %v1395
    %v1397 = vmul.f32 %v1392, 1.442695
    %v1398 = vpow.pop %v1397
    %v1399 = vmul.f32 %v1393, 1.442695
    %v1400 = vpow.pop %v1399
    %v1401 = vmul.f32 %v1394, 1.442695
    %v1402 = vpow.pop %v1401
    %v1403 = vsel %vm940, %v1396, 0.0
    %1404 = vadd.xlane.f32.xlu0 %v1403
    %v1405 = vpop.xlane.xlu0 %1404
    %v1406 = vsel %vm940, %v1398, 0.0
    %1407 = vadd.xlane.f32.xlu0 %v1406
    %v1408 = vpop.xlane.xlu0 %1407
    %v1409 = vsel %vm940, %v1400, 0.0
    %1410 = vadd.xlane.f32.xlu0 %v1409
    %v1411 = vpop.xlane.xlu0 %1410
    %v1412 = vsel %vm940, %v1402, 0.0
    %1413 = vadd.xlane.f32.xlu0 %v1412
    %v1414 = vpop.xlane.xlu0 %1413
    %v1415 = vrcp.pop %v1405
    %v1416 = vrcp.pop %v1408
    %v1417 = vrcp.pop %v1411
    %v1418 = vrcp.pop %v1414
    %v1419 = vpack.c.bf16 %v1396, %v1396
    %v1420 = vpack.c.bf16 %v1398, %v1398
    %v1421 = vpack.c.bf16 %v1400, %v1400
    %v1422 = vpack.c.bf16 %v1402, %v1402
    %v1425 = vunpack.c.l.b16 %v1419
    %v1426 = vunpack.c.l.b16 %v1420
    %v1427 = vpack.c.b16 %v1426, %v1425
    %1428 = vrot.lane.b32.xlu0 %v889, 40
    %v1429 = vpop.permute.xlu0 %1428
    %v1432 = vsel %vm940, %v1427, 0
    %1434 = vmatpush.bf16.msra.mxu0 0
    %1435 = vmatpush.bf16.msra.mxu0 0
    %1436 = vmatpush.bf16.msra.mxu0 0
    %1437 = vmatpush.bf16.msra.mxu0 0
    %1438 = vmatpush.bf16.msra.mxu0 0
    %1439 = vmatpush.bf16.msra.mxu0 0
    %1440 = vmatpush.bf16.msra.mxu0 0
    %1441 = vmatpush.bf16.msra.mxu0 %v1429
    %1442 = vmatmul.bf16.gmra.mxu0 %v1432
    %v1443 = vpop.f32.mrf.mxu0
    %v1444 = vadd.f32 0.0, %v1443
    %v1445 = vpop.f32.mrf.mxu0
    %v1446 = vadd.f32 0.0, %v1445
    %1447 = vdwg.mxu0
    %v1450 = vunpack.c.l.b16 %v1421
    %v1451 = vunpack.c.l.b16 %v1422
    %v1452 = vpack.c.b16 %v1451, %v1450
    %1453 = vrot.lane.b32.xlu0 %v917, 40
    %v1454 = vpop.permute.xlu0 %1453
    %v1457 = vsel %vm940, %v1452, 0
    %1459 = vmatpush.bf16.msra.mxu0 0
    %1460 = vmatpush.bf16.msra.mxu0 0
    %1461 = vmatpush.bf16.msra.mxu0 0
    %1462 = vmatpush.bf16.msra.mxu0 0
    %1463 = vmatpush.bf16.msra.mxu0 0
    %1464 = vmatpush.bf16.msra.mxu0 0
    %1465 = vmatpush.bf16.msra.mxu0 0
    %1466 = vmatpush.bf16.msra.mxu0 %v1454
    %1467 = vmatmul.bf16.gmra.mxu0 %v1457
    %v1468 = vpop.f32.mrf.mxu0
    %v1469 = vadd.f32 0.0, %v1468
    %v1470 = vpop.f32.mrf.mxu0
    %v1471 = vadd.f32 0.0, %v1470
    %1472 = vdwg.mxu0
    %v1473 = vmul.f32 %v1444, %v1415
    %v1474 = vmul.f32 %v1446, %v1416
    %v1475 = vmul.f32 %v1469, %v1417
    %v1476 = vmul.f32 %v1471, %v1418
    %1481 = vrot.lane.b32.xlu0 %v1181, 8
    %v1482 = vpop.permute.xlu0 %1481
    %1483 = vrot.lane.b32.xlu0 %v1182, 8
    %v1484 = vpop.permute.xlu0 %1483
    %1485 = vrot.lane.b32.xlu0 %v1183, 8
    %v1486 = vpop.permute.xlu0 %1485
    %1487 = vrot.lane.b32.xlu0 %v1184, 8
    %v1488 = vpop.permute.xlu0 %1487
    %1497 = vrot.lane.b32.xlu0 %v1327, 16
    %v1498 = vpop.permute.xlu0 %1497
    %1499 = vrot.lane.b32.xlu0 %v1328, 16
    %v1500 = vpop.permute.xlu0 %1499
    %1501 = vrot.lane.b32.xlu0 %v1329, 16
    %v1502 = vpop.permute.xlu0 %1501
    %1503 = vrot.lane.b32.xlu0 %v1330, 16
    %v1504 = vpop.permute.xlu0 %1503
    %1513 = vrot.lane.b32.xlu0 %v1473, 24
    %v1514 = vpop.permute.xlu0 %1513
    %1515 = vrot.lane.b32.xlu0 %v1474, 24
    %v1516 = vpop.permute.xlu0 %1515
    %1517 = vrot.lane.b32.xlu0 %v1475, 24
    %v1518 = vpop.permute.xlu0 %1517
    %1519 = vrot.lane.b32.xlu0 %v1476, 24
    %v1520 = vpop.permute.xlu0 %1519
    %v1525 = vsel %vm892, %v1035, %v1482
    %v1526 = vsel %vm892, %v1036, %v1484
    %v1527 = vsel %vm892, %v1037, %v1486
    %v1528 = vsel %vm892, %v1038, %v1488
    %v1529 = vsel %vm940, %v1525, %v1498
    %v1530 = vsel %vm940, %v1526, %v1500
    %v1531 = vsel %vm940, %v1527, %v1502
    %v1532 = vsel %vm940, %v1528, %v1504
    %vm1533 = vcmask 195584
    %v1534 = vsel %vm1533, %v1529, %v1514
    %v1535 = vsel %vm1533, %v1530, %v1516
    %v1536 = vsel %vm1533, %v1531, %v1518
    %v1537 = vsel %vm1533, %v1532, %v1520
    %v1538 = vpack.c.bf16 %v1535, %v1534
    %v1539 = vpack.c.bf16 %v1537, %v1536
    %v1544 = vunpack.c.l.b16 %v550
    %v1545 = vunpack.c.l.b16 %v551
    %v1546 = vunpack.c.l.b16 %v552
    %v1547 = vunpack.c.l.b16 %v553
    %v1548 = vpack.c.b16 %v1545, %v1544
    %v1549 = vpack.c.b16 %v1547, %v1546
    %v1553 = vsel %vm729, %v1538, 0
    %v1556 = vsel %vm729, %v1539, 0
    %1558 = vmatpush.bf16.msra.mxu0 0
    %1559 = vmatpush.bf16.msra.mxu0 0
    %1560 = vmatpush.bf16.msra.mxu0 0
    %1561 = vmatpush.bf16.msra.mxu0 0
    %1562 = vmatpush.bf16.msra.mxu0 0
    %1563 = vmatpush.bf16.msra.mxu0 0
    %1564 = vmatpush.bf16.msra.mxu0 %v1549
    %1565 = vmatpush.bf16.msra.mxu0 %v1548
    %1566 = vmatmul.bf16.gmra.mxu0 %v1553
    %v1567 = vpop.f32.mrf.mxu0
    %v1568 = vadd.f32 0.0, %v1567
    %v1569 = vpop.f32.mrf.mxu0
    %v1570 = vadd.f32 0.0, %v1569
    %1571 = vmatmul.bf16.gmra.mxu0 %v1556
    %v1572 = vpop.f32.mrf.mxu0
    %v1573 = vadd.f32 0.0, %v1572
    %v1574 = vpop.f32.mrf.mxu0
    %v1575 = vadd.f32 0.0, %v1574
    %1576 = vdwg.mxu0
    %v1577 = vadd.f32 %v701, %v1568
    %v1578 = vadd.f32 %v702, %v1570
    %v1579 = vadd.f32 %v703, %v1573
    %v1580 = vadd.f32 %v704, %v1575
    %v1582 = vperm.slane %v554, 0
    %v1584 = vadd.f32 %v1577, %v1582
    %v1585 = vadd.f32 %v1578, %v1582
    %v1586 = vadd.f32 %v1579, %v1582
    %v1587 = vadd.f32 %v1580, %v1582
    %v1588 = vsel %vm729, %v1584, 0.0
    %1589 = vadd.xlane.f32.xlu0 %v1588
    %v1590 = vpop.xlane.xlu0 %1589
    %v1591 = vsel %vm729, %v1585, 0.0
    %1592 = vadd.xlane.f32.xlu0 %v1591
    %v1593 = vpop.xlane.xlu0 %1592
    %v1594 = vsel %vm729, %v1586, 0.0
    %1595 = vadd.xlane.f32.xlu0 %v1594
    %v1596 = vpop.xlane.xlu0 %1595
    %v1597 = vsel %vm729, %v1587, 0.0
    %1598 = vadd.xlane.f32.xlu0 %v1597
    %v1599 = vpop.xlane.xlu0 %1598
    %v1600 = vmul.f32 %v1590, %v748
    %v1601 = vmul.f32 %v1593, %v748
    %v1602 = vmul.f32 %v1596, %v748
    %v1603 = vmul.f32 %v1599, %v748
    %v1604 = vsub.f32 %v1584, %v1600
    %v1605 = vsub.f32 %v1585, %v1601
    %v1606 = vsub.f32 %v1586, %v1602
    %v1607 = vsub.f32 %v1587, %v1603
    %v1608 = vmul.f32 %v1604, %v1604
    %v1609 = vmul.f32 %v1605, %v1605
    %v1610 = vmul.f32 %v1606, %v1606
    %v1611 = vmul.f32 %v1607, %v1607
    %v1612 = vsel %vm729, %v1608, 0.0
    %1613 = vadd.xlane.f32.xlu0 %v1612
    %v1614 = vpop.xlane.xlu0 %1613
    %v1615 = vsel %vm729, %v1609, 0.0
    %1616 = vadd.xlane.f32.xlu0 %v1615
    %v1617 = vpop.xlane.xlu0 %1616
    %v1618 = vsel %vm729, %v1610, 0.0
    %1619 = vadd.xlane.f32.xlu0 %v1618
    %v1620 = vpop.xlane.xlu0 %1619
    %v1621 = vsel %vm729, %v1611, 0.0
    %1622 = vadd.xlane.f32.xlu0 %v1621
    %v1623 = vpop.xlane.xlu0 %1622
    %v1624 = vmul.f32 %v1614, %v748
    %v1625 = vmul.f32 %v1617, %v748
    %v1626 = vmul.f32 %v1620, %v748
    %v1627 = vmul.f32 %v1623, %v748
    %v1628 = vadd.f32 %v1624, 1e-05
    %v1629 = vadd.f32 %v1625, 1e-05
    %v1630 = vadd.f32 %v1626, 1e-05
    %v1631 = vadd.f32 %v1627, 1e-05
    %v1632 = vrsqrt.pop %v1628
    %v1633 = vmul.f32 %v1632, %v1628
    %v1634 = vmul.f32 %v1633, %v1632
    %v1635 = vmul.f32 0.5, %v1634
    %v1636 = vsub.f32 1.5, %v1635
    %v1637 = vmul.f32 %v1632, %v1636
    %vm1638 = vweird.f32 %v1628
    %vm1639 = vweird.f32 %v1632
    %vm1640 = vmor %vm1638, %vm1639
    %v1641 = vsel %vm1640, %v1632, %v1637
    %v1642 = vrsqrt.pop %v1629
    %v1643 = vmul.f32 %v1642, %v1629
    %v1644 = vmul.f32 %v1643, %v1642
    %v1645 = vmul.f32 0.5, %v1644
    %v1646 = vsub.f32 1.5, %v1645
    %v1647 = vmul.f32 %v1642, %v1646
    %vm1648 = vweird.f32 %v1629
    %vm1649 = vweird.f32 %v1642
    %vm1650 = vmor %vm1648, %vm1649
    %v1651 = vsel %vm1650, %v1642, %v1647
    %v1652 = vrsqrt.pop %v1630
    %v1653 = vmul.f32 %v1652, %v1630
    %v1654 = vmul.f32 %v1653, %v1652
    %v1655 = vmul.f32 0.5, %v1654
    %v1656 = vsub.f32 1.5, %v1655
    %v1657 = vmul.f32 %v1652, %v1656
    %vm1658 = vweird.f32 %v1630
    %vm1659 = vweird.f32 %v1652
    %vm1660 = vmor %vm1658, %vm1659
    %v1661 = vsel %vm1660, %v1652, %v1657
    %v1662 = vrsqrt.pop %v1631
    %v1663 = vmul.f32 %v1662, %v1631
    %v1664 = vmul.f32 %v1663, %v1662
    %v1665 = vmul.f32 0.5, %v1664
    %v1666 = vsub.f32 1.5, %v1665
    %v1667 = vmul.f32 %v1662, %v1666
    %vm1668 = vweird.f32 %v1631
    %vm1669 = vweird.f32 %v1662
    %vm1670 = vmor %vm1668, %vm1669
    %v1671 = vsel %vm1670, %v1662, %v1667
    %v1672 = vmul.f32 %v1604, %v1641
    %v1673 = vmul.f32 %v1605, %v1651
    %v1674 = vmul.f32 %v1606, %v1661
    %v1675 = vmul.f32 %v1607, %v1671
    %v1677 = vperm.slane %v555, 0
    %v1679 = vmul.f32 %v1672, %v1677
    %v1680 = vmul.f32 %v1673, %v1677
    %v1681 = vmul.f32 %v1674, %v1677
    %v1682 = vmul.f32 %v1675, %v1677
    %v1684 = vperm.slane %v556, 0
    %v1686 = vadd.f32 %v1679, %v1684
    %v1687 = vadd.f32 %v1680, %v1684
    %v1688 = vadd.f32 %v1681, %v1684
    %v1689 = vadd.f32 %v1682, %v1684
    %v1690 = vpack.c.bf16 %v1687, %v1686
    %v1691 = vpack.c.bf16 %v1689, %v1688
    %v1693 = vperm.slane %v561, 0
    %v1699 = vunpack.c.l.b16 %v557
    %v1700 = vunpack.c.l.b16 %v558
    %v1701 = vunpack.c.l.b16 %v559
    %v1702 = vunpack.c.l.b16 %v560
    %v1703 = vpack.c.b16 %v1700, %v1699
    %v1704 = vpack.c.b16 %v1702, %v1701
    %v1708 = vsel %vm729, %v1690, 0
    %v1711 = vsel %vm729, %v1691, 0
    %1713 = vmatpush.bf16.msra.mxu0 0
    %1714 = vmatpush.bf16.msra.mxu0 0
    %1715 = vmatpush.bf16.msra.mxu0 0
    %1716 = vmatpush.bf16.msra.mxu0 0
    %1717 = vmatpush.bf16.msra.mxu0 0
    %1718 = vmatpush.bf16.msra.mxu0 0
    %1719 = vmatpush.bf16.msra.mxu0 %v1704
    %1720 = vmatpush.bf16.msra.mxu0 %v1703
    %1721 = vmatmul.bf16.gmra.mxu0 %v1708
    %v1722 = vpop.f32.mrf.mxu0
    %v1723 = vadd.f32 %v1693, %v1722
    %v1724 = vpop.f32.mrf.mxu0
    %v1725 = vadd.f32 %v1693, %v1724
    %1726 = vmatmul.bf16.gmra.mxu0 %v1711
    %v1727 = vpop.f32.mrf.mxu0
    %v1728 = vadd.f32 %v1693, %v1727
    %v1729 = vpop.f32.mrf.mxu0
    %v1730 = vadd.f32 %v1693, %v1729
    %1731 = vdwg.mxu0
    %v1732 = vmul.f32 %v1723, 0.5
    %v1733 = vmul.f32 %v1725, 0.5
    %v1734 = vmul.f32 %v1728, 0.5
    %v1735 = vmul.f32 %v1730, 0.5
    %v1736 = vmul.f32 %v1723, 0.044715
    %v1737 = vmul.f32 %v1725, 0.044715
    %v1738 = vmul.f32 %v1728, 0.044715
    %v1739 = vmul.f32 %v1730, 0.044715
    %v1740 = vmul.f32 %v1736, %v1723
    %v1741 = vmul.f32 %v1737, %v1725
    %v1742 = vmul.f32 %v1738, %v1728
    %v1743 = vmul.f32 %v1739, %v1730
    %v1744 = vmul.f32 %v1740, %v1723
    %v1745 = vmul.f32 %v1741, %v1725
    %v1746 = vmul.f32 %v1742, %v1728
    %v1747 = vmul.f32 %v1743, %v1730
    %v1748 = vadd.f32 %v1723, %v1744
    %v1749 = vadd.f32 %v1725, %v1745
    %v1750 = vadd.f32 %v1728, %v1746
    %v1751 = vadd.f32 %v1730, %v1747
    %v1752 = vmul.f32 %v1748, 0.7978846
    %v1753 = vmul.f32 %v1749, 0.7978846
    %v1754 = vmul.f32 %v1750, 0.7978846
    %v1755 = vmul.f32 %v1751, 0.7978846
    %v1756 = vtanh.pop %v1752
    %v1757 = vtanh.pop %v1753
    %v1758 = vtanh.pop %v1754
    %v1759 = vtanh.pop %v1755
    %v1760 = vadd.f32 %v1756, 1.0
    %v1761 = vadd.f32 %v1757, 1.0
    %v1762 = vadd.f32 %v1758, 1.0
    %v1763 = vadd.f32 %v1759, 1.0
    %v1764 = vmul.f32 %v1732, %v1760
    %v1765 = vmul.f32 %v1733, %v1761
    %v1766 = vmul.f32 %v1734, %v1762
    %v1767 = vmul.f32 %v1735, %v1763
    %v1768 = vpack.c.bf16 %v1765, %v1764
    %v1769 = vpack.c.bf16 %v1767, %v1766
    %v1786 = vunpack.c.l.b16 %v562
    %v1787 = vunpack.c.l.b16 %v563
    %v1788 = vunpack.c.l.b16 %v564
    %v1789 = vunpack.c.l.b16 %v565
    %v1790 = vunpack.c.l.b16 %v566
    %v1791 = vunpack.c.l.b16 %v567
    %v1792 = vunpack.c.l.b16 %v568
    %v1793 = vunpack.c.l.b16 %v569
    %v1794 = vunpack.c.l.b16 %v570
    %v1795 = vunpack.c.l.b16 %v571
    %v1796 = vunpack.c.l.b16 %v572
    %v1797 = vunpack.c.l.b16 %v573
    %v1798 = vunpack.c.l.b16 %v574
    %v1799 = vunpack.c.l.b16 %v575
    %v1800 = vunpack.c.l.b16 %v576
    %v1801 = vunpack.c.l.b16 %v577
    %v1802 = vpack.c.b16 %v1787, %v1786
    %v1803 = vpack.c.b16 %v1789, %v1788
    %v1804 = vpack.c.b16 %v1791, %v1790
    %v1805 = vpack.c.b16 %v1793, %v1792
    %v1806 = vpack.c.b16 %v1795, %v1794
    %v1807 = vpack.c.b16 %v1797, %v1796
    %v1808 = vpack.c.b16 %v1799, %v1798
    %v1809 = vpack.c.b16 %v1801, %v1800
    %1818 = vmatpush.bf16.msra.mxu0 %v1809
    %1819 = vmatpush.bf16.msra.mxu0 %v1808
    %1820 = vmatpush.bf16.msra.mxu0 %v1807
    %1821 = vmatpush.bf16.msra.mxu0 %v1806
    %1822 = vmatpush.bf16.msra.mxu0 %v1805
    %1823 = vmatpush.bf16.msra.mxu0 %v1804
    %1824 = vmatpush.bf16.msra.mxu0 %v1803
    %1825 = vmatpush.bf16.msra.mxu0 %v1802
    %1826 = vmatmul.bf16.gmra.mxu0 %v1768
    %v1827 = vpop.f32.mrf.mxu0
    %v1828 = vadd.f32 0.0, %v1827
    %v1829 = vpop.f32.mrf.mxu0
    %v1830 = vadd.f32 0.0, %v1829
    %1831 = vmatmul.bf16.gmra.mxu0 %v1769
    %v1832 = vpop.f32.mrf.mxu0
    %v1833 = vadd.f32 0.0, %v1832
    %v1834 = vpop.f32.mrf.mxu0
    %v1835 = vadd.f32 0.0, %v1834
    %1836 = vdwg.mxu0
    %v1837 = vadd.f32 %v1584, %v1828
    %v1838 = vadd.f32 %v1585, %v1830
    %v1839 = vadd.f32 %v1586, %v1833
    %v1840 = vadd.f32 %v1587, %v1835
    %v1842 = vperm.slane %v578, 0
    %v1844 = vadd.f32 %v1837, %v1842
    %v1845 = vadd.f32 %v1838, %v1842
    %v1846 = vadd.f32 %v1839, %v1842
    %v1847 = vadd.f32 %v1840, %v1842
    %v1848 = vld [vmem:[%s7] sm:$0xff]
    %v1849 = vld [vmem:[%s7 + $0x8] sm:$0xff]
    %v1850 = vld [vmem:[%s7 + $0x10] sm:$0xff]
    %v1851 = vld [vmem:[%s7 + $0x18] sm:$0xff]
    %v1852 = vld [vmem:[%s7 + $0x20] sm:$0xff]
    %v1853 = vld [vmem:[%s7 + $0x28] sm:$0xff]
    %v1854 = vld [vmem:[%s7 + $0x30] sm:$0xff]
    %v1855 = vld [vmem:[%s7 + $0x38] sm:$0xff]
    %v1856 = vld [vmem:[%s7 + $0x40] sm:$0xff]
    %v1857 = vld [vmem:[%s7 + $0x48] sm:$0xff]
    %v1858 = vld [vmem:[%s7 + $0x50] sm:$0xff]
    %v1859 = vld [vmem:[%s7 + $0x58] sm:$0xff]
    %v1860 = vld [vmem:[%s7 + $0x60] sm:$0xff]
    %v1861 = vld [vmem:[%s7 + $0x68] sm:$0xff]
    %v1862 = vld [vmem:[%s7 + $0x70] sm:$0xff]
    %v1863 = vld [vmem:[%s7 + $0x78] sm:$0xff]
    %v1864 = vld [vmem:[%s7 + $0x80] sm:$0xff]
    %v1865 = vld [vmem:[%s7 + $0x88] sm:$0xff]
    %v1866 = vld [vmem:[%s7 + $0x90] sm:$0xff]
    %v1867 = vld [vmem:[%s7 + $0x98] sm:$0xff]
    %v1868 = vld [vmem:[%s7 + $0xa0] sm:$0xff]
    %v1869 = vld [vmem:[%s7 + $0xa8] sm:$0xff]
    %v1870 = vld [vmem:[%s7 + $0xb0] sm:$0xff]
    %v1871 = vld [vmem:[%s7 + $0xb8] sm:$0xff]
    %v1872 = vld [vmem:[%s7 + $0xc0] sm:$0xff]
    %v1873 = vld [vmem:[%s7 + $0xc8] sm:$0xff]
    %v1874 = vld [vmem:[%s7 + $0xd0] sm:$0xff]
    %v1875 = vld [vmem:[%s7 + $0xd8] sm:$0xff]
    %v1876 = vld [vmem:[%s7 + $0xe0] sm:$0xff]
    %v1877 = vld [vmem:[%s7 + $0xe8] sm:$0xff]
    %v1878 = vld [vmem:[%s7 + $0xf0] sm:$0xff]
    %v1879 = vld [vmem:[%s7 + $0xf8] sm:$0xff]
    %v1880 = vsel %vm729, %v705, 0.0
    %1881 = vadd.xlane.f32.xlu0 %v1880
    %v1882 = vpop.xlane.xlu0 %1881
    %v1883 = vsel %vm729, %v706, 0.0
    %1884 = vadd.xlane.f32.xlu0 %v1883
    %v1885 = vpop.xlane.xlu0 %1884
    %v1886 = vsel %vm729, %v707, 0.0
    %1887 = vadd.xlane.f32.xlu0 %v1886
    %v1888 = vpop.xlane.xlu0 %1887
    %v1889 = vsel %vm729, %v708, 0.0
    %1890 = vadd.xlane.f32.xlu0 %v1889
    %v1891 = vpop.xlane.xlu0 %1890
    %v1892 = vsel %vm729, %v709, 0.0
    %1893 = vadd.xlane.f32.xlu0 %v1892
    %v1894 = vpop.xlane.xlu0 %1893
    %v1895 = vsel %vm729, %v710, 0.0
    %1896 = vadd.xlane.f32.xlu0 %v1895
    %v1897 = vpop.xlane.xlu0 %1896
    %v1898 = vsel %vm729, %v711, 0.0
    %1899 = vadd.xlane.f32.xlu0 %v1898
    %v1900 = vpop.xlane.xlu0 %1899
    %v1901 = vsel %vm729, %v712, 0.0
    %1902 = vadd.xlane.f32.xlu0 %v1901
    %v1903 = vpop.xlane.xlu0 %1902
    %v1904 = vsel %vm729, %v713, 0.0
    %1905 = vadd.xlane.f32.xlu0 %v1904
    %v1906 = vpop.xlane.xlu0 %1905
    %v1907 = vsel %vm729, %v714, 0.0
    %1908 = vadd.xlane.f32.xlu0 %v1907
    %v1909 = vpop.xlane.xlu0 %1908
    %v1910 = vsel %vm729, %v715, 0.0
    %1911 = vadd.xlane.f32.xlu0 %v1910
    %v1912 = vpop.xlane.xlu0 %1911
    %v1913 = vsel %vm729, %v716, 0.0
    %1914 = vadd.xlane.f32.xlu0 %v1913
    %v1915 = vpop.xlane.xlu0 %1914
    %v1916 = vsel %vm729, %v717, 0.0
    %1917 = vadd.xlane.f32.xlu0 %v1916
    %v1918 = vpop.xlane.xlu0 %1917
    %v1919 = vsel %vm729, %v718, 0.0
    %1920 = vadd.xlane.f32.xlu0 %v1919
    %v1921 = vpop.xlane.xlu0 %1920
    %v1922 = vsel %vm729, %v719, 0.0
    %1923 = vadd.xlane.f32.xlu0 %v1922
    %v1924 = vpop.xlane.xlu0 %1923
    %v1925 = vsel %vm729, %v720, 0.0
    %1926 = vadd.xlane.f32.xlu0 %v1925
    %v1927 = vpop.xlane.xlu0 %1926
    %v1928 = vmul.f32 %v1882, %v748
    %v1929 = vmul.f32 %v1885, %v748
    %v1930 = vmul.f32 %v1888, %v748
    %v1931 = vmul.f32 %v1891, %v748
    %v1932 = vmul.f32 %v1894, %v748
    %v1933 = vmul.f32 %v1897, %v748
    %v1934 = vmul.f32 %v1900, %v748
    %v1935 = vmul.f32 %v1903, %v748
    %v1936 = vmul.f32 %v1906, %v748
    %v1937 = vmul.f32 %v1909, %v748
    %v1938 = vmul.f32 %v1912, %v748
    %v1939 = vmul.f32 %v1915, %v748
    %v1940 = vmul.f32 %v1918, %v748
    %v1941 = vmul.f32 %v1921, %v748
    %v1942 = vmul.f32 %v1924, %v748
    %v1943 = vmul.f32 %v1927, %v748
    %v1944 = vsub.f32 %v705, %v1928
    %v1945 = vsub.f32 %v706, %v1929
    %v1946 = vsub.f32 %v707, %v1930
    %v1947 = vsub.f32 %v708, %v1931
    %v1948 = vsub.f32 %v709, %v1932
    %v1949 = vsub.f32 %v710, %v1933
    %v1950 = vsub.f32 %v711, %v1934
    %v1951 = vsub.f32 %v712, %v1935
    %v1952 = vsub.f32 %v713, %v1936
    %v1953 = vsub.f32 %v714, %v1937
    %v1954 = vsub.f32 %v715, %v1938
    %v1955 = vsub.f32 %v716, %v1939
    %v1956 = vsub.f32 %v717, %v1940
    %v1957 = vsub.f32 %v718, %v1941
    %v1958 = vsub.f32 %v719, %v1942
    %v1959 = vsub.f32 %v720, %v1943
    %v1960 = vmul.f32 %v1944, %v1944
    %v1961 = vmul.f32 %v1945, %v1945
    %v1962 = vmul.f32 %v1946, %v1946
    %v1963 = vmul.f32 %v1947, %v1947
    %v1964 = vmul.f32 %v1948, %v1948
    %v1965 = vmul.f32 %v1949, %v1949
    %v1966 = vmul.f32 %v1950, %v1950
    %v1967 = vmul.f32 %v1951, %v1951
    %v1968 = vmul.f32 %v1952, %v1952
    %v1969 = vmul.f32 %v1953, %v1953
    %v1970 = vmul.f32 %v1954, %v1954
    %v1971 = vmul.f32 %v1955, %v1955
    %v1972 = vmul.f32 %v1956, %v1956
    %v1973 = vmul.f32 %v1957, %v1957
    %v1974 = vmul.f32 %v1958, %v1958
    %v1975 = vmul.f32 %v1959, %v1959
    %v1976 = vsel %vm729, %v1960, 0.0
    %1977 = vadd.xlane.f32.xlu0 %v1976
    %v1978 = vpop.xlane.xlu0 %1977
    %v1979 = vsel %vm729, %v1961, 0.0
    %1980 = vadd.xlane.f32.xlu0 %v1979
    %v1981 = vpop.xlane.xlu0 %1980
    %v1982 = vsel %vm729, %v1962, 0.0
    %1983 = vadd.xlane.f32.xlu0 %v1982
    %v1984 = vpop.xlane.xlu0 %1983
    %v1985 = vsel %vm729, %v1963, 0.0
    %1986 = vadd.xlane.f32.xlu0 %v1985
    %v1987 = vpop.xlane.xlu0 %1986
    %v1988 = vsel %vm729, %v1964, 0.0
    %1989 = vadd.xlane.f32.xlu0 %v1988
    %v1990 = vpop.xlane.xlu0 %1989
    %v1991 = vsel %vm729, %v1965, 0.0
    %1992 = vadd.xlane.f32.xlu0 %v1991
    %v1993 = vpop.xlane.xlu0 %1992
    %v1994 = vsel %vm729, %v1966, 0.0
    %1995 = vadd.xlane.f32.xlu0 %v1994
    %v1996 = vpop.xlane.xlu0 %1995
    %v1997 = vsel %vm729, %v1967, 0.0
    %1998 = vadd.xlane.f32.xlu0 %v1997
    %v1999 = vpop.xlane.xlu0 %1998
    %v2000 = vsel %vm729, %v1968, 0.0
    %2001 = vadd.xlane.f32.xlu0 %v2000
    %v2002 = vpop.xlane.xlu0 %2001
    %v2003 = vsel %vm729, %v1969, 0.0
    %2004 = vadd.xlane.f32.xlu0 %v2003
    %v2005 = vpop.xlane.xlu0 %2004
    %v2006 = vsel %vm729, %v1970, 0.0
    %2007 = vadd.xlane.f32.xlu0 %v2006
    %v2008 = vpop.xlane.xlu0 %2007
    %v2009 = vsel %vm729, %v1971, 0.0
    %2010 = vadd.xlane.f32.xlu0 %v2009
    %v2011 = vpop.xlane.xlu0 %2010
    %v2012 = vsel %vm729, %v1972, 0.0
    %2013 = vadd.xlane.f32.xlu0 %v2012
    %v2014 = vpop.xlane.xlu0 %2013
    %v2015 = vsel %vm729, %v1973, 0.0
    %2016 = vadd.xlane.f32.xlu0 %v2015
    %v2017 = vpop.xlane.xlu0 %2016
    %v2018 = vsel %vm729, %v1974, 0.0
    %2019 = vadd.xlane.f32.xlu0 %v2018
    %v2020 = vpop.xlane.xlu0 %2019
    %v2021 = vsel %vm729, %v1975, 0.0
    %2022 = vadd.xlane.f32.xlu0 %v2021
    %v2023 = vpop.xlane.xlu0 %2022
    %v2024 = vmul.f32 %v1978, %v748
    %v2025 = vmul.f32 %v1981, %v748
    %v2026 = vmul.f32 %v1984, %v748
    %v2027 = vmul.f32 %v1987, %v748
    %v2028 = vmul.f32 %v1990, %v748
    %v2029 = vmul.f32 %v1993, %v748
    %v2030 = vmul.f32 %v1996, %v748
    %v2031 = vmul.f32 %v1999, %v748
    %v2032 = vmul.f32 %v2002, %v748
    %v2033 = vmul.f32 %v2005, %v748
    %v2034 = vmul.f32 %v2008, %v748
    %v2035 = vmul.f32 %v2011, %v748
    %v2036 = vmul.f32 %v2014, %v748
    %v2037 = vmul.f32 %v2017, %v748
    %v2038 = vmul.f32 %v2020, %v748
    %v2039 = vmul.f32 %v2023, %v748
    %v2040 = vadd.f32 %v2024, 1e-05
    %v2041 = vadd.f32 %v2025, 1e-05
    %v2042 = vadd.f32 %v2026, 1e-05
    %v2043 = vadd.f32 %v2027, 1e-05
    %v2044 = vadd.f32 %v2028, 1e-05
    %v2045 = vadd.f32 %v2029, 1e-05
    %v2046 = vadd.f32 %v2030, 1e-05
    %v2047 = vadd.f32 %v2031, 1e-05
    %v2048 = vadd.f32 %v2032, 1e-05
    %v2049 = vadd.f32 %v2033, 1e-05
    %v2050 = vadd.f32 %v2034, 1e-05
    %v2051 = vadd.f32 %v2035, 1e-05
    %v2052 = vadd.f32 %v2036, 1e-05
    %v2053 = vadd.f32 %v2037, 1e-05
    %v2054 = vadd.f32 %v2038, 1e-05
    %v2055 = vadd.f32 %v2039, 1e-05
    %v2056 = vrsqrt.pop %v2040
    %v2057 = vmul.f32 %v2056, %v2040
    %v2058 = vmul.f32 %v2057, %v2056
    %v2059 = vmul.f32 0.5, %v2058
    %v2060 = vsub.f32 1.5, %v2059
    %v2061 = vmul.f32 %v2056, %v2060
    %vm2062 = vweird.f32 %v2040
    %vm2063 = vweird.f32 %v2056
    %vm2064 = vmor %vm2062, %vm2063
    %v2065 = vsel %vm2064, %v2056, %v2061
    %v2066 = vrsqrt.pop %v2041
    %v2067 = vmul.f32 %v2066, %v2041
    %v2068 = vmul.f32 %v2067, %v2066
    %v2069 = vmul.f32 0.5, %v2068
    %v2070 = vsub.f32 1.5, %v2069
    %v2071 = vmul.f32 %v2066, %v2070
    %vm2072 = vweird.f32 %v2041
    %vm2073 = vweird.f32 %v2066
    %vm2074 = vmor %vm2072, %vm2073
    %v2075 = vsel %vm2074, %v2066, %v2071
    %v2076 = vrsqrt.pop %v2042
    %v2077 = vmul.f32 %v2076, %v2042
    %v2078 = vmul.f32 %v2077, %v2076
    %v2079 = vmul.f32 0.5, %v2078
    %v2080 = vsub.f32 1.5, %v2079
    %v2081 = vmul.f32 %v2076, %v2080
    %vm2082 = vweird.f32 %v2042
    %vm2083 = vweird.f32 %v2076
    %vm2084 = vmor %vm2082, %vm2083
    %v2085 = vsel %vm2084, %v2076, %v2081
    %v2086 = vrsqrt.pop %v2043
    %v2087 = vmul.f32 %v2086, %v2043
    %v2088 = vmul.f32 %v2087, %v2086
    %v2089 = vmul.f32 0.5, %v2088
    %v2090 = vsub.f32 1.5, %v2089
    %v2091 = vmul.f32 %v2086, %v2090
    %vm2092 = vweird.f32 %v2043
    %vm2093 = vweird.f32 %v2086
    %vm2094 = vmor %vm2092, %vm2093
    %v2095 = vsel %vm2094, %v2086, %v2091
    %v2096 = vrsqrt.pop %v2044
    %v2097 = vmul.f32 %v2096, %v2044
    %v2098 = vmul.f32 %v2097, %v2096
    %v2099 = vmul.f32 0.5, %v2098
    %v2100 = vsub.f32 1.5, %v2099
    %v2101 = vmul.f32 %v2096, %v2100
    %vm2102 = vweird.f32 %v2044
    %vm2103 = vweird.f32 %v2096
    %vm2104 = vmor %vm2102, %vm2103
    %v2105 = vsel %vm2104, %v2096, %v2101
    %v2106 = vrsqrt.pop %v2045
    %v2107 = vmul.f32 %v2106, %v2045
    %v2108 = vmul.f32 %v2107, %v2106
    %v2109 = vmul.f32 0.5, %v2108
    %v2110 = vsub.f32 1.5, %v2109
    %v2111 = vmul.f32 %v2106, %v2110
    %vm2112 = vweird.f32 %v2045
    %vm2113 = vweird.f32 %v2106
    %vm2114 = vmor %vm2112, %vm2113
    %v2115 = vsel %vm2114, %v2106, %v2111
    %v2116 = vrsqrt.pop %v2046
    %v2117 = vmul.f32 %v2116, %v2046
    %v2118 = vmul.f32 %v2117, %v2116
    %v2119 = vmul.f32 0.5, %v2118
    %v2120 = vsub.f32 1.5, %v2119
    %v2121 = vmul.f32 %v2116, %v2120
    %vm2122 = vweird.f32 %v2046
    %vm2123 = vweird.f32 %v2116
    %vm2124 = vmor %vm2122, %vm2123
    %v2125 = vsel %vm2124, %v2116, %v2121
    %v2126 = vrsqrt.pop %v2047
    %v2127 = vmul.f32 %v2126, %v2047
    %v2128 = vmul.f32 %v2127, %v2126
    %v2129 = vmul.f32 0.5, %v2128
    %v2130 = vsub.f32 1.5, %v2129
    %v2131 = vmul.f32 %v2126, %v2130
    %vm2132 = vweird.f32 %v2047
    %vm2133 = vweird.f32 %v2126
    %vm2134 = vmor %vm2132, %vm2133
    %v2135 = vsel %vm2134, %v2126, %v2131
    %v2136 = vrsqrt.pop %v2048
    %v2137 = vmul.f32 %v2136, %v2048
    %v2138 = vmul.f32 %v2137, %v2136
    %v2139 = vmul.f32 0.5, %v2138
    %v2140 = vsub.f32 1.5, %v2139
    %v2141 = vmul.f32 %v2136, %v2140
    %vm2142 = vweird.f32 %v2048
    %vm2143 = vweird.f32 %v2136
    %vm2144 = vmor %vm2142, %vm2143
    %v2145 = vsel %vm2144, %v2136, %v2141
    %v2146 = vrsqrt.pop %v2049
    %v2147 = vmul.f32 %v2146, %v2049
    %v2148 = vmul.f32 %v2147, %v2146
    %v2149 = vmul.f32 0.5, %v2148
    %v2150 = vsub.f32 1.5, %v2149
    %v2151 = vmul.f32 %v2146, %v2150
    %vm2152 = vweird.f32 %v2049
    %vm2153 = vweird.f32 %v2146
    %vm2154 = vmor %vm2152, %vm2153
    %v2155 = vsel %vm2154, %v2146, %v2151
    %v2156 = vrsqrt.pop %v2050
    %v2157 = vmul.f32 %v2156, %v2050
    %v2158 = vmul.f32 %v2157, %v2156
    %v2159 = vmul.f32 0.5, %v2158
    %v2160 = vsub.f32 1.5, %v2159
    %v2161 = vmul.f32 %v2156, %v2160
    %vm2162 = vweird.f32 %v2050
    %vm2163 = vweird.f32 %v2156
    %vm2164 = vmor %vm2162, %vm2163
    %v2165 = vsel %vm2164, %v2156, %v2161
    %v2166 = vrsqrt.pop %v2051
    %v2167 = vmul.f32 %v2166, %v2051
    %v2168 = vmul.f32 %v2167, %v2166
    %v2169 = vmul.f32 0.5, %v2168
    %v2170 = vsub.f32 1.5, %v2169
    %v2171 = vmul.f32 %v2166, %v2170
    %vm2172 = vweird.f32 %v2051
    %vm2173 = vweird.f32 %v2166
    %vm2174 = vmor %vm2172, %vm2173
    %v2175 = vsel %vm2174, %v2166, %v2171
    %v2176 = vrsqrt.pop %v2052
    %v2177 = vmul.f32 %v2176, %v2052
    %v2178 = vmul.f32 %v2177, %v2176
    %v2179 = vmul.f32 0.5, %v2178
    %v2180 = vsub.f32 1.5, %v2179
    %v2181 = vmul.f32 %v2176, %v2180
    %vm2182 = vweird.f32 %v2052
    %vm2183 = vweird.f32 %v2176
    %vm2184 = vmor %vm2182, %vm2183
    %v2185 = vsel %vm2184, %v2176, %v2181
    %v2186 = vrsqrt.pop %v2053
    %v2187 = vmul.f32 %v2186, %v2053
    %v2188 = vmul.f32 %v2187, %v2186
    %v2189 = vmul.f32 0.5, %v2188
    %v2190 = vsub.f32 1.5, %v2189
    %v2191 = vmul.f32 %v2186, %v2190
    %vm2192 = vweird.f32 %v2053
    %vm2193 = vweird.f32 %v2186
    %vm2194 = vmor %vm2192, %vm2193
    %v2195 = vsel %vm2194, %v2186, %v2191
    %v2196 = vrsqrt.pop %v2054
    %v2197 = vmul.f32 %v2196, %v2054
    %v2198 = vmul.f32 %v2197, %v2196
    %v2199 = vmul.f32 0.5, %v2198
    %v2200 = vsub.f32 1.5, %v2199
    %v2201 = vmul.f32 %v2196, %v2200
    %vm2202 = vweird.f32 %v2054
    %vm2203 = vweird.f32 %v2196
    %vm2204 = vmor %vm2202, %vm2203
    %v2205 = vsel %vm2204, %v2196, %v2201
    %v2206 = vrsqrt.pop %v2055
    %v2207 = vmul.f32 %v2206, %v2055
    %v2208 = vmul.f32 %v2207, %v2206
    %v2209 = vmul.f32 0.5, %v2208
    %v2210 = vsub.f32 1.5, %v2209
    %v2211 = vmul.f32 %v2206, %v2210
    %vm2212 = vweird.f32 %v2055
    %vm2213 = vweird.f32 %v2206
    %vm2214 = vmor %vm2212, %vm2213
    %v2215 = vsel %vm2214, %v2206, %v2211
    %v2216 = vmul.f32 %v1944, %v2065
    %v2217 = vmul.f32 %v1945, %v2075
    %v2218 = vmul.f32 %v1946, %v2085
    %v2219 = vmul.f32 %v1947, %v2095
    %v2220 = vmul.f32 %v1948, %v2105
    %v2221 = vmul.f32 %v1949, %v2115
    %v2222 = vmul.f32 %v1950, %v2125
    %v2223 = vmul.f32 %v1951, %v2135
    %v2224 = vmul.f32 %v1952, %v2145
    %v2225 = vmul.f32 %v1953, %v2155
    %v2226 = vmul.f32 %v1954, %v2165
    %v2227 = vmul.f32 %v1955, %v2175
    %v2228 = vmul.f32 %v1956, %v2185
    %v2229 = vmul.f32 %v1957, %v2195
    %v2230 = vmul.f32 %v1958, %v2205
    %v2231 = vmul.f32 %v1959, %v2215
    %v2233 = vperm.slane %v579, 0
    %v2235 = vmul.f32 %v2216, %v2233
    %v2236 = vmul.f32 %v2217, %v2233
    %v2237 = vmul.f32 %v2218, %v2233
    %v2238 = vmul.f32 %v2219, %v2233
    %v2239 = vmul.f32 %v2220, %v2233
    %v2240 = vmul.f32 %v2221, %v2233
    %v2241 = vmul.f32 %v2222, %v2233
    %v2242 = vmul.f32 %v2223, %v2233
    %v2243 = vmul.f32 %v2224, %v2233
    %v2244 = vmul.f32 %v2225, %v2233
    %v2245 = vmul.f32 %v2226, %v2233
    %v2246 = vmul.f32 %v2227, %v2233
    %v2247 = vmul.f32 %v2228, %v2233
    %v2248 = vmul.f32 %v2229, %v2233
    %v2249 = vmul.f32 %v2230, %v2233
    %v2250 = vmul.f32 %v2231, %v2233
    %v2252 = vperm.slane %v580, 0
    %v2254 = vadd.f32 %v2235, %v2252
    %v2255 = vadd.f32 %v2236, %v2252
    %v2256 = vadd.f32 %v2237, %v2252
    %v2257 = vadd.f32 %v2238, %v2252
    %v2258 = vadd.f32 %v2239, %v2252
    %v2259 = vadd.f32 %v2240, %v2252
    %v2260 = vadd.f32 %v2241, %v2252
    %v2261 = vadd.f32 %v2242, %v2252
    %v2262 = vadd.f32 %v2243, %v2252
    %v2263 = vadd.f32 %v2244, %v2252
    %v2264 = vadd.f32 %v2245, %v2252
    %v2265 = vadd.f32 %v2246, %v2252
    %v2266 = vadd.f32 %v2247, %v2252
    %v2267 = vadd.f32 %v2248, %v2252
    %v2268 = vadd.f32 %v2249, %v2252
    %v2269 = vadd.f32 %v2250, %v2252
    %v2270 = vpack.c.bf16 %v2255, %v2254
    %v2271 = vpack.c.bf16 %v2257, %v2256
    %v2272 = vpack.c.bf16 %v2259, %v2258
    %v2273 = vpack.c.bf16 %v2261, %v2260
    %v2274 = vpack.c.bf16 %v2263, %v2262
    %v2275 = vpack.c.bf16 %v2265, %v2264
    %v2276 = vpack.c.bf16 %v2267, %v2266
    %v2277 = vpack.c.bf16 %v2269, %v2268
    %v2279 = vperm.slane %v585, 0
    %v2285 = vunpack.c.l.b16 %v581
    %v2286 = vunpack.c.l.b16 %v582
    %v2287 = vunpack.c.l.b16 %v583
    %v2288 = vunpack.c.l.b16 %v584
    %v2289 = vpack.c.b16 %v2286, %v2285
    %v2290 = vpack.c.b16 %v2288, %v2287
    %v2294 = vsel %vm729, %v2270, 0
    %v2297 = vsel %vm729, %v2271, 0
    %v2300 = vsel %vm729, %v2272, 0
    %v2303 = vsel %vm729, %v2273, 0
    %v2306 = vsel %vm729, %v2274, 0
    %v2309 = vsel %vm729, %v2275, 0
    %v2312 = vsel %vm729, %v2276, 0
    %v2315 = vsel %vm729, %v2277, 0
    %2317 = vmatpush.bf16.msra.mxu0 0
    %2318 = vmatpush.bf16.msra.mxu0 0
    %2319 = vmatpush.bf16.msra.mxu0 0
    %2320 = vmatpush.bf16.msra.mxu0 0
    %2321 = vmatpush.bf16.msra.mxu0 0
    %2322 = vmatpush.bf16.msra.mxu0 0
    %2323 = vmatpush.bf16.msra.mxu0 %v2290
    %2324 = vmatpush.bf16.msra.mxu0 %v2289
    %2325 = vmatmul.bf16.gmra.mxu0 %v2294
    %v2326 = vpop.f32.mrf.mxu0
    %v2327 = vadd.f32 %v2279, %v2326
    %v2328 = vpop.f32.mrf.mxu0
    %v2329 = vadd.f32 %v2279, %v2328
    %2330 = vmatmul.bf16.gmra.mxu0 %v2297
    %v2331 = vpop.f32.mrf.mxu0
    %v2332 = vadd.f32 %v2279, %v2331
    %v2333 = vpop.f32.mrf.mxu0
    %v2334 = vadd.f32 %v2279, %v2333
    %2335 = vmatmul.bf16.gmra.mxu0 %v2300
    %v2336 = vpop.f32.mrf.mxu0
    %v2337 = vadd.f32 %v2279, %v2336
    %v2338 = vpop.f32.mrf.mxu0
    %v2339 = vadd.f32 %v2279, %v2338
    %2340 = vmatmul.bf16.gmra.mxu0 %v2303
    %v2341 = vpop.f32.mrf.mxu0
    %v2342 = vadd.f32 %v2279, %v2341
    %v2343 = vpop.f32.mrf.mxu0
    %v2344 = vadd.f32 %v2279, %v2343
    %2345 = vmatmul.bf16.gmra.mxu0 %v2306
    %v2346 = vpop.f32.mrf.mxu0
    %v2347 = vadd.f32 %v2279, %v2346
    %v2348 = vpop.f32.mrf.mxu0
    %v2349 = vadd.f32 %v2279, %v2348
    %2350 = vmatmul.bf16.gmra.mxu0 %v2309
    %v2351 = vpop.f32.mrf.mxu0
    %v2352 = vadd.f32 %v2279, %v2351
    %v2353 = vpop.f32.mrf.mxu0
    %v2354 = vadd.f32 %v2279, %v2353
    %2355 = vmatmul.bf16.gmra.mxu0 %v2312
    %v2356 = vpop.f32.mrf.mxu0
    %v2357 = vadd.f32 %v2279, %v2356
    %v2358 = vpop.f32.mrf.mxu0
    %v2359 = vadd.f32 %v2279, %v2358
    %2360 = vmatmul.bf16.gmra.mxu0 %v2315
    %v2361 = vpop.f32.mrf.mxu0
    %v2362 = vadd.f32 %v2279, %v2361
    %v2363 = vpop.f32.mrf.mxu0
    %v2364 = vadd.f32 %v2279, %v2363
    %2365 = vdwg.mxu0
    %v2366 = vpack.c.bf16 %v2327, %v2327
    %v2367 = vpack.c.bf16 %v2329, %v2329
    %v2368 = vpack.c.bf16 %v2332, %v2332
    %v2369 = vpack.c.bf16 %v2334, %v2334
    %v2370 = vpack.c.bf16 %v2337, %v2337
    %v2371 = vpack.c.bf16 %v2339, %v2339
    %v2372 = vpack.c.bf16 %v2342, %v2342
    %v2373 = vpack.c.bf16 %v2344, %v2344
    %v2374 = vpack.c.bf16 %v2347, %v2347
    %v2375 = vpack.c.bf16 %v2349, %v2349
    %v2376 = vpack.c.bf16 %v2352, %v2352
    %v2377 = vpack.c.bf16 %v2354, %v2354
    %v2378 = vpack.c.bf16 %v2357, %v2357
    %v2379 = vpack.c.bf16 %v2359, %v2359
    %v2380 = vpack.c.bf16 %v2362, %v2362
    %v2381 = vpack.c.bf16 %v2364, %v2364
    %v2390 = vunpack.c.l.b16 %v2366
    %v2391 = vunpack.c.l.b16 %v2367
    %v2392 = vunpack.c.l.b16 %v2368
    %v2393 = vunpack.c.l.b16 %v2369
    %v2394 = vunpack.c.l.b16 %v2370
    %v2395 = vunpack.c.l.b16 %v2371
    %v2396 = vunpack.c.l.b16 %v2372
    %v2397 = vunpack.c.l.b16 %v2373
    %v2398 = vpack.c.b16 %v2391, %v2390
    %v2399 = vpack.c.b16 %v2393, %v2392
    %v2400 = vpack.c.b16 %v2395, %v2394
    %v2401 = vpack.c.b16 %v2397, %v2396
    %2402 = vrot.lane.b32.xlu0 %v2398, 96
    %v2403 = vpop.permute.xlu0 %2402
    %2404 = vrot.lane.b32.xlu0 %v2399, 96
    %v2405 = vpop.permute.xlu0 %2404
    %2406 = vrot.lane.b32.xlu0 %v2400, 96
    %v2407 = vpop.permute.xlu0 %2406
    %2408 = vrot.lane.b32.xlu0 %v2401, 96
    %v2409 = vpop.permute.xlu0 %2408
    %v2411 = vsel %vm892, %v2398, 0
    %v2414 = vsel %vm892, %v2399, 0
    %v2417 = vsel %vm892, %v2400, 0
    %v2420 = vsel %vm892, %v2401, 0
    %v2423 = vsel %vm892, %v2403, 0
    %v2426 = vsel %vm892, %v2405, 0
    %v2429 = vsel %vm892, %v2407, 0
    %v2432 = vsel %vm892, %v2409, 0
    %2434 = vmatpush.bf16.xpose.msra.mxu0 0
    %2435 = vmatpush.bf16.xpose.msra.mxu0 0
    %2436 = vmatpush.bf16.xpose.msra.mxu0 0
    %2437 = vmatpush.bf16.xpose.msra.mxu0 0
    %2438 = vmatpush.bf16.xpose.msra.mxu0 %v2432
    %2439 = vmatpush.bf16.xpose.msra.mxu0 %v2429
    %2440 = vmatpush.bf16.xpose.msra.mxu0 %v2426
    %2441 = vmatpush.bf16.xpose.msra.mxu0 %v2423
    %2442 = vmatmul.bf16.gmra.mxu0 %v2411
    %v2443 = vpop.f32.mrf.mxu0
    %v2444 = vadd.f32 %v1848, %v2443
    %v2445 = vpop.f32.mrf.mxu0
    %v2446 = vadd.f32 %v1849, %v2445
    %2447 = vmatmul.bf16.gmra.mxu0 %v2414
    %v2448 = vpop.f32.mrf.mxu0
    %v2449 = vadd.f32 %v1850, %v2448
    %v2450 = vpop.f32.mrf.mxu0
    %v2451 = vadd.f32 %v1851, %v2450
    %2452 = vmatmul.bf16.gmra.mxu0 %v2417
    %v2453 = vpop.f32.mrf.mxu0
    %v2454 = vadd.f32 %v1852, %v2453
    %v2455 = vpop.f32.mrf.mxu0
    %v2456 = vadd.f32 %v1853, %v2455
    %2457 = vmatmul.bf16.gmra.mxu0 %v2420
    %v2458 = vpop.f32.mrf.mxu0
    %v2459 = vadd.f32 %v1854, %v2458
    %v2460 = vpop.f32.mrf.mxu0
    %v2461 = vadd.f32 %v1855, %v2460
    %2462 = vdwg.mxu0
    %v2471 = vunpack.c.l.b16 %v2374
    %v2472 = vunpack.c.l.b16 %v2375
    %v2473 = vunpack.c.l.b16 %v2376
    %v2474 = vunpack.c.l.b16 %v2377
    %v2475 = vunpack.c.l.b16 %v2378
    %v2476 = vunpack.c.l.b16 %v2379
    %v2477 = vunpack.c.l.b16 %v2380
    %v2478 = vunpack.c.l.b16 %v2381
    %v2479 = vpack.c.b16 %v2472, %v2471
    %v2480 = vpack.c.b16 %v2474, %v2473
    %v2481 = vpack.c.b16 %v2476, %v2475
    %v2482 = vpack.c.b16 %v2478, %v2477
    %2483 = vrot.lane.b32.xlu0 %v2479, 96
    %v2484 = vpop.permute.xlu0 %2483
    %2485 = vrot.lane.b32.xlu0 %v2480, 96
    %v2486 = vpop.permute.xlu0 %2485
    %2487 = vrot.lane.b32.xlu0 %v2481, 96
    %v2488 = vpop.permute.xlu0 %2487
    %2489 = vrot.lane.b32.xlu0 %v2482, 96
    %v2490 = vpop.permute.xlu0 %2489
    %v2492 = vsel %vm892, %v2479, 0
    %v2495 = vsel %vm892, %v2480, 0
    %v2498 = vsel %vm892, %v2481, 0
    %v2501 = vsel %vm892, %v2482, 0
    %v2504 = vsel %vm892, %v2484, 0
    %v2507 = vsel %vm892, %v2486, 0
    %v2510 = vsel %vm892, %v2488, 0
    %v2513 = vsel %vm892, %v2490, 0
    %2515 = vmatpush.bf16.xpose.msra.mxu0 0
    %2516 = vmatpush.bf16.xpose.msra.mxu0 0
    %2517 = vmatpush.bf16.xpose.msra.mxu0 0
    %2518 = vmatpush.bf16.xpose.msra.mxu0 0
    %2519 = vmatpush.bf16.xpose.msra.mxu0 %v2513
    %2520 = vmatpush.bf16.xpose.msra.mxu0 %v2510
    %2521 = vmatpush.bf16.xpose.msra.mxu0 %v2507
    %2522 = vmatpush.bf16.xpose.msra.mxu0 %v2504
    %2523 = vmatmul.bf16.gmra.mxu0 %v2492
    %v2524 = vpop.f32.mrf.mxu0
    %v2525 = vadd.f32 %v1848, %v2524
    %v2526 = vpop.f32.mrf.mxu0
    %v2527 = vadd.f32 %v1849, %v2526
    %2528 = vmatmul.bf16.gmra.mxu0 %v2495
    %v2529 = vpop.f32.mrf.mxu0
    %v2530 = vadd.f32 %v1850, %v2529
    %v2531 = vpop.f32.mrf.mxu0
    %v2532 = vadd.f32 %v1851, %v2531
    %2533 = vmatmul.bf16.gmra.mxu0 %v2498
    %v2534 = vpop.f32.mrf.mxu0
    %v2535 = vadd.f32 %v1852, %v2534
    %v2536 = vpop.f32.mrf.mxu0
    %v2537 = vadd.f32 %v1853, %v2536
    %2538 = vmatmul.bf16.gmra.mxu0 %v2501
    %v2539 = vpop.f32.mrf.mxu0
    %v2540 = vadd.f32 %v1854, %v2539
    %v2541 = vpop.f32.mrf.mxu0
    %v2542 = vadd.f32 %v1855, %v2541
    %2543 = vdwg.mxu0
    %vm2544 = vcmask 523264
    %v2545 = vsel %vm2544, %v2444, -inf
    %2546 = vmax.xlane.f32.xlu0 %v2545
    %v2547 = vpop.xlane.xlu0 %2546
    %v2548 = vsel %vm2544, %v2446, -inf
    %2549 = vmax.xlane.f32.xlu0 %v2548
    %v2550 = vpop.xlane.xlu0 %2549
    %v2551 = vsel %vm2544, %v2449, -inf
    %2552 = vmax.xlane.f32.xlu0 %v2551
    %v2553 = vpop.xlane.xlu0 %2552
    %v2554 = vsel %vm2544, %v2451, -inf
    %2555 = vmax.xlane.f32.xlu0 %v2554
    %v2556 = vpop.xlane.xlu0 %2555
    %v2557 = vsel %vm2544, %v2454, -inf
    %2558 = vmax.xlane.f32.xlu0 %v2557
    %v2559 = vpop.xlane.xlu0 %2558
    %v2560 = vsel %vm2544, %v2456, -inf
    %2561 = vmax.xlane.f32.xlu0 %v2560
    %v2562 = vpop.xlane.xlu0 %2561
    %v2563 = vsel %vm2544, %v2459, -inf
    %2564 = vmax.xlane.f32.xlu0 %v2563
    %v2565 = vpop.xlane.xlu0 %2564
    %v2566 = vsel %vm2544, %v2461, -inf
    %2567 = vmax.xlane.f32.xlu0 %v2566
    %v2568 = vpop.xlane.xlu0 %2567
    %v2569 = vsel %vm2544, %v2525, -inf
    %2570 = vmax.xlane.f32.xlu0 %v2569
    %v2571 = vpop.xlane.xlu0 %2570
    %v2572 = vsel %vm2544, %v2527, -inf
    %2573 = vmax.xlane.f32.xlu0 %v2572
    %v2574 = vpop.xlane.xlu0 %2573
    %v2575 = vsel %vm2544, %v2530, -inf
    %2576 = vmax.xlane.f32.xlu0 %v2575
    %v2577 = vpop.xlane.xlu0 %2576
    %v2578 = vsel %vm2544, %v2532, -inf
    %2579 = vmax.xlane.f32.xlu0 %v2578
    %v2580 = vpop.xlane.xlu0 %2579
    %v2581 = vsel %vm2544, %v2535, -inf
    %2582 = vmax.xlane.f32.xlu0 %v2581
    %v2583 = vpop.xlane.xlu0 %2582
    %v2584 = vsel %vm2544, %v2537, -inf
    %2585 = vmax.xlane.f32.xlu0 %v2584
    %v2586 = vpop.xlane.xlu0 %2585
    %v2587 = vsel %vm2544, %v2540, -inf
    %2588 = vmax.xlane.f32.xlu0 %v2587
    %v2589 = vpop.xlane.xlu0 %2588
    %v2590 = vsel %vm2544, %v2542, -inf
    %2591 = vmax.xlane.f32.xlu0 %v2590
    %v2592 = vpop.xlane.xlu0 %2591
    %v2593 = vsub.f32 %v2444, %v2547
    %v2594 = vsub.f32 %v2446, %v2550
    %v2595 = vsub.f32 %v2449, %v2553
    %v2596 = vsub.f32 %v2451, %v2556
    %v2597 = vsub.f32 %v2454, %v2559
    %v2598 = vsub.f32 %v2456, %v2562
    %v2599 = vsub.f32 %v2459, %v2565
    %v2600 = vsub.f32 %v2461, %v2568
    %v2601 = vsub.f32 %v2525, %v2571
    %v2602 = vsub.f32 %v2527, %v2574
    %v2603 = vsub.f32 %v2530, %v2577
    %v2604 = vsub.f32 %v2532, %v2580
    %v2605 = vsub.f32 %v2535, %v2583
    %v2606 = vsub.f32 %v2537, %v2586
    %v2607 = vsub.f32 %v2540, %v2589
    %v2608 = vsub.f32 %v2542, %v2592
    %v2609 = vmul.f32 %v2593, 1.442695
    %v2610 = vpow.pop %v2609
    %v2611 = vmul.f32 %v2594, 1.442695
    %v2612 = vpow.pop %v2611
    %v2613 = vmul.f32 %v2595, 1.442695
    %v2614 = vpow.pop %v2613
    %v2615 = vmul.f32 %v2596, 1.442695
    %v2616 = vpow.pop %v2615
    %v2617 = vmul.f32 %v2597, 1.442695
    %v2618 = vpow.pop %v2617
    %v2619 = vmul.f32 %v2598, 1.442695
    %v2620 = vpow.pop %v2619
    %v2621 = vmul.f32 %v2599, 1.442695
    %v2622 = vpow.pop %v2621
    %v2623 = vmul.f32 %v2600, 1.442695
    %v2624 = vpow.pop %v2623
    %v2625 = vmul.f32 %v2601, 1.442695
    %v2626 = vpow.pop %v2625
    %v2627 = vmul.f32 %v2602, 1.442695
    %v2628 = vpow.pop %v2627
    %v2629 = vmul.f32 %v2603, 1.442695
    %v2630 = vpow.pop %v2629
    %v2631 = vmul.f32 %v2604, 1.442695
    %v2632 = vpow.pop %v2631
    %v2633 = vmul.f32 %v2605, 1.442695
    %v2634 = vpow.pop %v2633
    %v2635 = vmul.f32 %v2606, 1.442695
    %v2636 = vpow.pop %v2635
    %v2637 = vmul.f32 %v2607, 1.442695
    %v2638 = vpow.pop %v2637
    %v2639 = vmul.f32 %v2608, 1.442695
    %v2640 = vpow.pop %v2639
    %v2641 = vsel %vm2544, %v2610, 0.0
    %2642 = vadd.xlane.f32.xlu0 %v2641
    %v2643 = vpop.xlane.xlu0 %2642
    %v2644 = vsel %vm2544, %v2612, 0.0
    %2645 = vadd.xlane.f32.xlu0 %v2644
    %v2646 = vpop.xlane.xlu0 %2645
    %v2647 = vsel %vm2544, %v2614, 0.0
    %2648 = vadd.xlane.f32.xlu0 %v2647
    %v2649 = vpop.xlane.xlu0 %2648
    %v2650 = vsel %vm2544, %v2616, 0.0
    %2651 = vadd.xlane.f32.xlu0 %v2650
    %v2652 = vpop.xlane.xlu0 %2651
    %v2653 = vsel %vm2544, %v2618, 0.0
    %2654 = vadd.xlane.f32.xlu0 %v2653
    %v2655 = vpop.xlane.xlu0 %2654
    %v2656 = vsel %vm2544, %v2620, 0.0
    %2657 = vadd.xlane.f32.xlu0 %v2656
    %v2658 = vpop.xlane.xlu0 %2657
    %v2659 = vsel %vm2544, %v2622, 0.0
    %2660 = vadd.xlane.f32.xlu0 %v2659
    %v2661 = vpop.xlane.xlu0 %2660
    %v2662 = vsel %vm2544, %v2624, 0.0
    %2663 = vadd.xlane.f32.xlu0 %v2662
    %v2664 = vpop.xlane.xlu0 %2663
    %v2665 = vsel %vm2544, %v2626, 0.0
    %2666 = vadd.xlane.f32.xlu0 %v2665
    %v2667 = vpop.xlane.xlu0 %2666
    %v2668 = vsel %vm2544, %v2628, 0.0
    %2669 = vadd.xlane.f32.xlu0 %v2668
    %v2670 = vpop.xlane.xlu0 %2669
    %v2671 = vsel %vm2544, %v2630, 0.0
    %2672 = vadd.xlane.f32.xlu0 %v2671
    %v2673 = vpop.xlane.xlu0 %2672
    %v2674 = vsel %vm2544, %v2632, 0.0
    %2675 = vadd.xlane.f32.xlu0 %v2674
    %v2676 = vpop.xlane.xlu0 %2675
    %v2677 = vsel %vm2544, %v2634, 0.0
    %2678 = vadd.xlane.f32.xlu0 %v2677
    %v2679 = vpop.xlane.xlu0 %2678
    %v2680 = vsel %vm2544, %v2636, 0.0
    %2681 = vadd.xlane.f32.xlu0 %v2680
    %v2682 = vpop.xlane.xlu0 %2681
    %v2683 = vsel %vm2544, %v2638, 0.0
    %2684 = vadd.xlane.f32.xlu0 %v2683
    %v2685 = vpop.xlane.xlu0 %2684
    %v2686 = vsel %vm2544, %v2640, 0.0
    %2687 = vadd.xlane.f32.xlu0 %v2686
    %v2688 = vpop.xlane.xlu0 %2687
    %v2689 = vrcp.pop %v2643
    %v2690 = vrcp.pop %v2646
    %v2691 = vrcp.pop %v2649
    %v2692 = vrcp.pop %v2652
    %v2693 = vrcp.pop %v2655
    %v2694 = vrcp.pop %v2658
    %v2695 = vrcp.pop %v2661
    %v2696 = vrcp.pop %v2664
    %v2697 = vrcp.pop %v2667
    %v2698 = vrcp.pop %v2670
    %v2699 = vrcp.pop %v2673
    %v2700 = vrcp.pop %v2676
    %v2701 = vrcp.pop %v2679
    %v2702 = vrcp.pop %v2682
    %v2703 = vrcp.pop %v2685
    %v2704 = vrcp.pop %v2688
    %v2705 = vpack.c.bf16 %v2610, %v2610
    %v2706 = vpack.c.bf16 %v2612, %v2612
    %v2707 = vpack.c.bf16 %v2614, %v2614
    %v2708 = vpack.c.bf16 %v2616, %v2616
    %v2709 = vpack.c.bf16 %v2618, %v2618
    %v2710 = vpack.c.bf16 %v2620, %v2620
    %v2711 = vpack.c.bf16 %v2622, %v2622
    %v2712 = vpack.c.bf16 %v2624, %v2624
    %v2713 = vpack.c.bf16 %v2626, %v2626
    %v2714 = vpack.c.bf16 %v2628, %v2628
    %v2715 = vpack.c.bf16 %v2630, %v2630
    %v2716 = vpack.c.bf16 %v2632, %v2632
    %v2717 = vpack.c.bf16 %v2634, %v2634
    %v2718 = vpack.c.bf16 %v2636, %v2636
    %v2719 = vpack.c.bf16 %v2638, %v2638
    %v2720 = vpack.c.bf16 %v2640, %v2640
    %v2729 = vunpack.c.l.b16 %v2705
    %v2730 = vunpack.c.l.b16 %v2706
    %v2731 = vunpack.c.l.b16 %v2707
    %v2732 = vunpack.c.l.b16 %v2708
    %v2733 = vunpack.c.l.b16 %v2709
    %v2734 = vunpack.c.l.b16 %v2710
    %v2735 = vunpack.c.l.b16 %v2711
    %v2736 = vunpack.c.l.b16 %v2712
    %v2737 = vpack.c.b16 %v2730, %v2729
    %v2738 = vpack.c.b16 %v2732, %v2731
    %v2739 = vpack.c.b16 %v2734, %v2733
    %v2740 = vpack.c.b16 %v2736, %v2735
    %2741 = vrot.lane.b32.xlu0 %v2398, 64
    %v2742 = vpop.permute.xlu0 %2741
    %2743 = vrot.lane.b32.xlu0 %v2399, 64
    %v2744 = vpop.permute.xlu0 %2743
    %2745 = vrot.lane.b32.xlu0 %v2400, 64
    %v2746 = vpop.permute.xlu0 %2745
    %2747 = vrot.lane.b32.xlu0 %v2401, 64
    %v2748 = vpop.permute.xlu0 %2747
    %v2754 = vsel %vm2544, %v2737, 0
    %v2757 = vsel %vm2544, %v2738, 0
    %v2760 = vsel %vm2544, %v2739, 0
    %v2763 = vsel %vm2544, %v2740, 0
    %2765 = vmatpush.bf16.msra.mxu0 0
    %2766 = vmatpush.bf16.msra.mxu0 0
    %2767 = vmatpush.bf16.msra.mxu0 0
    %2768 = vmatpush.bf16.msra.mxu0 0
    %2769 = vmatpush.bf16.msra.mxu0 %v2748
    %2770 = vmatpush.bf16.msra.mxu0 %v2746
    %2771 = vmatpush.bf16.msra.mxu0 %v2744
    %2772 = vmatpush.bf16.msra.mxu0 %v2742
    %2773 = vmatmul.bf16.gmra.mxu0 %v2754
    %v2774 = vpop.f32.mrf.mxu0
    %v2775 = vadd.f32 0.0, %v2774
    %v2776 = vpop.f32.mrf.mxu0
    %v2777 = vadd.f32 0.0, %v2776
    %2778 = vmatmul.bf16.gmra.mxu0 %v2757
    %v2779 = vpop.f32.mrf.mxu0
    %v2780 = vadd.f32 0.0, %v2779
    %v2781 = vpop.f32.mrf.mxu0
    %v2782 = vadd.f32 0.0, %v2781
    %2783 = vmatmul.bf16.gmra.mxu0 %v2760
    %v2784 = vpop.f32.mrf.mxu0
    %v2785 = vadd.f32 0.0, %v2784
    %v2786 = vpop.f32.mrf.mxu0
    %v2787 = vadd.f32 0.0, %v2786
    %2788 = vmatmul.bf16.gmra.mxu0 %v2763
    %v2789 = vpop.f32.mrf.mxu0
    %v2790 = vadd.f32 0.0, %v2789
    %v2791 = vpop.f32.mrf.mxu0
    %v2792 = vadd.f32 0.0, %v2791
    %2793 = vdwg.mxu0
    %v2802 = vunpack.c.l.b16 %v2713
    %v2803 = vunpack.c.l.b16 %v2714
    %v2804 = vunpack.c.l.b16 %v2715
    %v2805 = vunpack.c.l.b16 %v2716
    %v2806 = vunpack.c.l.b16 %v2717
    %v2807 = vunpack.c.l.b16 %v2718
    %v2808 = vunpack.c.l.b16 %v2719
    %v2809 = vunpack.c.l.b16 %v2720
    %v2810 = vpack.c.b16 %v2803, %v2802
    %v2811 = vpack.c.b16 %v2805, %v2804
    %v2812 = vpack.c.b16 %v2807, %v2806
    %v2813 = vpack.c.b16 %v2809, %v2808
    %2814 = vrot.lane.b32.xlu0 %v2479, 64
    %v2815 = vpop.permute.xlu0 %2814
    %2816 = vrot.lane.b32.xlu0 %v2480, 64
    %v2817 = vpop.permute.xlu0 %2816
    %2818 = vrot.lane.b32.xlu0 %v2481, 64
    %v2819 = vpop.permute.xlu0 %2818
    %2820 = vrot.lane.b32.xlu0 %v2482, 64
    %v2821 = vpop.permute.xlu0 %2820
    %v2827 = vsel %vm2544, %v2810, 0
    %v2830 = vsel %vm2544, %v2811, 0
    %v2833 = vsel %vm2544, %v2812, 0
    %v2836 = vsel %vm2544, %v2813, 0
    %2838 = vmatpush.bf16.msra.mxu0 0
    %2839 = vmatpush.bf16.msra.mxu0 0
    %2840 = vmatpush.bf16.msra.mxu0 0
    %2841 = vmatpush.bf16.msra.mxu0 0
    %2842 = vmatpush.bf16.msra.mxu0 %v2821
    %2843 = vmatpush.bf16.msra.mxu0 %v2819
    %2844 = vmatpush.bf16.msra.mxu0 %v2817
    %2845 = vmatpush.bf16.msra.mxu0 %v2815
    %2846 = vmatmul.bf16.gmra.mxu0 %v2827
    %v2847 = vpop.f32.mrf.mxu0
    %v2848 = vadd.f32 0.0, %v2847
    %v2849 = vpop.f32.mrf.mxu0
    %v2850 = vadd.f32 0.0, %v2849
    %2851 = vmatmul.bf16.gmra.mxu0 %v2830
    %v2852 = vpop.f32.mrf.mxu0
    %v2853 = vadd.f32 0.0, %v2852
    %v2854 = vpop.f32.mrf.mxu0
    %v2855 = vadd.f32 0.0, %v2854
    %2856 = vmatmul.bf16.gmra.mxu0 %v2833
    %v2857 = vpop.f32.mrf.mxu0
    %v2858 = vadd.f32 0.0, %v2857
    %v2859 = vpop.f32.mrf.mxu0
    %v2860 = vadd.f32 0.0, %v2859
    %2861 = vmatmul.bf16.gmra.mxu0 %v2836
    %v2862 = vpop.f32.mrf.mxu0
    %v2863 = vadd.f32 0.0, %v2862
    %v2864 = vpop.f32.mrf.mxu0
    %v2865 = vadd.f32 0.0, %v2864
    %2866 = vdwg.mxu0
    %v2867 = vmul.f32 %v2775, %v2689
    %v2868 = vmul.f32 %v2777, %v2690
    %v2869 = vmul.f32 %v2780, %v2691
    %v2870 = vmul.f32 %v2782, %v2692
    %v2871 = vmul.f32 %v2785, %v2693
    %v2872 = vmul.f32 %v2787, %v2694
    %v2873 = vmul.f32 %v2790, %v2695
    %v2874 = vmul.f32 %v2792, %v2696
    %v2875 = vmul.f32 %v2848, %v2697
    %v2876 = vmul.f32 %v2850, %v2698
    %v2877 = vmul.f32 %v2853, %v2699
    %v2878 = vmul.f32 %v2855, %v2700
    %v2879 = vmul.f32 %v2858, %v2701
    %v2880 = vmul.f32 %v2860, %v2702
    %v2881 = vmul.f32 %v2863, %v2703
    %v2882 = vmul.f32 %v2865, %v2704
    %2883 = vrot.lane.b32.xlu0 %v2398, 120
    %v2884 = vpop.permute.xlu0 %2883
    %2885 = vrot.lane.b32.xlu0 %v2399, 120
    %v2886 = vpop.permute.xlu0 %2885
    %2887 = vrot.lane.b32.xlu0 %v2400, 120
    %v2888 = vpop.permute.xlu0 %2887
    %2889 = vrot.lane.b32.xlu0 %v2401, 120
    %v2890 = vpop.permute.xlu0 %2889
    %2891 = vrot.lane.b32.xlu0 %v2398, 88
    %v2892 = vpop.permute.xlu0 %2891
    %2893 = vrot.lane.b32.xlu0 %v2399, 88
    %v2894 = vpop.permute.xlu0 %2893
    %2895 = vrot.lane.b32.xlu0 %v2400, 88
    %v2896 = vpop.permute.xlu0 %2895
    %2897 = vrot.lane.b32.xlu0 %v2401, 88
    %v2898 = vpop.permute.xlu0 %2897
    %v2900 = vsel %vm892, %v2884, 0
    %v2903 = vsel %vm892, %v2886, 0
    %v2906 = vsel %vm892, %v2888, 0
    %v2909 = vsel %vm892, %v2890, 0
    %v2912 = vsel %vm892, %v2892, 0
    %v2915 = vsel %vm892, %v2894, 0
    %v2918 = vsel %vm892, %v2896, 0
    %v2921 = vsel %vm892, %v2898, 0
    %2923 = vmatpush.bf16.xpose.msra.mxu0 0
    %2924 = vmatpush.bf16.xpose.msra.mxu0 0
    %2925 = vmatpush.bf16.xpose.msra.mxu0 0
    %2926 = vmatpush.bf16.xpose.msra.mxu0 0
    %2927 = vmatpush.bf16.xpose.msra.mxu0 %v2921
    %2928 = vmatpush.bf16.xpose.msra.mxu0 %v2918
    %2929 = vmatpush.bf16.xpose.msra.mxu0 %v2915
    %2930 = vmatpush.bf16.xpose.msra.mxu0 %v2912
    %2931 = vmatmul.bf16.gmra.mxu0 %v2900
    %v2932 = vpop.f32.mrf.mxu0
    %v2933 = vadd.f32 %v1856, %v2932
    %v2934 = vpop.f32.mrf.mxu0
    %v2935 = vadd.f32 %v1857, %v2934
    %2936 = vmatmul.bf16.gmra.mxu0 %v2903
    %v2937 = vpop.f32.mrf.mxu0
    %v2938 = vadd.f32 %v1858, %v2937
    %v2939 = vpop.f32.mrf.mxu0
    %v2940 = vadd.f32 %v1859, %v2939
    %2941 = vmatmul.bf16.gmra.mxu0 %v2906
    %v2942 = vpop.f32.mrf.mxu0
    %v2943 = vadd.f32 %v1860, %v2942
    %v2944 = vpop.f32.mrf.mxu0
    %v2945 = vadd.f32 %v1861, %v2944
    %2946 = vmatmul.bf16.gmra.mxu0 %v2909
    %v2947 = vpop.f32.mrf.mxu0
    %v2948 = vadd.f32 %v1862, %v2947
    %v2949 = vpop.f32.mrf.mxu0
    %v2950 = vadd.f32 %v1863, %v2949
    %2951 = vdwg.mxu0
    %2952 = vrot.lane.b32.xlu0 %v2479, 120
    %v2953 = vpop.permute.xlu0 %2952
    %2954 = vrot.lane.b32.xlu0 %v2480, 120
    %v2955 = vpop.permute.xlu0 %2954
    %2956 = vrot.lane.b32.xlu0 %v2481, 120
    %v2957 = vpop.permute.xlu0 %2956
    %2958 = vrot.lane.b32.xlu0 %v2482, 120
    %v2959 = vpop.permute.xlu0 %2958
    %2960 = vrot.lane.b32.xlu0 %v2479, 88
    %v2961 = vpop.permute.xlu0 %2960
    %2962 = vrot.lane.b32.xlu0 %v2480, 88
    %v2963 = vpop.permute.xlu0 %2962
    %2964 = vrot.lane.b32.xlu0 %v2481, 88
    %v2965 = vpop.permute.xlu0 %2964
    %2966 = vrot.lane.b32.xlu0 %v2482, 88
    %v2967 = vpop.permute.xlu0 %2966
    %v2969 = vsel %vm892, %v2953, 0
    %v2972 = vsel %vm892, %v2955, 0
    %v2975 = vsel %vm892, %v2957, 0
    %v2978 = vsel %vm892, %v2959, 0
    %v2981 = vsel %vm892, %v2961, 0
    %v2984 = vsel %vm892, %v2963, 0
    %v2987 = vsel %vm892, %v2965, 0
    %v2990 = vsel %vm892, %v2967, 0
    %2992 = vmatpush.bf16.xpose.msra.mxu0 0
    %2993 = vmatpush.bf16.xpose.msra.mxu0 0
    %2994 = vmatpush.bf16.xpose.msra.mxu0 0
    %2995 = vmatpush.bf16.xpose.msra.mxu0 0
    %2996 = vmatpush.bf16.xpose.msra.mxu0 %v2990
    %2997 = vmatpush.bf16.xpose.msra.mxu0 %v2987
    %2998 = vmatpush.bf16.xpose.msra.mxu0 %v2984
    %2999 = vmatpush.bf16.xpose.msra.mxu0 %v2981
    %3000 = vmatmul.bf16.gmra.mxu0 %v2969
    %v3001 = vpop.f32.mrf.mxu0
    %v3002 = vadd.f32 %v1856, %v3001
    %v3003 = vpop.f32.mrf.mxu0
    %v3004 = vadd.f32 %v1857, %v3003
    %3005 = vmatmul.bf16.gmra.mxu0 %v2972
    %v3006 = vpop.f32.mrf.mxu0
    %v3007 = vadd.f32 %v1858, %v3006
    %v3008 = vpop.f32.mrf.mxu0
    %v3009 = vadd.f32 %v1859, %v3008
    %3010 = vmatmul.bf16.gmra.mxu0 %v2975
    %v3011 = vpop.f32.mrf.mxu0
    %v3012 = vadd.f32 %v1860, %v3011
    %v3013 = vpop.f32.mrf.mxu0
    %v3014 = vadd.f32 %v1861, %v3013
    %3015 = vmatmul.bf16.gmra.mxu0 %v2978
    %v3016 = vpop.f32.mrf.mxu0
    %v3017 = vadd.f32 %v1862, %v3016
    %v3018 = vpop.f32.mrf.mxu0
    %v3019 = vadd.f32 %v1863, %v3018
    %3020 = vdwg.mxu0
    %v3021 = vsel %vm2544, %v2933, -inf
    %3022 = vmax.xlane.f32.xlu0 %v3021
    %v3023 = vpop.xlane.xlu0 %3022
    %v3024 = vsel %vm2544, %v2935, -inf
    %3025 = vmax.xlane.f32.xlu0 %v3024
    %v3026 = vpop.xlane.xlu0 %3025
    %v3027 = vsel %vm2544, %v2938, -inf
    %3028 = vmax.xlane.f32.xlu0 %v3027
    %v3029 = vpop.xlane.xlu0 %3028
    %v3030 = vsel %vm2544, %v2940, -inf
    %3031 = vmax.xlane.f32.xlu0 %v3030
    %v3032 = vpop.xlane.xlu0 %3031
    %v3033 = vsel %vm2544, %v2943, -inf
    %3034 = vmax.xlane.f32.xlu0 %v3033
    %v3035 = vpop.xlane.xlu0 %3034
    %v3036 = vsel %vm2544, %v2945, -inf
    %3037 = vmax.xlane.f32.xlu0 %v3036
    %v3038 = vpop.xlane.xlu0 %3037
    %v3039 = vsel %vm2544, %v2948, -inf
    %3040 = vmax.xlane.f32.xlu0 %v3039
    %v3041 = vpop.xlane.xlu0 %3040
    %v3042 = vsel %vm2544, %v2950, -inf
    %3043 = vmax.xlane.f32.xlu0 %v3042
    %v3044 = vpop.xlane.xlu0 %3043
    %v3045 = vsel %vm2544, %v3002, -inf
    %3046 = vmax.xlane.f32.xlu0 %v3045
    %v3047 = vpop.xlane.xlu0 %3046
    %v3048 = vsel %vm2544, %v3004, -inf
    %3049 = vmax.xlane.f32.xlu0 %v3048
    %v3050 = vpop.xlane.xlu0 %3049
    %v3051 = vsel %vm2544, %v3007, -inf
    %3052 = vmax.xlane.f32.xlu0 %v3051
    %v3053 = vpop.xlane.xlu0 %3052
    %v3054 = vsel %vm2544, %v3009, -inf
    %3055 = vmax.xlane.f32.xlu0 %v3054
    %v3056 = vpop.xlane.xlu0 %3055
    %v3057 = vsel %vm2544, %v3012, -inf
    %3058 = vmax.xlane.f32.xlu0 %v3057
    %v3059 = vpop.xlane.xlu0 %3058
    %v3060 = vsel %vm2544, %v3014, -inf
    %3061 = vmax.xlane.f32.xlu0 %v3060
    %v3062 = vpop.xlane.xlu0 %3061
    %v3063 = vsel %vm2544, %v3017, -inf
    %3064 = vmax.xlane.f32.xlu0 %v3063
    %v3065 = vpop.xlane.xlu0 %3064
    %v3066 = vsel %vm2544, %v3019, -inf
    %3067 = vmax.xlane.f32.xlu0 %v3066
    %v3068 = vpop.xlane.xlu0 %3067
    %v3069 = vsub.f32 %v2933, %v3023
    %v3070 = vsub.f32 %v2935, %v3026
    %v3071 = vsub.f32 %v2938, %v3029
    %v3072 = vsub.f32 %v2940, %v3032
    %v3073 = vsub.f32 %v2943, %v3035
    %v3074 = vsub.f32 %v2945, %v3038
    %v3075 = vsub.f32 %v2948, %v3041
    %v3076 = vsub.f32 %v2950, %v3044
    %v3077 = vsub.f32 %v3002, %v3047
    %v3078 = vsub.f32 %v3004, %v3050
    %v3079 = vsub.f32 %v3007, %v3053
    %v3080 = vsub.f32 %v3009, %v3056
    %v3081 = vsub.f32 %v3012, %v3059
    %v3082 = vsub.f32 %v3014, %v3062
    %v3083 = vsub.f32 %v3017, %v3065
    %v3084 = vsub.f32 %v3019, %v3068
    %v3085 = vmul.f32 %v3069, 1.442695
    %v3086 = vpow.pop %v3085
    %v3087 = vmul.f32 %v3070, 1.442695
    %v3088 = vpow.pop %v3087
    %v3089 = vmul.f32 %v3071, 1.442695
    %v3090 = vpow.pop %v3089
    %v3091 = vmul.f32 %v3072, 1.442695
    %v3092 = vpow.pop %v3091
    %v3093 = vmul.f32 %v3073, 1.442695
    %v3094 = vpow.pop %v3093
    %v3095 = vmul.f32 %v3074, 1.442695
    %v3096 = vpow.pop %v3095
    %v3097 = vmul.f32 %v3075, 1.442695
    %v3098 = vpow.pop %v3097
    %v3099 = vmul.f32 %v3076, 1.442695
    %v3100 = vpow.pop %v3099
    %v3101 = vmul.f32 %v3077, 1.442695
    %v3102 = vpow.pop %v3101
    %v3103 = vmul.f32 %v3078, 1.442695
    %v3104 = vpow.pop %v3103
    %v3105 = vmul.f32 %v3079, 1.442695
    %v3106 = vpow.pop %v3105
    %v3107 = vmul.f32 %v3080, 1.442695
    %v3108 = vpow.pop %v3107
    %v3109 = vmul.f32 %v3081, 1.442695
    %v3110 = vpow.pop %v3109
    %v3111 = vmul.f32 %v3082, 1.442695
    %v3112 = vpow.pop %v3111
    %v3113 = vmul.f32 %v3083, 1.442695
    %v3114 = vpow.pop %v3113
    %v3115 = vmul.f32 %v3084, 1.442695
    %v3116 = vpow.pop %v3115
    %v3117 = vsel %vm2544, %v3086, 0.0
    %3118 = vadd.xlane.f32.xlu0 %v3117
    %v3119 = vpop.xlane.xlu0 %3118
    %v3120 = vsel %vm2544, %v3088, 0.0
    %3121 = vadd.xlane.f32.xlu0 %v3120
    %v3122 = vpop.xlane.xlu0 %3121
    %v3123 = vsel %vm2544, %v3090, 0.0
    %3124 = vadd.xlane.f32.xlu0 %v3123
    %v3125 = vpop.xlane.xlu0 %3124
    %v3126 = vsel %vm2544, %v3092, 0.0
    %3127 = vadd.xlane.f32.xlu0 %v3126
    %v3128 = vpop.xlane.xlu0 %3127
    %v3129 = vsel %vm2544, %v3094, 0.0
    %3130 = vadd.xlane.f32.xlu0 %v3129
    %v3131 = vpop.xlane.xlu0 %3130
    %v3132 = vsel %vm2544, %v3096, 0.0
    %3133 = vadd.xlane.f32.xlu0 %v3132
    %v3134 = vpop.xlane.xlu0 %3133
    %v3135 = vsel %vm2544, %v3098, 0.0
    %3136 = vadd.xlane.f32.xlu0 %v3135
    %v3137 = vpop.xlane.xlu0 %3136
    %v3138 = vsel %vm2544, %v3100, 0.0
    %3139 = vadd.xlane.f32.xlu0 %v3138
    %v3140 = vpop.xlane.xlu0 %3139
    %v3141 = vsel %vm2544, %v3102, 0.0
    %3142 = vadd.xlane.f32.xlu0 %v3141
    %v3143 = vpop.xlane.xlu0 %3142
    %v3144 = vsel %vm2544, %v3104, 0.0
    %3145 = vadd.xlane.f32.xlu0 %v3144
    %v3146 = vpop.xlane.xlu0 %3145
    %v3147 = vsel %vm2544, %v3106, 0.0
    %3148 = vadd.xlane.f32.xlu0 %v3147
    %v3149 = vpop.xlane.xlu0 %3148
    %v3150 = vsel %vm2544, %v3108, 0.0
    %3151 = vadd.xlane.f32.xlu0 %v3150
    %v3152 = vpop.xlane.xlu0 %3151
    %v3153 = vsel %vm2544, %v3110, 0.0
    %3154 = vadd.xlane.f32.xlu0 %v3153
    %v3155 = vpop.xlane.xlu0 %3154
    %v3156 = vsel %vm2544, %v3112, 0.0
    %3157 = vadd.xlane.f32.xlu0 %v3156
    %v3158 = vpop.xlane.xlu0 %3157
    %v3159 = vsel %vm2544, %v3114, 0.0
    %3160 = vadd.xlane.f32.xlu0 %v3159
    %v3161 = vpop.xlane.xlu0 %3160
    %v3162 = vsel %vm2544, %v3116, 0.0
    %3163 = vadd.xlane.f32.xlu0 %v3162
    %v3164 = vpop.xlane.xlu0 %3163
    %v3165 = vrcp.pop %v3119
    %v3166 = vrcp.pop %v3122
    %v3167 = vrcp.pop %v3125
    %v3168 = vrcp.pop %v3128
    %v3169 = vrcp.pop %v3131
    %v3170 = vrcp.pop %v3134
    %v3171 = vrcp.pop %v3137
    %v3172 = vrcp.pop %v3140
    %v3173 = vrcp.pop %v3143
    %v3174 = vrcp.pop %v3146
    %v3175 = vrcp.pop %v3149
    %v3176 = vrcp.pop %v3152
    %v3177 = vrcp.pop %v3155
    %v3178 = vrcp.pop %v3158
    %v3179 = vrcp.pop %v3161
    %v3180 = vrcp.pop %v3164
    %v3181 = vpack.c.bf16 %v3086, %v3086
    %v3182 = vpack.c.bf16 %v3088, %v3088
    %v3183 = vpack.c.bf16 %v3090, %v3090
    %v3184 = vpack.c.bf16 %v3092, %v3092
    %v3185 = vpack.c.bf16 %v3094, %v3094
    %v3186 = vpack.c.bf16 %v3096, %v3096
    %v3187 = vpack.c.bf16 %v3098, %v3098
    %v3188 = vpack.c.bf16 %v3100, %v3100
    %v3189 = vpack.c.bf16 %v3102, %v3102
    %v3190 = vpack.c.bf16 %v3104, %v3104
    %v3191 = vpack.c.bf16 %v3106, %v3106
    %v3192 = vpack.c.bf16 %v3108, %v3108
    %v3193 = vpack.c.bf16 %v3110, %v3110
    %v3194 = vpack.c.bf16 %v3112, %v3112
    %v3195 = vpack.c.bf16 %v3114, %v3114
    %v3196 = vpack.c.bf16 %v3116, %v3116
    %v3205 = vunpack.c.l.b16 %v3181
    %v3206 = vunpack.c.l.b16 %v3182
    %v3207 = vunpack.c.l.b16 %v3183
    %v3208 = vunpack.c.l.b16 %v3184
    %v3209 = vunpack.c.l.b16 %v3185
    %v3210 = vunpack.c.l.b16 %v3186
    %v3211 = vunpack.c.l.b16 %v3187
    %v3212 = vunpack.c.l.b16 %v3188
    %v3213 = vpack.c.b16 %v3206, %v3205
    %v3214 = vpack.c.b16 %v3208, %v3207
    %v3215 = vpack.c.b16 %v3210, %v3209
    %v3216 = vpack.c.b16 %v3212, %v3211
    %3217 = vrot.lane.b32.xlu0 %v2398, 56
    %v3218 = vpop.permute.xlu0 %3217
    %3219 = vrot.lane.b32.xlu0 %v2399, 56
    %v3220 = vpop.permute.xlu0 %3219
    %3221 = vrot.lane.b32.xlu0 %v2400, 56
    %v3222 = vpop.permute.xlu0 %3221
    %3223 = vrot.lane.b32.xlu0 %v2401, 56
    %v3224 = vpop.permute.xlu0 %3223
    %v3230 = vsel %vm2544, %v3213, 0
    %v3233 = vsel %vm2544, %v3214, 0
    %v3236 = vsel %vm2544, %v3215, 0
    %v3239 = vsel %vm2544, %v3216, 0
    %3241 = vmatpush.bf16.msra.mxu0 0
    %3242 = vmatpush.bf16.msra.mxu0 0
    %3243 = vmatpush.bf16.msra.mxu0 0
    %3244 = vmatpush.bf16.msra.mxu0 0
    %3245 = vmatpush.bf16.msra.mxu0 %v3224
    %3246 = vmatpush.bf16.msra.mxu0 %v3222
    %3247 = vmatpush.bf16.msra.mxu0 %v3220
    %3248 = vmatpush.bf16.msra.mxu0 %v3218
    %3249 = vmatmul.bf16.gmra.mxu0 %v3230
    %v3250 = vpop.f32.mrf.mxu0
    %v3251 = vadd.f32 0.0, %v3250
    %v3252 = vpop.f32.mrf.mxu0
    %v3253 = vadd.f32 0.0, %v3252
    %3254 = vmatmul.bf16.gmra.mxu0 %v3233
    %v3255 = vpop.f32.mrf.mxu0
    %v3256 = vadd.f32 0.0, %v3255
    %v3257 = vpop.f32.mrf.mxu0
    %v3258 = vadd.f32 0.0, %v3257
    %3259 = vmatmul.bf16.gmra.mxu0 %v3236
    %v3260 = vpop.f32.mrf.mxu0
    %v3261 = vadd.f32 0.0, %v3260
    %v3262 = vpop.f32.mrf.mxu0
    %v3263 = vadd.f32 0.0, %v3262
    %3264 = vmatmul.bf16.gmra.mxu0 %v3239
    %v3265 = vpop.f32.mrf.mxu0
    %v3266 = vadd.f32 0.0, %v3265
    %v3267 = vpop.f32.mrf.mxu0
    %v3268 = vadd.f32 0.0, %v3267
    %3269 = vdwg.mxu0
    %v3278 = vunpack.c.l.b16 %v3189
    %v3279 = vunpack.c.l.b16 %v3190
    %v3280 = vunpack.c.l.b16 %v3191
    %v3281 = vunpack.c.l.b16 %v3192
    %v3282 = vunpack.c.l.b16 %v3193
    %v3283 = vunpack.c.l.b16 %v3194
    %v3284 = vunpack.c.l.b16 %v3195
    %v3285 = vunpack.c.l.b16 %v3196
    %v3286 = vpack.c.b16 %v3279, %v3278
    %v3287 = vpack.c.b16 %v3281, %v3280
    %v3288 = vpack.c.b16 %v3283, %v3282
    %v3289 = vpack.c.b16 %v3285, %v3284
    %3290 = vrot.lane.b32.xlu0 %v2479, 56
    %v3291 = vpop.permute.xlu0 %3290
    %3292 = vrot.lane.b32.xlu0 %v2480, 56
    %v3293 = vpop.permute.xlu0 %3292
    %3294 = vrot.lane.b32.xlu0 %v2481, 56
    %v3295 = vpop.permute.xlu0 %3294
    %3296 = vrot.lane.b32.xlu0 %v2482, 56
    %v3297 = vpop.permute.xlu0 %3296
    %v3303 = vsel %vm2544, %v3286, 0
    %v3306 = vsel %vm2544, %v3287, 0
    %v3309 = vsel %vm2544, %v3288, 0
    %v3312 = vsel %vm2544, %v3289, 0
    %3314 = vmatpush.bf16.msra.mxu0 0
    %3315 = vmatpush.bf16.msra.mxu0 0
    %3316 = vmatpush.bf16.msra.mxu0 0
    %3317 = vmatpush.bf16.msra.mxu0 0
    %3318 = vmatpush.bf16.msra.mxu0 %v3297
    %3319 = vmatpush.bf16.msra.mxu0 %v3295
    %3320 = vmatpush.bf16.msra.mxu0 %v3293
    %3321 = vmatpush.bf16.msra.mxu0 %v3291
    %3322 = vmatmul.bf16.gmra.mxu0 %v3303
    %v3323 = vpop.f32.mrf.mxu0
    %v3324 = vadd.f32 0.0, %v3323
    %v3325 = vpop.f32.mrf.mxu0
    %v3326 = vadd.f32 0.0, %v3325
    %3327 = vmatmul.bf16.gmra.mxu0 %v3306
    %v3328 = vpop.f32.mrf.mxu0
    %v3329 = vadd.f32 0.0, %v3328
    %v3330 = vpop.f32.mrf.mxu0
    %v3331 = vadd.f32 0.0, %v3330
    %3332 = vmatmul.bf16.gmra.mxu0 %v3309
    %v3333 = vpop.f32.mrf.mxu0
    %v3334 = vadd.f32 0.0, %v3333
    %v3335 = vpop.f32.mrf.mxu0
    %v3336 = vadd.f32 0.0, %v3335
    %3337 = vmatmul.bf16.gmra.mxu0 %v3312
    %v3338 = vpop.f32.mrf.mxu0
    %v3339 = vadd.f32 0.0, %v3338
    %v3340 = vpop.f32.mrf.mxu0
    %v3341 = vadd.f32 0.0, %v3340
    %3342 = vdwg.mxu0
    %v3343 = vmul.f32 %v3251, %v3165
    %v3344 = vmul.f32 %v3253, %v3166
    %v3345 = vmul.f32 %v3256, %v3167
    %v3346 = vmul.f32 %v3258, %v3168
    %v3347 = vmul.f32 %v3261, %v3169
    %v3348 = vmul.f32 %v3263, %v3170
    %v3349 = vmul.f32 %v3266, %v3171
    %v3350 = vmul.f32 %v3268, %v3172
    %v3351 = vmul.f32 %v3324, %v3173
    %v3352 = vmul.f32 %v3326, %v3174
    %v3353 = vmul.f32 %v3329, %v3175
    %v3354 = vmul.f32 %v3331, %v3176
    %v3355 = vmul.f32 %v3334, %v3177
    %v3356 = vmul.f32 %v3336, %v3178
    %v3357 = vmul.f32 %v3339, %v3179
    %v3358 = vmul.f32 %v3341, %v3180
    %3359 = vrot.lane.b32.xlu0 %v2398, 112
    %v3360 = vpop.permute.xlu0 %3359
    %3361 = vrot.lane.b32.xlu0 %v2399, 112
    %v3362 = vpop.permute.xlu0 %3361
    %3363 = vrot.lane.b32.xlu0 %v2400, 112
    %v3364 = vpop.permute.xlu0 %3363
    %3365 = vrot.lane.b32.xlu0 %v2401, 112
    %v3366 = vpop.permute.xlu0 %3365
    %3367 = vrot.lane.b32.xlu0 %v2398, 80
    %v3368 = vpop.permute.xlu0 %3367
    %3369 = vrot.lane.b32.xlu0 %v2399, 80
    %v3370 = vpop.permute.xlu0 %3369
    %3371 = vrot.lane.b32.xlu0 %v2400, 80
    %v3372 = vpop.permute.xlu0 %3371
    %3373 = vrot.lane.b32.xlu0 %v2401, 80
    %v3374 = vpop.permute.xlu0 %3373
    %v3376 = vsel %vm892, %v3360, 0
    %v3379 = vsel %vm892, %v3362, 0
    %v3382 = vsel %vm892, %v3364, 0
    %v3385 = vsel %vm892, %v3366, 0
    %v3388 = vsel %vm892, %v3368, 0
    %v3391 = vsel %vm892, %v3370, 0
    %v3394 = vsel %vm892, %v3372, 0
    %v3397 = vsel %vm892, %v3374, 0
    %3399 = vmatpush.bf16.xpose.msra.mxu0 0
    %3400 = vmatpush.bf16.xpose.msra.mxu0 0
    %3401 = vmatpush.bf16.xpose.msra.mxu0 0
    %3402 = vmatpush.bf16.xpose.msra.mxu0 0
    %3403 = vmatpush.bf16.xpose.msra.mxu0 %v3397
    %3404 = vmatpush.bf16.xpose.msra.mxu0 %v3394
    %3405 = vmatpush.bf16.xpose.msra.mxu0 %v3391
    %3406 = vmatpush.bf16.xpose.msra.mxu0 %v3388
    %3407 = vmatmul.bf16.gmra.mxu0 %v3376
    %v3408 = vpop.f32.mrf.mxu0
    %v3409 = vadd.f32 %v1864, %v3408
    %v3410 = vpop.f32.mrf.mxu0
    %v3411 = vadd.f32 %v1865, %v3410
    %3412 = vmatmul.bf16.gmra.mxu0 %v3379
    %v3413 = vpop.f32.mrf.mxu0
    %v3414 = vadd.f32 %v1866, %v3413
    %v3415 = vpop.f32.mrf.mxu0
    %v3416 = vadd.f32 %v1867, %v3415
    %3417 = vmatmul.bf16.gmra.mxu0 %v3382
    %v3418 = vpop.f32.mrf.mxu0
    %v3419 = vadd.f32 %v1868, %v3418
    %v3420 = vpop.f32.mrf.mxu0
    %v3421 = vadd.f32 %v1869, %v3420
    %3422 = vmatmul.bf16.gmra.mxu0 %v3385
    %v3423 = vpop.f32.mrf.mxu0
    %v3424 = vadd.f32 %v1870, %v3423
    %v3425 = vpop.f32.mrf.mxu0
    %v3426 = vadd.f32 %v1871, %v3425
    %3427 = vdwg.mxu0
    %3428 = vrot.lane.b32.xlu0 %v2479, 112
    %v3429 = vpop.permute.xlu0 %3428
    %3430 = vrot.lane.b32.xlu0 %v2480, 112
    %v3431 = vpop.permute.xlu0 %3430
    %3432 = vrot.lane.b32.xlu0 %v2481, 112
    %v3433 = vpop.permute.xlu0 %3432
    %3434 = vrot.lane.b32.xlu0 %v2482, 112
    %v3435 = vpop.permute.xlu0 %3434
    %3436 = vrot.lane.b32.xlu0 %v2479, 80
    %v3437 = vpop.permute.xlu0 %3436
    %3438 = vrot.lane.b32.xlu0 %v2480, 80
    %v3439 = vpop.permute.xlu0 %3438
    %3440 = vrot.lane.b32.xlu0 %v2481, 80
    %v3441 = vpop.permute.xlu0 %3440
    %3442 = vrot.lane.b32.xlu0 %v2482, 80
    %v3443 = vpop.permute.xlu0 %3442
    %v3445 = vsel %vm892, %v3429, 0
    %v3448 = vsel %vm892, %v3431, 0
    %v3451 = vsel %vm892, %v3433, 0
    %v3454 = vsel %vm892, %v3435, 0
    %v3457 = vsel %vm892, %v3437, 0
    %v3460 = vsel %vm892, %v3439, 0
    %v3463 = vsel %vm892, %v3441, 0
    %v3466 = vsel %vm892, %v3443, 0
    %3468 = vmatpush.bf16.xpose.msra.mxu0 0
    %3469 = vmatpush.bf16.xpose.msra.mxu0 0
    %3470 = vmatpush.bf16.xpose.msra.mxu0 0
    %3471 = vmatpush.bf16.xpose.msra.mxu0 0
    %3472 = vmatpush.bf16.xpose.msra.mxu0 %v3466
    %3473 = vmatpush.bf16.xpose.msra.mxu0 %v3463
    %3474 = vmatpush.bf16.xpose.msra.mxu0 %v3460
    %3475 = vmatpush.bf16.xpose.msra.mxu0 %v3457
    %3476 = vmatmul.bf16.gmra.mxu0 %v3445
    %v3477 = vpop.f32.mrf.mxu0
    %v3478 = vadd.f32 %v1864, %v3477
    %v3479 = vpop.f32.mrf.mxu0
    %v3480 = vadd.f32 %v1865, %v3479
    %3481 = vmatmul.bf16.gmra.mxu0 %v3448
    %v3482 = vpop.f32.mrf.mxu0
    %v3483 = vadd.f32 %v1866, %v3482
    %v3484 = vpop.f32.mrf.mxu0
    %v3485 = vadd.f32 %v1867, %v3484
    %3486 = vmatmul.bf16.gmra.mxu0 %v3451
    %v3487 = vpop.f32.mrf.mxu0
    %v3488 = vadd.f32 %v1868, %v3487
    %v3489 = vpop.f32.mrf.mxu0
    %v3490 = vadd.f32 %v1869, %v3489
    %3491 = vmatmul.bf16.gmra.mxu0 %v3454
    %v3492 = vpop.f32.mrf.mxu0
    %v3493 = vadd.f32 %v1870, %v3492
    %v3494 = vpop.f32.mrf.mxu0
    %v3495 = vadd.f32 %v1871, %v3494
    %3496 = vdwg.mxu0
    %v3497 = vsel %vm2544, %v3409, -inf
    %3498 = vmax.xlane.f32.xlu0 %v3497
    %v3499 = vpop.xlane.xlu0 %3498
    %v3500 = vsel %vm2544, %v3411, -inf
    %3501 = vmax.xlane.f32.xlu0 %v3500
    %v3502 = vpop.xlane.xlu0 %3501
    %v3503 = vsel %vm2544, %v3414, -inf
    %3504 = vmax.xlane.f32.xlu0 %v3503
    %v3505 = vpop.xlane.xlu0 %3504
    %v3506 = vsel %vm2544, %v3416, -inf
    %3507 = vmax.xlane.f32.xlu0 %v3506
    %v3508 = vpop.xlane.xlu0 %3507
    %v3509 = vsel %vm2544, %v3419, -inf
    %3510 = vmax.xlane.f32.xlu0 %v3509
    %v3511 = vpop.xlane.xlu0 %3510
    %v3512 = vsel %vm2544, %v3421, -inf
    %3513 = vmax.xlane.f32.xlu0 %v3512
    %v3514 = vpop.xlane.xlu0 %3513
    %v3515 = vsel %vm2544, %v3424, -inf
    %3516 = vmax.xlane.f32.xlu0 %v3515
    %v3517 = vpop.xlane.xlu0 %3516
    %v3518 = vsel %vm2544, %v3426, -inf
    %3519 = vmax.xlane.f32.xlu0 %v3518
    %v3520 = vpop.xlane.xlu0 %3519
    %v3521 = vsel %vm2544, %v3478, -inf
    %3522 = vmax.xlane.f32.xlu0 %v3521
    %v3523 = vpop.xlane.xlu0 %3522
    %v3524 = vsel %vm2544, %v3480, -inf
    %3525 = vmax.xlane.f32.xlu0 %v3524
    %v3526 = vpop.xlane.xlu0 %3525
    %v3527 = vsel %vm2544, %v3483, -inf
    %3528 = vmax.xlane.f32.xlu0 %v3527
    %v3529 = vpop.xlane.xlu0 %3528
    %v3530 = vsel %vm2544, %v3485, -inf
    %3531 = vmax.xlane.f32.xlu0 %v3530
    %v3532 = vpop.xlane.xlu0 %3531
    %v3533 = vsel %vm2544, %v3488, -inf
    %3534 = vmax.xlane.f32.xlu0 %v3533
    %v3535 = vpop.xlane.xlu0 %3534
    %v3536 = vsel %vm2544, %v3490, -inf
    %3537 = vmax.xlane.f32.xlu0 %v3536
    %v3538 = vpop.xlane.xlu0 %3537
    %v3539 = vsel %vm2544, %v3493, -inf
    %3540 = vmax.xlane.f32.xlu0 %v3539
    %v3541 = vpop.xlane.xlu0 %3540
    %v3542 = vsel %vm2544, %v3495, -inf
    %3543 = vmax.xlane.f32.xlu0 %v3542
    %v3544 = vpop.xlane.xlu0 %3543
    %v3545 = vsub.f32 %v3409, %v3499
    %v3546 = vsub.f32 %v3411, %v3502
    %v3547 = vsub.f32 %v3414, %v3505
    %v3548 = vsub.f32 %v3416, %v3508
    %v3549 = vsub.f32 %v3419, %v3511
    %v3550 = vsub.f32 %v3421, %v3514
    %v3551 = vsub.f32 %v3424, %v3517
    %v3552 = vsub.f32 %v3426, %v3520
    %v3553 = vsub.f32 %v3478, %v3523
    %v3554 = vsub.f32 %v3480, %v3526
    %v3555 = vsub.f32 %v3483, %v3529
    %v3556 = vsub.f32 %v3485, %v3532
    %v3557 = vsub.f32 %v3488, %v3535
    %v3558 = vsub.f32 %v3490, %v3538
    %v3559 = vsub.f32 %v3493, %v3541
    %v3560 = vsub.f32 %v3495, %v3544
    %v3561 = vmul.f32 %v3545, 1.442695
    %v3562 = vpow.pop %v3561
    %v3563 = vmul.f32 %v3546, 1.442695
    %v3564 = vpow.pop %v3563
    %v3565 = vmul.f32 %v3547, 1.442695
    %v3566 = vpow.pop %v3565
    %v3567 = vmul.f32 %v3548, 1.442695
    %v3568 = vpow.pop %v3567
    %v3569 = vmul.f32 %v3549, 1.442695
    %v3570 = vpow.pop %v3569
    %v3571 = vmul.f32 %v3550, 1.442695
    %v3572 = vpow.pop %v3571
    %v3573 = vmul.f32 %v3551, 1.442695
    %v3574 = vpow.pop %v3573
    %v3575 = vmul.f32 %v3552, 1.442695
    %v3576 = vpow.pop %v3575
    %v3577 = vmul.f32 %v3553, 1.442695
    %v3578 = vpow.pop %v3577
    %v3579 = vmul.f32 %v3554, 1.442695
    %v3580 = vpow.pop %v3579
    %v3581 = vmul.f32 %v3555, 1.442695
    %v3582 = vpow.pop %v3581
    %v3583 = vmul.f32 %v3556, 1.442695
    %v3584 = vpow.pop %v3583
    %v3585 = vmul.f32 %v3557, 1.442695
    %v3586 = vpow.pop %v3585
    %v3587 = vmul.f32 %v3558, 1.442695
    %v3588 = vpow.pop %v3587
    %v3589 = vmul.f32 %v3559, 1.442695
    %v3590 = vpow.pop %v3589
    %v3591 = vmul.f32 %v3560, 1.442695
    %v3592 = vpow.pop %v3591
    %v3593 = vsel %vm2544, %v3562, 0.0
    %3594 = vadd.xlane.f32.xlu0 %v3593
    %v3595 = vpop.xlane.xlu0 %3594
    %v3596 = vsel %vm2544, %v3564, 0.0
    %3597 = vadd.xlane.f32.xlu0 %v3596
    %v3598 = vpop.xlane.xlu0 %3597
    %v3599 = vsel %vm2544, %v3566, 0.0
    %3600 = vadd.xlane.f32.xlu0 %v3599
    %v3601 = vpop.xlane.xlu0 %3600
    %v3602 = vsel %vm2544, %v3568, 0.0
    %3603 = vadd.xlane.f32.xlu0 %v3602
    %v3604 = vpop.xlane.xlu0 %3603
    %v3605 = vsel %vm2544, %v3570, 0.0
    %3606 = vadd.xlane.f32.xlu0 %v3605
    %v3607 = vpop.xlane.xlu0 %3606
    %v3608 = vsel %vm2544, %v3572, 0.0
    %3609 = vadd.xlane.f32.xlu0 %v3608
    %v3610 = vpop.xlane.xlu0 %3609
    %v3611 = vsel %vm2544, %v3574, 0.0
    %3612 = vadd.xlane.f32.xlu0 %v3611
    %v3613 = vpop.xlane.xlu0 %3612
    %v3614 = vsel %vm2544, %v3576, 0.0
    %3615 = vadd.xlane.f32.xlu0 %v3614
    %v3616 = vpop.xlane.xlu0 %3615
    %v3617 = vsel %vm2544, %v3578, 0.0
    %3618 = vadd.xlane.f32.xlu0 %v3617
    %v3619 = vpop.xlane.xlu0 %3618
    %v3620 = vsel %vm2544, %v3580, 0.0
    %3621 = vadd.xlane.f32.xlu0 %v3620
    %v3622 = vpop.xlane.xlu0 %3621
    %v3623 = vsel %vm2544, %v3582, 0.0
    %3624 = vadd.xlane.f32.xlu0 %v3623
    %v3625 = vpop.xlane.xlu0 %3624
    %v3626 = vsel %vm2544, %v3584, 0.0
    %3627 = vadd.xlane.f32.xlu0 %v3626
    %v3628 = vpop.xlane.xlu0 %3627
    %v3629 = vsel %vm2544, %v3586, 0.0
    %3630 = vadd.xlane.f32.xlu0 %v3629
    %v3631 = vpop.xlane.xlu0 %3630
    %v3632 = vsel %vm2544, %v3588, 0.0
    %3633 = vadd.xlane.f32.xlu0 %v3632
    %v3634 = vpop.xlane.xlu0 %3633
    %v3635 = vsel %vm2544, %v3590, 0.0
    %3636 = vadd.xlane.f32.xlu0 %v3635
    %v3637 = vpop.xlane.xlu0 %3636
    %v3638 = vsel %vm2544, %v3592, 0.0
    %3639 = vadd.xlane.f32.xlu0 %v3638
    %v3640 = vpop.xlane.xlu0 %3639
    %v3641 = vrcp.pop %v3595
    %v3642 = vrcp.pop %v3598
    %v3643 = vrcp.pop %v3601
    %v3644 = vrcp.pop %v3604
    %v3645 = vrcp.pop %v3607
    %v3646 = vrcp.pop %v3610
    %v3647 = vrcp.pop %v3613
    %v3648 = vrcp.pop %v3616
    %v3649 = vrcp.pop %v3619
    %v3650 = vrcp.pop %v3622
    %v3651 = vrcp.pop %v3625
    %v3652 = vrcp.pop %v3628
    %v3653 = vrcp.pop %v3631
    %v3654 = vrcp.pop %v3634
    %v3655 = vrcp.pop %v3637
    %v3656 = vrcp.pop %v3640
    %v3657 = vpack.c.bf16 %v3562, %v3562
    %v3658 = vpack.c.bf16 %v3564, %v3564
    %v3659 = vpack.c.bf16 %v3566, %v3566
    %v3660 = vpack.c.bf16 %v3568, %v3568
    %v3661 = vpack.c.bf16 %v3570, %v3570
    %v3662 = vpack.c.bf16 %v3572, %v3572
    %v3663 = vpack.c.bf16 %v3574, %v3574
    %v3664 = vpack.c.bf16 %v3576, %v3576
    %v3665 = vpack.c.bf16 %v3578, %v3578
    %v3666 = vpack.c.bf16 %v3580, %v3580
    %v3667 = vpack.c.bf16 %v3582, %v3582
    %v3668 = vpack.c.bf16 %v3584, %v3584
    %v3669 = vpack.c.bf16 %v3586, %v3586
    %v3670 = vpack.c.bf16 %v3588, %v3588
    %v3671 = vpack.c.bf16 %v3590, %v3590
    %v3672 = vpack.c.bf16 %v3592, %v3592
    %v3681 = vunpack.c.l.b16 %v3657
    %v3682 = vunpack.c.l.b16 %v3658
    %v3683 = vunpack.c.l.b16 %v3659
    %v3684 = vunpack.c.l.b16 %v3660
    %v3685 = vunpack.c.l.b16 %v3661
    %v3686 = vunpack.c.l.b16 %v3662
    %v3687 = vunpack.c.l.b16 %v3663
    %v3688 = vunpack.c.l.b16 %v3664
    %v3689 = vpack.c.b16 %v3682, %v3681
    %v3690 = vpack.c.b16 %v3684, %v3683
    %v3691 = vpack.c.b16 %v3686, %v3685
    %v3692 = vpack.c.b16 %v3688, %v3687
    %3693 = vrot.lane.b32.xlu0 %v2398, 48
    %v3694 = vpop.permute.xlu0 %3693
    %3695 = vrot.lane.b32.xlu0 %v2399, 48
    %v3696 = vpop.permute.xlu0 %3695
    %3697 = vrot.lane.b32.xlu0 %v2400, 48
    %v3698 = vpop.permute.xlu0 %3697
    %3699 = vrot.lane.b32.xlu0 %v2401, 48
    %v3700 = vpop.permute.xlu0 %3699
    %v3706 = vsel %vm2544, %v3689, 0
    %v3709 = vsel %vm2544, %v3690, 0
    %v3712 = vsel %vm2544, %v3691, 0
    %v3715 = vsel %vm2544, %v3692, 0
    %3717 = vmatpush.bf16.msra.mxu0 0
    %3718 = vmatpush.bf16.msra.mxu0 0
    %3719 = vmatpush.bf16.msra.mxu0 0
    %3720 = vmatpush.bf16.msra.mxu0 0
    %3721 = vmatpush.bf16.msra.mxu0 %v3700
    %3722 = vmatpush.bf16.msra.mxu0 %v3698
    %3723 = vmatpush.bf16.msra.mxu0 %v3696
    %3724 = vmatpush.bf16.msra.mxu0 %v3694
    %3725 = vmatmul.bf16.gmra.mxu0 %v3706
    %v3726 = vpop.f32.mrf.mxu0
    %v3727 = vadd.f32 0.0, %v3726
    %v3728 = vpop.f32.mrf.mxu0
    %v3729 = vadd.f32 0.0, %v3728
    %3730 = vmatmul.bf16.gmra.mxu0 %v3709
    %v3731 = vpop.f32.mrf.mxu0
    %v3732 = vadd.f32 0.0, %v3731
    %v3733 = vpop.f32.mrf.mxu0
    %v3734 = vadd.f32 0.0, %v3733
    %3735 = vmatmul.bf16.gmra.mxu0 %v3712
    %v3736 = vpop.f32.mrf.mxu0
    %v3737 = vadd.f32 0.0, %v3736
    %v3738 = vpop.f32.mrf.mxu0
    %v3739 = vadd.f32 0.0, %v3738
    %3740 = vmatmul.bf16.gmra.mxu0 %v3715
    %v3741 = vpop.f32.mrf.mxu0
    %v3742 = vadd.f32 0.0, %v3741
    %v3743 = vpop.f32.mrf.mxu0
    %v3744 = vadd.f32 0.0, %v3743
    %3745 = vdwg.mxu0
    %v3754 = vunpack.c.l.b16 %v3665
    %v3755 = vunpack.c.l.b16 %v3666
    %v3756 = vunpack.c.l.b16 %v3667
    %v3757 = vunpack.c.l.b16 %v3668
    %v3758 = vunpack.c.l.b16 %v3669
    %v3759 = vunpack.c.l.b16 %v3670
    %v3760 = vunpack.c.l.b16 %v3671
    %v3761 = vunpack.c.l.b16 %v3672
    %v3762 = vpack.c.b16 %v3755, %v3754
    %v3763 = vpack.c.b16 %v3757, %v3756
    %v3764 = vpack.c.b16 %v3759, %v3758
    %v3765 = vpack.c.b16 %v3761, %v3760
    %3766 = vrot.lane.b32.xlu0 %v2479, 48
    %v3767 = vpop.permute.xlu0 %3766
    %3768 = vrot.lane.b32.xlu0 %v2480, 48
    %v3769 = vpop.permute.xlu0 %3768
    %3770 = vrot.lane.b32.xlu0 %v2481, 48
    %v3771 = vpop.permute.xlu0 %3770
    %3772 = vrot.lane.b32.xlu0 %v2482, 48
    %v3773 = vpop.permute.xlu0 %3772
    %v3779 = vsel %vm2544, %v3762, 0
    %v3782 = vsel %vm2544, %v3763, 0
    %v3785 = vsel %vm2544, %v3764, 0
    %v3788 = vsel %vm2544, %v3765, 0
    %3790 = vmatpush.bf16.msra.mxu0 0
    %3791 = vmatpush.bf16.msra.mxu0 0
    %3792 = vmatpush.bf16.msra.mxu0 0
    %3793 = vmatpush.bf16.msra.mxu0 0
    %3794 = vmatpush.bf16.msra.mxu0 %v3773
    %3795 = vmatpush.bf16.msra.mxu0 %v3771
    %3796 = vmatpush.bf16.msra.mxu0 %v3769
    %3797 = vmatpush.bf16.msra.mxu0 %v3767
    %3798 = vmatmul.bf16.gmra.mxu0 %v3779
    %v3799 = vpop.f32.mrf.mxu0
    %v3800 = vadd.f32 0.0, %v3799
    %v3801 = vpop.f32.mrf.mxu0
    %v3802 = vadd.f32 0.0, %v3801
    %3803 = vmatmul.bf16.gmra.mxu0 %v3782
    %v3804 = vpop.f32.mrf.mxu0
    %v3805 = vadd.f32 0.0, %v3804
    %v3806 = vpop.f32.mrf.mxu0
    %v3807 = vadd.f32 0.0, %v3806
    %3808 = vmatmul.bf16.gmra.mxu0 %v3785
    %v3809 = vpop.f32.mrf.mxu0
    %v3810 = vadd.f32 0.0, %v3809
    %v3811 = vpop.f32.mrf.mxu0
    %v3812 = vadd.f32 0.0, %v3811
    %3813 = vmatmul.bf16.gmra.mxu0 %v3788
    %v3814 = vpop.f32.mrf.mxu0
    %v3815 = vadd.f32 0.0, %v3814
    %v3816 = vpop.f32.mrf.mxu0
    %v3817 = vadd.f32 0.0, %v3816
    %3818 = vdwg.mxu0
    %v3819 = vmul.f32 %v3727, %v3641
    %v3820 = vmul.f32 %v3729, %v3642
    %v3821 = vmul.f32 %v3732, %v3643
    %v3822 = vmul.f32 %v3734, %v3644
    %v3823 = vmul.f32 %v3737, %v3645
    %v3824 = vmul.f32 %v3739, %v3646
    %v3825 = vmul.f32 %v3742, %v3647
    %v3826 = vmul.f32 %v3744, %v3648
    %v3827 = vmul.f32 %v3800, %v3649
    %v3828 = vmul.f32 %v3802, %v3650
    %v3829 = vmul.f32 %v3805, %v3651
    %v3830 = vmul.f32 %v3807, %v3652
    %v3831 = vmul.f32 %v3810, %v3653
    %v3832 = vmul.f32 %v3812, %v3654
    %v3833 = vmul.f32 %v3815, %v3655
    %v3834 = vmul.f32 %v3817, %v3656
    %3835 = vrot.lane.b32.xlu0 %v2398, 104
    %v3836 = vpop.permute.xlu0 %3835
    %3837 = vrot.lane.b32.xlu0 %v2399, 104
    %v3838 = vpop.permute.xlu0 %3837
    %3839 = vrot.lane.b32.xlu0 %v2400, 104
    %v3840 = vpop.permute.xlu0 %3839
    %3841 = vrot.lane.b32.xlu0 %v2401, 104
    %v3842 = vpop.permute.xlu0 %3841
    %3843 = vrot.lane.b32.xlu0 %v2398, 72
    %v3844 = vpop.permute.xlu0 %3843
    %3845 = vrot.lane.b32.xlu0 %v2399, 72
    %v3846 = vpop.permute.xlu0 %3845
    %3847 = vrot.lane.b32.xlu0 %v2400, 72
    %v3848 = vpop.permute.xlu0 %3847
    %3849 = vrot.lane.b32.xlu0 %v2401, 72
    %v3850 = vpop.permute.xlu0 %3849
    %v3852 = vsel %vm892, %v3836, 0
    %v3855 = vsel %vm892, %v3838, 0
    %v3858 = vsel %vm892, %v3840, 0
    %v3861 = vsel %vm892, %v3842, 0
    %v3864 = vsel %vm892, %v3844, 0
    %v3867 = vsel %vm892, %v3846, 0
    %v3870 = vsel %vm892, %v3848, 0
    %v3873 = vsel %vm892, %v3850, 0
    %3875 = vmatpush.bf16.xpose.msra.mxu0 0
    %3876 = vmatpush.bf16.xpose.msra.mxu0 0
    %3877 = vmatpush.bf16.xpose.msra.mxu0 0
    %3878 = vmatpush.bf16.xpose.msra.mxu0 0
    %3879 = vmatpush.bf16.xpose.msra.mxu0 %v3873
    %3880 = vmatpush.bf16.xpose.msra.mxu0 %v3870
    %3881 = vmatpush.bf16.xpose.msra.mxu0 %v3867
    %3882 = vmatpush.bf16.xpose.msra.mxu0 %v3864
    %3883 = vmatmul.bf16.gmra.mxu0 %v3852
    %v3884 = vpop.f32.mrf.mxu0
    %v3885 = vadd.f32 %v1872, %v3884
    %v3886 = vpop.f32.mrf.mxu0
    %v3887 = vadd.f32 %v1873, %v3886
    %3888 = vmatmul.bf16.gmra.mxu0 %v3855
    %v3889 = vpop.f32.mrf.mxu0
    %v3890 = vadd.f32 %v1874, %v3889
    %v3891 = vpop.f32.mrf.mxu0
    %v3892 = vadd.f32 %v1875, %v3891
    %3893 = vmatmul.bf16.gmra.mxu0 %v3858
    %v3894 = vpop.f32.mrf.mxu0
    %v3895 = vadd.f32 %v1876, %v3894
    %v3896 = vpop.f32.mrf.mxu0
    %v3897 = vadd.f32 %v1877, %v3896
    %3898 = vmatmul.bf16.gmra.mxu0 %v3861
    %v3899 = vpop.f32.mrf.mxu0
    %v3900 = vadd.f32 %v1878, %v3899
    %v3901 = vpop.f32.mrf.mxu0
    %v3902 = vadd.f32 %v1879, %v3901
    %3903 = vdwg.mxu0
    %3904 = vrot.lane.b32.xlu0 %v2479, 104
    %v3905 = vpop.permute.xlu0 %3904
    %3906 = vrot.lane.b32.xlu0 %v2480, 104
    %v3907 = vpop.permute.xlu0 %3906
    %3908 = vrot.lane.b32.xlu0 %v2481, 104
    %v3909 = vpop.permute.xlu0 %3908
    %3910 = vrot.lane.b32.xlu0 %v2482, 104
    %v3911 = vpop.permute.xlu0 %3910
    %3912 = vrot.lane.b32.xlu0 %v2479, 72
    %v3913 = vpop.permute.xlu0 %3912
    %3914 = vrot.lane.b32.xlu0 %v2480, 72
    %v3915 = vpop.permute.xlu0 %3914
    %3916 = vrot.lane.b32.xlu0 %v2481, 72
    %v3917 = vpop.permute.xlu0 %3916
    %3918 = vrot.lane.b32.xlu0 %v2482, 72
    %v3919 = vpop.permute.xlu0 %3918
    %v3921 = vsel %vm892, %v3905, 0
    %v3924 = vsel %vm892, %v3907, 0
    %v3927 = vsel %vm892, %v3909, 0
    %v3930 = vsel %vm892, %v3911, 0
    %v3933 = vsel %vm892, %v3913, 0
    %v3936 = vsel %vm892, %v3915, 0
    %v3939 = vsel %vm892, %v3917, 0
    %v3942 = vsel %vm892, %v3919, 0
    %3944 = vmatpush.bf16.xpose.msra.mxu0 0
    %3945 = vmatpush.bf16.xpose.msra.mxu0 0
    %3946 = vmatpush.bf16.xpose.msra.mxu0 0
    %3947 = vmatpush.bf16.xpose.msra.mxu0 0
    %3948 = vmatpush.bf16.xpose.msra.mxu0 %v3942
    %3949 = vmatpush.bf16.xpose.msra.mxu0 %v3939
    %3950 = vmatpush.bf16.xpose.msra.mxu0 %v3936
    %3951 = vmatpush.bf16.xpose.msra.mxu0 %v3933
    %3952 = vmatmul.bf16.gmra.mxu0 %v3921
    %v3953 = vpop.f32.mrf.mxu0
    %v3954 = vadd.f32 %v1872, %v3953
    %v3955 = vpop.f32.mrf.mxu0
    %v3956 = vadd.f32 %v1873, %v3955
    %3957 = vmatmul.bf16.gmra.mxu0 %v3924
    %v3958 = vpop.f32.mrf.mxu0
    %v3959 = vadd.f32 %v1874, %v3958
    %v3960 = vpop.f32.mrf.mxu0
    %v3961 = vadd.f32 %v1875, %v3960
    %3962 = vmatmul.bf16.gmra.mxu0 %v3927
    %v3963 = vpop.f32.mrf.mxu0
    %v3964 = vadd.f32 %v1876, %v3963
    %v3965 = vpop.f32.mrf.mxu0
    %v3966 = vadd.f32 %v1877, %v3965
    %3967 = vmatmul.bf16.gmra.mxu0 %v3930
    %v3968 = vpop.f32.mrf.mxu0
    %v3969 = vadd.f32 %v1878, %v3968
    %v3970 = vpop.f32.mrf.mxu0
    %v3971 = vadd.f32 %v1879, %v3970
    %3972 = vdwg.mxu0
    %v3973 = vsel %vm2544, %v3885, -inf
    %3974 = vmax.xlane.f32.xlu0 %v3973
    %v3975 = vpop.xlane.xlu0 %3974
    %v3976 = vsel %vm2544, %v3887, -inf
    %3977 = vmax.xlane.f32.xlu0 %v3976
    %v3978 = vpop.xlane.xlu0 %3977
    %v3979 = vsel %vm2544, %v3890, -inf
    %3980 = vmax.xlane.f32.xlu0 %v3979
    %v3981 = vpop.xlane.xlu0 %3980
    %v3982 = vsel %vm2544, %v3892, -inf
    %3983 = vmax.xlane.f32.xlu0 %v3982
    %v3984 = vpop.xlane.xlu0 %3983
    %v3985 = vsel %vm2544, %v3895, -inf
    %3986 = vmax.xlane.f32.xlu0 %v3985
    %v3987 = vpop.xlane.xlu0 %3986
    %v3988 = vsel %vm2544, %v3897, -inf
    %3989 = vmax.xlane.f32.xlu0 %v3988
    %v3990 = vpop.xlane.xlu0 %3989
    %v3991 = vsel %vm2544, %v3900, -inf
    %3992 = vmax.xlane.f32.xlu0 %v3991
    %v3993 = vpop.xlane.xlu0 %3992
    %v3994 = vsel %vm2544, %v3902, -inf
    %3995 = vmax.xlane.f32.xlu0 %v3994
    %v3996 = vpop.xlane.xlu0 %3995
    %v3997 = vsel %vm2544, %v3954, -inf
    %3998 = vmax.xlane.f32.xlu0 %v3997
    %v3999 = vpop.xlane.xlu0 %3998
    %v4000 = vsel %vm2544, %v3956, -inf
    %4001 = vmax.xlane.f32.xlu0 %v4000
    %v4002 = vpop.xlane.xlu0 %4001
    %v4003 = vsel %vm2544, %v3959, -inf
    %4004 = vmax.xlane.f32.xlu0 %v4003
    %v4005 = vpop.xlane.xlu0 %4004
    %v4006 = vsel %vm2544, %v3961, -inf
    %4007 = vmax.xlane.f32.xlu0 %v4006
    %v4008 = vpop.xlane.xlu0 %4007
    %v4009 = vsel %vm2544, %v3964, -inf
    %4010 = vmax.xlane.f32.xlu0 %v4009
    %v4011 = vpop.xlane.xlu0 %4010
    %v4012 = vsel %vm2544, %v3966, -inf
    %4013 = vmax.xlane.f32.xlu0 %v4012
    %v4014 = vpop.xlane.xlu0 %4013
    %v4015 = vsel %vm2544, %v3969, -inf
    %4016 = vmax.xlane.f32.xlu0 %v4015
    %v4017 = vpop.xlane.xlu0 %4016
    %v4018 = vsel %vm2544, %v3971, -inf
    %4019 = vmax.xlane.f32.xlu0 %v4018
    %v4020 = vpop.xlane.xlu0 %4019
    %v4021 = vsub.f32 %v3885, %v3975
    %v4022 = vsub.f32 %v3887, %v3978
    %v4023 = vsub.f32 %v3890, %v3981
    %v4024 = vsub.f32 %v3892, %v3984
    %v4025 = vsub.f32 %v3895, %v3987
    %v4026 = vsub.f32 %v3897, %v3990
    %v4027 = vsub.f32 %v3900, %v3993
    %v4028 = vsub.f32 %v3902, %v3996
    %v4029 = vsub.f32 %v3954, %v3999
    %v4030 = vsub.f32 %v3956, %v4002
    %v4031 = vsub.f32 %v3959, %v4005
    %v4032 = vsub.f32 %v3961, %v4008
    %v4033 = vsub.f32 %v3964, %v4011
    %v4034 = vsub.f32 %v3966, %v4014
    %v4035 = vsub.f32 %v3969, %v4017
    %v4036 = vsub.f32 %v3971, %v4020
    %v4037 = vmul.f32 %v4021, 1.442695
    %v4038 = vpow.pop %v4037
    %v4039 = vmul.f32 %v4022, 1.442695
    %v4040 = vpow.pop %v4039
    %v4041 = vmul.f32 %v4023, 1.442695
    %v4042 = vpow.pop %v4041
    %v4043 = vmul.f32 %v4024, 1.442695
    %v4044 = vpow.pop %v4043
    %v4045 = vmul.f32 %v4025, 1.442695
    %v4046 = vpow.pop %v4045
    %v4047 = vmul.f32 %v4026, 1.442695
    %v4048 = vpow.pop %v4047
    %v4049 = vmul.f32 %v4027, 1.442695
    %v4050 = vpow.pop %v4049
    %v4051 = vmul.f32 %v4028, 1.442695
    %v4052 = vpow.pop %v4051
    %v4053 = vmul.f32 %v4029, 1.442695
    %v4054 = vpow.pop %v4053
    %v4055 = vmul.f32 %v4030, 1.442695
    %v4056 = vpow.pop %v4055
    %v4057 = vmul.f32 %v4031, 1.442695
    %v4058 = vpow.pop %v4057
    %v4059 = vmul.f32 %v4032, 1.442695
    %v4060 = vpow.pop %v4059
    %v4061 = vmul.f32 %v4033, 1.442695
    %v4062 = vpow.pop %v4061
    %v4063 = vmul.f32 %v4034, 1.442695
    %v4064 = vpow.pop %v4063
    %v4065 = vmul.f32 %v4035, 1.442695
    %v4066 = vpow.pop %v4065
    %v4067 = vmul.f32 %v4036, 1.442695
    %v4068 = vpow.pop %v4067
    %v4069 = vsel %vm2544, %v4038, 0.0
    %4070 = vadd.xlane.f32.xlu0 %v4069
    %v4071 = vpop.xlane.xlu0 %4070
    %v4072 = vsel %vm2544, %v4040, 0.0
    %4073 = vadd.xlane.f32.xlu0 %v4072
    %v4074 = vpop.xlane.xlu0 %4073
    %v4075 = vsel %vm2544, %v4042, 0.0
    %4076 = vadd.xlane.f32.xlu0 %v4075
    %v4077 = vpop.xlane.xlu0 %4076
    %v4078 = vsel %vm2544, %v4044, 0.0
    %4079 = vadd.xlane.f32.xlu0 %v4078
    %v4080 = vpop.xlane.xlu0 %4079
    %v4081 = vsel %vm2544, %v4046, 0.0
    %4082 = vadd.xlane.f32.xlu0 %v4081
    %v4083 = vpop.xlane.xlu0 %4082
    %v4084 = vsel %vm2544, %v4048, 0.0
    %4085 = vadd.xlane.f32.xlu0 %v4084
    %v4086 = vpop.xlane.xlu0 %4085
    %v4087 = vsel %vm2544, %v4050, 0.0
    %4088 = vadd.xlane.f32.xlu0 %v4087
    %v4089 = vpop.xlane.xlu0 %4088
    %v4090 = vsel %vm2544, %v4052, 0.0
    %4091 = vadd.xlane.f32.xlu0 %v4090
    %v4092 = vpop.xlane.xlu0 %4091
    %v4093 = vsel %vm2544, %v4054, 0.0
    %4094 = vadd.xlane.f32.xlu0 %v4093
    %v4095 = vpop.xlane.xlu0 %4094
    %v4096 = vsel %vm2544, %v4056, 0.0
    %4097 = vadd.xlane.f32.xlu0 %v4096
    %v4098 = vpop.xlane.xlu0 %4097
    %v4099 = vsel %vm2544, %v4058, 0.0
    %4100 = vadd.xlane.f32.xlu0 %v4099
    %v4101 = vpop.xlane.xlu0 %4100
    %v4102 = vsel %vm2544, %v4060, 0.0
    %4103 = vadd.xlane.f32.xlu0 %v4102
    %v4104 = vpop.xlane.xlu0 %4103
    %v4105 = vsel %vm2544, %v4062, 0.0
    %4106 = vadd.xlane.f32.xlu0 %v4105
    %v4107 = vpop.xlane.xlu0 %4106
    %v4108 = vsel %vm2544, %v4064, 0.0
    %4109 = vadd.xlane.f32.xlu0 %v4108
    %v4110 = vpop.xlane.xlu0 %4109
    %v4111 = vsel %vm2544, %v4066, 0.0
    %4112 = vadd.xlane.f32.xlu0 %v4111
    %v4113 = vpop.xlane.xlu0 %4112
    %v4114 = vsel %vm2544, %v4068, 0.0
    %4115 = vadd.xlane.f32.xlu0 %v4114
    %v4116 = vpop.xlane.xlu0 %4115
    %v4117 = vrcp.pop %v4071
    %v4118 = vrcp.pop %v4074
    %v4119 = vrcp.pop %v4077
    %v4120 = vrcp.pop %v4080
    %v4121 = vrcp.pop %v4083
    %v4122 = vrcp.pop %v4086
    %v4123 = vrcp.pop %v4089
    %v4124 = vrcp.pop %v4092
    %v4125 = vrcp.pop %v4095
    %v4126 = vrcp.pop %v4098
    %v4127 = vrcp.pop %v4101
    %v4128 = vrcp.pop %v4104
    %v4129 = vrcp.pop %v4107
    %v4130 = vrcp.pop %v4110
    %v4131 = vrcp.pop %v4113
    %v4132 = vrcp.pop %v4116
    %v4133 = vpack.c.bf16 %v4038, %v4038
    %v4134 = vpack.c.bf16 %v4040, %v4040
    %v4135 = vpack.c.bf16 %v4042, %v4042
    %v4136 = vpack.c.bf16 %v4044, %v4044
    %v4137 = vpack.c.bf16 %v4046, %v4046
    %v4138 = vpack.c.bf16 %v4048, %v4048
    %v4139 = vpack.c.bf16 %v4050, %v4050
    %v4140 = vpack.c.bf16 %v4052, %v4052
    %v4141 = vpack.c.bf16 %v4054, %v4054
    %v4142 = vpack.c.bf16 %v4056, %v4056
    %v4143 = vpack.c.bf16 %v4058, %v4058
    %v4144 = vpack.c.bf16 %v4060, %v4060
    %v4145 = vpack.c.bf16 %v4062, %v4062
    %v4146 = vpack.c.bf16 %v4064, %v4064
    %v4147 = vpack.c.bf16 %v4066, %v4066
    %v4148 = vpack.c.bf16 %v4068, %v4068
    %v4157 = vunpack.c.l.b16 %v4133
    %v4158 = vunpack.c.l.b16 %v4134
    %v4159 = vunpack.c.l.b16 %v4135
    %v4160 = vunpack.c.l.b16 %v4136
    %v4161 = vunpack.c.l.b16 %v4137
    %v4162 = vunpack.c.l.b16 %v4138
    %v4163 = vunpack.c.l.b16 %v4139
    %v4164 = vunpack.c.l.b16 %v4140
    %v4165 = vpack.c.b16 %v4158, %v4157
    %v4166 = vpack.c.b16 %v4160, %v4159
    %v4167 = vpack.c.b16 %v4162, %v4161
    %v4168 = vpack.c.b16 %v4164, %v4163
    %4169 = vrot.lane.b32.xlu0 %v2398, 40
    %v4170 = vpop.permute.xlu0 %4169
    %4171 = vrot.lane.b32.xlu0 %v2399, 40
    %v4172 = vpop.permute.xlu0 %4171
    %4173 = vrot.lane.b32.xlu0 %v2400, 40
    %v4174 = vpop.permute.xlu0 %4173
    %4175 = vrot.lane.b32.xlu0 %v2401, 40
    %v4176 = vpop.permute.xlu0 %4175
    %v4182 = vsel %vm2544, %v4165, 0
    %v4185 = vsel %vm2544, %v4166, 0
    %v4188 = vsel %vm2544, %v4167, 0
    %v4191 = vsel %vm2544, %v4168, 0
    %4193 = vmatpush.bf16.msra.mxu0 0
    %4194 = vmatpush.bf16.msra.mxu0 0
    %4195 = vmatpush.bf16.msra.mxu0 0
    %4196 = vmatpush.bf16.msra.mxu0 0
    %4197 = vmatpush.bf16.msra.mxu0 %v4176
    %4198 = vmatpush.bf16.msra.mxu0 %v4174
    %4199 = vmatpush.bf16.msra.mxu0 %v4172
    %4200 = vmatpush.bf16.msra.mxu0 %v4170
    %4201 = vmatmul.bf16.gmra.mxu0 %v4182
    %v4202 = vpop.f32.mrf.mxu0
    %v4203 = vadd.f32 0.0, %v4202
    %v4204 = vpop.f32.mrf.mxu0
    %v4205 = vadd.f32 0.0, %v4204
    %4206 = vmatmul.bf16.gmra.mxu0 %v4185
    %v4207 = vpop.f32.mrf.mxu0
    %v4208 = vadd.f32 0.0, %v4207
    %v4209 = vpop.f32.mrf.mxu0
    %v4210 = vadd.f32 0.0, %v4209
    %4211 = vmatmul.bf16.gmra.mxu0 %v4188
    %v4212 = vpop.f32.mrf.mxu0
    %v4213 = vadd.f32 0.0, %v4212
    %v4214 = vpop.f32.mrf.mxu0
    %v4215 = vadd.f32 0.0, %v4214
    %4216 = vmatmul.bf16.gmra.mxu0 %v4191
    %v4217 = vpop.f32.mrf.mxu0
    %v4218 = vadd.f32 0.0, %v4217
    %v4219 = vpop.f32.mrf.mxu0
    %v4220 = vadd.f32 0.0, %v4219
    %4221 = vdwg.mxu0
    %v4230 = vunpack.c.l.b16 %v4141
    %v4231 = vunpack.c.l.b16 %v4142
    %v4232 = vunpack.c.l.b16 %v4143
    %v4233 = vunpack.c.l.b16 %v4144
    %v4234 = vunpack.c.l.b16 %v4145
    %v4235 = vunpack.c.l.b16 %v4146
    %v4236 = vunpack.c.l.b16 %v4147
    %v4237 = vunpack.c.l.b16 %v4148
    %v4238 = vpack.c.b16 %v4231, %v4230
    %v4239 = vpack.c.b16 %v4233, %v4232
    %v4240 = vpack.c.b16 %v4235, %v4234
    %v4241 = vpack.c.b16 %v4237, %v4236
    %4242 = vrot.lane.b32.xlu0 %v2479, 40
    %v4243 = vpop.permute.xlu0 %4242
    %4244 = vrot.lane.b32.xlu0 %v2480, 40
    %v4245 = vpop.permute.xlu0 %4244
    %4246 = vrot.lane.b32.xlu0 %v2481, 40
    %v4247 = vpop.permute.xlu0 %4246
    %4248 = vrot.lane.b32.xlu0 %v2482, 40
    %v4249 = vpop.permute.xlu0 %4248
    %v4255 = vsel %vm2544, %v4238, 0
    %v4258 = vsel %vm2544, %v4239, 0
    %v4261 = vsel %vm2544, %v4240, 0
    %v4264 = vsel %vm2544, %v4241, 0
    %4266 = vmatpush.bf16.msra.mxu0 0
    %4267 = vmatpush.bf16.msra.mxu0 0
    %4268 = vmatpush.bf16.msra.mxu0 0
    %4269 = vmatpush.bf16.msra.mxu0 0
    %4270 = vmatpush.bf16.msra.mxu0 %v4249
    %4271 = vmatpush.bf16.msra.mxu0 %v4247
    %4272 = vmatpush.bf16.msra.mxu0 %v4245
    %4273 = vmatpush.bf16.msra.mxu0 %v4243
    %4274 = vmatmul.bf16.gmra.mxu0 %v4255
    %v4275 = vpop.f32.mrf.mxu0
    %v4276 = vadd.f32 0.0, %v4275
    %v4277 = vpop.f32.mrf.mxu0
    %v4278 = vadd.f32 0.0, %v4277
    %4279 = vmatmul.bf16.gmra.mxu0 %v4258
    %v4280 = vpop.f32.mrf.mxu0
    %v4281 = vadd.f32 0.0, %v4280
    %v4282 = vpop.f32.mrf.mxu0
    %v4283 = vadd.f32 0.0, %v4282
    %4284 = vmatmul.bf16.gmra.mxu0 %v4261
    %v4285 = vpop.f32.mrf.mxu0
    %v4286 = vadd.f32 0.0, %v4285
    %v4287 = vpop.f32.mrf.mxu0
    %v4288 = vadd.f32 0.0, %v4287
    %4289 = vmatmul.bf16.gmra.mxu0 %v4264
    %v4290 = vpop.f32.mrf.mxu0
    %v4291 = vadd.f32 0.0, %v4290
    %v4292 = vpop.f32.mrf.mxu0
    %v4293 = vadd.f32 0.0, %v4292
    %4294 = vdwg.mxu0
    %v4295 = vmul.f32 %v4203, %v4117
    %v4296 = vmul.f32 %v4205, %v4118
    %v4297 = vmul.f32 %v4208, %v4119
    %v4298 = vmul.f32 %v4210, %v4120
    %v4299 = vmul.f32 %v4213, %v4121
    %v4300 = vmul.f32 %v4215, %v4122
    %v4301 = vmul.f32 %v4218, %v4123
    %v4302 = vmul.f32 %v4220, %v4124
    %v4303 = vmul.f32 %v4276, %v4125
    %v4304 = vmul.f32 %v4278, %v4126
    %v4305 = vmul.f32 %v4281, %v4127
    %v4306 = vmul.f32 %v4283, %v4128
    %v4307 = vmul.f32 %v4286, %v4129
    %v4308 = vmul.f32 %v4288, %v4130
    %v4309 = vmul.f32 %v4291, %v4131
    %v4310 = vmul.f32 %v4293, %v4132
    %4327 = vrot.lane.b32.xlu0 %v3343, 8
    %v4328 = vpop.permute.xlu0 %4327
    %4329 = vrot.lane.b32.xlu0 %v3344, 8
    %v4330 = vpop.permute.xlu0 %4329
    %4331 = vrot.lane.b32.xlu0 %v3345, 8
    %v4332 = vpop.permute.xlu0 %4331
    %4333 = vrot.lane.b32.xlu0 %v3346, 8
    %v4334 = vpop.permute.xlu0 %4333
    %4335 = vrot.lane.b32.xlu0 %v3347, 8
    %v4336 = vpop.permute.xlu0 %4335
    %4337 = vrot.lane.b32.xlu0 %v3348, 8
    %v4338 = vpop.permute.xlu0 %4337
    %4339 = vrot.lane.b32.xlu0 %v3349, 8
    %v4340 = vpop.permute.xlu0 %4339
    %4341 = vrot.lane.b32.xlu0 %v3350, 8
    %v4342 = vpop.permute.xlu0 %4341
    %4343 = vrot.lane.b32.xlu0 %v3351, 8
    %v4344 = vpop.permute.xlu0 %4343
    %4345 = vrot.lane.b32.xlu0 %v3352, 8
    %v4346 = vpop.permute.xlu0 %4345
    %4347 = vrot.lane.b32.xlu0 %v3353, 8
    %v4348 = vpop.permute.xlu0 %4347
    %4349 = vrot.lane.b32.xlu0 %v3354, 8
    %v4350 = vpop.permute.xlu0 %4349
    %4351 = vrot.lane.b32.xlu0 %v3355, 8
    %v4352 = vpop.permute.xlu0 %4351
    %4353 = vrot.lane.b32.xlu0 %v3356, 8
    %v4354 = vpop.permute.xlu0 %4353
    %4355 = vrot.lane.b32.xlu0 %v3357, 8
    %v4356 = vpop.permute.xlu0 %4355
    %4357 = vrot.lane.b32.xlu0 %v3358, 8
    %v4358 = vpop.permute.xlu0 %4357
    %4391 = vrot.lane.b32.xlu0 %v3819, 16
    %v4392 = vpop.permute.xlu0 %4391
    %4393 = vrot.lane.b32.xlu0 %v3820, 16
    %v4394 = vpop.permute.xlu0 %4393
    %4395 = vrot.lane.b32.xlu0 %v3821, 16
    %v4396 = vpop.permute.xlu0 %4395
    %4397 = vrot.lane.b32.xlu0 %v3822, 16
    %v4398 = vpop.permute.xlu0 %4397
    %4399 = vrot.lane.b32.xlu0 %v3823, 16
    %v4400 = vpop.permute.xlu0 %4399
    %4401 = vrot.lane.b32.xlu0 %v3824, 16
    %v4402 = vpop.permute.xlu0 %4401
    %4403 = vrot.lane.b32.xlu0 %v3825, 16
    %v4404 = vpop.permute.xlu0 %4403
    %4405 = vrot.lane.b32.xlu0 %v3826, 16
    %v4406 = vpop.permute.xlu0 %4405
    %4407 = vrot.lane.b32.xlu0 %v3827, 16
    %v4408 = vpop.permute.xlu0 %4407
    %4409 = vrot.lane.b32.xlu0 %v3828, 16
    %v4410 = vpop.permute.xlu0 %4409
    %4411 = vrot.lane.b32.xlu0 %v3829, 16
    %v4412 = vpop.permute.xlu0 %4411
    %4413 = vrot.lane.b32.xlu0 %v3830, 16
    %v4414 = vpop.permute.xlu0 %4413
    %4415 = vrot.lane.b32.xlu0 %v3831, 16
    %v4416 = vpop.permute.xlu0 %4415
    %4417 = vrot.lane.b32.xlu0 %v3832, 16
    %v4418 = vpop.permute.xlu0 %4417
    %4419 = vrot.lane.b32.xlu0 %v3833, 16
    %v4420 = vpop.permute.xlu0 %4419
    %4421 = vrot.lane.b32.xlu0 %v3834, 16
    %v4422 = vpop.permute.xlu0 %4421
    %4455 = vrot.lane.b32.xlu0 %v4295, 24
    %v4456 = vpop.permute.xlu0 %4455
    %4457 = vrot.lane.b32.xlu0 %v4296, 24
    %v4458 = vpop.permute.xlu0 %4457
    %4459 = vrot.lane.b32.xlu0 %v4297, 24
    %v4460 = vpop.permute.xlu0 %4459
    %4461 = vrot.lane.b32.xlu0 %v4298, 24
    %v4462 = vpop.permute.xlu0 %4461
    %4463 = vrot.lane.b32.xlu0 %v4299, 24
    %v4464 = vpop.permute.xlu0 %4463
    %4465 = vrot.lane.b32.xlu0 %v4300, 24
    %v4466 = vpop.permute.xlu0 %4465
    %4467 = vrot.lane.b32.xlu0 %v4301, 24
    %v4468 = vpop.permute.xlu0 %4467
    %4469 = vrot.lane.b32.xlu0 %v4302, 24
    %v4470 = vpop.permute.xlu0 %4469
    %4471 = vrot.lane.b32.xlu0 %v4303, 24
    %v4472 = vpop.permute.xlu0 %4471
    %4473 = vrot.lane.b32.xlu0 %v4304, 24
    %v4474 = vpop.permute.xlu0 %4473
    %4475 = vrot.lane.b32.xlu0 %v4305, 24
    %v4476 = vpop.permute.xlu0 %4475
    %4477 = vrot.lane.b32.xlu0 %v4306, 24
    %v4478 = vpop.permute.xlu0 %4477
    %4479 = vrot.lane.b32.xlu0 %v4307, 24
    %v4480 = vpop.permute.xlu0 %4479
    %4481 = vrot.lane.b32.xlu0 %v4308, 24
    %v4482 = vpop.permute.xlu0 %4481
    %4483 = vrot.lane.b32.xlu0 %v4309, 24
    %v4484 = vpop.permute.xlu0 %4483
    %4485 = vrot.lane.b32.xlu0 %v4310, 24
    %v4486 = vpop.permute.xlu0 %4485
    %v4503 = vsel %vm892, %v2867, %v4328
    %v4504 = vsel %vm892, %v2868, %v4330
    %v4505 = vsel %vm892, %v2869, %v4332
    %v4506 = vsel %vm892, %v2870, %v4334
    %v4507 = vsel %vm892, %v2871, %v4336
    %v4508 = vsel %vm892, %v2872, %v4338
    %v4509 = vsel %vm892, %v2873, %v4340
    %v4510 = vsel %vm892, %v2874, %v4342
    %v4511 = vsel %vm892, %v2875, %v4344
    %v4512 = vsel %vm892, %v2876, %v4346
    %v4513 = vsel %vm892, %v2877, %v4348
    %v4514 = vsel %vm892, %v2878, %v4350
    %v4515 = vsel %vm892, %v2879, %v4352
    %v4516 = vsel %vm892, %v2880, %v4354
    %v4517 = vsel %vm892, %v2881, %v4356
    %v4518 = vsel %vm892, %v2882, %v4358
    %v4519 = vsel %vm940, %v4503, %v4392
    %v4520 = vsel %vm940, %v4504, %v4394
    %v4521 = vsel %vm940, %v4505, %v4396
    %v4522 = vsel %vm940, %v4506, %v4398
    %v4523 = vsel %vm940, %v4507, %v4400
    %v4524 = vsel %vm940, %v4508, %v4402
    %v4525 = vsel %vm940, %v4509, %v4404
    %v4526 = vsel %vm940, %v4510, %v4406
    %v4527 = vsel %vm940, %v4511, %v4408
    %v4528 = vsel %vm940, %v4512, %v4410
    %v4529 = vsel %vm940, %v4513, %v4412
    %v4530 = vsel %vm940, %v4514, %v4414
    %v4531 = vsel %vm940, %v4515, %v4416
    %v4532 = vsel %vm940, %v4516, %v4418
    %v4533 = vsel %vm940, %v4517, %v4420
    %v4534 = vsel %vm940, %v4518, %v4422
    %v4535 = vsel %vm1533, %v4519, %v4456
    %v4536 = vsel %vm1533, %v4520, %v4458
    %v4537 = vsel %vm1533, %v4521, %v4460
    %v4538 = vsel %vm1533, %v4522, %v4462
    %v4539 = vsel %vm1533, %v4523, %v4464
    %v4540 = vsel %vm1533, %v4524, %v4466
    %v4541 = vsel %vm1533, %v4525, %v4468
    %v4542 = vsel %vm1533, %v4526, %v4470
    %v4543 = vsel %vm1533, %v4527, %v4472
    %v4544 = vsel %vm1533, %v4528, %v4474
    %v4545 = vsel %vm1533, %v4529, %v4476
    %v4546 = vsel %vm1533, %v4530, %v4478
    %v4547 = vsel %vm1533, %v4531, %v4480
    %v4548 = vsel %vm1533, %v4532, %v4482
    %v4549 = vsel %vm1533, %v4533, %v4484
    %v4550 = vsel %vm1533, %v4534, %v4486
    %v4551 = vpack.c.bf16 %v4536, %v4535
    %v4552 = vpack.c.bf16 %v4538, %v4537
    %v4553 = vpack.c.bf16 %v4540, %v4539
    %v4554 = vpack.c.bf16 %v4542, %v4541
    %v4555 = vpack.c.bf16 %v4544, %v4543
    %v4556 = vpack.c.bf16 %v4546, %v4545
    %v4557 = vpack.c.bf16 %v4548, %v4547
    %v4558 = vpack.c.bf16 %v4550, %v4549
    %v4563 = vunpack.c.l.b16 %v586
    %v4564 = vunpack.c.l.b16 %v587
    %v4565 = vunpack.c.l.b16 %v588
    %v4566 = vunpack.c.l.b16 %v589
    %v4567 = vpack.c.b16 %v4564, %v4563
    %v4568 = vpack.c.b16 %v4566, %v4565
    %v4572 = vsel %vm729, %v4551, 0
    %v4575 = vsel %vm729, %v4552, 0
    %v4578 = vsel %vm729, %v4553, 0
    %v4581 = vsel %vm729, %v4554, 0
    %v4584 = vsel %vm729, %v4555, 0
    %v4587 = vsel %vm729, %v4556, 0
    %v4590 = vsel %vm729, %v4557, 0
    %v4593 = vsel %vm729, %v4558, 0
    %4595 = vmatpush.bf16.msra.mxu0 0
    %4596 = vmatpush.bf16.msra.mxu0 0
    %4597 = vmatpush.bf16.msra.mxu0 0
    %4598 = vmatpush.bf16.msra.mxu0 0
    %4599 = vmatpush.bf16.msra.mxu0 0
    %4600 = vmatpush.bf16.msra.mxu0 0
    %4601 = vmatpush.bf16.msra.mxu0 %v4568
    %4602 = vmatpush.bf16.msra.mxu0 %v4567
    %4603 = vmatmul.bf16.gmra.mxu0 %v4572
    %v4604 = vpop.f32.mrf.mxu0
    %v4605 = vadd.f32 0.0, %v4604
    %v4606 = vpop.f32.mrf.mxu0
    %v4607 = vadd.f32 0.0, %v4606
    %4608 = vmatmul.bf16.gmra.mxu0 %v4575
    %v4609 = vpop.f32.mrf.mxu0
    %v4610 = vadd.f32 0.0, %v4609
    %v4611 = vpop.f32.mrf.mxu0
    %v4612 = vadd.f32 0.0, %v4611
    %4613 = vmatmul.bf16.gmra.mxu0 %v4578
    %v4614 = vpop.f32.mrf.mxu0
    %v4615 = vadd.f32 0.0, %v4614
    %v4616 = vpop.f32.mrf.mxu0
    %v4617 = vadd.f32 0.0, %v4616
    %4618 = vmatmul.bf16.gmra.mxu0 %v4581
    %v4619 = vpop.f32.mrf.mxu0
    %v4620 = vadd.f32 0.0, %v4619
    %v4621 = vpop.f32.mrf.mxu0
    %v4622 = vadd.f32 0.0, %v4621
    %4623 = vmatmul.bf16.gmra.mxu0 %v4584
    %v4624 = vpop.f32.mrf.mxu0
    %v4625 = vadd.f32 0.0, %v4624
    %v4626 = vpop.f32.mrf.mxu0
    %v4627 = vadd.f32 0.0, %v4626
    %4628 = vmatmul.bf16.gmra.mxu0 %v4587
    %v4629 = vpop.f32.mrf.mxu0
    %v4630 = vadd.f32 0.0, %v4629
    %v4631 = vpop.f32.mrf.mxu0
    %v4632 = vadd.f32 0.0, %v4631
    %4633 = vmatmul.bf16.gmra.mxu0 %v4590
    %v4634 = vpop.f32.mrf.mxu0
    %v4635 = vadd.f32 0.0, %v4634
    %v4636 = vpop.f32.mrf.mxu0
    %v4637 = vadd.f32 0.0, %v4636
    %4638 = vmatmul.bf16.gmra.mxu0 %v4593
    %v4639 = vpop.f32.mrf.mxu0
    %v4640 = vadd.f32 0.0, %v4639
    %v4641 = vpop.f32.mrf.mxu0
    %v4642 = vadd.f32 0.0, %v4641
    %4643 = vdwg.mxu0
    %v4644 = vadd.f32 %v705, %v4605
    %v4645 = vadd.f32 %v706, %v4607
    %v4646 = vadd.f32 %v707, %v4610
    %v4647 = vadd.f32 %v708, %v4612
    %v4648 = vadd.f32 %v709, %v4615
    %v4649 = vadd.f32 %v710, %v4617
    %v4650 = vadd.f32 %v711, %v4620
    %v4651 = vadd.f32 %v712, %v4622
    %v4652 = vadd.f32 %v713, %v4625
    %v4653 = vadd.f32 %v714, %v4627
    %v4654 = vadd.f32 %v715, %v4630
    %v4655 = vadd.f32 %v716, %v4632
    %v4656 = vadd.f32 %v717, %v4635
    %v4657 = vadd.f32 %v718, %v4637
    %v4658 = vadd.f32 %v719, %v4640
    %v4659 = vadd.f32 %v720, %v4642
    %v4661 = vperm.slane %v590, 0
    %v4663 = vadd.f32 %v4644, %v4661
    %v4664 = vadd.f32 %v4645, %v4661
    %v4665 = vadd.f32 %v4646, %v4661
    %v4666 = vadd.f32 %v4647, %v4661
    %v4667 = vadd.f32 %v4648, %v4661
    %v4668 = vadd.f32 %v4649, %v4661
    %v4669 = vadd.f32 %v4650, %v4661
    %v4670 = vadd.f32 %v4651, %v4661
    %v4671 = vadd.f32 %v4652, %v4661
    %v4672 = vadd.f32 %v4653, %v4661
    %v4673 = vadd.f32 %v4654, %v4661
    %v4674 = vadd.f32 %v4655, %v4661
    %v4675 = vadd.f32 %v4656, %v4661
    %v4676 = vadd.f32 %v4657, %v4661
    %v4677 = vadd.f32 %v4658, %v4661
    %v4678 = vadd.f32 %v4659, %v4661
    %v4679 = vsel %vm729, %v4663, 0.0
    %4680 = vadd.xlane.f32.xlu0 %v4679
    %v4681 = vpop.xlane.xlu0 %4680
    %v4682 = vsel %vm729, %v4664, 0.0
    %4683 = vadd.xlane.f32.xlu0 %v4682
    %v4684 = vpop.xlane.xlu0 %4683
    %v4685 = vsel %vm729, %v4665, 0.0
    %4686 = vadd.xlane.f32.xlu0 %v4685
    %v4687 = vpop.xlane.xlu0 %4686
    %v4688 = vsel %vm729, %v4666, 0.0
    %4689 = vadd.xlane.f32.xlu0 %v4688
    %v4690 = vpop.xlane.xlu0 %4689
    %v4691 = vsel %vm729, %v4667, 0.0
    %4692 = vadd.xlane.f32.xlu0 %v4691
    %v4693 = vpop.xlane.xlu0 %4692
    %v4694 = vsel %vm729, %v4668, 0.0
    %4695 = vadd.xlane.f32.xlu0 %v4694
    %v4696 = vpop.xlane.xlu0 %4695
    %v4697 = vsel %vm729, %v4669, 0.0
    %4698 = vadd.xlane.f32.xlu0 %v4697
    %v4699 = vpop.xlane.xlu0 %4698
    %v4700 = vsel %vm729, %v4670, 0.0
    %4701 = vadd.xlane.f32.xlu0 %v4700
    %v4702 = vpop.xlane.xlu0 %4701
    %v4703 = vsel %vm729, %v4671, 0.0
    %4704 = vadd.xlane.f32.xlu0 %v4703
    %v4705 = vpop.xlane.xlu0 %4704
    %v4706 = vsel %vm729, %v4672, 0.0
    %4707 = vadd.xlane.f32.xlu0 %v4706
    %v4708 = vpop.xlane.xlu0 %4707
    %v4709 = vsel %vm729, %v4673, 0.0
    %4710 = vadd.xlane.f32.xlu0 %v4709
    %v4711 = vpop.xlane.xlu0 %4710
    %v4712 = vsel %vm729, %v4674, 0.0
    %4713 = vadd.xlane.f32.xlu0 %v4712
    %v4714 = vpop.xlane.xlu0 %4713
    %v4715 = vsel %vm729, %v4675, 0.0
    %4716 = vadd.xlane.f32.xlu0 %v4715
    %v4717 = vpop.xlane.xlu0 %4716
    %v4718 = vsel %vm729, %v4676, 0.0
    %4719 = vadd.xlane.f32.xlu0 %v4718
    %v4720 = vpop.xlane.xlu0 %4719
    %v4721 = vsel %vm729, %v4677, 0.0
    %4722 = vadd.xlane.f32.xlu0 %v4721
    %v4723 = vpop.xlane.xlu0 %4722
    %v4724 = vsel %vm729, %v4678, 0.0
    %4725 = vadd.xlane.f32.xlu0 %v4724
    %v4726 = vpop.xlane.xlu0 %4725
    %v4727 = vmul.f32 %v4681, %v748
    %v4728 = vmul.f32 %v4684, %v748
    %v4729 = vmul.f32 %v4687, %v748
    %v4730 = vmul.f32 %v4690, %v748
    %v4731 = vmul.f32 %v4693, %v748
    %v4732 = vmul.f32 %v4696, %v748
    %v4733 = vmul.f32 %v4699, %v748
    %v4734 = vmul.f32 %v4702, %v748
    %v4735 = vmul.f32 %v4705, %v748
    %v4736 = vmul.f32 %v4708, %v748
    %v4737 = vmul.f32 %v4711, %v748
    %v4738 = vmul.f32 %v4714, %v748
    %v4739 = vmul.f32 %v4717, %v748
    %v4740 = vmul.f32 %v4720, %v748
    %v4741 = vmul.f32 %v4723, %v748
    %v4742 = vmul.f32 %v4726, %v748
    %v4743 = vsub.f32 %v4663, %v4727
    %v4744 = vsub.f32 %v4664, %v4728
    %v4745 = vsub.f32 %v4665, %v4729
    %v4746 = vsub.f32 %v4666, %v4730
    %v4747 = vsub.f32 %v4667, %v4731
    %v4748 = vsub.f32 %v4668, %v4732
    %v4749 = vsub.f32 %v4669, %v4733
    %v4750 = vsub.f32 %v4670, %v4734
    %v4751 = vsub.f32 %v4671, %v4735
    %v4752 = vsub.f32 %v4672, %v4736
    %v4753 = vsub.f32 %v4673, %v4737
    %v4754 = vsub.f32 %v4674, %v4738
    %v4755 = vsub.f32 %v4675, %v4739
    %v4756 = vsub.f32 %v4676, %v4740
    %v4757 = vsub.f32 %v4677, %v4741
    %v4758 = vsub.f32 %v4678, %v4742
    %v4759 = vmul.f32 %v4743, %v4743
    %v4760 = vmul.f32 %v4744, %v4744
    %v4761 = vmul.f32 %v4745, %v4745
    %v4762 = vmul.f32 %v4746, %v4746
    %v4763 = vmul.f32 %v4747, %v4747
    %v4764 = vmul.f32 %v4748, %v4748
    %v4765 = vmul.f32 %v4749, %v4749
    %v4766 = vmul.f32 %v4750, %v4750
    %v4767 = vmul.f32 %v4751, %v4751
    %v4768 = vmul.f32 %v4752, %v4752
    %v4769 = vmul.f32 %v4753, %v4753
    %v4770 = vmul.f32 %v4754, %v4754
    %v4771 = vmul.f32 %v4755, %v4755
    %v4772 = vmul.f32 %v4756, %v4756
    %v4773 = vmul.f32 %v4757, %v4757
    %v4774 = vmul.f32 %v4758, %v4758
    %v4775 = vsel %vm729, %v4759, 0.0
    %4776 = vadd.xlane.f32.xlu0 %v4775
    %v4777 = vpop.xlane.xlu0 %4776
    %v4778 = vsel %vm729, %v4760, 0.0
    %4779 = vadd.xlane.f32.xlu0 %v4778
    %v4780 = vpop.xlane.xlu0 %4779
    %v4781 = vsel %vm729, %v4761, 0.0
    %4782 = vadd.xlane.f32.xlu0 %v4781
    %v4783 = vpop.xlane.xlu0 %4782
    %v4784 = vsel %vm729, %v4762, 0.0
    %4785 = vadd.xlane.f32.xlu0 %v4784
    %v4786 = vpop.xlane.xlu0 %4785
    %v4787 = vsel %vm729, %v4763, 0.0
    %4788 = vadd.xlane.f32.xlu0 %v4787
    %v4789 = vpop.xlane.xlu0 %4788
    %v4790 = vsel %vm729, %v4764, 0.0
    %4791 = vadd.xlane.f32.xlu0 %v4790
    %v4792 = vpop.xlane.xlu0 %4791
    %v4793 = vsel %vm729, %v4765, 0.0
    %4794 = vadd.xlane.f32.xlu0 %v4793
    %v4795 = vpop.xlane.xlu0 %4794
    %v4796 = vsel %vm729, %v4766, 0.0
    %4797 = vadd.xlane.f32.xlu0 %v4796
    %v4798 = vpop.xlane.xlu0 %4797
    %v4799 = vsel %vm729, %v4767, 0.0
    %4800 = vadd.xlane.f32.xlu0 %v4799
    %v4801 = vpop.xlane.xlu0 %4800
    %v4802 = vsel %vm729, %v4768, 0.0
    %4803 = vadd.xlane.f32.xlu0 %v4802
    %v4804 = vpop.xlane.xlu0 %4803
    %v4805 = vsel %vm729, %v4769, 0.0
    %4806 = vadd.xlane.f32.xlu0 %v4805
    %v4807 = vpop.xlane.xlu0 %4806
    %v4808 = vsel %vm729, %v4770, 0.0
    %4809 = vadd.xlane.f32.xlu0 %v4808
    %v4810 = vpop.xlane.xlu0 %4809
    %v4811 = vsel %vm729, %v4771, 0.0
    %4812 = vadd.xlane.f32.xlu0 %v4811
    %v4813 = vpop.xlane.xlu0 %4812
    %v4814 = vsel %vm729, %v4772, 0.0
    %4815 = vadd.xlane.f32.xlu0 %v4814
    %v4816 = vpop.xlane.xlu0 %4815
    %v4817 = vsel %vm729, %v4773, 0.0
    %4818 = vadd.xlane.f32.xlu0 %v4817
    %v4819 = vpop.xlane.xlu0 %4818
    %v4820 = vsel %vm729, %v4774, 0.0
    %4821 = vadd.xlane.f32.xlu0 %v4820
    %v4822 = vpop.xlane.xlu0 %4821
    %v4823 = vmul.f32 %v4777, %v748
    %v4824 = vmul.f32 %v4780, %v748
    %v4825 = vmul.f32 %v4783, %v748
    %v4826 = vmul.f32 %v4786, %v748
    %v4827 = vmul.f32 %v4789, %v748
    %v4828 = vmul.f32 %v4792, %v748
    %v4829 = vmul.f32 %v4795, %v748
    %v4830 = vmul.f32 %v4798, %v748
    %v4831 = vmul.f32 %v4801, %v748
    %v4832 = vmul.f32 %v4804, %v748
    %v4833 = vmul.f32 %v4807, %v748
    %v4834 = vmul.f32 %v4810, %v748
    %v4835 = vmul.f32 %v4813, %v748
    %v4836 = vmul.f32 %v4816, %v748
    %v4837 = vmul.f32 %v4819, %v748
    %v4838 = vmul.f32 %v4822, %v748
    %v4839 = vadd.f32 %v4823, 1e-05
    %v4840 = vadd.f32 %v4824, 1e-05
    %v4841 = vadd.f32 %v4825, 1e-05
    %v4842 = vadd.f32 %v4826, 1e-05
    %v4843 = vadd.f32 %v4827, 1e-05
    %v4844 = vadd.f32 %v4828, 1e-05
    %v4845 = vadd.f32 %v4829, 1e-05
    %v4846 = vadd.f32 %v4830, 1e-05
    %v4847 = vadd.f32 %v4831, 1e-05
    %v4848 = vadd.f32 %v4832, 1e-05
    %v4849 = vadd.f32 %v4833, 1e-05
    %v4850 = vadd.f32 %v4834, 1e-05
    %v4851 = vadd.f32 %v4835, 1e-05
    %v4852 = vadd.f32 %v4836, 1e-05
    %v4853 = vadd.f32 %v4837, 1e-05
    %v4854 = vadd.f32 %v4838, 1e-05
    %v4855 = vrsqrt.pop %v4839
    %v4856 = vmul.f32 %v4855, %v4839
    %v4857 = vmul.f32 %v4856, %v4855
    %v4858 = vmul.f32 0.5, %v4857
    %v4859 = vsub.f32 1.5, %v4858
    %v4860 = vmul.f32 %v4855, %v4859
    %vm4861 = vweird.f32 %v4839
    %vm4862 = vweird.f32 %v4855
    %vm4863 = vmor %vm4861, %vm4862
    %v4864 = vsel %vm4863, %v4855, %v4860
    %v4865 = vrsqrt.pop %v4840
    %v4866 = vmul.f32 %v4865, %v4840
    %v4867 = vmul.f32 %v4866, %v4865
    %v4868 = vmul.f32 0.5, %v4867
    %v4869 = vsub.f32 1.5, %v4868
    %v4870 = vmul.f32 %v4865, %v4869
    %vm4871 = vweird.f32 %v4840
    %vm4872 = vweird.f32 %v4865
    %vm4873 = vmor %vm4871, %vm4872
    %v4874 = vsel %vm4873, %v4865, %v4870
    %v4875 = vrsqrt.pop %v4841
    %v4876 = vmul.f32 %v4875, %v4841
    %v4877 = vmul.f32 %v4876, %v4875
    %v4878 = vmul.f32 0.5, %v4877
    %v4879 = vsub.f32 1.5, %v4878
    %v4880 = vmul.f32 %v4875, %v4879
    %vm4881 = vweird.f32 %v4841
    %vm4882 = vweird.f32 %v4875
    %vm4883 = vmor %vm4881, %vm4882
    %v4884 = vsel %vm4883, %v4875, %v4880
    %v4885 = vrsqrt.pop %v4842
    %v4886 = vmul.f32 %v4885, %v4842
    %v4887 = vmul.f32 %v4886, %v4885
    %v4888 = vmul.f32 0.5, %v4887
    %v4889 = vsub.f32 1.5, %v4888
    %v4890 = vmul.f32 %v4885, %v4889
    %vm4891 = vweird.f32 %v4842
    %vm4892 = vweird.f32 %v4885
    %vm4893 = vmor %vm4891, %vm4892
    %v4894 = vsel %vm4893, %v4885, %v4890
    %v4895 = vrsqrt.pop %v4843
    %v4896 = vmul.f32 %v4895, %v4843
    %v4897 = vmul.f32 %v4896, %v4895
    %v4898 = vmul.f32 0.5, %v4897
    %v4899 = vsub.f32 1.5, %v4898
    %v4900 = vmul.f32 %v4895, %v4899
    %vm4901 = vweird.f32 %v4843
    %vm4902 = vweird.f32 %v4895
    %vm4903 = vmor %vm4901, %vm4902
    %v4904 = vsel %vm4903, %v4895, %v4900
    %v4905 = vrsqrt.pop %v4844
    %v4906 = vmul.f32 %v4905, %v4844
    %v4907 = vmul.f32 %v4906, %v4905
    %v4908 = vmul.f32 0.5, %v4907
    %v4909 = vsub.f32 1.5, %v4908
    %v4910 = vmul.f32 %v4905, %v4909
    %vm4911 = vweird.f32 %v4844
    %vm4912 = vweird.f32 %v4905
    %vm4913 = vmor %vm4911, %vm4912
    %v4914 = vsel %vm4913, %v4905, %v4910
    %v4915 = vrsqrt.pop %v4845
    %v4916 = vmul.f32 %v4915, %v4845
    %v4917 = vmul.f32 %v4916, %v4915
    %v4918 = vmul.f32 0.5, %v4917
    %v4919 = vsub.f32 1.5, %v4918
    %v4920 = vmul.f32 %v4915, %v4919
    %vm4921 = vweird.f32 %v4845
    %vm4922 = vweird.f32 %v4915
    %vm4923 = vmor %vm4921, %vm4922
    %v4924 = vsel %vm4923, %v4915, %v4920
    %v4925 = vrsqrt.pop %v4846
    %v4926 = vmul.f32 %v4925, %v4846
    %v4927 = vmul.f32 %v4926, %v4925
    %v4928 = vmul.f32 0.5, %v4927
    %v4929 = vsub.f32 1.5, %v4928
    %v4930 = vmul.f32 %v4925, %v4929
    %vm4931 = vweird.f32 %v4846
    %vm4932 = vweird.f32 %v4925
    %vm4933 = vmor %vm4931, %vm4932
    %v4934 = vsel %vm4933, %v4925, %v4930
    %v4935 = vrsqrt.pop %v4847
    %v4936 = vmul.f32 %v4935, %v4847
    %v4937 = vmul.f32 %v4936, %v4935
    %v4938 = vmul.f32 0.5, %v4937
    %v4939 = vsub.f32 1.5, %v4938
    %v4940 = vmul.f32 %v4935, %v4939
    %vm4941 = vweird.f32 %v4847
    %vm4942 = vweird.f32 %v4935
    %vm4943 = vmor %vm4941, %vm4942
    %v4944 = vsel %vm4943, %v4935, %v4940
    %v4945 = vrsqrt.pop %v4848
    %v4946 = vmul.f32 %v4945, %v4848
    %v4947 = vmul.f32 %v4946, %v4945
    %v4948 = vmul.f32 0.5, %v4947
    %v4949 = vsub.f32 1.5, %v4948
    %v4950 = vmul.f32 %v4945, %v4949
    %vm4951 = vweird.f32 %v4848
    %vm4952 = vweird.f32 %v4945
    %vm4953 = vmor %vm4951, %vm4952
    %v4954 = vsel %vm4953, %v4945, %v4950
    %v4955 = vrsqrt.pop %v4849
    %v4956 = vmul.f32 %v4955, %v4849
    %v4957 = vmul.f32 %v4956, %v4955
    %v4958 = vmul.f32 0.5, %v4957
    %v4959 = vsub.f32 1.5, %v4958
    %v4960 = vmul.f32 %v4955, %v4959
    %vm4961 = vweird.f32 %v4849
    %vm4962 = vweird.f32 %v4955
    %vm4963 = vmor %vm4961, %vm4962
    %v4964 = vsel %vm4963, %v4955, %v4960
    %v4965 = vrsqrt.pop %v4850
    %v4966 = vmul.f32 %v4965, %v4850
    %v4967 = vmul.f32 %v4966, %v4965
    %v4968 = vmul.f32 0.5, %v4967
    %v4969 = vsub.f32 1.5, %v4968
    %v4970 = vmul.f32 %v4965, %v4969
    %vm4971 = vweird.f32 %v4850
    %vm4972 = vweird.f32 %v4965
    %vm4973 = vmor %vm4971, %vm4972
    %v4974 = vsel %vm4973, %v4965, %v4970
    %v4975 = vrsqrt.pop %v4851
    %v4976 = vmul.f32 %v4975, %v4851
    %v4977 = vmul.f32 %v4976, %v4975
    %v4978 = vmul.f32 0.5, %v4977
    %v4979 = vsub.f32 1.5, %v4978
    %v4980 = vmul.f32 %v4975, %v4979
    %vm4981 = vweird.f32 %v4851
    %vm4982 = vweird.f32 %v4975
    %vm4983 = vmor %vm4981, %vm4982
    %v4984 = vsel %vm4983, %v4975, %v4980
    %v4985 = vrsqrt.pop %v4852
    %v4986 = vmul.f32 %v4985, %v4852
    %v4987 = vmul.f32 %v4986, %v4985
    %v4988 = vmul.f32 0.5, %v4987
    %v4989 = vsub.f32 1.5, %v4988
    %v4990 = vmul.f32 %v4985, %v4989
    %vm4991 = vweird.f32 %v4852
    %vm4992 = vweird.f32 %v4985
    %vm4993 = vmor %vm4991, %vm4992
    %v4994 = vsel %vm4993, %v4985, %v4990
    %v4995 = vrsqrt.pop %v4853
    %v4996 = vmul.f32 %v4995, %v4853
    %v4997 = vmul.f32 %v4996, %v4995
    %v4998 = vmul.f32 0.5, %v4997
    %v4999 = vsub.f32 1.5, %v4998
    %v5000 = vmul.f32 %v4995, %v4999
    %vm5001 = vweird.f32 %v4853
    %vm5002 = vweird.f32 %v4995
    %vm5003 = vmor %vm5001, %vm5002
    %v5004 = vsel %vm5003, %v4995, %v5000
    %v5005 = vrsqrt.pop %v4854
    %v5006 = vmul.f32 %v5005, %v4854
    %v5007 = vmul.f32 %v5006, %v5005
    %v5008 = vmul.f32 0.5, %v5007
    %v5009 = vsub.f32 1.5, %v5008
    %v5010 = vmul.f32 %v5005, %v5009
    %vm5011 = vweird.f32 %v4854
    %vm5012 = vweird.f32 %v5005
    %vm5013 = vmor %vm5011, %vm5012
    %v5014 = vsel %vm5013, %v5005, %v5010
    %v5015 = vmul.f32 %v4743, %v4864
    %v5016 = vmul.f32 %v4744, %v4874
    %v5017 = vmul.f32 %v4745, %v4884
    %v5018 = vmul.f32 %v4746, %v4894
    %v5019 = vmul.f32 %v4747, %v4904
    %v5020 = vmul.f32 %v4748, %v4914
    %v5021 = vmul.f32 %v4749, %v4924
    %v5022 = vmul.f32 %v4750, %v4934
    %v5023 = vmul.f32 %v4751, %v4944
    %v5024 = vmul.f32 %v4752, %v4954
    %v5025 = vmul.f32 %v4753, %v4964
    %v5026 = vmul.f32 %v4754, %v4974
    %v5027 = vmul.f32 %v4755, %v4984
    %v5028 = vmul.f32 %v4756, %v4994
    %v5029 = vmul.f32 %v4757, %v5004
    %v5030 = vmul.f32 %v4758, %v5014
    %v5032 = vperm.slane %v591, 0
    %v5034 = vmul.f32 %v5015, %v5032
    %v5035 = vmul.f32 %v5016, %v5032
    %v5036 = vmul.f32 %v5017, %v5032
    %v5037 = vmul.f32 %v5018, %v5032
    %v5038 = vmul.f32 %v5019, %v5032
    %v5039 = vmul.f32 %v5020, %v5032
    %v5040 = vmul.f32 %v5021, %v5032
    %v5041 = vmul.f32 %v5022, %v5032
    %v5042 = vmul.f32 %v5023, %v5032
    %v5043 = vmul.f32 %v5024, %v5032
    %v5044 = vmul.f32 %v5025, %v5032
    %v5045 = vmul.f32 %v5026, %v5032
    %v5046 = vmul.f32 %v5027, %v5032
    %v5047 = vmul.f32 %v5028, %v5032
    %v5048 = vmul.f32 %v5029, %v5032
    %v5049 = vmul.f32 %v5030, %v5032
    %v5051 = vperm.slane %v592, 0
    %v5053 = vadd.f32 %v5034, %v5051
    %v5054 = vadd.f32 %v5035, %v5051
    %v5055 = vadd.f32 %v5036, %v5051
    %v5056 = vadd.f32 %v5037, %v5051
    %v5057 = vadd.f32 %v5038, %v5051
    %v5058 = vadd.f32 %v5039, %v5051
    %v5059 = vadd.f32 %v5040, %v5051
    %v5060 = vadd.f32 %v5041, %v5051
    %v5061 = vadd.f32 %v5042, %v5051
    %v5062 = vadd.f32 %v5043, %v5051
    %v5063 = vadd.f32 %v5044, %v5051
    %v5064 = vadd.f32 %v5045, %v5051
    %v5065 = vadd.f32 %v5046, %v5051
    %v5066 = vadd.f32 %v5047, %v5051
    %v5067 = vadd.f32 %v5048, %v5051
    %v5068 = vadd.f32 %v5049, %v5051
    %v5069 = vpack.c.bf16 %v5054, %v5053
    %v5070 = vpack.c.bf16 %v5056, %v5055
    %v5071 = vpack.c.bf16 %v5058, %v5057
    %v5072 = vpack.c.bf16 %v5060, %v5059
    %v5073 = vpack.c.bf16 %v5062, %v5061
    %v5074 = vpack.c.bf16 %v5064, %v5063
    %v5075 = vpack.c.bf16 %v5066, %v5065
    %v5076 = vpack.c.bf16 %v5068, %v5067
    %v5078 = vperm.slane %v597, 0
    %v5084 = vunpack.c.l.b16 %v593
    %v5085 = vunpack.c.l.b16 %v594
    %v5086 = vunpack.c.l.b16 %v595
    %v5087 = vunpack.c.l.b16 %v596
    %v5088 = vpack.c.b16 %v5085, %v5084
    %v5089 = vpack.c.b16 %v5087, %v5086
    %v5093 = vsel %vm729, %v5069, 0
    %v5096 = vsel %vm729, %v5070, 0
    %v5099 = vsel %vm729, %v5071, 0
    %v5102 = vsel %vm729, %v5072, 0
    %v5105 = vsel %vm729, %v5073, 0
    %v5108 = vsel %vm729, %v5074, 0
    %v5111 = vsel %vm729, %v5075, 0
    %v5114 = vsel %vm729, %v5076, 0
    %5116 = vmatpush.bf16.msra.mxu0 0
    %5117 = vmatpush.bf16.msra.mxu0 0
    %5118 = vmatpush.bf16.msra.mxu0 0
    %5119 = vmatpush.bf16.msra.mxu0 0
    %5120 = vmatpush.bf16.msra.mxu0 0
    %5121 = vmatpush.bf16.msra.mxu0 0
    %5122 = vmatpush.bf16.msra.mxu0 %v5089
    %5123 = vmatpush.bf16.msra.mxu0 %v5088
    %5124 = vmatmul.bf16.gmra.mxu0 %v5093
    %v5125 = vpop.f32.mrf.mxu0
    %v5126 = vadd.f32 %v5078, %v5125
    %v5127 = vpop.f32.mrf.mxu0
    %v5128 = vadd.f32 %v5078, %v5127
    %5129 = vmatmul.bf16.gmra.mxu0 %v5096
    %v5130 = vpop.f32.mrf.mxu0
    %v5131 = vadd.f32 %v5078, %v5130
    %v5132 = vpop.f32.mrf.mxu0
    %v5133 = vadd.f32 %v5078, %v5132
    %5134 = vmatmul.bf16.gmra.mxu0 %v5099
    %v5135 = vpop.f32.mrf.mxu0
    %v5136 = vadd.f32 %v5078, %v5135
    %v5137 = vpop.f32.mrf.mxu0
    %v5138 = vadd.f32 %v5078, %v5137
    %5139 = vmatmul.bf16.gmra.mxu0 %v5102
    %v5140 = vpop.f32.mrf.mxu0
    %v5141 = vadd.f32 %v5078, %v5140
    %v5142 = vpop.f32.mrf.mxu0
    %v5143 = vadd.f32 %v5078, %v5142
    %5144 = vmatmul.bf16.gmra.mxu0 %v5105
    %v5145 = vpop.f32.mrf.mxu0
    %v5146 = vadd.f32 %v5078, %v5145
    %v5147 = vpop.f32.mrf.mxu0
    %v5148 = vadd.f32 %v5078, %v5147
    %5149 = vmatmul.bf16.gmra.mxu0 %v5108
    %v5150 = vpop.f32.mrf.mxu0
    %v5151 = vadd.f32 %v5078, %v5150
    %v5152 = vpop.f32.mrf.mxu0
    %v5153 = vadd.f32 %v5078, %v5152
    %5154 = vmatmul.bf16.gmra.mxu0 %v5111
    %v5155 = vpop.f32.mrf.mxu0
    %v5156 = vadd.f32 %v5078, %v5155
    %v5157 = vpop.f32.mrf.mxu0
    %v5158 = vadd.f32 %v5078, %v5157
    %5159 = vmatmul.bf16.gmra.mxu0 %v5114
    %v5160 = vpop.f32.mrf.mxu0
    %v5161 = vadd.f32 %v5078, %v5160
    %v5162 = vpop.f32.mrf.mxu0
    %v5163 = vadd.f32 %v5078, %v5162
    %5164 = vdwg.mxu0
    %v5165 = vmul.f32 %v5126, 0.5
    %v5166 = vmul.f32 %v5128, 0.5
    %v5167 = vmul.f32 %v5131, 0.5
    %v5168 = vmul.f32 %v5133, 0.5
    %v5169 = vmul.f32 %v5136, 0.5
    %v5170 = vmul.f32 %v5138, 0.5
    %v5171 = vmul.f32 %v5141, 0.5
    %v5172 = vmul.f32 %v5143, 0.5
    %v5173 = vmul.f32 %v5146, 0.5
    %v5174 = vmul.f32 %v5148, 0.5
    %v5175 = vmul.f32 %v5151, 0.5
    %v5176 = vmul.f32 %v5153, 0.5
    %v5177 = vmul.f32 %v5156, 0.5
    %v5178 = vmul.f32 %v5158, 0.5
    %v5179 = vmul.f32 %v5161, 0.5
    %v5180 = vmul.f32 %v5163, 0.5
    %v5181 = vmul.f32 %v5126, 0.044715
    %v5182 = vmul.f32 %v5128, 0.044715
    %v5183 = vmul.f32 %v5131, 0.044715
    %v5184 = vmul.f32 %v5133, 0.044715
    %v5185 = vmul.f32 %v5136, 0.044715
    %v5186 = vmul.f32 %v5138, 0.044715
    %v5187 = vmul.f32 %v5141, 0.044715
    %v5188 = vmul.f32 %v5143, 0.044715
    %v5189 = vmul.f32 %v5146, 0.044715
    %v5190 = vmul.f32 %v5148, 0.044715
    %v5191 = vmul.f32 %v5151, 0.044715
    %v5192 = vmul.f32 %v5153, 0.044715
    %v5193 = vmul.f32 %v5156, 0.044715
    %v5194 = vmul.f32 %v5158, 0.044715
    %v5195 = vmul.f32 %v5161, 0.044715
    %v5196 = vmul.f32 %v5163, 0.044715
    %v5197 = vmul.f32 %v5181, %v5126
    %v5198 = vmul.f32 %v5182, %v5128
    %v5199 = vmul.f32 %v5183, %v5131
    %v5200 = vmul.f32 %v5184, %v5133
    %v5201 = vmul.f32 %v5185, %v5136
    %v5202 = vmul.f32 %v5186, %v5138
    %v5203 = vmul.f32 %v5187, %v5141
    %v5204 = vmul.f32 %v5188, %v5143
    %v5205 = vmul.f32 %v5189, %v5146
    %v5206 = vmul.f32 %v5190, %v5148
    %v5207 = vmul.f32 %v5191, %v5151
    %v5208 = vmul.f32 %v5192, %v5153
    %v5209 = vmul.f32 %v5193, %v5156
    %v5210 = vmul.f32 %v5194, %v5158
    %v5211 = vmul.f32 %v5195, %v5161
    %v5212 = vmul.f32 %v5196, %v5163
    %v5213 = vmul.f32 %v5197, %v5126
    %v5214 = vmul.f32 %v5198, %v5128
    %v5215 = vmul.f32 %v5199, %v5131
    %v5216 = vmul.f32 %v5200, %v5133
    %v5217 = vmul.f32 %v5201, %v5136
    %v5218 = vmul.f32 %v5202, %v5138
    %v5219 = vmul.f32 %v5203, %v5141
    %v5220 = vmul.f32 %v5204, %v5143
    %v5221 = vmul.f32 %v5205, %v5146
    %v5222 = vmul.f32 %v5206, %v5148
    %v5223 = vmul.f32 %v5207, %v5151
    %v5224 = vmul.f32 %v5208, %v5153
    %v5225 = vmul.f32 %v5209, %v5156
    %v5226 = vmul.f32 %v5210, %v5158
    %v5227 = vmul.f32 %v5211, %v5161
    %v5228 = vmul.f32 %v5212, %v5163
    %v5229 = vadd.f32 %v5126, %v5213
    %v5230 = vadd.f32 %v5128, %v5214
    %v5231 = vadd.f32 %v5131, %v5215
    %v5232 = vadd.f32 %v5133, %v5216
    %v5233 = vadd.f32 %v5136, %v5217
    %v5234 = vadd.f32 %v5138, %v5218
    %v5235 = vadd.f32 %v5141, %v5219
    %v5236 = vadd.f32 %v5143, %v5220
    %v5237 = vadd.f32 %v5146, %v5221
    %v5238 = vadd.f32 %v5148, %v5222
    %v5239 = vadd.f32 %v5151, %v5223
    %v5240 = vadd.f32 %v5153, %v5224
    %v5241 = vadd.f32 %v5156, %v5225
    %v5242 = vadd.f32 %v5158, %v5226
    %v5243 = vadd.f32 %v5161, %v5227
    %v5244 = vadd.f32 %v5163, %v5228
    %v5245 = vmul.f32 %v5229, 0.7978846
    %v5246 = vmul.f32 %v5230, 0.7978846
    %v5247 = vmul.f32 %v5231, 0.7978846
    %v5248 = vmul.f32 %v5232, 0.7978846
    %v5249 = vmul.f32 %v5233, 0.7978846
    %v5250 = vmul.f32 %v5234, 0.7978846
    %v5251 = vmul.f32 %v5235, 0.7978846
    %v5252 = vmul.f32 %v5236, 0.7978846
    %v5253 = vmul.f32 %v5237, 0.7978846
    %v5254 = vmul.f32 %v5238, 0.7978846
    %v5255 = vmul.f32 %v5239, 0.7978846
    %v5256 = vmul.f32 %v5240, 0.7978846
    %v5257 = vmul.f32 %v5241, 0.7978846
    %v5258 = vmul.f32 %v5242, 0.7978846
    %v5259 = vmul.f32 %v5243, 0.7978846
    %v5260 = vmul.f32 %v5244, 0.7978846
    %v5261 = vtanh.pop %v5245
    %v5262 = vtanh.pop %v5246
    %v5263 = vtanh.pop %v5247
    %v5264 = vtanh.pop %v5248
    %v5265 = vtanh.pop %v5249
    %v5266 = vtanh.pop %v5250
    %v5267 = vtanh.pop %v5251
    %v5268 = vtanh.pop %v5252
    %v5269 = vtanh.pop %v5253
    %v5270 = vtanh.pop %v5254
    %v5271 = vtanh.pop %v5255
    %v5272 = vtanh.pop %v5256
    %v5273 = vtanh.pop %v5257
    %v5274 = vtanh.pop %v5258
    %v5275 = vtanh.pop %v5259
    %v5276 = vtanh.pop %v5260
    %v5277 = vadd.f32 %v5261, 1.0
    %v5278 = vadd.f32 %v5262, 1.0
    %v5279 = vadd.f32 %v5263, 1.0
    %v5280 = vadd.f32 %v5264, 1.0
    %v5281 = vadd.f32 %v5265, 1.0
    %v5282 = vadd.f32 %v5266, 1.0
    %v5283 = vadd.f32 %v5267, 1.0
    %v5284 = vadd.f32 %v5268, 1.0
    %v5285 = vadd.f32 %v5269, 1.0
    %v5286 = vadd.f32 %v5270, 1.0
    %v5287 = vadd.f32 %v5271, 1.0
    %v5288 = vadd.f32 %v5272, 1.0
    %v5289 = vadd.f32 %v5273, 1.0
    %v5290 = vadd.f32 %v5274, 1.0
    %v5291 = vadd.f32 %v5275, 1.0
    %v5292 = vadd.f32 %v5276, 1.0
    %v5293 = vmul.f32 %v5165, %v5277
    %v5294 = vmul.f32 %v5166, %v5278
    %v5295 = vmul.f32 %v5167, %v5279
    %v5296 = vmul.f32 %v5168, %v5280
    %v5297 = vmul.f32 %v5169, %v5281
    %v5298 = vmul.f32 %v5170, %v5282
    %v5299 = vmul.f32 %v5171, %v5283
    %v5300 = vmul.f32 %v5172, %v5284
    %v5301 = vmul.f32 %v5173, %v5285
    %v5302 = vmul.f32 %v5174, %v5286
    %v5303 = vmul.f32 %v5175, %v5287
    %v5304 = vmul.f32 %v5176, %v5288
    %v5305 = vmul.f32 %v5177, %v5289
    %v5306 = vmul.f32 %v5178, %v5290
    %v5307 = vmul.f32 %v5179, %v5291
    %v5308 = vmul.f32 %v5180, %v5292
    %v5309 = vpack.c.bf16 %v5294, %v5293
    %v5310 = vpack.c.bf16 %v5296, %v5295
    %v5311 = vpack.c.bf16 %v5298, %v5297
    %v5312 = vpack.c.bf16 %v5300, %v5299
    %v5313 = vpack.c.bf16 %v5302, %v5301
    %v5314 = vpack.c.bf16 %v5304, %v5303
    %v5315 = vpack.c.bf16 %v5306, %v5305
    %v5316 = vpack.c.bf16 %v5308, %v5307
    %v5333 = vunpack.c.l.b16 %v598
    %v5334 = vunpack.c.l.b16 %v599
    %v5335 = vunpack.c.l.b16 %v600
    %v5336 = vunpack.c.l.b16 %v601
    %v5337 = vunpack.c.l.b16 %v602
    %v5338 = vunpack.c.l.b16 %v603
    %v5339 = vunpack.c.l.b16 %v604
    %v5340 = vunpack.c.l.b16 %v605
    %v5341 = vunpack.c.l.b16 %v606
    %v5342 = vunpack.c.l.b16 %v607
    %v5343 = vunpack.c.l.b16 %v608
    %v5344 = vunpack.c.l.b16 %v609
    %v5345 = vunpack.c.l.b16 %v610
    %v5346 = vunpack.c.l.b16 %v611
    %v5347 = vunpack.c.l.b16 %v612
    %v5348 = vunpack.c.l.b16 %v613
    %v5349 = vpack.c.b16 %v5334, %v5333
    %v5350 = vpack.c.b16 %v5336, %v5335
    %v5351 = vpack.c.b16 %v5338, %v5337
    %v5352 = vpack.c.b16 %v5340, %v5339
    %v5353 = vpack.c.b16 %v5342, %v5341
    %v5354 = vpack.c.b16 %v5344, %v5343
    %v5355 = vpack.c.b16 %v5346, %v5345
    %v5356 = vpack.c.b16 %v5348, %v5347
    %5365 = vmatpush.bf16.msra.mxu0 %v5356
    %5366 = vmatpush.bf16.msra.mxu0 %v5355
    %5367 = vmatpush.bf16.msra.mxu0 %v5354
    %5368 = vmatpush.bf16.msra.mxu0 %v5353
    %5369 = vmatpush.bf16.msra.mxu0 %v5352
    %5370 = vmatpush.bf16.msra.mxu0 %v5351
    %5371 = vmatpush.bf16.msra.mxu0 %v5350
    %5372 = vmatpush.bf16.msra.mxu0 %v5349
    %5373 = vmatmul.bf16.gmra.mxu0 %v5309
    %v5374 = vpop.f32.mrf.mxu0
    %v5375 = vadd.f32 0.0, %v5374
    %v5376 = vpop.f32.mrf.mxu0
    %v5377 = vadd.f32 0.0, %v5376
    %5378 = vmatmul.bf16.gmra.mxu0 %v5310
    %v5379 = vpop.f32.mrf.mxu0
    %v5380 = vadd.f32 0.0, %v5379
    %v5381 = vpop.f32.mrf.mxu0
    %v5382 = vadd.f32 0.0, %v5381
    %5383 = vmatmul.bf16.gmra.mxu0 %v5311
    %v5384 = vpop.f32.mrf.mxu0
    %v5385 = vadd.f32 0.0, %v5384
    %v5386 = vpop.f32.mrf.mxu0
    %v5387 = vadd.f32 0.0, %v5386
    %5388 = vmatmul.bf16.gmra.mxu0 %v5312
    %v5389 = vpop.f32.mrf.mxu0
    %v5390 = vadd.f32 0.0, %v5389
    %v5391 = vpop.f32.mrf.mxu0
    %v5392 = vadd.f32 0.0, %v5391
    %5393 = vmatmul.bf16.gmra.mxu0 %v5313
    %v5394 = vpop.f32.mrf.mxu0
    %v5395 = vadd.f32 0.0, %v5394
    %v5396 = vpop.f32.mrf.mxu0
    %v5397 = vadd.f32 0.0, %v5396
    %5398 = vmatmul.bf16.gmra.mxu0 %v5314
    %v5399 = vpop.f32.mrf.mxu0
    %v5400 = vadd.f32 0.0, %v5399
    %v5401 = vpop.f32.mrf.mxu0
    %v5402 = vadd.f32 0.0, %v5401
    %5403 = vmatmul.bf16.gmra.mxu0 %v5315
    %v5404 = vpop.f32.mrf.mxu0
    %v5405 = vadd.f32 0.0, %v5404
    %v5406 = vpop.f32.mrf.mxu0
    %v5407 = vadd.f32 0.0, %v5406
    %5408 = vmatmul.bf16.gmra.mxu0 %v5316
    %v5409 = vpop.f32.mrf.mxu0
    %v5410 = vadd.f32 0.0, %v5409
    %v5411 = vpop.f32.mrf.mxu0
    %v5412 = vadd.f32 0.0, %v5411
    %5413 = vdwg.mxu0
    %v5414 = vadd.f32 %v4663, %v5375
    %v5415 = vadd.f32 %v4664, %v5377
    %v5416 = vadd.f32 %v4665, %v5380
    %v5417 = vadd.f32 %v4666, %v5382
    %v5418 = vadd.f32 %v4667, %v5385
    %v5419 = vadd.f32 %v4668, %v5387
    %v5420 = vadd.f32 %v4669, %v5390
    %v5421 = vadd.f32 %v4670, %v5392
    %v5422 = vadd.f32 %v4671, %v5395
    %v5423 = vadd.f32 %v4672, %v5397
    %v5424 = vadd.f32 %v4673, %v5400
    %v5425 = vadd.f32 %v4674, %v5402
    %v5426 = vadd.f32 %v4675, %v5405
    %v5427 = vadd.f32 %v4676, %v5407
    %v5428 = vadd.f32 %v4677, %v5410
    %v5429 = vadd.f32 %v4678, %v5412
    %v5431 = vperm.slane %v614, 0
    %v5433 = vadd.f32 %v5414, %v5431
    %v5434 = vadd.f32 %v5415, %v5431
    %v5435 = vadd.f32 %v5416, %v5431
    %v5436 = vadd.f32 %v5417, %v5431
    %v5437 = vadd.f32 %v5418, %v5431
    %v5438 = vadd.f32 %v5419, %v5431
    %v5439 = vadd.f32 %v5420, %v5431
    %v5440 = vadd.f32 %v5421, %v5431
    %v5441 = vadd.f32 %v5422, %v5431
    %v5442 = vadd.f32 %v5423, %v5431
    %v5443 = vadd.f32 %v5424, %v5431
    %v5444 = vadd.f32 %v5425, %v5431
    %v5445 = vadd.f32 %v5426, %v5431
    %v5446 = vadd.f32 %v5427, %v5431
    %v5447 = vadd.f32 %v5428, %v5431
    %v5448 = vadd.f32 %v5429, %v5431
    %v5449 = vld [vmem:[%s9] sm:$0xff]
    %v5450 = vld [vmem:[%s9 + $0x8] sm:$0xff]
    %v5451 = vld [vmem:[%s9 + $0x10] sm:$0xff]
    %v5452 = vld [vmem:[%s9 + $0x18] sm:$0xff]
    %v5453 = vld [vmem:[%s9 + $0x20] sm:$0xff]
    %v5454 = vld [vmem:[%s9 + $0x28] sm:$0xff]
    %v5455 = vld [vmem:[%s9 + $0x30] sm:$0xff]
    %v5456 = vld [vmem:[%s9 + $0x38] sm:$0xff]
    %v5457 = vsel %vm729, %v1844, 0.0
    %5458 = vadd.xlane.f32.xlu0 %v5457
    %v5459 = vpop.xlane.xlu0 %5458
    %v5460 = vsel %vm729, %v1845, 0.0
    %5461 = vadd.xlane.f32.xlu0 %v5460
    %v5462 = vpop.xlane.xlu0 %5461
    %v5463 = vsel %vm729, %v1846, 0.0
    %5464 = vadd.xlane.f32.xlu0 %v5463
    %v5465 = vpop.xlane.xlu0 %5464
    %v5466 = vsel %vm729, %v1847, 0.0
    %5467 = vadd.xlane.f32.xlu0 %v5466
    %v5468 = vpop.xlane.xlu0 %5467
    %v5469 = vmul.f32 %v5459, %v748
    %v5470 = vmul.f32 %v5462, %v748
    %v5471 = vmul.f32 %v5465, %v748
    %v5472 = vmul.f32 %v5468, %v748
    %v5473 = vsub.f32 %v1844, %v5469
    %v5474 = vsub.f32 %v1845, %v5470
    %v5475 = vsub.f32 %v1846, %v5471
    %v5476 = vsub.f32 %v1847, %v5472
    %v5477 = vmul.f32 %v5473, %v5473
    %v5478 = vmul.f32 %v5474, %v5474
    %v5479 = vmul.f32 %v5475, %v5475
    %v5480 = vmul.f32 %v5476, %v5476
    %v5481 = vsel %vm729, %v5477, 0.0
    %5482 = vadd.xlane.f32.xlu0 %v5481
    %v5483 = vpop.xlane.xlu0 %5482
    %v5484 = vsel %vm729, %v5478, 0.0
    %5485 = vadd.xlane.f32.xlu0 %v5484
    %v5486 = vpop.xlane.xlu0 %5485
    %v5487 = vsel %vm729, %v5479, 0.0
    %5488 = vadd.xlane.f32.xlu0 %v5487
    %v5489 = vpop.xlane.xlu0 %5488
    %v5490 = vsel %vm729, %v5480, 0.0
    %5491 = vadd.xlane.f32.xlu0 %v5490
    %v5492 = vpop.xlane.xlu0 %5491
    %v5493 = vmul.f32 %v5483, %v748
    %v5494 = vmul.f32 %v5486, %v748
    %v5495 = vmul.f32 %v5489, %v748
    %v5496 = vmul.f32 %v5492, %v748
    %v5497 = vadd.f32 %v5493, 1e-05
    %v5498 = vadd.f32 %v5494, 1e-05
    %v5499 = vadd.f32 %v5495, 1e-05
    %v5500 = vadd.f32 %v5496, 1e-05
    %v5501 = vrsqrt.pop %v5497
    %v5502 = vmul.f32 %v5501, %v5497
    %v5503 = vmul.f32 %v5502, %v5501
    %v5504 = vmul.f32 0.5, %v5503
    %v5505 = vsub.f32 1.5, %v5504
    %v5506 = vmul.f32 %v5501, %v5505
    %vm5507 = vweird.f32 %v5497
    %vm5508 = vweird.f32 %v5501
    %vm5509 = vmor %vm5507, %vm5508
    %v5510 = vsel %vm5509, %v5501, %v5506
    %v5511 = vrsqrt.pop %v5498
    %v5512 = vmul.f32 %v5511, %v5498
    %v5513 = vmul.f32 %v5512, %v5511
    %v5514 = vmul.f32 0.5, %v5513
    %v5515 = vsub.f32 1.5, %v5514
    %v5516 = vmul.f32 %v5511, %v5515
    %vm5517 = vweird.f32 %v5498
    %vm5518 = vweird.f32 %v5511
    %vm5519 = vmor %vm5517, %vm5518
    %v5520 = vsel %vm5519, %v5511, %v5516
    %v5521 = vrsqrt.pop %v5499
    %v5522 = vmul.f32 %v5521, %v5499
    %v5523 = vmul.f32 %v5522, %v5521
    %v5524 = vmul.f32 0.5, %v5523
    %v5525 = vsub.f32 1.5, %v5524
    %v5526 = vmul.f32 %v5521, %v5525
    %vm5527 = vweird.f32 %v5499
    %vm5528 = vweird.f32 %v5521
    %vm5529 = vmor %vm5527, %vm5528
    %v5530 = vsel %vm5529, %v5521, %v5526
    %v5531 = vrsqrt.pop %v5500
    %v5532 = vmul.f32 %v5531, %v5500
    %v5533 = vmul.f32 %v5532, %v5531
    %v5534 = vmul.f32 0.5, %v5533
    %v5535 = vsub.f32 1.5, %v5534
    %v5536 = vmul.f32 %v5531, %v5535
    %vm5537 = vweird.f32 %v5500
    %vm5538 = vweird.f32 %v5531
    %vm5539 = vmor %vm5537, %vm5538
    %v5540 = vsel %vm5539, %v5531, %v5536
    %v5541 = vmul.f32 %v5473, %v5510
    %v5542 = vmul.f32 %v5474, %v5520
    %v5543 = vmul.f32 %v5475, %v5530
    %v5544 = vmul.f32 %v5476, %v5540
    %v5546 = vperm.slane %v615, 0
    %v5548 = vmul.f32 %v5541, %v5546
    %v5549 = vmul.f32 %v5542, %v5546
    %v5550 = vmul.f32 %v5543, %v5546
    %v5551 = vmul.f32 %v5544, %v5546
    %v5553 = vperm.slane %v616, 0
    %v5555 = vadd.f32 %v5548, %v5553
    %v5556 = vadd.f32 %v5549, %v5553
    %v5557 = vadd.f32 %v5550, %v5553
    %v5558 = vadd.f32 %v5551, %v5553
    %v5559 = vsel %vm729, %v5433, 0.0
    %5560 = vadd.xlane.f32.xlu0 %v5559
    %v5561 = vpop.xlane.xlu0 %5560
    %v5562 = vsel %vm729, %v5434, 0.0
    %5563 = vadd.xlane.f32.xlu0 %v5562
    %v5564 = vpop.xlane.xlu0 %5563
    %v5565 = vsel %vm729, %v5435, 0.0
    %5566 = vadd.xlane.f32.xlu0 %v5565
    %v5567 = vpop.xlane.xlu0 %5566
    %v5568 = vsel %vm729, %v5436, 0.0
    %5569 = vadd.xlane.f32.xlu0 %v5568
    %v5570 = vpop.xlane.xlu0 %5569
    %v5571 = vsel %vm729, %v5437, 0.0
    %5572 = vadd.xlane.f32.xlu0 %v5571
    %v5573 = vpop.xlane.xlu0 %5572
    %v5574 = vsel %vm729, %v5438, 0.0
    %5575 = vadd.xlane.f32.xlu0 %v5574
    %v5576 = vpop.xlane.xlu0 %5575
    %v5577 = vsel %vm729, %v5439, 0.0
    %5578 = vadd.xlane.f32.xlu0 %v5577
    %v5579 = vpop.xlane.xlu0 %5578
    %v5580 = vsel %vm729, %v5440, 0.0
    %5581 = vadd.xlane.f32.xlu0 %v5580
    %v5582 = vpop.xlane.xlu0 %5581
    %v5583 = vsel %vm729, %v5441, 0.0
    %5584 = vadd.xlane.f32.xlu0 %v5583
    %v5585 = vpop.xlane.xlu0 %5584
    %v5586 = vsel %vm729, %v5442, 0.0
    %5587 = vadd.xlane.f32.xlu0 %v5586
    %v5588 = vpop.xlane.xlu0 %5587
    %v5589 = vsel %vm729, %v5443, 0.0
    %5590 = vadd.xlane.f32.xlu0 %v5589
    %v5591 = vpop.xlane.xlu0 %5590
    %v5592 = vsel %vm729, %v5444, 0.0
    %5593 = vadd.xlane.f32.xlu0 %v5592
    %v5594 = vpop.xlane.xlu0 %5593
    %v5595 = vsel %vm729, %v5445, 0.0
    %5596 = vadd.xlane.f32.xlu0 %v5595
    %v5597 = vpop.xlane.xlu0 %5596
    %v5598 = vsel %vm729, %v5446, 0.0
    %5599 = vadd.xlane.f32.xlu0 %v5598
    %v5600 = vpop.xlane.xlu0 %5599
    %v5601 = vsel %vm729, %v5447, 0.0
    %5602 = vadd.xlane.f32.xlu0 %v5601
    %v5603 = vpop.xlane.xlu0 %5602
    %v5604 = vsel %vm729, %v5448, 0.0
    %5605 = vadd.xlane.f32.xlu0 %v5604
    %v5606 = vpop.xlane.xlu0 %5605
    %v5607 = vmul.f32 %v5561, %v748
    %v5608 = vmul.f32 %v5564, %v748
    %v5609 = vmul.f32 %v5567, %v748
    %v5610 = vmul.f32 %v5570, %v748
    %v5611 = vmul.f32 %v5573, %v748
    %v5612 = vmul.f32 %v5576, %v748
    %v5613 = vmul.f32 %v5579, %v748
    %v5614 = vmul.f32 %v5582, %v748
    %v5615 = vmul.f32 %v5585, %v748
    %v5616 = vmul.f32 %v5588, %v748
    %v5617 = vmul.f32 %v5591, %v748
    %v5618 = vmul.f32 %v5594, %v748
    %v5619 = vmul.f32 %v5597, %v748
    %v5620 = vmul.f32 %v5600, %v748
    %v5621 = vmul.f32 %v5603, %v748
    %v5622 = vmul.f32 %v5606, %v748
    %v5623 = vsub.f32 %v5433, %v5607
    %v5624 = vsub.f32 %v5434, %v5608
    %v5625 = vsub.f32 %v5435, %v5609
    %v5626 = vsub.f32 %v5436, %v5610
    %v5627 = vsub.f32 %v5437, %v5611
    %v5628 = vsub.f32 %v5438, %v5612
    %v5629 = vsub.f32 %v5439, %v5613
    %v5630 = vsub.f32 %v5440, %v5614
    %v5631 = vsub.f32 %v5441, %v5615
    %v5632 = vsub.f32 %v5442, %v5616
    %v5633 = vsub.f32 %v5443, %v5617
    %v5634 = vsub.f32 %v5444, %v5618
    %v5635 = vsub.f32 %v5445, %v5619
    %v5636 = vsub.f32 %v5446, %v5620
    %v5637 = vsub.f32 %v5447, %v5621
    %v5638 = vsub.f32 %v5448, %v5622
    %v5639 = vmul.f32 %v5623, %v5623
    %v5640 = vmul.f32 %v5624, %v5624
    %v5641 = vmul.f32 %v5625, %v5625
    %v5642 = vmul.f32 %v5626, %v5626
    %v5643 = vmul.f32 %v5627, %v5627
    %v5644 = vmul.f32 %v5628, %v5628
    %v5645 = vmul.f32 %v5629, %v5629
    %v5646 = vmul.f32 %v5630, %v5630
    %v5647 = vmul.f32 %v5631, %v5631
    %v5648 = vmul.f32 %v5632, %v5632
    %v5649 = vmul.f32 %v5633, %v5633
    %v5650 = vmul.f32 %v5634, %v5634
    %v5651 = vmul.f32 %v5635, %v5635
    %v5652 = vmul.f32 %v5636, %v5636
    %v5653 = vmul.f32 %v5637, %v5637
    %v5654 = vmul.f32 %v5638, %v5638
    %v5655 = vsel %vm729, %v5639, 0.0
    %5656 = vadd.xlane.f32.xlu0 %v5655
    %v5657 = vpop.xlane.xlu0 %5656
    %v5658 = vsel %vm729, %v5640, 0.0
    %5659 = vadd.xlane.f32.xlu0 %v5658
    %v5660 = vpop.xlane.xlu0 %5659
    %v5661 = vsel %vm729, %v5641, 0.0
    %5662 = vadd.xlane.f32.xlu0 %v5661
    %v5663 = vpop.xlane.xlu0 %5662
    %v5664 = vsel %vm729, %v5642, 0.0
    %5665 = vadd.xlane.f32.xlu0 %v5664
    %v5666 = vpop.xlane.xlu0 %5665
    %v5667 = vsel %vm729, %v5643, 0.0
    %5668 = vadd.xlane.f32.xlu0 %v5667
    %v5669 = vpop.xlane.xlu0 %5668
    %v5670 = vsel %vm729, %v5644, 0.0
    %5671 = vadd.xlane.f32.xlu0 %v5670
    %v5672 = vpop.xlane.xlu0 %5671
    %v5673 = vsel %vm729, %v5645, 0.0
    %5674 = vadd.xlane.f32.xlu0 %v5673
    %v5675 = vpop.xlane.xlu0 %5674
    %v5676 = vsel %vm729, %v5646, 0.0
    %5677 = vadd.xlane.f32.xlu0 %v5676
    %v5678 = vpop.xlane.xlu0 %5677
    %v5679 = vsel %vm729, %v5647, 0.0
    %5680 = vadd.xlane.f32.xlu0 %v5679
    %v5681 = vpop.xlane.xlu0 %5680
    %v5682 = vsel %vm729, %v5648, 0.0
    %5683 = vadd.xlane.f32.xlu0 %v5682
    %v5684 = vpop.xlane.xlu0 %5683
    %v5685 = vsel %vm729, %v5649, 0.0
    %5686 = vadd.xlane.f32.xlu0 %v5685
    %v5687 = vpop.xlane.xlu0 %5686
    %v5688 = vsel %vm729, %v5650, 0.0
    %5689 = vadd.xlane.f32.xlu0 %v5688
    %v5690 = vpop.xlane.xlu0 %5689
    %v5691 = vsel %vm729, %v5651, 0.0
    %5692 = vadd.xlane.f32.xlu0 %v5691
    %v5693 = vpop.xlane.xlu0 %5692
    %v5694 = vsel %vm729, %v5652, 0.0
    %5695 = vadd.xlane.f32.xlu0 %v5694
    %v5696 = vpop.xlane.xlu0 %5695
    %v5697 = vsel %vm729, %v5653, 0.0
    %5698 = vadd.xlane.f32.xlu0 %v5697
    %v5699 = vpop.xlane.xlu0 %5698
    %v5700 = vsel %vm729, %v5654, 0.0
    %5701 = vadd.xlane.f32.xlu0 %v5700
    %v5702 = vpop.xlane.xlu0 %5701
    %v5703 = vmul.f32 %v5657, %v748
    %v5704 = vmul.f32 %v5660, %v748
    %v5705 = vmul.f32 %v5663, %v748
    %v5706 = vmul.f32 %v5666, %v748
    %v5707 = vmul.f32 %v5669, %v748
    %v5708 = vmul.f32 %v5672, %v748
    %v5709 = vmul.f32 %v5675, %v748
    %v5710 = vmul.f32 %v5678, %v748
    %v5711 = vmul.f32 %v5681, %v748
    %v5712 = vmul.f32 %v5684, %v748
    %v5713 = vmul.f32 %v5687, %v748
    %v5714 = vmul.f32 %v5690, %v748
    %v5715 = vmul.f32 %v5693, %v748
    %v5716 = vmul.f32 %v5696, %v748
    %v5717 = vmul.f32 %v5699, %v748
    %v5718 = vmul.f32 %v5702, %v748
    %v5719 = vadd.f32 %v5703, 1e-05
    %v5720 = vadd.f32 %v5704, 1e-05
    %v5721 = vadd.f32 %v5705, 1e-05
    %v5722 = vadd.f32 %v5706, 1e-05
    %v5723 = vadd.f32 %v5707, 1e-05
    %v5724 = vadd.f32 %v5708, 1e-05
    %v5725 = vadd.f32 %v5709, 1e-05
    %v5726 = vadd.f32 %v5710, 1e-05
    %v5727 = vadd.f32 %v5711, 1e-05
    %v5728 = vadd.f32 %v5712, 1e-05
    %v5729 = vadd.f32 %v5713, 1e-05
    %v5730 = vadd.f32 %v5714, 1e-05
    %v5731 = vadd.f32 %v5715, 1e-05
    %v5732 = vadd.f32 %v5716, 1e-05
    %v5733 = vadd.f32 %v5717, 1e-05
    %v5734 = vadd.f32 %v5718, 1e-05
    %v5735 = vrsqrt.pop %v5719
    %v5736 = vmul.f32 %v5735, %v5719
    %v5737 = vmul.f32 %v5736, %v5735
    %v5738 = vmul.f32 0.5, %v5737
    %v5739 = vsub.f32 1.5, %v5738
    %v5740 = vmul.f32 %v5735, %v5739
    %vm5741 = vweird.f32 %v5719
    %vm5742 = vweird.f32 %v5735
    %vm5743 = vmor %vm5741, %vm5742
    %v5744 = vsel %vm5743, %v5735, %v5740
    %v5745 = vrsqrt.pop %v5720
    %v5746 = vmul.f32 %v5745, %v5720
    %v5747 = vmul.f32 %v5746, %v5745
    %v5748 = vmul.f32 0.5, %v5747
    %v5749 = vsub.f32 1.5, %v5748
    %v5750 = vmul.f32 %v5745, %v5749
    %vm5751 = vweird.f32 %v5720
    %vm5752 = vweird.f32 %v5745
    %vm5753 = vmor %vm5751, %vm5752
    %v5754 = vsel %vm5753, %v5745, %v5750
    %v5755 = vrsqrt.pop %v5721
    %v5756 = vmul.f32 %v5755, %v5721
    %v5757 = vmul.f32 %v5756, %v5755
    %v5758 = vmul.f32 0.5, %v5757
    %v5759 = vsub.f32 1.5, %v5758
    %v5760 = vmul.f32 %v5755, %v5759
    %vm5761 = vweird.f32 %v5721
    %vm5762 = vweird.f32 %v5755
    %vm5763 = vmor %vm5761, %vm5762
    %v5764 = vsel %vm5763, %v5755, %v5760
    %v5765 = vrsqrt.pop %v5722
    %v5766 = vmul.f32 %v5765, %v5722
    %v5767 = vmul.f32 %v5766, %v5765
    %v5768 = vmul.f32 0.5, %v5767
    %v5769 = vsub.f32 1.5, %v5768
    %v5770 = vmul.f32 %v5765, %v5769
    %vm5771 = vweird.f32 %v5722
    %vm5772 = vweird.f32 %v5765
    %vm5773 = vmor %vm5771, %vm5772
    %v5774 = vsel %vm5773, %v5765, %v5770
    %v5775 = vrsqrt.pop %v5723
    %v5776 = vmul.f32 %v5775, %v5723
    %v5777 = vmul.f32 %v5776, %v5775
    %v5778 = vmul.f32 0.5, %v5777
    %v5779 = vsub.f32 1.5, %v5778
    %v5780 = vmul.f32 %v5775, %v5779
    %vm5781 = vweird.f32 %v5723
    %vm5782 = vweird.f32 %v5775
    %vm5783 = vmor %vm5781, %vm5782
    %v5784 = vsel %vm5783, %v5775, %v5780
    %v5785 = vrsqrt.pop %v5724
    %v5786 = vmul.f32 %v5785, %v5724
    %v5787 = vmul.f32 %v5786, %v5785
    %v5788 = vmul.f32 0.5, %v5787
    %v5789 = vsub.f32 1.5, %v5788
    %v5790 = vmul.f32 %v5785, %v5789
    %vm5791 = vweird.f32 %v5724
    %vm5792 = vweird.f32 %v5785
    %vm5793 = vmor %vm5791, %vm5792
    %v5794 = vsel %vm5793, %v5785, %v5790
    %v5795 = vrsqrt.pop %v5725
    %v5796 = vmul.f32 %v5795, %v5725
    %v5797 = vmul.f32 %v5796, %v5795
    %v5798 = vmul.f32 0.5, %v5797
    %v5799 = vsub.f32 1.5, %v5798
    %v5800 = vmul.f32 %v5795, %v5799
    %vm5801 = vweird.f32 %v5725
    %vm5802 = vweird.f32 %v5795
    %vm5803 = vmor %vm5801, %vm5802
    %v5804 = vsel %vm5803, %v5795, %v5800
    %v5805 = vrsqrt.pop %v5726
    %v5806 = vmul.f32 %v5805, %v5726
    %v5807 = vmul.f32 %v5806, %v5805
    %v5808 = vmul.f32 0.5, %v5807
    %v5809 = vsub.f32 1.5, %v5808
    %v5810 = vmul.f32 %v5805, %v5809
    %vm5811 = vweird.f32 %v5726
    %vm5812 = vweird.f32 %v5805
    %vm5813 = vmor %vm5811, %vm5812
    %v5814 = vsel %vm5813, %v5805, %v5810
    %v5815 = vrsqrt.pop %v5727
    %v5816 = vmul.f32 %v5815, %v5727
    %v5817 = vmul.f32 %v5816, %v5815
    %v5818 = vmul.f32 0.5, %v5817
    %v5819 = vsub.f32 1.5, %v5818
    %v5820 = vmul.f32 %v5815, %v5819
    %vm5821 = vweird.f32 %v5727
    %vm5822 = vweird.f32 %v5815
    %vm5823 = vmor %vm5821, %vm5822
    %v5824 = vsel %vm5823, %v5815, %v5820
    %v5825 = vrsqrt.pop %v5728
    %v5826 = vmul.f32 %v5825, %v5728
    %v5827 = vmul.f32 %v5826, %v5825
    %v5828 = vmul.f32 0.5, %v5827
    %v5829 = vsub.f32 1.5, %v5828
    %v5830 = vmul.f32 %v5825, %v5829
    %vm5831 = vweird.f32 %v5728
    %vm5832 = vweird.f32 %v5825
    %vm5833 = vmor %vm5831, %vm5832
    %v5834 = vsel %vm5833, %v5825, %v5830
    %v5835 = vrsqrt.pop %v5729
    %v5836 = vmul.f32 %v5835, %v5729
    %v5837 = vmul.f32 %v5836, %v5835
    %v5838 = vmul.f32 0.5, %v5837
    %v5839 = vsub.f32 1.5, %v5838
    %v5840 = vmul.f32 %v5835, %v5839
    %vm5841 = vweird.f32 %v5729
    %vm5842 = vweird.f32 %v5835
    %vm5843 = vmor %vm5841, %vm5842
    %v5844 = vsel %vm5843, %v5835, %v5840
    %v5845 = vrsqrt.pop %v5730
    %v5846 = vmul.f32 %v5845, %v5730
    %v5847 = vmul.f32 %v5846, %v5845
    %v5848 = vmul.f32 0.5, %v5847
    %v5849 = vsub.f32 1.5, %v5848
    %v5850 = vmul.f32 %v5845, %v5849
    %vm5851 = vweird.f32 %v5730
    %vm5852 = vweird.f32 %v5845
    %vm5853 = vmor %vm5851, %vm5852
    %v5854 = vsel %vm5853, %v5845, %v5850
    %v5855 = vrsqrt.pop %v5731
    %v5856 = vmul.f32 %v5855, %v5731
    %v5857 = vmul.f32 %v5856, %v5855
    %v5858 = vmul.f32 0.5, %v5857
    %v5859 = vsub.f32 1.5, %v5858
    %v5860 = vmul.f32 %v5855, %v5859
    %vm5861 = vweird.f32 %v5731
    %vm5862 = vweird.f32 %v5855
    %vm5863 = vmor %vm5861, %vm5862
    %v5864 = vsel %vm5863, %v5855, %v5860
    %v5865 = vrsqrt.pop %v5732
    %v5866 = vmul.f32 %v5865, %v5732
    %v5867 = vmul.f32 %v5866, %v5865
    %v5868 = vmul.f32 0.5, %v5867
    %v5869 = vsub.f32 1.5, %v5868
    %v5870 = vmul.f32 %v5865, %v5869
    %vm5871 = vweird.f32 %v5732
    %vm5872 = vweird.f32 %v5865
    %vm5873 = vmor %vm5871, %vm5872
    %v5874 = vsel %vm5873, %v5865, %v5870
    %v5875 = vrsqrt.pop %v5733
    %v5876 = vmul.f32 %v5875, %v5733
    %v5877 = vmul.f32 %v5876, %v5875
    %v5878 = vmul.f32 0.5, %v5877
    %v5879 = vsub.f32 1.5, %v5878
    %v5880 = vmul.f32 %v5875, %v5879
    %vm5881 = vweird.f32 %v5733
    %vm5882 = vweird.f32 %v5875
    %vm5883 = vmor %vm5881, %vm5882
    %v5884 = vsel %vm5883, %v5875, %v5880
    %v5885 = vrsqrt.pop %v5734
    %v5886 = vmul.f32 %v5885, %v5734
    %v5887 = vmul.f32 %v5886, %v5885
    %v5888 = vmul.f32 0.5, %v5887
    %v5889 = vsub.f32 1.5, %v5888
    %v5890 = vmul.f32 %v5885, %v5889
    %vm5891 = vweird.f32 %v5734
    %vm5892 = vweird.f32 %v5885
    %vm5893 = vmor %vm5891, %vm5892
    %v5894 = vsel %vm5893, %v5885, %v5890
    %v5895 = vmul.f32 %v5623, %v5744
    %v5896 = vmul.f32 %v5624, %v5754
    %v5897 = vmul.f32 %v5625, %v5764
    %v5898 = vmul.f32 %v5626, %v5774
    %v5899 = vmul.f32 %v5627, %v5784
    %v5900 = vmul.f32 %v5628, %v5794
    %v5901 = vmul.f32 %v5629, %v5804
    %v5902 = vmul.f32 %v5630, %v5814
    %v5903 = vmul.f32 %v5631, %v5824
    %v5904 = vmul.f32 %v5632, %v5834
    %v5905 = vmul.f32 %v5633, %v5844
    %v5906 = vmul.f32 %v5634, %v5854
    %v5907 = vmul.f32 %v5635, %v5864
    %v5908 = vmul.f32 %v5636, %v5874
    %v5909 = vmul.f32 %v5637, %v5884
    %v5910 = vmul.f32 %v5638, %v5894
    %v5912 = vperm.slane %v617, 0
    %v5914 = vmul.f32 %v5895, %v5912
    %v5915 = vmul.f32 %v5896, %v5912
    %v5916 = vmul.f32 %v5897, %v5912
    %v5917 = vmul.f32 %v5898, %v5912
    %v5918 = vmul.f32 %v5899, %v5912
    %v5919 = vmul.f32 %v5900, %v5912
    %v5920 = vmul.f32 %v5901, %v5912
    %v5921 = vmul.f32 %v5902, %v5912
    %v5922 = vmul.f32 %v5903, %v5912
    %v5923 = vmul.f32 %v5904, %v5912
    %v5924 = vmul.f32 %v5905, %v5912
    %v5925 = vmul.f32 %v5906, %v5912
    %v5926 = vmul.f32 %v5907, %v5912
    %v5927 = vmul.f32 %v5908, %v5912
    %v5928 = vmul.f32 %v5909, %v5912
    %v5929 = vmul.f32 %v5910, %v5912
    %v5931 = vperm.slane %v618, 0
    %v5933 = vadd.f32 %v5914, %v5931
    %v5934 = vadd.f32 %v5915, %v5931
    %v5935 = vadd.f32 %v5916, %v5931
    %v5936 = vadd.f32 %v5917, %v5931
    %v5937 = vadd.f32 %v5918, %v5931
    %v5938 = vadd.f32 %v5919, %v5931
    %v5939 = vadd.f32 %v5920, %v5931
    %v5940 = vadd.f32 %v5921, %v5931
    %v5941 = vadd.f32 %v5922, %v5931
    %v5942 = vadd.f32 %v5923, %v5931
    %v5943 = vadd.f32 %v5924, %v5931
    %v5944 = vadd.f32 %v5925, %v5931
    %v5945 = vadd.f32 %v5926, %v5931
    %v5946 = vadd.f32 %v5927, %v5931
    %v5947 = vadd.f32 %v5928, %v5931
    %v5948 = vadd.f32 %v5929, %v5931
    %v5949 = vpack.c.bf16 %v5556, %v5555
    %v5950 = vpack.c.bf16 %v5558, %v5557
    %v5952 = vperm.slane %v623, 0
    %v5958 = vunpack.c.l.b16 %v619
    %v5959 = vunpack.c.l.b16 %v620
    %v5960 = vunpack.c.l.b16 %v621
    %v5961 = vunpack.c.l.b16 %v622
    %v5962 = vpack.c.b16 %v5959, %v5958
    %v5963 = vpack.c.b16 %v5961, %v5960
    %v5967 = vsel %vm729, %v5949, 0
    %v5970 = vsel %vm729, %v5950, 0
    %5972 = vmatpush.bf16.msra.mxu0 0
    %5973 = vmatpush.bf16.msra.mxu0 0
    %5974 = vmatpush.bf16.msra.mxu0 0
    %5975 = vmatpush.bf16.msra.mxu0 0
    %5976 = vmatpush.bf16.msra.mxu0 0
    %5977 = vmatpush.bf16.msra.mxu0 0
    %5978 = vmatpush.bf16.msra.mxu0 %v5963
    %5979 = vmatpush.bf16.msra.mxu0 %v5962
    %5980 = vmatmul.bf16.gmra.mxu0 %v5967
    %v5981 = vpop.f32.mrf.mxu0
    %v5982 = vadd.f32 %v5952, %v5981
    %v5983 = vpop.f32.mrf.mxu0
    %v5984 = vadd.f32 %v5952, %v5983
    %5985 = vmatmul.bf16.gmra.mxu0 %v5970
    %v5986 = vpop.f32.mrf.mxu0
    %v5987 = vadd.f32 %v5952, %v5986
    %v5988 = vpop.f32.mrf.mxu0
    %v5989 = vadd.f32 %v5952, %v5988
    %5990 = vdwg.mxu0
    %v5991 = vpack.c.bf16 %v5934, %v5933
    %v5992 = vpack.c.bf16 %v5936, %v5935
    %v5993 = vpack.c.bf16 %v5938, %v5937
    %v5994 = vpack.c.bf16 %v5940, %v5939
    %v5995 = vpack.c.bf16 %v5942, %v5941
    %v5996 = vpack.c.bf16 %v5944, %v5943
    %v5997 = vpack.c.bf16 %v5946, %v5945
    %v5998 = vpack.c.bf16 %v5948, %v5947
    %v6000 = vperm.slane %v628, 0
    %v6006 = vunpack.c.l.b16 %v624
    %v6007 = vunpack.c.l.b16 %v625
    %v6008 = vunpack.c.l.b16 %v626
    %v6009 = vunpack.c.l.b16 %v627
    %v6010 = vpack.c.b16 %v6007, %v6006
    %v6011 = vpack.c.b16 %v6009, %v6008
    %v6015 = vsel %vm729, %v5991, 0
    %v6018 = vsel %vm729, %v5992, 0
    %v6021 = vsel %vm729, %v5993, 0
    %v6024 = vsel %vm729, %v5994, 0
    %v6027 = vsel %vm729, %v5995, 0
    %v6030 = vsel %vm729, %v5996, 0
    %v6033 = vsel %vm729, %v5997, 0
    %v6036 = vsel %vm729, %v5998, 0
    %6038 = vmatpush.bf16.msra.mxu0 0
    %6039 = vmatpush.bf16.msra.mxu0 0
    %6040 = vmatpush.bf16.msra.mxu0 0
    %6041 = vmatpush.bf16.msra.mxu0 0
    %6042 = vmatpush.bf16.msra.mxu0 0
    %6043 = vmatpush.bf16.msra.mxu0 0
    %6044 = vmatpush.bf16.msra.mxu0 %v6011
    %6045 = vmatpush.bf16.msra.mxu0 %v6010
    %6046 = vmatmul.bf16.gmra.mxu0 %v6015
    %v6047 = vpop.f32.mrf.mxu0
    %v6048 = vadd.f32 %v6000, %v6047
    %v6049 = vpop.f32.mrf.mxu0
    %v6050 = vadd.f32 %v6000, %v6049
    %6051 = vmatmul.bf16.gmra.mxu0 %v6018
    %v6052 = vpop.f32.mrf.mxu0
    %v6053 = vadd.f32 %v6000, %v6052
    %v6054 = vpop.f32.mrf.mxu0
    %v6055 = vadd.f32 %v6000, %v6054
    %6056 = vmatmul.bf16.gmra.mxu0 %v6021
    %v6057 = vpop.f32.mrf.mxu0
    %v6058 = vadd.f32 %v6000, %v6057
    %v6059 = vpop.f32.mrf.mxu0
    %v6060 = vadd.f32 %v6000, %v6059
    %6061 = vmatmul.bf16.gmra.mxu0 %v6024
    %v6062 = vpop.f32.mrf.mxu0
    %v6063 = vadd.f32 %v6000, %v6062
    %v6064 = vpop.f32.mrf.mxu0
    %v6065 = vadd.f32 %v6000, %v6064
    %6066 = vmatmul.bf16.gmra.mxu0 %v6027
    %v6067 = vpop.f32.mrf.mxu0
    %v6068 = vadd.f32 %v6000, %v6067
    %v6069 = vpop.f32.mrf.mxu0
    %v6070 = vadd.f32 %v6000, %v6069
    %6071 = vmatmul.bf16.gmra.mxu0 %v6030
    %v6072 = vpop.f32.mrf.mxu0
    %v6073 = vadd.f32 %v6000, %v6072
    %v6074 = vpop.f32.mrf.mxu0
    %v6075 = vadd.f32 %v6000, %v6074
    %6076 = vmatmul.bf16.gmra.mxu0 %v6033
    %v6077 = vpop.f32.mrf.mxu0
    %v6078 = vadd.f32 %v6000, %v6077
    %v6079 = vpop.f32.mrf.mxu0
    %v6080 = vadd.f32 %v6000, %v6079
    %6081 = vmatmul.bf16.gmra.mxu0 %v6036
    %v6082 = vpop.f32.mrf.mxu0
    %v6083 = vadd.f32 %v6000, %v6082
    %v6084 = vpop.f32.mrf.mxu0
    %v6085 = vadd.f32 %v6000, %v6084
    %6086 = vdwg.mxu0
    %v6087 = vpack.c.bf16 %v5982, %v5982
    %v6088 = vpack.c.bf16 %v5984, %v5984
    %v6089 = vpack.c.bf16 %v5987, %v5987
    %v6090 = vpack.c.bf16 %v5989, %v5989
    %v6091 = vpack.c.bf16 %v6048, %v6048
    %v6092 = vpack.c.bf16 %v6050, %v6050
    %v6093 = vpack.c.bf16 %v6053, %v6053
    %v6094 = vpack.c.bf16 %v6055, %v6055
    %v6095 = vpack.c.bf16 %v6058, %v6058
    %v6096 = vpack.c.bf16 %v6060, %v6060
    %v6097 = vpack.c.bf16 %v6063, %v6063
    %v6098 = vpack.c.bf16 %v6065, %v6065
    %v6099 = vpack.c.bf16 %v6068, %v6068
    %v6100 = vpack.c.bf16 %v6070, %v6070
    %v6101 = vpack.c.bf16 %v6073, %v6073
    %v6102 = vpack.c.bf16 %v6075, %v6075
    %v6103 = vpack.c.bf16 %v6078, %v6078
    %v6104 = vpack.c.bf16 %v6080, %v6080
    %v6105 = vpack.c.bf16 %v6083, %v6083
    %v6106 = vpack.c.bf16 %v6085, %v6085
    %v6109 = vunpack.c.l.b16 %v6087
    %v6110 = vunpack.c.l.b16 %v6088
    %v6111 = vpack.c.b16 %v6110, %v6109
    %v6120 = vunpack.c.l.b16 %v6091
    %v6121 = vunpack.c.l.b16 %v6092
    %v6122 = vunpack.c.l.b16 %v6093
    %v6123 = vunpack.c.l.b16 %v6094
    %v6124 = vunpack.c.l.b16 %v6095
    %v6125 = vunpack.c.l.b16 %v6096
    %v6126 = vunpack.c.l.b16 %v6097
    %v6127 = vunpack.c.l.b16 %v6098
    %v6128 = vpack.c.b16 %v6121, %v6120
    %v6129 = vpack.c.b16 %v6123, %v6122
    %v6130 = vpack.c.b16 %v6125, %v6124
    %v6131 = vpack.c.b16 %v6127, %v6126
    %v6133 = vsel %vm892, %v6111, 0
    %v6136 = vsel %vm892, %v6128, 0
    %v6139 = vsel %vm892, %v6129, 0
    %v6142 = vsel %vm892, %v6130, 0
    %v6145 = vsel %vm892, %v6131, 0
    %6147 = vmatpush.bf16.xpose.msra.mxu0 0
    %6148 = vmatpush.bf16.xpose.msra.mxu0 0
    %6149 = vmatpush.bf16.xpose.msra.mxu0 0
    %6150 = vmatpush.bf16.xpose.msra.mxu0 0
    %6151 = vmatpush.bf16.xpose.msra.mxu0 %v6145
    %6152 = vmatpush.bf16.xpose.msra.mxu0 %v6142
    %6153 = vmatpush.bf16.xpose.msra.mxu0 %v6139
    %6154 = vmatpush.bf16.xpose.msra.mxu0 %v6136
    %6155 = vmatmul.bf16.gmra.mxu0 %v6133
    %v6156 = vpop.f32.mrf.mxu0
    %v6157 = vadd.f32 %v5449, %v6156
    %v6158 = vpop.f32.mrf.mxu0
    %v6159 = vadd.f32 %v5450, %v6158
    %6160 = vdwg.mxu0
    %v6163 = vunpack.c.l.b16 %v6089
    %v6164 = vunpack.c.l.b16 %v6090
    %v6165 = vpack.c.b16 %v6164, %v6163
    %v6174 = vunpack.c.l.b16 %v6099
    %v6175 = vunpack.c.l.b16 %v6100
    %v6176 = vunpack.c.l.b16 %v6101
    %v6177 = vunpack.c.l.b16 %v6102
    %v6178 = vunpack.c.l.b16 %v6103
    %v6179 = vunpack.c.l.b16 %v6104
    %v6180 = vunpack.c.l.b16 %v6105
    %v6181 = vunpack.c.l.b16 %v6106
    %v6182 = vpack.c.b16 %v6175, %v6174
    %v6183 = vpack.c.b16 %v6177, %v6176
    %v6184 = vpack.c.b16 %v6179, %v6178
    %v6185 = vpack.c.b16 %v6181, %v6180
    %v6187 = vsel %vm892, %v6165, 0
    %v6190 = vsel %vm892, %v6182, 0
    %v6193 = vsel %vm892, %v6183, 0
    %v6196 = vsel %vm892, %v6184, 0
    %v6199 = vsel %vm892, %v6185, 0
    %6201 = vmatpush.bf16.xpose.msra.mxu0 0
    %6202 = vmatpush.bf16.xpose.msra.mxu0 0
    %6203 = vmatpush.bf16.xpose.msra.mxu0 0
    %6204 = vmatpush.bf16.xpose.msra.mxu0 0
    %6205 = vmatpush.bf16.xpose.msra.mxu0 %v6199
    %6206 = vmatpush.bf16.xpose.msra.mxu0 %v6196
    %6207 = vmatpush.bf16.xpose.msra.mxu0 %v6193
    %6208 = vmatpush.bf16.xpose.msra.mxu0 %v6190
    %6209 = vmatmul.bf16.gmra.mxu0 %v6187
    %v6210 = vpop.f32.mrf.mxu0
    %v6211 = vadd.f32 %v5449, %v6210
    %v6212 = vpop.f32.mrf.mxu0
    %v6213 = vadd.f32 %v5450, %v6212
    %6214 = vdwg.mxu0
    %v6215 = vsel %vm2544, %v6157, -inf
    %6216 = vmax.xlane.f32.xlu0 %v6215
    %v6217 = vpop.xlane.xlu0 %6216
    %v6218 = vsel %vm2544, %v6159, -inf
    %6219 = vmax.xlane.f32.xlu0 %v6218
    %v6220 = vpop.xlane.xlu0 %6219
    %v6221 = vsel %vm2544, %v6211, -inf
    %6222 = vmax.xlane.f32.xlu0 %v6221
    %v6223 = vpop.xlane.xlu0 %6222
    %v6224 = vsel %vm2544, %v6213, -inf
    %6225 = vmax.xlane.f32.xlu0 %v6224
    %v6226 = vpop.xlane.xlu0 %6225
    %v6227 = vsub.f32 %v6157, %v6217
    %v6228 = vsub.f32 %v6159, %v6220
    %v6229 = vsub.f32 %v6211, %v6223
    %v6230 = vsub.f32 %v6213, %v6226
    %v6231 = vmul.f32 %v6227, 1.442695
    %v6232 = vpow.pop %v6231
    %v6233 = vmul.f32 %v6228, 1.442695
    %v6234 = vpow.pop %v6233
    %v6235 = vmul.f32 %v6229, 1.442695
    %v6236 = vpow.pop %v6235
    %v6237 = vmul.f32 %v6230, 1.442695
    %v6238 = vpow.pop %v6237
    %v6239 = vsel %vm2544, %v6232, 0.0
    %6240 = vadd.xlane.f32.xlu0 %v6239
    %v6241 = vpop.xlane.xlu0 %6240
    %v6242 = vsel %vm2544, %v6234, 0.0
    %6243 = vadd.xlane.f32.xlu0 %v6242
    %v6244 = vpop.xlane.xlu0 %6243
    %v6245 = vsel %vm2544, %v6236, 0.0
    %6246 = vadd.xlane.f32.xlu0 %v6245
    %v6247 = vpop.xlane.xlu0 %6246
    %v6248 = vsel %vm2544, %v6238, 0.0
    %6249 = vadd.xlane.f32.xlu0 %v6248
    %v6250 = vpop.xlane.xlu0 %6249
    %v6251 = vrcp.pop %v6241
    %v6252 = vrcp.pop %v6244
    %v6253 = vrcp.pop %v6247
    %v6254 = vrcp.pop %v6250
    %v6255 = vpack.c.bf16 %v6232, %v6232
    %v6256 = vpack.c.bf16 %v6234, %v6234
    %v6257 = vpack.c.bf16 %v6236, %v6236
    %v6258 = vpack.c.bf16 %v6238, %v6238
    %v6261 = vunpack.c.l.b16 %v6255
    %v6262 = vunpack.c.l.b16 %v6256
    %v6263 = vpack.c.b16 %v6262, %v6261
    %6264 = vrot.lane.b32.xlu0 %v6128, 96
    %v6265 = vpop.permute.xlu0 %6264
    %6266 = vrot.lane.b32.xlu0 %v6129, 96
    %v6267 = vpop.permute.xlu0 %6266
    %6268 = vrot.lane.b32.xlu0 %v6130, 96
    %v6269 = vpop.permute.xlu0 %6268
    %6270 = vrot.lane.b32.xlu0 %v6131, 96
    %v6271 = vpop.permute.xlu0 %6270
    %v6277 = vsel %vm2544, %v6263, 0
    %6279 = vmatpush.bf16.msra.mxu0 0
    %6280 = vmatpush.bf16.msra.mxu0 0
    %6281 = vmatpush.bf16.msra.mxu0 0
    %6282 = vmatpush.bf16.msra.mxu0 0
    %6283 = vmatpush.bf16.msra.mxu0 %v6271
    %6284 = vmatpush.bf16.msra.mxu0 %v6269
    %6285 = vmatpush.bf16.msra.mxu0 %v6267
    %6286 = vmatpush.bf16.msra.mxu0 %v6265
    %6287 = vmatmul.bf16.gmra.mxu0 %v6277
    %v6288 = vpop.f32.mrf.mxu0
    %v6289 = vadd.f32 0.0, %v6288
    %v6290 = vpop.f32.mrf.mxu0
    %v6291 = vadd.f32 0.0, %v6290
    %6292 = vdwg.mxu0
    %v6295 = vunpack.c.l.b16 %v6257
    %v6296 = vunpack.c.l.b16 %v6258
    %v6297 = vpack.c.b16 %v6296, %v6295
    %6298 = vrot.lane.b32.xlu0 %v6182, 96
    %v6299 = vpop.permute.xlu0 %6298
    %6300 = vrot.lane.b32.xlu0 %v6183, 96
    %v6301 = vpop.permute.xlu0 %6300
    %6302 = vrot.lane.b32.xlu0 %v6184, 96
    %v6303 = vpop.permute.xlu0 %6302
    %6304 = vrot.lane.b32.xlu0 %v6185, 96
    %v6305 = vpop.permute.xlu0 %6304
    %v6311 = vsel %vm2544, %v6297, 0
    %6313 = vmatpush.bf16.msra.mxu0 0
    %6314 = vmatpush.bf16.msra.mxu0 0
    %6315 = vmatpush.bf16.msra.mxu0 0
    %6316 = vmatpush.bf16.msra.mxu0 0
    %6317 = vmatpush.bf16.msra.mxu0 %v6305
    %6318 = vmatpush.bf16.msra.mxu0 %v6303
    %6319 = vmatpush.bf16.msra.mxu0 %v6301
    %6320 = vmatpush.bf16.msra.mxu0 %v6299
    %6321 = vmatmul.bf16.gmra.mxu0 %v6311
    %v6322 = vpop.f32.mrf.mxu0
    %v6323 = vadd.f32 0.0, %v6322
    %v6324 = vpop.f32.mrf.mxu0
    %v6325 = vadd.f32 0.0, %v6324
    %6326 = vdwg.mxu0
    %v6327 = vmul.f32 %v6289, %v6251
    %v6328 = vmul.f32 %v6291, %v6252
    %v6329 = vmul.f32 %v6323, %v6253
    %v6330 = vmul.f32 %v6325, %v6254
    %6331 = vrot.lane.b32.xlu0 %v6111, 120
    %v6332 = vpop.permute.xlu0 %6331
    %6333 = vrot.lane.b32.xlu0 %v6128, 120
    %v6334 = vpop.permute.xlu0 %6333
    %6335 = vrot.lane.b32.xlu0 %v6129, 120
    %v6336 = vpop.permute.xlu0 %6335
    %6337 = vrot.lane.b32.xlu0 %v6130, 120
    %v6338 = vpop.permute.xlu0 %6337
    %6339 = vrot.lane.b32.xlu0 %v6131, 120
    %v6340 = vpop.permute.xlu0 %6339
    %v6342 = vsel %vm892, %v6332, 0
    %v6345 = vsel %vm892, %v6334, 0
    %v6348 = vsel %vm892, %v6336, 0
    %v6351 = vsel %vm892, %v6338, 0
    %v6354 = vsel %vm892, %v6340, 0
    %6356 = vmatpush.bf16.xpose.msra.mxu0 0
    %6357 = vmatpush.bf16.xpose.msra.mxu0 0
    %6358 = vmatpush.bf16.xpose.msra.mxu0 0
    %6359 = vmatpush.bf16.xpose.msra.mxu0 0
    %6360 = vmatpush.bf16.xpose.msra.mxu0 %v6354
    %6361 = vmatpush.bf16.xpose.msra.mxu0 %v6351
    %6362 = vmatpush.bf16.xpose.msra.mxu0 %v6348
    %6363 = vmatpush.bf16.xpose.msra.mxu0 %v6345
    %6364 = vmatmul.bf16.gmra.mxu0 %v6342
    %v6365 = vpop.f32.mrf.mxu0
    %v6366 = vadd.f32 %v5451, %v6365
    %v6367 = vpop.f32.mrf.mxu0
    %v6368 = vadd.f32 %v5452, %v6367
    %6369 = vdwg.mxu0
    %6370 = vrot.lane.b32.xlu0 %v6165, 120
    %v6371 = vpop.permute.xlu0 %6370
    %6372 = vrot.lane.b32.xlu0 %v6182, 120
    %v6373 = vpop.permute.xlu0 %6372
    %6374 = vrot.lane.b32.xlu0 %v6183, 120
    %v6375 = vpop.permute.xlu0 %6374
    %6376 = vrot.lane.b32.xlu0 %v6184, 120
    %v6377 = vpop.permute.xlu0 %6376
    %6378 = vrot.lane.b32.xlu0 %v6185, 120
    %v6379 = vpop.permute.xlu0 %6378
    %v6381 = vsel %vm892, %v6371, 0
    %v6384 = vsel %vm892, %v6373, 0
    %v6387 = vsel %vm892, %v6375, 0
    %v6390 = vsel %vm892, %v6377, 0
    %v6393 = vsel %vm892, %v6379, 0
    %6395 = vmatpush.bf16.xpose.msra.mxu0 0
    %6396 = vmatpush.bf16.xpose.msra.mxu0 0
    %6397 = vmatpush.bf16.xpose.msra.mxu0 0
    %6398 = vmatpush.bf16.xpose.msra.mxu0 0
    %6399 = vmatpush.bf16.xpose.msra.mxu0 %v6393
    %6400 = vmatpush.bf16.xpose.msra.mxu0 %v6390
    %6401 = vmatpush.bf16.xpose.msra.mxu0 %v6387
    %6402 = vmatpush.bf16.xpose.msra.mxu0 %v6384
    %6403 = vmatmul.bf16.gmra.mxu0 %v6381
    %v6404 = vpop.f32.mrf.mxu0
    %v6405 = vadd.f32 %v5451, %v6404
    %v6406 = vpop.f32.mrf.mxu0
    %v6407 = vadd.f32 %v5452, %v6406
    %6408 = vdwg.mxu0
    %v6409 = vsel %vm2544, %v6366, -inf
    %6410 = vmax.xlane.f32.xlu0 %v6409
    %v6411 = vpop.xlane.xlu0 %6410
    %v6412 = vsel %vm2544, %v6368, -inf
    %6413 = vmax.xlane.f32.xlu0 %v6412
    %v6414 = vpop.xlane.xlu0 %6413
    %v6415 = vsel %vm2544, %v6405, -inf
    %6416 = vmax.xlane.f32.xlu0 %v6415
    %v6417 = vpop.xlane.xlu0 %6416
    %v6418 = vsel %vm2544, %v6407, -inf
    %6419 = vmax.xlane.f32.xlu0 %v6418
    %v6420 = vpop.xlane.xlu0 %6419
    %v6421 = vsub.f32 %v6366, %v6411
    %v6422 = vsub.f32 %v6368, %v6414
    %v6423 = vsub.f32 %v6405, %v6417
    %v6424 = vsub.f32 %v6407, %v6420
    %v6425 = vmul.f32 %v6421, 1.442695
    %v6426 = vpow.pop %v6425
    %v6427 = vmul.f32 %v6422, 1.442695
    %v6428 = vpow.pop %v6427
    %v6429 = vmul.f32 %v6423, 1.442695
    %v6430 = vpow.pop %v6429
    %v6431 = vmul.f32 %v6424, 1.442695
    %v6432 = vpow.pop %v6431
    %v6433 = vsel %vm2544, %v6426, 0.0
    %6434 = vadd.xlane.f32.xlu0 %v6433
    %v6435 = vpop.xlane.xlu0 %6434
    %v6436 = vsel %vm2544, %v6428, 0.0
    %6437 = vadd.xlane.f32.xlu0 %v6436
    %v6438 = vpop.xlane.xlu0 %6437
    %v6439 = vsel %vm2544, %v6430, 0.0
    %6440 = vadd.xlane.f32.xlu0 %v6439
    %v6441 = vpop.xlane.xlu0 %6440
    %v6442 = vsel %vm2544, %v6432, 0.0
    %6443 = vadd.xlane.f32.xlu0 %v6442
    %v6444 = vpop.xlane.xlu0 %6443
    %v6445 = vrcp.pop %v6435
    %v6446 = vrcp.pop %v6438
    %v6447 = vrcp.pop %v6441
    %v6448 = vrcp.pop %v6444
    %v6449 = vpack.c.bf16 %v6426, %v6426
    %v6450 = vpack.c.bf16 %v6428, %v6428
    %v6451 = vpack.c.bf16 %v6430, %v6430
    %v6452 = vpack.c.bf16 %v6432, %v6432
    %v6455 = vunpack.c.l.b16 %v6449
    %v6456 = vunpack.c.l.b16 %v6450
    %v6457 = vpack.c.b16 %v6456, %v6455
    %6458 = vrot.lane.b32.xlu0 %v6128, 88
    %v6459 = vpop.permute.xlu0 %6458
    %6460 = vrot.lane.b32.xlu0 %v6129, 88
    %v6461 = vpop.permute.xlu0 %6460
    %6462 = vrot.lane.b32.xlu0 %v6130, 88
    %v6463 = vpop.permute.xlu0 %6462
    %6464 = vrot.lane.b32.xlu0 %v6131, 88
    %v6465 = vpop.permute.xlu0 %6464
    %v6471 = vsel %vm2544, %v6457, 0
    %6473 = vmatpush.bf16.msra.mxu0 0
    %6474 = vmatpush.bf16.msra.mxu0 0
    %6475 = vmatpush.bf16.msra.mxu0 0
    %6476 = vmatpush.bf16.msra.mxu0 0
    %6477 = vmatpush.bf16.msra.mxu0 %v6465
    %6478 = vmatpush.bf16.msra.mxu0 %v6463
    %6479 = vmatpush.bf16.msra.mxu0 %v6461
    %6480 = vmatpush.bf16.msra.mxu0 %v6459
    %6481 = vmatmul.bf16.gmra.mxu0 %v6471
    %v6482 = vpop.f32.mrf.mxu0
    %v6483 = vadd.f32 0.0, %v6482
    %v6484 = vpop.f32.mrf.mxu0
    %v6485 = vadd.f32 0.0, %v6484
    %6486 = vdwg.mxu0
    %v6489 = vunpack.c.l.b16 %v6451
    %v6490 = vunpack.c.l.b16 %v6452
    %v6491 = vpack.c.b16 %v6490, %v6489
    %6492 = vrot.lane.b32.xlu0 %v6182, 88
    %v6493 = vpop.permute.xlu0 %6492
    %6494 = vrot.lane.b32.xlu0 %v6183, 88
    %v6495 = vpop.permute.xlu0 %6494
    %6496 = vrot.lane.b32.xlu0 %v6184, 88
    %v6497 = vpop.permute.xlu0 %6496
    %6498 = vrot.lane.b32.xlu0 %v6185, 88
    %v6499 = vpop.permute.xlu0 %6498
    %v6505 = vsel %vm2544, %v6491, 0
    %6507 = vmatpush.bf16.msra.mxu0 0
    %6508 = vmatpush.bf16.msra.mxu0 0
    %6509 = vmatpush.bf16.msra.mxu0 0
    %6510 = vmatpush.bf16.msra.mxu0 0
    %6511 = vmatpush.bf16.msra.mxu0 %v6499
    %6512 = vmatpush.bf16.msra.mxu0 %v6497
    %6513 = vmatpush.bf16.msra.mxu0 %v6495
    %6514 = vmatpush.bf16.msra.mxu0 %v6493
    %6515 = vmatmul.bf16.gmra.mxu0 %v6505
    %v6516 = vpop.f32.mrf.mxu0
    %v6517 = vadd.f32 0.0, %v6516
    %v6518 = vpop.f32.mrf.mxu0
    %v6519 = vadd.f32 0.0, %v6518
    %6520 = vdwg.mxu0
    %v6521 = vmul.f32 %v6483, %v6445
    %v6522 = vmul.f32 %v6485, %v6446
    %v6523 = vmul.f32 %v6517, %v6447
    %v6524 = vmul.f32 %v6519, %v6448
    %6525 = vrot.lane.b32.xlu0 %v6111, 112
    %v6526 = vpop.permute.xlu0 %6525
    %6527 = vrot.lane.b32.xlu0 %v6128, 112
    %v6528 = vpop.permute.xlu0 %6527
    %6529 = vrot.lane.b32.xlu0 %v6129, 112
    %v6530 = vpop.permute.xlu0 %6529
    %6531 = vrot.lane.b32.xlu0 %v6130, 112
    %v6532 = vpop.permute.xlu0 %6531
    %6533 = vrot.lane.b32.xlu0 %v6131, 112
    %v6534 = vpop.permute.xlu0 %6533
    %v6536 = vsel %vm892, %v6526, 0
    %v6539 = vsel %vm892, %v6528, 0
    %v6542 = vsel %vm892, %v6530, 0
    %v6545 = vsel %vm892, %v6532, 0
    %v6548 = vsel %vm892, %v6534, 0
    %6550 = vmatpush.bf16.xpose.msra.mxu0 0
    %6551 = vmatpush.bf16.xpose.msra.mxu0 0
    %6552 = vmatpush.bf16.xpose.msra.mxu0 0
    %6553 = vmatpush.bf16.xpose.msra.mxu0 0
    %6554 = vmatpush.bf16.xpose.msra.mxu0 %v6548
    %6555 = vmatpush.bf16.xpose.msra.mxu0 %v6545
    %6556 = vmatpush.bf16.xpose.msra.mxu0 %v6542
    %6557 = vmatpush.bf16.xpose.msra.mxu0 %v6539
    %6558 = vmatmul.bf16.gmra.mxu0 %v6536
    %v6559 = vpop.f32.mrf.mxu0
    %v6560 = vadd.f32 %v5453, %v6559
    %v6561 = vpop.f32.mrf.mxu0
    %v6562 = vadd.f32 %v5454, %v6561
    %6563 = vdwg.mxu0
    %6564 = vrot.lane.b32.xlu0 %v6165, 112
    %v6565 = vpop.permute.xlu0 %6564
    %6566 = vrot.lane.b32.xlu0 %v6182, 112
    %v6567 = vpop.permute.xlu0 %6566
    %6568 = vrot.lane.b32.xlu0 %v6183, 112
    %v6569 = vpop.permute.xlu0 %6568
    %6570 = vrot.lane.b32.xlu0 %v6184, 112
    %v6571 = vpop.permute.xlu0 %6570
    %6572 = vrot.lane.b32.xlu0 %v6185, 112
    %v6573 = vpop.permute.xlu0 %6572
    %v6575 = vsel %vm892, %v6565, 0
    %v6578 = vsel %vm892, %v6567, 0
    %v6581 = vsel %vm892, %v6569, 0
    %v6584 = vsel %vm892, %v6571, 0
    %v6587 = vsel %vm892, %v6573, 0
    %6589 = vmatpush.bf16.xpose.msra.mxu0 0
    %6590 = vmatpush.bf16.xpose.msra.mxu0 0
    %6591 = vmatpush.bf16.xpose.msra.mxu0 0
    %6592 = vmatpush.bf16.xpose.msra.mxu0 0
    %6593 = vmatpush.bf16.xpose.msra.mxu0 %v6587
    %6594 = vmatpush.bf16.xpose.msra.mxu0 %v6584
    %6595 = vmatpush.bf16.xpose.msra.mxu0 %v6581
    %6596 = vmatpush.bf16.xpose.msra.mxu0 %v6578
    %6597 = vmatmul.bf16.gmra.mxu0 %v6575
    %v6598 = vpop.f32.mrf.mxu0
    %v6599 = vadd.f32 %v5453, %v6598
    %v6600 = vpop.f32.mrf.mxu0
    %v6601 = vadd.f32 %v5454, %v6600
    %6602 = vdwg.mxu0
    %v6603 = vsel %vm2544, %v6560, -inf
    %6604 = vmax.xlane.f32.xlu0 %v6603
    %v6605 = vpop.xlane.xlu0 %6604
    %v6606 = vsel %vm2544, %v6562, -inf
    %6607 = vmax.xlane.f32.xlu0 %v6606
    %v6608 = vpop.xlane.xlu0 %6607
    %v6609 = vsel %vm2544, %v6599, -inf
    %6610 = vmax.xlane.f32.xlu0 %v6609
    %v6611 = vpop.xlane.xlu0 %6610
    %v6612 = vsel %vm2544, %v6601, -inf
    %6613 = vmax.xlane.f32.xlu0 %v6612
    %v6614 = vpop.xlane.xlu0 %6613
    %v6615 = vsub.f32 %v6560, %v6605
    %v6616 = vsub.f32 %v6562, %v6608
    %v6617 = vsub.f32 %v6599, %v6611
    %v6618 = vsub.f32 %v6601, %v6614
    %v6619 = vmul.f32 %v6615, 1.442695
    %v6620 = vpow.pop %v6619
    %v6621 = vmul.f32 %v6616, 1.442695
    %v6622 = vpow.pop %v6621
    %v6623 = vmul.f32 %v6617, 1.442695
    %v6624 = vpow.pop %v6623
    %v6625 = vmul.f32 %v6618, 1.442695
    %v6626 = vpow.pop %v6625
    %v6627 = vsel %vm2544, %v6620, 0.0
    %6628 = vadd.xlane.f32.xlu0 %v6627
    %v6629 = vpop.xlane.xlu0 %6628
    %v6630 = vsel %vm2544, %v6622, 0.0
    %6631 = vadd.xlane.f32.xlu0 %v6630
    %v6632 = vpop.xlane.xlu0 %6631
    %v6633 = vsel %vm2544, %v6624, 0.0
    %6634 = vadd.xlane.f32.xlu0 %v6633
    %v6635 = vpop.xlane.xlu0 %6634
    %v6636 = vsel %vm2544, %v6626, 0.0
    %6637 = vadd.xlane.f32.xlu0 %v6636
    %v6638 = vpop.xlane.xlu0 %6637
    %v6639 = vrcp.pop %v6629
    %v6640 = vrcp.pop %v6632
    %v6641 = vrcp.pop %v6635
    %v6642 = vrcp.pop %v6638
    %v6643 = vpack.c.bf16 %v6620, %v6620
    %v6644 = vpack.c.bf16 %v6622, %v6622
    %v6645 = vpack.c.bf16 %v6624, %v6624
    %v6646 = vpack.c.bf16 %v6626, %v6626
    %v6649 = vunpack.c.l.b16 %v6643
    %v6650 = vunpack.c.l.b16 %v6644
    %v6651 = vpack.c.b16 %v6650, %v6649
    %6652 = vrot.lane.b32.xlu0 %v6128, 80
    %v6653 = vpop.permute.xlu0 %6652
    %6654 = vrot.lane.b32.xlu0 %v6129, 80
    %v6655 = vpop.permute.xlu0 %6654
    %6656 = vrot.lane.b32.xlu0 %v6130, 80
    %v6657 = vpop.permute.xlu0 %6656
    %6658 = vrot.lane.b32.xlu0 %v6131, 80
    %v6659 = vpop.permute.xlu0 %6658
    %v6665 = vsel %vm2544, %v6651, 0
    %6667 = vmatpush.bf16.msra.mxu0 0
    %6668 = vmatpush.bf16.msra.mxu0 0
    %6669 = vmatpush.bf16.msra.mxu0 0
    %6670 = vmatpush.bf16.msra.mxu0 0
    %6671 = vmatpush.bf16.msra.mxu0 %v6659
    %6672 = vmatpush.bf16.msra.mxu0 %v6657
    %6673 = vmatpush.bf16.msra.mxu0 %v6655
    %6674 = vmatpush.bf16.msra.mxu0 %v6653
    %6675 = vmatmul.bf16.gmra.mxu0 %v6665
    %v6676 = vpop.f32.mrf.mxu0
    %v6677 = vadd.f32 0.0, %v6676
    %v6678 = vpop.f32.mrf.mxu0
    %v6679 = vadd.f32 0.0, %v6678
    %6680 = vdwg.mxu0
    %v6683 = vunpack.c.l.b16 %v6645
    %v6684 = vunpack.c.l.b16 %v6646
    %v6685 = vpack.c.b16 %v6684, %v6683
    %6686 = vrot.lane.b32.xlu0 %v6182, 80
    %v6687 = vpop.permute.xlu0 %6686
    %6688 = vrot.lane.b32.xlu0 %v6183, 80
    %v6689 = vpop.permute.xlu0 %6688
    %6690 = vrot.lane.b32.xlu0 %v6184, 80
    %v6691 = vpop.permute.xlu0 %6690
    %6692 = vrot.lane.b32.xlu0 %v6185, 80
    %v6693 = vpop.permute.xlu0 %6692
    %v6699 = vsel %vm2544, %v6685, 0
    %6701 = vmatpush.bf16.msra.mxu0 0
    %6702 = vmatpush.bf16.msra.mxu0 0
    %6703 = vmatpush.bf16.msra.mxu0 0
    %6704 = vmatpush.bf16.msra.mxu0 0
    %6705 = vmatpush.bf16.msra.mxu0 %v6693
    %6706 = vmatpush.bf16.msra.mxu0 %v6691
    %6707 = vmatpush.bf16.msra.mxu0 %v6689
    %6708 = vmatpush.bf16.msra.mxu0 %v6687
    %6709 = vmatmul.bf16.gmra.mxu0 %v6699
    %v6710 = vpop.f32.mrf.mxu0
    %v6711 = vadd.f32 0.0, %v6710
    %v6712 = vpop.f32.mrf.mxu0
    %v6713 = vadd.f32 0.0, %v6712
    %6714 = vdwg.mxu0
    %v6715 = vmul.f32 %v6677, %v6639
    %v6716 = vmul.f32 %v6679, %v6640
    %v6717 = vmul.f32 %v6711, %v6641
    %v6718 = vmul.f32 %v6713, %v6642
    %6719 = vrot.lane.b32.xlu0 %v6111, 104
    %v6720 = vpop.permute.xlu0 %6719
    %6721 = vrot.lane.b32.xlu0 %v6128, 104
    %v6722 = vpop.permute.xlu0 %6721
    %6723 = vrot.lane.b32.xlu0 %v6129, 104
    %v6724 = vpop.permute.xlu0 %6723
    %6725 = vrot.lane.b32.xlu0 %v6130, 104
    %v6726 = vpop.permute.xlu0 %6725
    %6727 = vrot.lane.b32.xlu0 %v6131, 104
    %v6728 = vpop.permute.xlu0 %6727
    %v6730 = vsel %vm892, %v6720, 0
    %v6733 = vsel %vm892, %v6722, 0
    %v6736 = vsel %vm892, %v6724, 0
    %v6739 = vsel %vm892, %v6726, 0
    %v6742 = vsel %vm892, %v6728, 0
    %6744 = vmatpush.bf16.xpose.msra.mxu0 0
    %6745 = vmatpush.bf16.xpose.msra.mxu0 0
    %6746 = vmatpush.bf16.xpose.msra.mxu0 0
    %6747 = vmatpush.bf16.xpose.msra.mxu0 0
    %6748 = vmatpush.bf16.xpose.msra.mxu0 %v6742
    %6749 = vmatpush.bf16.xpose.msra.mxu0 %v6739
    %6750 = vmatpush.bf16.xpose.msra.mxu0 %v6736
    %6751 = vmatpush.bf16.xpose.msra.mxu0 %v6733
    %6752 = vmatmul.bf16.gmra.mxu0 %v6730
    %v6753 = vpop.f32.mrf.mxu0
    %v6754 = vadd.f32 %v5455, %v6753
    %v6755 = vpop.f32.mrf.mxu0
    %v6756 = vadd.f32 %v5456, %v6755
    %6757 = vdwg.mxu0
    %6758 = vrot.lane.b32.xlu0 %v6165, 104
    %v6759 = vpop.permute.xlu0 %6758
    %6760 = vrot.lane.b32.xlu0 %v6182, 104
    %v6761 = vpop.permute.xlu0 %6760
    %6762 = vrot.lane.b32.xlu0 %v6183, 104
    %v6763 = vpop.permute.xlu0 %6762
    %6764 = vrot.lane.b32.xlu0 %v6184, 104
    %v6765 = vpop.permute.xlu0 %6764
    %6766 = vrot.lane.b32.xlu0 %v6185, 104
    %v6767 = vpop.permute.xlu0 %6766
    %v6769 = vsel %vm892, %v6759, 0
    %v6772 = vsel %vm892, %v6761, 0
    %v6775 = vsel %vm892, %v6763, 0
    %v6778 = vsel %vm892, %v6765, 0
    %v6781 = vsel %vm892, %v6767, 0
    %6783 = vmatpush.bf16.xpose.msra.mxu0 0
    %6784 = vmatpush.bf16.xpose.msra.mxu0 0
    %6785 = vmatpush.bf16.xpose.msra.mxu0 0
    %6786 = vmatpush.bf16.xpose.msra.mxu0 0
    %6787 = vmatpush.bf16.xpose.msra.mxu0 %v6781
    %6788 = vmatpush.bf16.xpose.msra.mxu0 %v6778
    %6789 = vmatpush.bf16.xpose.msra.mxu0 %v6775
    %6790 = vmatpush.bf16.xpose.msra.mxu0 %v6772
    %6791 = vmatmul.bf16.gmra.mxu0 %v6769
    %v6792 = vpop.f32.mrf.mxu0
    %v6793 = vadd.f32 %v5455, %v6792
    %v6794 = vpop.f32.mrf.mxu0
    %v6795 = vadd.f32 %v5456, %v6794
    %6796 = vdwg.mxu0
    %v6797 = vsel %vm2544, %v6754, -inf
    %6798 = vmax.xlane.f32.xlu0 %v6797
    %v6799 = vpop.xlane.xlu0 %6798
    %v6800 = vsel %vm2544, %v6756, -inf
    %6801 = vmax.xlane.f32.xlu0 %v6800
    %v6802 = vpop.xlane.xlu0 %6801
    %v6803 = vsel %vm2544, %v6793, -inf
    %6804 = vmax.xlane.f32.xlu0 %v6803
    %v6805 = vpop.xlane.xlu0 %6804
    %v6806 = vsel %vm2544, %v6795, -inf
    %6807 = vmax.xlane.f32.xlu0 %v6806
    %v6808 = vpop.xlane.xlu0 %6807
    %v6809 = vsub.f32 %v6754, %v6799
    %v6810 = vsub.f32 %v6756, %v6802
    %v6811 = vsub.f32 %v6793, %v6805
    %v6812 = vsub.f32 %v6795, %v6808
    %v6813 = vmul.f32 %v6809, 1.442695
    %v6814 = vpow.pop %v6813
    %v6815 = vmul.f32 %v6810, 1.442695
    %v6816 = vpow.pop %v6815
    %v6817 = vmul.f32 %v6811, 1.442695
    %v6818 = vpow.pop %v6817
    %v6819 = vmul.f32 %v6812, 1.442695
    %v6820 = vpow.pop %v6819
    %v6821 = vsel %vm2544, %v6814, 0.0
    %6822 = vadd.xlane.f32.xlu0 %v6821
    %v6823 = vpop.xlane.xlu0 %6822
    %v6824 = vsel %vm2544, %v6816, 0.0
    %6825 = vadd.xlane.f32.xlu0 %v6824
    %v6826 = vpop.xlane.xlu0 %6825
    %v6827 = vsel %vm2544, %v6818, 0.0
    %6828 = vadd.xlane.f32.xlu0 %v6827
    %v6829 = vpop.xlane.xlu0 %6828
    %v6830 = vsel %vm2544, %v6820, 0.0
    %6831 = vadd.xlane.f32.xlu0 %v6830
    %v6832 = vpop.xlane.xlu0 %6831
    %v6833 = vrcp.pop %v6823
    %v6834 = vrcp.pop %v6826
    %v6835 = vrcp.pop %v6829
    %v6836 = vrcp.pop %v6832
    %v6837 = vpack.c.bf16 %v6814, %v6814
    %v6838 = vpack.c.bf16 %v6816, %v6816
    %v6839 = vpack.c.bf16 %v6818, %v6818
    %v6840 = vpack.c.bf16 %v6820, %v6820
    %v6843 = vunpack.c.l.b16 %v6837
    %v6844 = vunpack.c.l.b16 %v6838
    %v6845 = vpack.c.b16 %v6844, %v6843
    %6846 = vrot.lane.b32.xlu0 %v6128, 72
    %v6847 = vpop.permute.xlu0 %6846
    %6848 = vrot.lane.b32.xlu0 %v6129, 72
    %v6849 = vpop.permute.xlu0 %6848
    %6850 = vrot.lane.b32.xlu0 %v6130, 72
    %v6851 = vpop.permute.xlu0 %6850
    %6852 = vrot.lane.b32.xlu0 %v6131, 72
    %v6853 = vpop.permute.xlu0 %6852
    %v6859 = vsel %vm2544, %v6845, 0
    %6861 = vmatpush.bf16.msra.mxu0 0
    %6862 = vmatpush.bf16.msra.mxu0 0
    %6863 = vmatpush.bf16.msra.mxu0 0
    %6864 = vmatpush.bf16.msra.mxu0 0
    %6865 = vmatpush.bf16.msra.mxu0 %v6853
    %6866 = vmatpush.bf16.msra.mxu0 %v6851
    %6867 = vmatpush.bf16.msra.mxu0 %v6849
    %6868 = vmatpush.bf16.msra.mxu0 %v6847
    %6869 = vmatmul.bf16.gmra.mxu0 %v6859
    %v6870 = vpop.f32.mrf.mxu0
    %v6871 = vadd.f32 0.0, %v6870
    %v6872 = vpop.f32.mrf.mxu0
    %v6873 = vadd.f32 0.0, %v6872
    %6874 = vdwg.mxu0
    %v6877 = vunpack.c.l.b16 %v6839
    %v6878 = vunpack.c.l.b16 %v6840
    %v6879 = vpack.c.b16 %v6878, %v6877
    %6880 = vrot.lane.b32.xlu0 %v6182, 72
    %v6881 = vpop.permute.xlu0 %6880
    %6882 = vrot.lane.b32.xlu0 %v6183, 72
    %v6883 = vpop.permute.xlu0 %6882
    %6884 = vrot.lane.b32.xlu0 %v6184, 72
    %v6885 = vpop.permute.xlu0 %6884
    %6886 = vrot.lane.b32.xlu0 %v6185, 72
    %v6887 = vpop.permute.xlu0 %6886
    %v6893 = vsel %vm2544, %v6879, 0
    %6895 = vmatpush.bf16.msra.mxu0 0
    %6896 = vmatpush.bf16.msra.mxu0 0
    %6897 = vmatpush.bf16.msra.mxu0 0
    %6898 = vmatpush.bf16.msra.mxu0 0
    %6899 = vmatpush.bf16.msra.mxu0 %v6887
    %6900 = vmatpush.bf16.msra.mxu0 %v6885
    %6901 = vmatpush.bf16.msra.mxu0 %v6883
    %6902 = vmatpush.bf16.msra.mxu0 %v6881
    %6903 = vmatmul.bf16.gmra.mxu0 %v6893
    %v6904 = vpop.f32.mrf.mxu0
    %v6905 = vadd.f32 0.0, %v6904
    %v6906 = vpop.f32.mrf.mxu0
    %v6907 = vadd.f32 0.0, %v6906
    %6908 = vdwg.mxu0
    %v6909 = vmul.f32 %v6871, %v6833
    %v6910 = vmul.f32 %v6873, %v6834
    %v6911 = vmul.f32 %v6905, %v6835
    %v6912 = vmul.f32 %v6907, %v6836
    %6917 = vrot.lane.b32.xlu0 %v6521, 8
    %v6918 = vpop.permute.xlu0 %6917
    %6919 = vrot.lane.b32.xlu0 %v6522, 8
    %v6920 = vpop.permute.xlu0 %6919
    %6921 = vrot.lane.b32.xlu0 %v6523, 8
    %v6922 = vpop.permute.xlu0 %6921
    %6923 = vrot.lane.b32.xlu0 %v6524, 8
    %v6924 = vpop.permute.xlu0 %6923
    %6933 = vrot.lane.b32.xlu0 %v6715, 16
    %v6934 = vpop.permute.xlu0 %6933
    %6935 = vrot.lane.b32.xlu0 %v6716, 16
    %v6936 = vpop.permute.xlu0 %6935
    %6937 = vrot.lane.b32.xlu0 %v6717, 16
    %v6938 = vpop.permute.xlu0 %6937
    %6939 = vrot.lane.b32.xlu0 %v6718, 16
    %v6940 = vpop.permute.xlu0 %6939
    %6949 = vrot.lane.b32.xlu0 %v6909, 24
    %v6950 = vpop.permute.xlu0 %6949
    %6951 = vrot.lane.b32.xlu0 %v6910, 24
    %v6952 = vpop.permute.xlu0 %6951
    %6953 = vrot.lane.b32.xlu0 %v6911, 24
    %v6954 = vpop.permute.xlu0 %6953
    %6955 = vrot.lane.b32.xlu0 %v6912, 24
    %v6956 = vpop.permute.xlu0 %6955
    %v6961 = vsel %vm892, %v6327, %v6918
    %v6962 = vsel %vm892, %v6328, %v6920
    %v6963 = vsel %vm892, %v6329, %v6922
    %v6964 = vsel %vm892, %v6330, %v6924
    %v6965 = vsel %vm940, %v6961, %v6934
    %v6966 = vsel %vm940, %v6962, %v6936
    %v6967 = vsel %vm940, %v6963, %v6938
    %v6968 = vsel %vm940, %v6964, %v6940
    %v6969 = vsel %vm1533, %v6965, %v6950
    %v6970 = vsel %vm1533, %v6966, %v6952
    %v6971 = vsel %vm1533, %v6967, %v6954
    %v6972 = vsel %vm1533, %v6968, %v6956
    %v6973 = vpack.c.bf16 %v6970, %v6969
    %v6974 = vpack.c.bf16 %v6972, %v6971
    %v6979 = vunpack.c.l.b16 %v629
    %v6980 = vunpack.c.l.b16 %v630
    %v6981 = vunpack.c.l.b16 %v631
    %v6982 = vunpack.c.l.b16 %v632
    %v6983 = vpack.c.b16 %v6980, %v6979
    %v6984 = vpack.c.b16 %v6982, %v6981
    %v6988 = vsel %vm729, %v6973, 0
    %v6991 = vsel %vm729, %v6974, 0
    %6993 = vmatpush.bf16.msra.mxu0 0
    %6994 = vmatpush.bf16.msra.mxu0 0
    %6995 = vmatpush.bf16.msra.mxu0 0
    %6996 = vmatpush.bf16.msra.mxu0 0
    %6997 = vmatpush.bf16.msra.mxu0 0
    %6998 = vmatpush.bf16.msra.mxu0 0
    %6999 = vmatpush.bf16.msra.mxu0 %v6984
    %7000 = vmatpush.bf16.msra.mxu0 %v6983
    %7001 = vmatmul.bf16.gmra.mxu0 %v6988
    %v7002 = vpop.f32.mrf.mxu0
    %v7003 = vadd.f32 0.0, %v7002
    %v7004 = vpop.f32.mrf.mxu0
    %v7005 = vadd.f32 0.0, %v7004
    %7006 = vmatmul.bf16.gmra.mxu0 %v6991
    %v7007 = vpop.f32.mrf.mxu0
    %v7008 = vadd.f32 0.0, %v7007
    %v7009 = vpop.f32.mrf.mxu0
    %v7010 = vadd.f32 0.0, %v7009
    %7011 = vdwg.mxu0
    %v7012 = vadd.f32 %v1844, %v7003
    %v7013 = vadd.f32 %v1845, %v7005
    %v7014 = vadd.f32 %v1846, %v7008
    %v7015 = vadd.f32 %v1847, %v7010
    %v7017 = vperm.slane %v633, 0
    %v7019 = vadd.f32 %v7012, %v7017
    %v7020 = vadd.f32 %v7013, %v7017
    %v7021 = vadd.f32 %v7014, %v7017
    %v7022 = vadd.f32 %v7015, %v7017
    %v7023 = vsel %vm729, %v7019, 0.0
    %7024 = vadd.xlane.f32.xlu0 %v7023
    %v7025 = vpop.xlane.xlu0 %7024
    %v7026 = vsel %vm729, %v7020, 0.0
    %7027 = vadd.xlane.f32.xlu0 %v7026
    %v7028 = vpop.xlane.xlu0 %7027
    %v7029 = vsel %vm729, %v7021, 0.0
    %7030 = vadd.xlane.f32.xlu0 %v7029
    %v7031 = vpop.xlane.xlu0 %7030
    %v7032 = vsel %vm729, %v7022, 0.0
    %7033 = vadd.xlane.f32.xlu0 %v7032
    %v7034 = vpop.xlane.xlu0 %7033
    %v7035 = vmul.f32 %v7025, %v748
    %v7036 = vmul.f32 %v7028, %v748
    %v7037 = vmul.f32 %v7031, %v748
    %v7038 = vmul.f32 %v7034, %v748
    %v7039 = vsub.f32 %v7019, %v7035
    %v7040 = vsub.f32 %v7020, %v7036
    %v7041 = vsub.f32 %v7021, %v7037
    %v7042 = vsub.f32 %v7022, %v7038
    %v7043 = vmul.f32 %v7039, %v7039
    %v7044 = vmul.f32 %v7040, %v7040
    %v7045 = vmul.f32 %v7041, %v7041
    %v7046 = vmul.f32 %v7042, %v7042
    %v7047 = vsel %vm729, %v7043, 0.0
    %7048 = vadd.xlane.f32.xlu0 %v7047
    %v7049 = vpop.xlane.xlu0 %7048
    %v7050 = vsel %vm729, %v7044, 0.0
    %7051 = vadd.xlane.f32.xlu0 %v7050
    %v7052 = vpop.xlane.xlu0 %7051
    %v7053 = vsel %vm729, %v7045, 0.0
    %7054 = vadd.xlane.f32.xlu0 %v7053
    %v7055 = vpop.xlane.xlu0 %7054
    %v7056 = vsel %vm729, %v7046, 0.0
    %7057 = vadd.xlane.f32.xlu0 %v7056
    %v7058 = vpop.xlane.xlu0 %7057
    %v7059 = vmul.f32 %v7049, %v748
    %v7060 = vmul.f32 %v7052, %v748
    %v7061 = vmul.f32 %v7055, %v748
    %v7062 = vmul.f32 %v7058, %v748
    %v7063 = vadd.f32 %v7059, 1e-05
    %v7064 = vadd.f32 %v7060, 1e-05
    %v7065 = vadd.f32 %v7061, 1e-05
    %v7066 = vadd.f32 %v7062, 1e-05
    %v7067 = vrsqrt.pop %v7063
    %v7068 = vmul.f32 %v7067, %v7063
    %v7069 = vmul.f32 %v7068, %v7067
    %v7070 = vmul.f32 0.5, %v7069
    %v7071 = vsub.f32 1.5, %v7070
    %v7072 = vmul.f32 %v7067, %v7071
    %vm7073 = vweird.f32 %v7063
    %vm7074 = vweird.f32 %v7067
    %vm7075 = vmor %vm7073, %vm7074
    %v7076 = vsel %vm7075, %v7067, %v7072
    %v7077 = vrsqrt.pop %v7064
    %v7078 = vmul.f32 %v7077, %v7064
    %v7079 = vmul.f32 %v7078, %v7077
    %v7080 = vmul.f32 0.5, %v7079
    %v7081 = vsub.f32 1.5, %v7080
    %v7082 = vmul.f32 %v7077, %v7081
    %vm7083 = vweird.f32 %v7064
    %vm7084 = vweird.f32 %v7077
    %vm7085 = vmor %vm7083, %vm7084
    %v7086 = vsel %vm7085, %v7077, %v7082
    %v7087 = vrsqrt.pop %v7065
    %v7088 = vmul.f32 %v7087, %v7065
    %v7089 = vmul.f32 %v7088, %v7087
    %v7090 = vmul.f32 0.5, %v7089
    %v7091 = vsub.f32 1.5, %v7090
    %v7092 = vmul.f32 %v7087, %v7091
    %vm7093 = vweird.f32 %v7065
    %vm7094 = vweird.f32 %v7087
    %vm7095 = vmor %vm7093, %vm7094
    %v7096 = vsel %vm7095, %v7087, %v7092
    %v7097 = vrsqrt.pop %v7066
    %v7098 = vmul.f32 %v7097, %v7066
    %v7099 = vmul.f32 %v7098, %v7097
    %v7100 = vmul.f32 0.5, %v7099
    %v7101 = vsub.f32 1.5, %v7100
    %v7102 = vmul.f32 %v7097, %v7101
    %vm7103 = vweird.f32 %v7066
    %vm7104 = vweird.f32 %v7097
    %vm7105 = vmor %vm7103, %vm7104
    %v7106 = vsel %vm7105, %v7097, %v7102
    %v7107 = vmul.f32 %v7039, %v7076
    %v7108 = vmul.f32 %v7040, %v7086
    %v7109 = vmul.f32 %v7041, %v7096
    %v7110 = vmul.f32 %v7042, %v7106
    %v7112 = vperm.slane %v634, 0
    %v7114 = vmul.f32 %v7107, %v7112
    %v7115 = vmul.f32 %v7108, %v7112
    %v7116 = vmul.f32 %v7109, %v7112
    %v7117 = vmul.f32 %v7110, %v7112
    %v7119 = vperm.slane %v635, 0
    %v7121 = vadd.f32 %v7114, %v7119
    %v7122 = vadd.f32 %v7115, %v7119
    %v7123 = vadd.f32 %v7116, %v7119
    %v7124 = vadd.f32 %v7117, %v7119
    %v7125 = vpack.c.bf16 %v7122, %v7121
    %v7126 = vpack.c.bf16 %v7124, %v7123
    %v7128 = vperm.slane %v640, 0
    %v7134 = vunpack.c.l.b16 %v636
    %v7135 = vunpack.c.l.b16 %v637
    %v7136 = vunpack.c.l.b16 %v638
    %v7137 = vunpack.c.l.b16 %v639
    %v7138 = vpack.c.b16 %v7135, %v7134
    %v7139 = vpack.c.b16 %v7137, %v7136
    %v7143 = vsel %vm729, %v7125, 0
    %v7146 = vsel %vm729, %v7126, 0
    %7148 = vmatpush.bf16.msra.mxu0 0
    %7149 = vmatpush.bf16.msra.mxu0 0
    %7150 = vmatpush.bf16.msra.mxu0 0
    %7151 = vmatpush.bf16.msra.mxu0 0
    %7152 = vmatpush.bf16.msra.mxu0 0
    %7153 = vmatpush.bf16.msra.mxu0 0
    %7154 = vmatpush.bf16.msra.mxu0 %v7139
    %7155 = vmatpush.bf16.msra.mxu0 %v7138
    %7156 = vmatmul.bf16.gmra.mxu0 %v7143
    %v7157 = vpop.f32.mrf.mxu0
    %v7158 = vadd.f32 %v7128, %v7157
    %v7159 = vpop.f32.mrf.mxu0
    %v7160 = vadd.f32 %v7128, %v7159
    %7161 = vmatmul.bf16.gmra.mxu0 %v7146
    %v7162 = vpop.f32.mrf.mxu0
    %v7163 = vadd.f32 %v7128, %v7162
    %v7164 = vpop.f32.mrf.mxu0
    %v7165 = vadd.f32 %v7128, %v7164
    %7166 = vdwg.mxu0
    %v7167 = vmul.f32 %v7158, 0.5
    %v7168 = vmul.f32 %v7160, 0.5
    %v7169 = vmul.f32 %v7163, 0.5
    %v7170 = vmul.f32 %v7165, 0.5
    %v7171 = vmul.f32 %v7158, 0.044715
    %v7172 = vmul.f32 %v7160, 0.044715
    %v7173 = vmul.f32 %v7163, 0.044715
    %v7174 = vmul.f32 %v7165, 0.044715
    %v7175 = vmul.f32 %v7171, %v7158
    %v7176 = vmul.f32 %v7172, %v7160
    %v7177 = vmul.f32 %v7173, %v7163
    %v7178 = vmul.f32 %v7174, %v7165
    %v7179 = vmul.f32 %v7175, %v7158
    %v7180 = vmul.f32 %v7176, %v7160
    %v7181 = vmul.f32 %v7177, %v7163
    %v7182 = vmul.f32 %v7178, %v7165
    %v7183 = vadd.f32 %v7158, %v7179
    %v7184 = vadd.f32 %v7160, %v7180
    %v7185 = vadd.f32 %v7163, %v7181
    %v7186 = vadd.f32 %v7165, %v7182
    %v7187 = vmul.f32 %v7183, 0.7978846
    %v7188 = vmul.f32 %v7184, 0.7978846
    %v7189 = vmul.f32 %v7185, 0.7978846
    %v7190 = vmul.f32 %v7186, 0.7978846
    %v7191 = vtanh.pop %v7187
    %v7192 = vtanh.pop %v7188
    %v7193 = vtanh.pop %v7189
    %v7194 = vtanh.pop %v7190
    %v7195 = vadd.f32 %v7191, 1.0
    %v7196 = vadd.f32 %v7192, 1.0
    %v7197 = vadd.f32 %v7193, 1.0
    %v7198 = vadd.f32 %v7194, 1.0
    %v7199 = vmul.f32 %v7167, %v7195
    %v7200 = vmul.f32 %v7168, %v7196
    %v7201 = vmul.f32 %v7169, %v7197
    %v7202 = vmul.f32 %v7170, %v7198
    %v7203 = vpack.c.bf16 %v7200, %v7199
    %v7204 = vpack.c.bf16 %v7202, %v7201
    %v7221 = vunpack.c.l.b16 %v641
    %v7222 = vunpack.c.l.b16 %v642
    %v7223 = vunpack.c.l.b16 %v643
    %v7224 = vunpack.c.l.b16 %v644
    %v7225 = vunpack.c.l.b16 %v645
    %v7226 = vunpack.c.l.b16 %v646
    %v7227 = vunpack.c.l.b16 %v647
    %v7228 = vunpack.c.l.b16 %v648
    %v7229 = vunpack.c.l.b16 %v649
    %v7230 = vunpack.c.l.b16 %v650
    %v7231 = vunpack.c.l.b16 %v651
    %v7232 = vunpack.c.l.b16 %v652
    %v7233 = vunpack.c.l.b16 %v653
    %v7234 = vunpack.c.l.b16 %v654
    %v7235 = vunpack.c.l.b16 %v655
    %v7236 = vunpack.c.l.b16 %v656
    %v7237 = vpack.c.b16 %v7222, %v7221
    %v7238 = vpack.c.b16 %v7224, %v7223
    %v7239 = vpack.c.b16 %v7226, %v7225
    %v7240 = vpack.c.b16 %v7228, %v7227
    %v7241 = vpack.c.b16 %v7230, %v7229
    %v7242 = vpack.c.b16 %v7232, %v7231
    %v7243 = vpack.c.b16 %v7234, %v7233
    %v7244 = vpack.c.b16 %v7236, %v7235
    %7253 = vmatpush.bf16.msra.mxu0 %v7244
    %7254 = vmatpush.bf16.msra.mxu0 %v7243
    %7255 = vmatpush.bf16.msra.mxu0 %v7242
    %7256 = vmatpush.bf16.msra.mxu0 %v7241
    %7257 = vmatpush.bf16.msra.mxu0 %v7240
    %7258 = vmatpush.bf16.msra.mxu0 %v7239
    %7259 = vmatpush.bf16.msra.mxu0 %v7238
    %7260 = vmatpush.bf16.msra.mxu0 %v7237
    %7261 = vmatmul.bf16.gmra.mxu0 %v7203
    %v7262 = vpop.f32.mrf.mxu0
    %v7263 = vadd.f32 0.0, %v7262
    %v7264 = vpop.f32.mrf.mxu0
    %v7265 = vadd.f32 0.0, %v7264
    %7266 = vmatmul.bf16.gmra.mxu0 %v7204
    %v7267 = vpop.f32.mrf.mxu0
    %v7268 = vadd.f32 0.0, %v7267
    %v7269 = vpop.f32.mrf.mxu0
    %v7270 = vadd.f32 0.0, %v7269
    %7271 = vdwg.mxu0
    %v7272 = vadd.f32 %v7019, %v7263
    %v7273 = vadd.f32 %v7020, %v7265
    %v7274 = vadd.f32 %v7021, %v7268
    %v7275 = vadd.f32 %v7022, %v7270
    %v7277 = vperm.slane %v657, 0
    %v7279 = vadd.f32 %v7272, %v7277
    %v7280 = vadd.f32 %v7273, %v7277
    %v7281 = vadd.f32 %v7274, %v7277
    %v7282 = vadd.f32 %v7275, %v7277
    %v7283 = vld [vmem:[%s11] sm:$0xff]
    %v7284 = vld [vmem:[%s11 + $0x8] sm:$0xff]
    %v7285 = vld [vmem:[%s11 + $0x10] sm:$0xff]
    %v7286 = vld [vmem:[%s11 + $0x18] sm:$0xff]
    %v7287 = vld [vmem:[%s11 + $0x20] sm:$0xff]
    %v7288 = vld [vmem:[%s11 + $0x28] sm:$0xff]
    %v7289 = vld [vmem:[%s11 + $0x30] sm:$0xff]
    %v7290 = vld [vmem:[%s11 + $0x38] sm:$0xff]
    %v7291 = vld [vmem:[%s11 + $0x40] sm:$0xff]
    %v7292 = vld [vmem:[%s11 + $0x48] sm:$0xff]
    %v7293 = vld [vmem:[%s11 + $0x50] sm:$0xff]
    %v7294 = vld [vmem:[%s11 + $0x58] sm:$0xff]
    %v7295 = vld [vmem:[%s11 + $0x60] sm:$0xff]
    %v7296 = vld [vmem:[%s11 + $0x68] sm:$0xff]
    %v7297 = vld [vmem:[%s11 + $0x70] sm:$0xff]
    %v7298 = vld [vmem:[%s11 + $0x78] sm:$0xff]
    %v7299 = vld [vmem:[%s11 + $0x80] sm:$0xff]
    %v7300 = vld [vmem:[%s11 + $0x88] sm:$0xff]
    %v7301 = vld [vmem:[%s11 + $0x90] sm:$0xff]
    %v7302 = vld [vmem:[%s11 + $0x98] sm:$0xff]
    %v7303 = vld [vmem:[%s11 + $0xa0] sm:$0xff]
    %v7304 = vld [vmem:[%s11 + $0xa8] sm:$0xff]
    %v7305 = vld [vmem:[%s11 + $0xb0] sm:$0xff]
    %v7306 = vld [vmem:[%s11 + $0xb8] sm:$0xff]
    %v7307 = vld [vmem:[%s11 + $0xc0] sm:$0xff]
    %v7308 = vld [vmem:[%s11 + $0xc8] sm:$0xff]
    %v7309 = vld [vmem:[%s11 + $0xd0] sm:$0xff]
    %v7310 = vld [vmem:[%s11 + $0xd8] sm:$0xff]
    %v7311 = vld [vmem:[%s11 + $0xe0] sm:$0xff]
    %v7312 = vld [vmem:[%s11 + $0xe8] sm:$0xff]
    %v7313 = vld [vmem:[%s11 + $0xf0] sm:$0xff]
    %v7314 = vld [vmem:[%s11 + $0xf8] sm:$0xff]
    %v7316 = vperm.slane %v658, 0
    %v7318 = vmul.f32 %v5895, %v7316
    %v7319 = vmul.f32 %v5896, %v7316
    %v7320 = vmul.f32 %v5897, %v7316
    %v7321 = vmul.f32 %v5898, %v7316
    %v7322 = vmul.f32 %v5899, %v7316
    %v7323 = vmul.f32 %v5900, %v7316
    %v7324 = vmul.f32 %v5901, %v7316
    %v7325 = vmul.f32 %v5902, %v7316
    %v7326 = vmul.f32 %v5903, %v7316
    %v7327 = vmul.f32 %v5904, %v7316
    %v7328 = vmul.f32 %v5905, %v7316
    %v7329 = vmul.f32 %v5906, %v7316
    %v7330 = vmul.f32 %v5907, %v7316
    %v7331 = vmul.f32 %v5908, %v7316
    %v7332 = vmul.f32 %v5909, %v7316
    %v7333 = vmul.f32 %v5910, %v7316
    %v7335 = vperm.slane %v659, 0
    %v7337 = vadd.f32 %v7318, %v7335
    %v7338 = vadd.f32 %v7319, %v7335
    %v7339 = vadd.f32 %v7320, %v7335
    %v7340 = vadd.f32 %v7321, %v7335
    %v7341 = vadd.f32 %v7322, %v7335
    %v7342 = vadd.f32 %v7323, %v7335
    %v7343 = vadd.f32 %v7324, %v7335
    %v7344 = vadd.f32 %v7325, %v7335
    %v7345 = vadd.f32 %v7326, %v7335
    %v7346 = vadd.f32 %v7327, %v7335
    %v7347 = vadd.f32 %v7328, %v7335
    %v7348 = vadd.f32 %v7329, %v7335
    %v7349 = vadd.f32 %v7330, %v7335
    %v7350 = vadd.f32 %v7331, %v7335
    %v7351 = vadd.f32 %v7332, %v7335
    %v7352 = vadd.f32 %v7333, %v7335
    %v7354 = vperm.slane %v660, 0
    %v7356 = vmul.f32 %v5541, %v7354
    %v7357 = vmul.f32 %v5542, %v7354
    %v7358 = vmul.f32 %v5543, %v7354
    %v7359 = vmul.f32 %v5544, %v7354
    %v7361 = vperm.slane %v661, 0
    %v7363 = vadd.f32 %v7356, %v7361
    %v7364 = vadd.f32 %v7357, %v7361
    %v7365 = vadd.f32 %v7358, %v7361
    %v7366 = vadd.f32 %v7359, %v7361
    %v7367 = vpack.c.bf16 %v7338, %v7337
    %v7368 = vpack.c.bf16 %v7340, %v7339
    %v7369 = vpack.c.bf16 %v7342, %v7341
    %v7370 = vpack.c.bf16 %v7344, %v7343
    %v7371 = vpack.c.bf16 %v7346, %v7345
    %v7372 = vpack.c.bf16 %v7348, %v7347
    %v7373 = vpack.c.bf16 %v7350, %v7349
    %v7374 = vpack.c.bf16 %v7352, %v7351
    %v7376 = vperm.slane %v666, 0
    %v7382 = vunpack.c.l.b16 %v662
    %v7383 = vunpack.c.l.b16 %v663
    %v7384 = vunpack.c.l.b16 %v664
    %v7385 = vunpack.c.l.b16 %v665
    %v7386 = vpack.c.b16 %v7383, %v7382
    %v7387 = vpack.c.b16 %v7385, %v7384
    %v7391 = vsel %vm729, %v7367, 0
    %v7394 = vsel %vm729, %v7368, 0
    %v7397 = vsel %vm729, %v7369, 0
    %v7400 = vsel %vm729, %v7370, 0
    %v7403 = vsel %vm729, %v7371, 0
    %v7406 = vsel %vm729, %v7372, 0
    %v7409 = vsel %vm729, %v7373, 0
    %v7412 = vsel %vm729, %v7374, 0
    %7414 = vmatpush.bf16.msra.mxu0 0
    %7415 = vmatpush.bf16.msra.mxu0 0
    %7416 = vmatpush.bf16.msra.mxu0 0
    %7417 = vmatpush.bf16.msra.mxu0 0
    %7418 = vmatpush.bf16.msra.mxu0 0
    %7419 = vmatpush.bf16.msra.mxu0 0
    %7420 = vmatpush.bf16.msra.mxu0 %v7387
    %7421 = vmatpush.bf16.msra.mxu0 %v7386
    %7422 = vmatmul.bf16.gmra.mxu0 %v7391
    %v7423 = vpop.f32.mrf.mxu0
    %v7424 = vadd.f32 %v7376, %v7423
    %v7425 = vpop.f32.mrf.mxu0
    %v7426 = vadd.f32 %v7376, %v7425
    %7427 = vmatmul.bf16.gmra.mxu0 %v7394
    %v7428 = vpop.f32.mrf.mxu0
    %v7429 = vadd.f32 %v7376, %v7428
    %v7430 = vpop.f32.mrf.mxu0
    %v7431 = vadd.f32 %v7376, %v7430
    %7432 = vmatmul.bf16.gmra.mxu0 %v7397
    %v7433 = vpop.f32.mrf.mxu0
    %v7434 = vadd.f32 %v7376, %v7433
    %v7435 = vpop.f32.mrf.mxu0
    %v7436 = vadd.f32 %v7376, %v7435
    %7437 = vmatmul.bf16.gmra.mxu0 %v7400
    %v7438 = vpop.f32.mrf.mxu0
    %v7439 = vadd.f32 %v7376, %v7438
    %v7440 = vpop.f32.mrf.mxu0
    %v7441 = vadd.f32 %v7376, %v7440
    %7442 = vmatmul.bf16.gmra.mxu0 %v7403
    %v7443 = vpop.f32.mrf.mxu0
    %v7444 = vadd.f32 %v7376, %v7443
    %v7445 = vpop.f32.mrf.mxu0
    %v7446 = vadd.f32 %v7376, %v7445
    %7447 = vmatmul.bf16.gmra.mxu0 %v7406
    %v7448 = vpop.f32.mrf.mxu0
    %v7449 = vadd.f32 %v7376, %v7448
    %v7450 = vpop.f32.mrf.mxu0
    %v7451 = vadd.f32 %v7376, %v7450
    %7452 = vmatmul.bf16.gmra.mxu0 %v7409
    %v7453 = vpop.f32.mrf.mxu0
    %v7454 = vadd.f32 %v7376, %v7453
    %v7455 = vpop.f32.mrf.mxu0
    %v7456 = vadd.f32 %v7376, %v7455
    %7457 = vmatmul.bf16.gmra.mxu0 %v7412
    %v7458 = vpop.f32.mrf.mxu0
    %v7459 = vadd.f32 %v7376, %v7458
    %v7460 = vpop.f32.mrf.mxu0
    %v7461 = vadd.f32 %v7376, %v7460
    %7462 = vdwg.mxu0
    %v7463 = vpack.c.bf16 %v7364, %v7363
    %v7464 = vpack.c.bf16 %v7366, %v7365
    %v7466 = vperm.slane %v671, 0
    %v7472 = vunpack.c.l.b16 %v667
    %v7473 = vunpack.c.l.b16 %v668
    %v7474 = vunpack.c.l.b16 %v669
    %v7475 = vunpack.c.l.b16 %v670
    %v7476 = vpack.c.b16 %v7473, %v7472
    %v7477 = vpack.c.b16 %v7475, %v7474
    %v7481 = vsel %vm729, %v7463, 0
    %v7484 = vsel %vm729, %v7464, 0
    %7486 = vmatpush.bf16.msra.mxu0 0
    %7487 = vmatpush.bf16.msra.mxu0 0
    %7488 = vmatpush.bf16.msra.mxu0 0
    %7489 = vmatpush.bf16.msra.mxu0 0
    %7490 = vmatpush.bf16.msra.mxu0 0
    %7491 = vmatpush.bf16.msra.mxu0 0
    %7492 = vmatpush.bf16.msra.mxu0 %v7477
    %7493 = vmatpush.bf16.msra.mxu0 %v7476
    %7494 = vmatmul.bf16.gmra.mxu0 %v7481
    %v7495 = vpop.f32.mrf.mxu0
    %v7496 = vadd.f32 %v7466, %v7495
    %v7497 = vpop.f32.mrf.mxu0
    %v7498 = vadd.f32 %v7466, %v7497
    %7499 = vmatmul.bf16.gmra.mxu0 %v7484
    %v7500 = vpop.f32.mrf.mxu0
    %v7501 = vadd.f32 %v7466, %v7500
    %v7502 = vpop.f32.mrf.mxu0
    %v7503 = vadd.f32 %v7466, %v7502
    %7504 = vdwg.mxu0
    %v7505 = vpack.c.bf16 %v7424, %v7424
    %v7506 = vpack.c.bf16 %v7426, %v7426
    %v7507 = vpack.c.bf16 %v7429, %v7429
    %v7508 = vpack.c.bf16 %v7431, %v7431
    %v7509 = vpack.c.bf16 %v7434, %v7434
    %v7510 = vpack.c.bf16 %v7436, %v7436
    %v7511 = vpack.c.bf16 %v7439, %v7439
    %v7512 = vpack.c.bf16 %v7441, %v7441
    %v7513 = vpack.c.bf16 %v7444, %v7444
    %v7514 = vpack.c.bf16 %v7446, %v7446
    %v7515 = vpack.c.bf16 %v7449, %v7449
    %v7516 = vpack.c.bf16 %v7451, %v7451
    %v7517 = vpack.c.bf16 %v7454, %v7454
    %v7518 = vpack.c.bf16 %v7456, %v7456
    %v7519 = vpack.c.bf16 %v7459, %v7459
    %v7520 = vpack.c.bf16 %v7461, %v7461
    %v7521 = vpack.c.bf16 %v7496, %v7496
    %v7522 = vpack.c.bf16 %v7498, %v7498
    %v7523 = vpack.c.bf16 %v7501, %v7501
    %v7524 = vpack.c.bf16 %v7503, %v7503
    %v7533 = vunpack.c.l.b16 %v7505
    %v7534 = vunpack.c.l.b16 %v7506
    %v7535 = vunpack.c.l.b16 %v7507
    %v7536 = vunpack.c.l.b16 %v7508
    %v7537 = vunpack.c.l.b16 %v7509
    %v7538 = vunpack.c.l.b16 %v7510
    %v7539 = vunpack.c.l.b16 %v7511
    %v7540 = vunpack.c.l.b16 %v7512
    %v7541 = vpack.c.b16 %v7534, %v7533
    %v7542 = vpack.c.b16 %v7536, %v7535
    %v7543 = vpack.c.b16 %v7538, %v7537
    %v7544 = vpack.c.b16 %v7540, %v7539
    %v7547 = vunpack.c.l.b16 %v7521
    %v7548 = vunpack.c.l.b16 %v7522
    %v7549 = vpack.c.b16 %v7548, %v7547
    %v7551 = vsel %vm892, %v7541, 0
    %v7554 = vsel %vm892, %v7542, 0
    %v7557 = vsel %vm892, %v7543, 0
    %v7560 = vsel %vm892, %v7544, 0
    %v7563 = vsel %vm892, %v7549, 0
    %7565 = vmatpush.bf16.xpose.msra.mxu0 0
    %7566 = vmatpush.bf16.xpose.msra.mxu0 0
    %7567 = vmatpush.bf16.xpose.msra.mxu0 0
    %7568 = vmatpush.bf16.xpose.msra.mxu0 0
    %7569 = vmatpush.bf16.xpose.msra.mxu0 0
    %7570 = vmatpush.bf16.xpose.msra.mxu0 0
    %7571 = vmatpush.bf16.xpose.msra.mxu0 0
    %7572 = vmatpush.bf16.xpose.msra.mxu0 %v7563
    %7573 = vmatmul.bf16.gmra.mxu0 %v7551
    %v7574 = vpop.f32.mrf.mxu0
    %v7575 = vadd.f32 %v7283, %v7574
    %v7576 = vpop.f32.mrf.mxu0
    %v7577 = vadd.f32 %v7284, %v7576
    %7578 = vmatmul.bf16.gmra.mxu0 %v7554
    %v7579 = vpop.f32.mrf.mxu0
    %v7580 = vadd.f32 %v7285, %v7579
    %v7581 = vpop.f32.mrf.mxu0
    %v7582 = vadd.f32 %v7286, %v7581
    %7583 = vmatmul.bf16.gmra.mxu0 %v7557
    %v7584 = vpop.f32.mrf.mxu0
    %v7585 = vadd.f32 %v7287, %v7584
    %v7586 = vpop.f32.mrf.mxu0
    %v7587 = vadd.f32 %v7288, %v7586
    %7588 = vmatmul.bf16.gmra.mxu0 %v7560
    %v7589 = vpop.f32.mrf.mxu0
    %v7590 = vadd.f32 %v7289, %v7589
    %v7591 = vpop.f32.mrf.mxu0
    %v7592 = vadd.f32 %v7290, %v7591
    %7593 = vdwg.mxu0
    %v7602 = vunpack.c.l.b16 %v7513
    %v7603 = vunpack.c.l.b16 %v7514
    %v7604 = vunpack.c.l.b16 %v7515
    %v7605 = vunpack.c.l.b16 %v7516
    %v7606 = vunpack.c.l.b16 %v7517
    %v7607 = vunpack.c.l.b16 %v7518
    %v7608 = vunpack.c.l.b16 %v7519
    %v7609 = vunpack.c.l.b16 %v7520
    %v7610 = vpack.c.b16 %v7603, %v7602
    %v7611 = vpack.c.b16 %v7605, %v7604
    %v7612 = vpack.c.b16 %v7607, %v7606
    %v7613 = vpack.c.b16 %v7609, %v7608
    %v7616 = vunpack.c.l.b16 %v7523
    %v7617 = vunpack.c.l.b16 %v7524
    %v7618 = vpack.c.b16 %v7617, %v7616
    %v7620 = vsel %vm892, %v7610, 0
    %v7623 = vsel %vm892, %v7611, 0
    %v7626 = vsel %vm892, %v7612, 0
    %v7629 = vsel %vm892, %v7613, 0
    %v7632 = vsel %vm892, %v7618, 0
    %7634 = vmatpush.bf16.xpose.msra.mxu0 0
    %7635 = vmatpush.bf16.xpose.msra.mxu0 0
    %7636 = vmatpush.bf16.xpose.msra.mxu0 0
    %7637 = vmatpush.bf16.xpose.msra.mxu0 0
    %7638 = vmatpush.bf16.xpose.msra.mxu0 0
    %7639 = vmatpush.bf16.xpose.msra.mxu0 0
    %7640 = vmatpush.bf16.xpose.msra.mxu0 0
    %7641 = vmatpush.bf16.xpose.msra.mxu0 %v7632
    %7642 = vmatmul.bf16.gmra.mxu0 %v7620
    %v7643 = vpop.f32.mrf.mxu0
    %v7644 = vadd.f32 %v7283, %v7643
    %v7645 = vpop.f32.mrf.mxu0
    %v7646 = vadd.f32 %v7284, %v7645
    %7647 = vmatmul.bf16.gmra.mxu0 %v7623
    %v7648 = vpop.f32.mrf.mxu0
    %v7649 = vadd.f32 %v7285, %v7648
    %v7650 = vpop.f32.mrf.mxu0
    %v7651 = vadd.f32 %v7286, %v7650
    %7652 = vmatmul.bf16.gmra.mxu0 %v7626
    %v7653 = vpop.f32.mrf.mxu0
    %v7654 = vadd.f32 %v7287, %v7653
    %v7655 = vpop.f32.mrf.mxu0
    %v7656 = vadd.f32 %v7288, %v7655
    %7657 = vmatmul.bf16.gmra.mxu0 %v7629
    %v7658 = vpop.f32.mrf.mxu0
    %v7659 = vadd.f32 %v7289, %v7658
    %v7660 = vpop.f32.mrf.mxu0
    %v7661 = vadd.f32 %v7290, %v7660
    %7662 = vdwg.mxu0
    %v7663 = vsel %vm940, %v7575, -inf
    %7664 = vmax.xlane.f32.xlu0 %v7663
    %v7665 = vpop.xlane.xlu0 %7664
    %v7666 = vsel %vm940, %v7577, -inf
    %7667 = vmax.xlane.f32.xlu0 %v7666
    %v7668 = vpop.xlane.xlu0 %7667
    %v7669 = vsel %vm940, %v7580, -inf
    %7670 = vmax.xlane.f32.xlu0 %v7669
    %v7671 = vpop.xlane.xlu0 %7670
    %v7672 = vsel %vm940, %v7582, -inf
    %7673 = vmax.xlane.f32.xlu0 %v7672
    %v7674 = vpop.xlane.xlu0 %7673
    %v7675 = vsel %vm940, %v7585, -inf
    %7676 = vmax.xlane.f32.xlu0 %v7675
    %v7677 = vpop.xlane.xlu0 %7676
    %v7678 = vsel %vm940, %v7587, -inf
    %7679 = vmax.xlane.f32.xlu0 %v7678
    %v7680 = vpop.xlane.xlu0 %7679
    %v7681 = vsel %vm940, %v7590, -inf
    %7682 = vmax.xlane.f32.xlu0 %v7681
    %v7683 = vpop.xlane.xlu0 %7682
    %v7684 = vsel %vm940, %v7592, -inf
    %7685 = vmax.xlane.f32.xlu0 %v7684
    %v7686 = vpop.xlane.xlu0 %7685
    %v7687 = vsel %vm940, %v7644, -inf
    %7688 = vmax.xlane.f32.xlu0 %v7687
    %v7689 = vpop.xlane.xlu0 %7688
    %v7690 = vsel %vm940, %v7646, -inf
    %7691 = vmax.xlane.f32.xlu0 %v7690
    %v7692 = vpop.xlane.xlu0 %7691
    %v7693 = vsel %vm940, %v7649, -inf
    %7694 = vmax.xlane.f32.xlu0 %v7693
    %v7695 = vpop.xlane.xlu0 %7694
    %v7696 = vsel %vm940, %v7651, -inf
    %7697 = vmax.xlane.f32.xlu0 %v7696
    %v7698 = vpop.xlane.xlu0 %7697
    %v7699 = vsel %vm940, %v7654, -inf
    %7700 = vmax.xlane.f32.xlu0 %v7699
    %v7701 = vpop.xlane.xlu0 %7700
    %v7702 = vsel %vm940, %v7656, -inf
    %7703 = vmax.xlane.f32.xlu0 %v7702
    %v7704 = vpop.xlane.xlu0 %7703
    %v7705 = vsel %vm940, %v7659, -inf
    %7706 = vmax.xlane.f32.xlu0 %v7705
    %v7707 = vpop.xlane.xlu0 %7706
    %v7708 = vsel %vm940, %v7661, -inf
    %7709 = vmax.xlane.f32.xlu0 %v7708
    %v7710 = vpop.xlane.xlu0 %7709
    %v7711 = vsub.f32 %v7575, %v7665
    %v7712 = vsub.f32 %v7577, %v7668
    %v7713 = vsub.f32 %v7580, %v7671
    %v7714 = vsub.f32 %v7582, %v7674
    %v7715 = vsub.f32 %v7585, %v7677
    %v7716 = vsub.f32 %v7587, %v7680
    %v7717 = vsub.f32 %v7590, %v7683
    %v7718 = vsub.f32 %v7592, %v7686
    %v7719 = vsub.f32 %v7644, %v7689
    %v7720 = vsub.f32 %v7646, %v7692
    %v7721 = vsub.f32 %v7649, %v7695
    %v7722 = vsub.f32 %v7651, %v7698
    %v7723 = vsub.f32 %v7654, %v7701
    %v7724 = vsub.f32 %v7656, %v7704
    %v7725 = vsub.f32 %v7659, %v7707
    %v7726 = vsub.f32 %v7661, %v7710
    %v7727 = vmul.f32 %v7711, 1.442695
    %v7728 = vpow.pop %v7727
    %v7729 = vmul.f32 %v7712, 1.442695
    %v7730 = vpow.pop %v7729
    %v7731 = vmul.f32 %v7713, 1.442695
    %v7732 = vpow.pop %v7731
    %v7733 = vmul.f32 %v7714, 1.442695
    %v7734 = vpow.pop %v7733
    %v7735 = vmul.f32 %v7715, 1.442695
    %v7736 = vpow.pop %v7735
    %v7737 = vmul.f32 %v7716, 1.442695
    %v7738 = vpow.pop %v7737
    %v7739 = vmul.f32 %v7717, 1.442695
    %v7740 = vpow.pop %v7739
    %v7741 = vmul.f32 %v7718, 1.442695
    %v7742 = vpow.pop %v7741
    %v7743 = vmul.f32 %v7719, 1.442695
    %v7744 = vpow.pop %v7743
    %v7745 = vmul.f32 %v7720, 1.442695
    %v7746 = vpow.pop %v7745
    %v7747 = vmul.f32 %v7721, 1.442695
    %v7748 = vpow.pop %v7747
    %v7749 = vmul.f32 %v7722, 1.442695
    %v7750 = vpow.pop %v7749
    %v7751 = vmul.f32 %v7723, 1.442695
    %v7752 = vpow.pop %v7751
    %v7753 = vmul.f32 %v7724, 1.442695
    %v7754 = vpow.pop %v7753
    %v7755 = vmul.f32 %v7725, 1.442695
    %v7756 = vpow.pop %v7755
    %v7757 = vmul.f32 %v7726, 1.442695
    %v7758 = vpow.pop %v7757
    %v7759 = vsel %vm940, %v7728, 0.0
    %7760 = vadd.xlane.f32.xlu0 %v7759
    %v7761 = vpop.xlane.xlu0 %7760
    %v7762 = vsel %vm940, %v7730, 0.0
    %7763 = vadd.xlane.f32.xlu0 %v7762
    %v7764 = vpop.xlane.xlu0 %7763
    %v7765 = vsel %vm940, %v7732, 0.0
    %7766 = vadd.xlane.f32.xlu0 %v7765
    %v7767 = vpop.xlane.xlu0 %7766
    %v7768 = vsel %vm940, %v7734, 0.0
    %7769 = vadd.xlane.f32.xlu0 %v7768
    %v7770 = vpop.xlane.xlu0 %7769
    %v7771 = vsel %vm940, %v7736, 0.0
    %7772 = vadd.xlane.f32.xlu0 %v7771
    %v7773 = vpop.xlane.xlu0 %7772
    %v7774 = vsel %vm940, %v7738, 0.0
    %7775 = vadd.xlane.f32.xlu0 %v7774
    %v7776 = vpop.xlane.xlu0 %7775
    %v7777 = vsel %vm940, %v7740, 0.0
    %7778 = vadd.xlane.f32.xlu0 %v7777
    %v7779 = vpop.xlane.xlu0 %7778
    %v7780 = vsel %vm940, %v7742, 0.0
    %7781 = vadd.xlane.f32.xlu0 %v7780
    %v7782 = vpop.xlane.xlu0 %7781
    %v7783 = vsel %vm940, %v7744, 0.0
    %7784 = vadd.xlane.f32.xlu0 %v7783
    %v7785 = vpop.xlane.xlu0 %7784
    %v7786 = vsel %vm940, %v7746, 0.0
    %7787 = vadd.xlane.f32.xlu0 %v7786
    %v7788 = vpop.xlane.xlu0 %7787
    %v7789 = vsel %vm940, %v7748, 0.0
    %7790 = vadd.xlane.f32.xlu0 %v7789
    %v7791 = vpop.xlane.xlu0 %7790
    %v7792 = vsel %vm940, %v7750, 0.0
    %7793 = vadd.xlane.f32.xlu0 %v7792
    %v7794 = vpop.xlane.xlu0 %7793
    %v7795 = vsel %vm940, %v7752, 0.0
    %7796 = vadd.xlane.f32.xlu0 %v7795
    %v7797 = vpop.xlane.xlu0 %7796
    %v7798 = vsel %vm940, %v7754, 0.0
    %7799 = vadd.xlane.f32.xlu0 %v7798
    %v7800 = vpop.xlane.xlu0 %7799
    %v7801 = vsel %vm940, %v7756, 0.0
    %7802 = vadd.xlane.f32.xlu0 %v7801
    %v7803 = vpop.xlane.xlu0 %7802
    %v7804 = vsel %vm940, %v7758, 0.0
    %7805 = vadd.xlane.f32.xlu0 %v7804
    %v7806 = vpop.xlane.xlu0 %7805
    %v7807 = vrcp.pop %v7761
    %v7808 = vrcp.pop %v7764
    %v7809 = vrcp.pop %v7767
    %v7810 = vrcp.pop %v7770
    %v7811 = vrcp.pop %v7773
    %v7812 = vrcp.pop %v7776
    %v7813 = vrcp.pop %v7779
    %v7814 = vrcp.pop %v7782
    %v7815 = vrcp.pop %v7785
    %v7816 = vrcp.pop %v7788
    %v7817 = vrcp.pop %v7791
    %v7818 = vrcp.pop %v7794
    %v7819 = vrcp.pop %v7797
    %v7820 = vrcp.pop %v7800
    %v7821 = vrcp.pop %v7803
    %v7822 = vrcp.pop %v7806
    %v7823 = vpack.c.bf16 %v7728, %v7728
    %v7824 = vpack.c.bf16 %v7730, %v7730
    %v7825 = vpack.c.bf16 %v7732, %v7732
    %v7826 = vpack.c.bf16 %v7734, %v7734
    %v7827 = vpack.c.bf16 %v7736, %v7736
    %v7828 = vpack.c.bf16 %v7738, %v7738
    %v7829 = vpack.c.bf16 %v7740, %v7740
    %v7830 = vpack.c.bf16 %v7742, %v7742
    %v7831 = vpack.c.bf16 %v7744, %v7744
    %v7832 = vpack.c.bf16 %v7746, %v7746
    %v7833 = vpack.c.bf16 %v7748, %v7748
    %v7834 = vpack.c.bf16 %v7750, %v7750
    %v7835 = vpack.c.bf16 %v7752, %v7752
    %v7836 = vpack.c.bf16 %v7754, %v7754
    %v7837 = vpack.c.bf16 %v7756, %v7756
    %v7838 = vpack.c.bf16 %v7758, %v7758
    %v7847 = vunpack.c.l.b16 %v7823
    %v7848 = vunpack.c.l.b16 %v7824
    %v7849 = vunpack.c.l.b16 %v7825
    %v7850 = vunpack.c.l.b16 %v7826
    %v7851 = vunpack.c.l.b16 %v7827
    %v7852 = vunpack.c.l.b16 %v7828
    %v7853 = vunpack.c.l.b16 %v7829
    %v7854 = vunpack.c.l.b16 %v7830
    %v7855 = vpack.c.b16 %v7848, %v7847
    %v7856 = vpack.c.b16 %v7850, %v7849
    %v7857 = vpack.c.b16 %v7852, %v7851
    %v7858 = vpack.c.b16 %v7854, %v7853
    %7859 = vrot.lane.b32.xlu0 %v7549, 96
    %v7860 = vpop.permute.xlu0 %7859
    %v7863 = vsel %vm940, %v7855, 0
    %v7866 = vsel %vm940, %v7856, 0
    %v7869 = vsel %vm940, %v7857, 0
    %v7872 = vsel %vm940, %v7858, 0
    %7874 = vmatpush.bf16.msra.mxu0 0
    %7875 = vmatpush.bf16.msra.mxu0 0
    %7876 = vmatpush.bf16.msra.mxu0 0
    %7877 = vmatpush.bf16.msra.mxu0 0
    %7878 = vmatpush.bf16.msra.mxu0 0
    %7879 = vmatpush.bf16.msra.mxu0 0
    %7880 = vmatpush.bf16.msra.mxu0 0
    %7881 = vmatpush.bf16.msra.mxu0 %v7860
    %7882 = vmatmul.bf16.gmra.mxu0 %v7863
    %v7883 = vpop.f32.mrf.mxu0
    %v7884 = vadd.f32 0.0, %v7883
    %v7885 = vpop.f32.mrf.mxu0
    %v7886 = vadd.f32 0.0, %v7885
    %7887 = vmatmul.bf16.gmra.mxu0 %v7866
    %v7888 = vpop.f32.mrf.mxu0
    %v7889 = vadd.f32 0.0, %v7888
    %v7890 = vpop.f32.mrf.mxu0
    %v7891 = vadd.f32 0.0, %v7890
    %7892 = vmatmul.bf16.gmra.mxu0 %v7869
    %v7893 = vpop.f32.mrf.mxu0
    %v7894 = vadd.f32 0.0, %v7893
    %v7895 = vpop.f32.mrf.mxu0
    %v7896 = vadd.f32 0.0, %v7895
    %7897 = vmatmul.bf16.gmra.mxu0 %v7872
    %v7898 = vpop.f32.mrf.mxu0
    %v7899 = vadd.f32 0.0, %v7898
    %v7900 = vpop.f32.mrf.mxu0
    %v7901 = vadd.f32 0.0, %v7900
    %7902 = vdwg.mxu0
    %v7911 = vunpack.c.l.b16 %v7831
    %v7912 = vunpack.c.l.b16 %v7832
    %v7913 = vunpack.c.l.b16 %v7833
    %v7914 = vunpack.c.l.b16 %v7834
    %v7915 = vunpack.c.l.b16 %v7835
    %v7916 = vunpack.c.l.b16 %v7836
    %v7917 = vunpack.c.l.b16 %v7837
    %v7918 = vunpack.c.l.b16 %v7838
    %v7919 = vpack.c.b16 %v7912, %v7911
    %v7920 = vpack.c.b16 %v7914, %v7913
    %v7921 = vpack.c.b16 %v7916, %v7915
    %v7922 = vpack.c.b16 %v7918, %v7917
    %7923 = vrot.lane.b32.xlu0 %v7618, 96
    %v7924 = vpop.permute.xlu0 %7923
    %v7927 = vsel %vm940, %v7919, 0
    %v7930 = vsel %vm940, %v7920, 0
    %v7933 = vsel %vm940, %v7921, 0
    %v7936 = vsel %vm940, %v7922, 0
    %7938 = vmatpush.bf16.msra.mxu0 0
    %7939 = vmatpush.bf16.msra.mxu0 0
    %7940 = vmatpush.bf16.msra.mxu0 0
    %7941 = vmatpush.bf16.msra.mxu0 0
    %7942 = vmatpush.bf16.msra.mxu0 0
    %7943 = vmatpush.bf16.msra.mxu0 0
    %7944 = vmatpush.bf16.msra.mxu0 0
    %7945 = vmatpush.bf16.msra.mxu0 %v7924
    %7946 = vmatmul.bf16.gmra.mxu0 %v7927
    %v7947 = vpop.f32.mrf.mxu0
    %v7948 = vadd.f32 0.0, %v7947
    %v7949 = vpop.f32.mrf.mxu0
    %v7950 = vadd.f32 0.0, %v7949
    %7951 = vmatmul.bf16.gmra.mxu0 %v7930
    %v7952 = vpop.f32.mrf.mxu0
    %v7953 = vadd.f32 0.0, %v7952
    %v7954 = vpop.f32.mrf.mxu0
    %v7955 = vadd.f32 0.0, %v7954
    %7956 = vmatmul.bf16.gmra.mxu0 %v7933
    %v7957 = vpop.f32.mrf.mxu0
    %v7958 = vadd.f32 0.0, %v7957
    %v7959 = vpop.f32.mrf.mxu0
    %v7960 = vadd.f32 0.0, %v7959
    %7961 = vmatmul.bf16.gmra.mxu0 %v7936
    %v7962 = vpop.f32.mrf.mxu0
    %v7963 = vadd.f32 0.0, %v7962
    %v7964 = vpop.f32.mrf.mxu0
    %v7965 = vadd.f32 0.0, %v7964
    %7966 = vdwg.mxu0
    %v7967 = vmul.f32 %v7884, %v7807
    %v7968 = vmul.f32 %v7886, %v7808
    %v7969 = vmul.f32 %v7889, %v7809
    %v7970 = vmul.f32 %v7891, %v7810
    %v7971 = vmul.f32 %v7894, %v7811
    %v7972 = vmul.f32 %v7896, %v7812
    %v7973 = vmul.f32 %v7899, %v7813
    %v7974 = vmul.f32 %v7901, %v7814
    %v7975 = vmul.f32 %v7948, %v7815
    %v7976 = vmul.f32 %v7950, %v7816
    %v7977 = vmul.f32 %v7953, %v7817
    %v7978 = vmul.f32 %v7955, %v7818
    %v7979 = vmul.f32 %v7958, %v7819
    %v7980 = vmul.f32 %v7960, %v7820
    %v7981 = vmul.f32 %v7963, %v7821
    %v7982 = vmul.f32 %v7965, %v7822
    %7983 = vrot.lane.b32.xlu0 %v7541, 120
    %v7984 = vpop.permute.xlu0 %7983
    %7985 = vrot.lane.b32.xlu0 %v7542, 120
    %v7986 = vpop.permute.xlu0 %7985
    %7987 = vrot.lane.b32.xlu0 %v7543, 120
    %v7988 = vpop.permute.xlu0 %7987
    %7989 = vrot.lane.b32.xlu0 %v7544, 120
    %v7990 = vpop.permute.xlu0 %7989
    %7991 = vrot.lane.b32.xlu0 %v7549, 120
    %v7992 = vpop.permute.xlu0 %7991
    %v7994 = vsel %vm892, %v7984, 0
    %v7997 = vsel %vm892, %v7986, 0
    %v8000 = vsel %vm892, %v7988, 0
    %v8003 = vsel %vm892, %v7990, 0
    %v8006 = vsel %vm892, %v7992, 0
    %8008 = vmatpush.bf16.xpose.msra.mxu0 0
    %8009 = vmatpush.bf16.xpose.msra.mxu0 0
    %8010 = vmatpush.bf16.xpose.msra.mxu0 0
    %8011 = vmatpush.bf16.xpose.msra.mxu0 0
    %8012 = vmatpush.bf16.xpose.msra.mxu0 0
    %8013 = vmatpush.bf16.xpose.msra.mxu0 0
    %8014 = vmatpush.bf16.xpose.msra.mxu0 0
    %8015 = vmatpush.bf16.xpose.msra.mxu0 %v8006
    %8016 = vmatmul.bf16.gmra.mxu0 %v7994
    %v8017 = vpop.f32.mrf.mxu0
    %v8018 = vadd.f32 %v7291, %v8017
    %v8019 = vpop.f32.mrf.mxu0
    %v8020 = vadd.f32 %v7292, %v8019
    %8021 = vmatmul.bf16.gmra.mxu0 %v7997
    %v8022 = vpop.f32.mrf.mxu0
    %v8023 = vadd.f32 %v7293, %v8022
    %v8024 = vpop.f32.mrf.mxu0
    %v8025 = vadd.f32 %v7294, %v8024
    %8026 = vmatmul.bf16.gmra.mxu0 %v8000
    %v8027 = vpop.f32.mrf.mxu0
    %v8028 = vadd.f32 %v7295, %v8027
    %v8029 = vpop.f32.mrf.mxu0
    %v8030 = vadd.f32 %v7296, %v8029
    %8031 = vmatmul.bf16.gmra.mxu0 %v8003
    %v8032 = vpop.f32.mrf.mxu0
    %v8033 = vadd.f32 %v7297, %v8032
    %v8034 = vpop.f32.mrf.mxu0
    %v8035 = vadd.f32 %v7298, %v8034
    %8036 = vdwg.mxu0
    %8037 = vrot.lane.b32.xlu0 %v7610, 120
    %v8038 = vpop.permute.xlu0 %8037
    %8039 = vrot.lane.b32.xlu0 %v7611, 120
    %v8040 = vpop.permute.xlu0 %8039
    %8041 = vrot.lane.b32.xlu0 %v7612, 120
    %v8042 = vpop.permute.xlu0 %8041
    %8043 = vrot.lane.b32.xlu0 %v7613, 120
    %v8044 = vpop.permute.xlu0 %8043
    %8045 = vrot.lane.b32.xlu0 %v7618, 120
    %v8046 = vpop.permute.xlu0 %8045
    %v8048 = vsel %vm892, %v8038, 0
    %v8051 = vsel %vm892, %v8040, 0
    %v8054 = vsel %vm892, %v8042, 0
    %v8057 = vsel %vm892, %v8044, 0
    %v8060 = vsel %vm892, %v8046, 0
    %8062 = vmatpush.bf16.xpose.msra.mxu0 0
    %8063 = vmatpush.bf16.xpose.msra.mxu0 0
    %8064 = vmatpush.bf16.xpose.msra.mxu0 0
    %8065 = vmatpush.bf16.xpose.msra.mxu0 0
    %8066 = vmatpush.bf16.xpose.msra.mxu0 0
    %8067 = vmatpush.bf16.xpose.msra.mxu0 0
    %8068 = vmatpush.bf16.xpose.msra.mxu0 0
    %8069 = vmatpush.bf16.xpose.msra.mxu0 %v8060
    %8070 = vmatmul.bf16.gmra.mxu0 %v8048
    %v8071 = vpop.f32.mrf.mxu0
    %v8072 = vadd.f32 %v7291, %v8071
    %v8073 = vpop.f32.mrf.mxu0
    %v8074 = vadd.f32 %v7292, %v8073
    %8075 = vmatmul.bf16.gmra.mxu0 %v8051
    %v8076 = vpop.f32.mrf.mxu0
    %v8077 = vadd.f32 %v7293, %v8076
    %v8078 = vpop.f32.mrf.mxu0
    %v8079 = vadd.f32 %v7294, %v8078
    %8080 = vmatmul.bf16.gmra.mxu0 %v8054
    %v8081 = vpop.f32.mrf.mxu0
    %v8082 = vadd.f32 %v7295, %v8081
    %v8083 = vpop.f32.mrf.mxu0
    %v8084 = vadd.f32 %v7296, %v8083
    %8085 = vmatmul.bf16.gmra.mxu0 %v8057
    %v8086 = vpop.f32.mrf.mxu0
    %v8087 = vadd.f32 %v7297, %v8086
    %v8088 = vpop.f32.mrf.mxu0
    %v8089 = vadd.f32 %v7298, %v8088
    %8090 = vdwg.mxu0
    %v8091 = vsel %vm940, %v8018, -inf
    %8092 = vmax.xlane.f32.xlu0 %v8091
    %v8093 = vpop.xlane.xlu0 %8092
    %v8094 = vsel %vm940, %v8020, -inf
    %8095 = vmax.xlane.f32.xlu0 %v8094
    %v8096 = vpop.xlane.xlu0 %8095
    %v8097 = vsel %vm940, %v8023, -inf
    %8098 = vmax.xlane.f32.xlu0 %v8097
    %v8099 = vpop.xlane.xlu0 %8098
    %v8100 = vsel %vm940, %v8025, -inf
    %8101 = vmax.xlane.f32.xlu0 %v8100
    %v8102 = vpop.xlane.xlu0 %8101
    %v8103 = vsel %vm940, %v8028, -inf
    %8104 = vmax.xlane.f32.xlu0 %v8103
    %v8105 = vpop.xlane.xlu0 %8104
    %v8106 = vsel %vm940, %v8030, -inf
    %8107 = vmax.xlane.f32.xlu0 %v8106
    %v8108 = vpop.xlane.xlu0 %8107
    %v8109 = vsel %vm940, %v8033, -inf
    %8110 = vmax.xlane.f32.xlu0 %v8109
    %v8111 = vpop.xlane.xlu0 %8110
    %v8112 = vsel %vm940, %v8035, -inf
    %8113 = vmax.xlane.f32.xlu0 %v8112
    %v8114 = vpop.xlane.xlu0 %8113
    %v8115 = vsel %vm940, %v8072, -inf
    %8116 = vmax.xlane.f32.xlu0 %v8115
    %v8117 = vpop.xlane.xlu0 %8116
    %v8118 = vsel %vm940, %v8074, -inf
    %8119 = vmax.xlane.f32.xlu0 %v8118
    %v8120 = vpop.xlane.xlu0 %8119
    %v8121 = vsel %vm940, %v8077, -inf
    %8122 = vmax.xlane.f32.xlu0 %v8121
    %v8123 = vpop.xlane.xlu0 %8122
    %v8124 = vsel %vm940, %v8079, -inf
    %8125 = vmax.xlane.f32.xlu0 %v8124
    %v8126 = vpop.xlane.xlu0 %8125
    %v8127 = vsel %vm940, %v8082, -inf
    %8128 = vmax.xlane.f32.xlu0 %v8127
    %v8129 = vpop.xlane.xlu0 %8128
    %v8130 = vsel %vm940, %v8084, -inf
    %8131 = vmax.xlane.f32.xlu0 %v8130
    %v8132 = vpop.xlane.xlu0 %8131
    %v8133 = vsel %vm940, %v8087, -inf
    %8134 = vmax.xlane.f32.xlu0 %v8133
    %v8135 = vpop.xlane.xlu0 %8134
    %v8136 = vsel %vm940, %v8089, -inf
    %8137 = vmax.xlane.f32.xlu0 %v8136
    %v8138 = vpop.xlane.xlu0 %8137
    %v8139 = vsub.f32 %v8018, %v8093
    %v8140 = vsub.f32 %v8020, %v8096
    %v8141 = vsub.f32 %v8023, %v8099
    %v8142 = vsub.f32 %v8025, %v8102
    %v8143 = vsub.f32 %v8028, %v8105
    %v8144 = vsub.f32 %v8030, %v8108
    %v8145 = vsub.f32 %v8033, %v8111
    %v8146 = vsub.f32 %v8035, %v8114
    %v8147 = vsub.f32 %v8072, %v8117
    %v8148 = vsub.f32 %v8074, %v8120
    %v8149 = vsub.f32 %v8077, %v8123
    %v8150 = vsub.f32 %v8079, %v8126
    %v8151 = vsub.f32 %v8082, %v8129
    %v8152 = vsub.f32 %v8084, %v8132
    %v8153 = vsub.f32 %v8087, %v8135
    %v8154 = vsub.f32 %v8089, %v8138
    %v8155 = vmul.f32 %v8139, 1.442695
    %v8156 = vpow.pop %v8155
    %v8157 = vmul.f32 %v8140, 1.442695
    %v8158 = vpow.pop %v8157
    %v8159 = vmul.f32 %v8141, 1.442695
    %v8160 = vpow.pop %v8159
    %v8161 = vmul.f32 %v8142, 1.442695
    %v8162 = vpow.pop %v8161
    %v8163 = vmul.f32 %v8143, 1.442695
    %v8164 = vpow.pop %v8163
    %v8165 = vmul.f32 %v8144, 1.442695
    %v8166 = vpow.pop %v8165
    %v8167 = vmul.f32 %v8145, 1.442695
    %v8168 = vpow.pop %v8167
    %v8169 = vmul.f32 %v8146, 1.442695
    %v8170 = vpow.pop %v8169
    %v8171 = vmul.f32 %v8147, 1.442695
    %v8172 = vpow.pop %v8171
    %v8173 = vmul.f32 %v8148, 1.442695
    %v8174 = vpow.pop %v8173
    %v8175 = vmul.f32 %v8149, 1.442695
    %v8176 = vpow.pop %v8175
    %v8177 = vmul.f32 %v8150, 1.442695
    %v8178 = vpow.pop %v8177
    %v8179 = vmul.f32 %v8151, 1.442695
    %v8180 = vpow.pop %v8179
    %v8181 = vmul.f32 %v8152, 1.442695
    %v8182 = vpow.pop %v8181
    %v8183 = vmul.f32 %v8153, 1.442695
    %v8184 = vpow.pop %v8183
    %v8185 = vmul.f32 %v8154, 1.442695
    %v8186 = vpow.pop %v8185
    %v8187 = vsel %vm940, %v8156, 0.0
    %8188 = vadd.xlane.f32.xlu0 %v8187
    %v8189 = vpop.xlane.xlu0 %8188
    %v8190 = vsel %vm940, %v8158, 0.0
    %8191 = vadd.xlane.f32.xlu0 %v8190
    %v8192 = vpop.xlane.xlu0 %8191
    %v8193 = vsel %vm940, %v8160, 0.0
    %8194 = vadd.xlane.f32.xlu0 %v8193
    %v8195 = vpop.xlane.xlu0 %8194
    %v8196 = vsel %vm940, %v8162, 0.0
    %8197 = vadd.xlane.f32.xlu0 %v8196
    %v8198 = vpop.xlane.xlu0 %8197
    %v8199 = vsel %vm940, %v8164, 0.0
    %8200 = vadd.xlane.f32.xlu0 %v8199
    %v8201 = vpop.xlane.xlu0 %8200
    %v8202 = vsel %vm940, %v8166, 0.0
    %8203 = vadd.xlane.f32.xlu0 %v8202
    %v8204 = vpop.xlane.xlu0 %8203
    %v8205 = vsel %vm940, %v8168, 0.0
    %8206 = vadd.xlane.f32.xlu0 %v8205
    %v8207 = vpop.xlane.xlu0 %8206
    %v8208 = vsel %vm940, %v8170, 0.0
    %8209 = vadd.xlane.f32.xlu0 %v8208
    %v8210 = vpop.xlane.xlu0 %8209
    %v8211 = vsel %vm940, %v8172, 0.0
    %8212 = vadd.xlane.f32.xlu0 %v8211
    %v8213 = vpop.xlane.xlu0 %8212
    %v8214 = vsel %vm940, %v8174, 0.0
    %8215 = vadd.xlane.f32.xlu0 %v8214
    %v8216 = vpop.xlane.xlu0 %8215
    %v8217 = vsel %vm940, %v8176, 0.0
    %8218 = vadd.xlane.f32.xlu0 %v8217
    %v8219 = vpop.xlane.xlu0 %8218
    %v8220 = vsel %vm940, %v8178, 0.0
    %8221 = vadd.xlane.f32.xlu0 %v8220
    %v8222 = vpop.xlane.xlu0 %8221
    %v8223 = vsel %vm940, %v8180, 0.0
    %8224 = vadd.xlane.f32.xlu0 %v8223
    %v8225 = vpop.xlane.xlu0 %8224
    %v8226 = vsel %vm940, %v8182, 0.0
    %8227 = vadd.xlane.f32.xlu0 %v8226
    %v8228 = vpop.xlane.xlu0 %8227
    %v8229 = vsel %vm940, %v8184, 0.0
    %8230 = vadd.xlane.f32.xlu0 %v8229
    %v8231 = vpop.xlane.xlu0 %8230
    %v8232 = vsel %vm940, %v8186, 0.0
    %8233 = vadd.xlane.f32.xlu0 %v8232
    %v8234 = vpop.xlane.xlu0 %8233
    %v8235 = vrcp.pop %v8189
    %v8236 = vrcp.pop %v8192
    %v8237 = vrcp.pop %v8195
    %v8238 = vrcp.pop %v8198
    %v8239 = vrcp.pop %v8201
    %v8240 = vrcp.pop %v8204
    %v8241 = vrcp.pop %v8207
    %v8242 = vrcp.pop %v8210
    %v8243 = vrcp.pop %v8213
    %v8244 = vrcp.pop %v8216
    %v8245 = vrcp.pop %v8219
    %v8246 = vrcp.pop %v8222
    %v8247 = vrcp.pop %v8225
    %v8248 = vrcp.pop %v8228
    %v8249 = vrcp.pop %v8231
    %v8250 = vrcp.pop %v8234
    %v8251 = vpack.c.bf16 %v8156, %v8156
    %v8252 = vpack.c.bf16 %v8158, %v8158
    %v8253 = vpack.c.bf16 %v8160, %v8160
    %v8254 = vpack.c.bf16 %v8162, %v8162
    %v8255 = vpack.c.bf16 %v8164, %v8164
    %v8256 = vpack.c.bf16 %v8166, %v8166
    %v8257 = vpack.c.bf16 %v8168, %v8168
    %v8258 = vpack.c.bf16 %v8170, %v8170
    %v8259 = vpack.c.bf16 %v8172, %v8172
    %v8260 = vpack.c.bf16 %v8174, %v8174
    %v8261 = vpack.c.bf16 %v8176, %v8176
    %v8262 = vpack.c.bf16 %v8178, %v8178
    %v8263 = vpack.c.bf16 %v8180, %v8180
    %v8264 = vpack.c.bf16 %v8182, %v8182
    %v8265 = vpack.c.bf16 %v8184, %v8184
    %v8266 = vpack.c.bf16 %v8186, %v8186
    %v8275 = vunpack.c.l.b16 %v8251
    %v8276 = vunpack.c.l.b16 %v8252
    %v8277 = vunpack.c.l.b16 %v8253
    %v8278 = vunpack.c.l.b16 %v8254
    %v8279 = vunpack.c.l.b16 %v8255
    %v8280 = vunpack.c.l.b16 %v8256
    %v8281 = vunpack.c.l.b16 %v8257
    %v8282 = vunpack.c.l.b16 %v8258
    %v8283 = vpack.c.b16 %v8276, %v8275
    %v8284 = vpack.c.b16 %v8278, %v8277
    %v8285 = vpack.c.b16 %v8280, %v8279
    %v8286 = vpack.c.b16 %v8282, %v8281
    %8287 = vrot.lane.b32.xlu0 %v7549, 88
    %v8288 = vpop.permute.xlu0 %8287
    %v8291 = vsel %vm940, %v8283, 0
    %v8294 = vsel %vm940, %v8284, 0
    %v8297 = vsel %vm940, %v8285, 0
    %v8300 = vsel %vm940, %v8286, 0
    %8302 = vmatpush.bf16.msra.mxu0 0
    %8303 = vmatpush.bf16.msra.mxu0 0
    %8304 = vmatpush.bf16.msra.mxu0 0
    %8305 = vmatpush.bf16.msra.mxu0 0
    %8306 = vmatpush.bf16.msra.mxu0 0
    %8307 = vmatpush.bf16.msra.mxu0 0
    %8308 = vmatpush.bf16.msra.mxu0 0
    %8309 = vmatpush.bf16.msra.mxu0 %v8288
    %8310 = vmatmul.bf16.gmra.mxu0 %v8291
    %v8311 = vpop.f32.mrf.mxu0
    %v8312 = vadd.f32 0.0, %v8311
    %v8313 = vpop.f32.mrf.mxu0
    %v8314 = vadd.f32 0.0, %v8313
    %8315 = vmatmul.bf16.gmra.mxu0 %v8294
    %v8316 = vpop.f32.mrf.mxu0
    %v8317 = vadd.f32 0.0, %v8316
    %v8318 = vpop.f32.mrf.mxu0
    %v8319 = vadd.f32 0.0, %v8318
    %8320 = vmatmul.bf16.gmra.mxu0 %v8297
    %v8321 = vpop.f32.mrf.mxu0
    %v8322 = vadd.f32 0.0, %v8321
    %v8323 = vpop.f32.mrf.mxu0
    %v8324 = vadd.f32 0.0, %v8323
    %8325 = vmatmul.bf16.gmra.mxu0 %v8300
    %v8326 = vpop.f32.mrf.mxu0
    %v8327 = vadd.f32 0.0, %v8326
    %v8328 = vpop.f32.mrf.mxu0
    %v8329 = vadd.f32 0.0, %v8328
    %8330 = vdwg.mxu0
    %v8339 = vunpack.c.l.b16 %v8259
    %v8340 = vunpack.c.l.b16 %v8260
    %v8341 = vunpack.c.l.b16 %v8261
    %v8342 = vunpack.c.l.b16 %v8262
    %v8343 = vunpack.c.l.b16 %v8263
    %v8344 = vunpack.c.l.b16 %v8264
    %v8345 = vunpack.c.l.b16 %v8265
    %v8346 = vunpack.c.l.b16 %v8266
    %v8347 = vpack.c.b16 %v8340, %v8339
    %v8348 = vpack.c.b16 %v8342, %v8341
    %v8349 = vpack.c.b16 %v8344, %v8343
    %v8350 = vpack.c.b16 %v8346, %v8345
    %8351 = vrot.lane.b32.xlu0 %v7618, 88
    %v8352 = vpop.permute.xlu0 %8351
    %v8355 = vsel %vm940, %v8347, 0
    %v8358 = vsel %vm940, %v8348, 0
    %v8361 = vsel %vm940, %v8349, 0
    %v8364 = vsel %vm940, %v8350, 0
    %8366 = vmatpush.bf16.msra.mxu0 0
    %8367 = vmatpush.bf16.msra.mxu0 0
    %8368 = vmatpush.bf16.msra.mxu0 0
    %8369 = vmatpush.bf16.msra.mxu0 0
    %8370 = vmatpush.bf16.msra.mxu0 0
    %8371 = vmatpush.bf16.msra.mxu0 0
    %8372 = vmatpush.bf16.msra.mxu0 0
    %8373 = vmatpush.bf16.msra.mxu0 %v8352
    %8374 = vmatmul.bf16.gmra.mxu0 %v8355
    %v8375 = vpop.f32.mrf.mxu0
    %v8376 = vadd.f32 0.0, %v8375
    %v8377 = vpop.f32.mrf.mxu0
    %v8378 = vadd.f32 0.0, %v8377
    %8379 = vmatmul.bf16.gmra.mxu0 %v8358
    %v8380 = vpop.f32.mrf.mxu0
    %v8381 = vadd.f32 0.0, %v8380
    %v8382 = vpop.f32.mrf.mxu0
    %v8383 = vadd.f32 0.0, %v8382
    %8384 = vmatmul.bf16.gmra.mxu0 %v8361
    %v8385 = vpop.f32.mrf.mxu0
    %v8386 = vadd.f32 0.0, %v8385
    %v8387 = vpop.f32.mrf.mxu0
    %v8388 = vadd.f32 0.0, %v8387
    %8389 = vmatmul.bf16.gmra.mxu0 %v8364
    %v8390 = vpop.f32.mrf.mxu0
    %v8391 = vadd.f32 0.0, %v8390
    %v8392 = vpop.f32.mrf.mxu0
    %v8393 = vadd.f32 0.0, %v8392
    %8394 = vdwg.mxu0
    %v8395 = vmul.f32 %v8312, %v8235
    %v8396 = vmul.f32 %v8314, %v8236
    %v8397 = vmul.f32 %v8317, %v8237
    %v8398 = vmul.f32 %v8319, %v8238
    %v8399 = vmul.f32 %v8322, %v8239
    %v8400 = vmul.f32 %v8324, %v8240
    %v8401 = vmul.f32 %v8327, %v8241
    %v8402 = vmul.f32 %v8329, %v8242
    %v8403 = vmul.f32 %v8376, %v8243
    %v8404 = vmul.f32 %v8378, %v8244
    %v8405 = vmul.f32 %v8381, %v8245
    %v8406 = vmul.f32 %v8383, %v8246
    %v8407 = vmul.f32 %v8386, %v8247
    %v8408 = vmul.f32 %v8388, %v8248
    %v8409 = vmul.f32 %v8391, %v8249
    %v8410 = vmul.f32 %v8393, %v8250
    %8411 = vrot.lane.b32.xlu0 %v7541, 112
    %v8412 = vpop.permute.xlu0 %8411
    %8413 = vrot.lane.b32.xlu0 %v7542, 112
    %v8414 = vpop.permute.xlu0 %8413
    %8415 = vrot.lane.b32.xlu0 %v7543, 112
    %v8416 = vpop.permute.xlu0 %8415
    %8417 = vrot.lane.b32.xlu0 %v7544, 112
    %v8418 = vpop.permute.xlu0 %8417
    %8419 = vrot.lane.b32.xlu0 %v7549, 112
    %v8420 = vpop.permute.xlu0 %8419
    %v8422 = vsel %vm892, %v8412, 0
    %v8425 = vsel %vm892, %v8414, 0
    %v8428 = vsel %vm892, %v8416, 0
    %v8431 = vsel %vm892, %v8418, 0
    %v8434 = vsel %vm892, %v8420, 0
    %8436 = vmatpush.bf16.xpose.msra.mxu0 0
    %8437 = vmatpush.bf16.xpose.msra.mxu0 0
    %8438 = vmatpush.bf16.xpose.msra.mxu0 0
    %8439 = vmatpush.bf16.xpose.msra.mxu0 0
    %8440 = vmatpush.bf16.xpose.msra.mxu0 0
    %8441 = vmatpush.bf16.xpose.msra.mxu0 0
    %8442 = vmatpush.bf16.xpose.msra.mxu0 0
    %8443 = vmatpush.bf16.xpose.msra.mxu0 %v8434
    %8444 = vmatmul.bf16.gmra.mxu0 %v8422
    %v8445 = vpop.f32.mrf.mxu0
    %v8446 = vadd.f32 %v7299, %v8445
    %v8447 = vpop.f32.mrf.mxu0
    %v8448 = vadd.f32 %v7300, %v8447
    %8449 = vmatmul.bf16.gmra.mxu0 %v8425
    %v8450 = vpop.f32.mrf.mxu0
    %v8451 = vadd.f32 %v7301, %v8450
    %v8452 = vpop.f32.mrf.mxu0
    %v8453 = vadd.f32 %v7302, %v8452
    %8454 = vmatmul.bf16.gmra.mxu0 %v8428
    %v8455 = vpop.f32.mrf.mxu0
    %v8456 = vadd.f32 %v7303, %v8455
    %v8457 = vpop.f32.mrf.mxu0
    %v8458 = vadd.f32 %v7304, %v8457
    %8459 = vmatmul.bf16.gmra.mxu0 %v8431
    %v8460 = vpop.f32.mrf.mxu0
    %v8461 = vadd.f32 %v7305, %v8460
    %v8462 = vpop.f32.mrf.mxu0
    %v8463 = vadd.f32 %v7306, %v8462
    %8464 = vdwg.mxu0
    %8465 = vrot.lane.b32.xlu0 %v7610, 112
    %v8466 = vpop.permute.xlu0 %8465
    %8467 = vrot.lane.b32.xlu0 %v7611, 112
    %v8468 = vpop.permute.xlu0 %8467
    %8469 = vrot.lane.b32.xlu0 %v7612, 112
    %v8470 = vpop.permute.xlu0 %8469
    %8471 = vrot.lane.b32.xlu0 %v7613, 112
    %v8472 = vpop.permute.xlu0 %8471
    %8473 = vrot.lane.b32.xlu0 %v7618, 112
    %v8474 = vpop.permute.xlu0 %8473
    %v8476 = vsel %vm892, %v8466, 0
    %v8479 = vsel %vm892, %v8468, 0
    %v8482 = vsel %vm892, %v8470, 0
    %v8485 = vsel %vm892, %v8472, 0
    %v8488 = vsel %vm892, %v8474, 0
    %8490 = vmatpush.bf16.xpose.msra.mxu0 0
    %8491 = vmatpush.bf16.xpose.msra.mxu0 0
    %8492 = vmatpush.bf16.xpose.msra.mxu0 0
    %8493 = vmatpush.bf16.xpose.msra.mxu0 0
    %8494 = vmatpush.bf16.xpose.msra.mxu0 0
    %8495 = vmatpush.bf16.xpose.msra.mxu0 0
    %8496 = vmatpush.bf16.xpose.msra.mxu0 0
    %8497 = vmatpush.bf16.xpose.msra.mxu0 %v8488
    %8498 = vmatmul.bf16.gmra.mxu0 %v8476
    %v8499 = vpop.f32.mrf.mxu0
    %v8500 = vadd.f32 %v7299, %v8499
    %v8501 = vpop.f32.mrf.mxu0
    %v8502 = vadd.f32 %v7300, %v8501
    %8503 = vmatmul.bf16.gmra.mxu0 %v8479
    %v8504 = vpop.f32.mrf.mxu0
    %v8505 = vadd.f32 %v7301, %v8504
    %v8506 = vpop.f32.mrf.mxu0
    %v8507 = vadd.f32 %v7302, %v8506
    %8508 = vmatmul.bf16.gmra.mxu0 %v8482
    %v8509 = vpop.f32.mrf.mxu0
    %v8510 = vadd.f32 %v7303, %v8509
    %v8511 = vpop.f32.mrf.mxu0
    %v8512 = vadd.f32 %v7304, %v8511
    %8513 = vmatmul.bf16.gmra.mxu0 %v8485
    %v8514 = vpop.f32.mrf.mxu0
    %v8515 = vadd.f32 %v7305, %v8514
    %v8516 = vpop.f32.mrf.mxu0
    %v8517 = vadd.f32 %v7306, %v8516
    %8518 = vdwg.mxu0
    %v8519 = vsel %vm940, %v8446, -inf
    %8520 = vmax.xlane.f32.xlu0 %v8519
    %v8521 = vpop.xlane.xlu0 %8520
    %v8522 = vsel %vm940, %v8448, -inf
    %8523 = vmax.xlane.f32.xlu0 %v8522
    %v8524 = vpop.xlane.xlu0 %8523
    %v8525 = vsel %vm940, %v8451, -inf
    %8526 = vmax.xlane.f32.xlu0 %v8525
    %v8527 = vpop.xlane.xlu0 %8526
    %v8528 = vsel %vm940, %v8453, -inf
    %8529 = vmax.xlane.f32.xlu0 %v8528
    %v8530 = vpop.xlane.xlu0 %8529
    %v8531 = vsel %vm940, %v8456, -inf
    %8532 = vmax.xlane.f32.xlu0 %v8531
    %v8533 = vpop.xlane.xlu0 %8532
    %v8534 = vsel %vm940, %v8458, -inf
    %8535 = vmax.xlane.f32.xlu0 %v8534
    %v8536 = vpop.xlane.xlu0 %8535
    %v8537 = vsel %vm940, %v8461, -inf
    %8538 = vmax.xlane.f32.xlu0 %v8537
    %v8539 = vpop.xlane.xlu0 %8538
    %v8540 = vsel %vm940, %v8463, -inf
    %8541 = vmax.xlane.f32.xlu0 %v8540
    %v8542 = vpop.xlane.xlu0 %8541
    %v8543 = vsel %vm940, %v8500, -inf
    %8544 = vmax.xlane.f32.xlu0 %v8543
    %v8545 = vpop.xlane.xlu0 %8544
    %v8546 = vsel %vm940, %v8502, -inf
    %8547 = vmax.xlane.f32.xlu0 %v8546
    %v8548 = vpop.xlane.xlu0 %8547
    %v8549 = vsel %vm940, %v8505, -inf
    %8550 = vmax.xlane.f32.xlu0 %v8549
    %v8551 = vpop.xlane.xlu0 %8550
    %v8552 = vsel %vm940, %v8507, -inf
    %8553 = vmax.xlane.f32.xlu0 %v8552
    %v8554 = vpop.xlane.xlu0 %8553
    %v8555 = vsel %vm940, %v8510, -inf
    %8556 = vmax.xlane.f32.xlu0 %v8555
    %v8557 = vpop.xlane.xlu0 %8556
    %v8558 = vsel %vm940, %v8512, -inf
    %8559 = vmax.xlane.f32.xlu0 %v8558
    %v8560 = vpop.xlane.xlu0 %8559
    %v8561 = vsel %vm940, %v8515, -inf
    %8562 = vmax.xlane.f32.xlu0 %v8561
    %v8563 = vpop.xlane.xlu0 %8562
    %v8564 = vsel %vm940, %v8517, -inf
    %8565 = vmax.xlane.f32.xlu0 %v8564
    %v8566 = vpop.xlane.xlu0 %8565
    %v8567 = vsub.f32 %v8446, %v8521
    %v8568 = vsub.f32 %v8448, %v8524
    %v8569 = vsub.f32 %v8451, %v8527
    %v8570 = vsub.f32 %v8453, %v8530
    %v8571 = vsub.f32 %v8456, %v8533
    %v8572 = vsub.f32 %v8458, %v8536
    %v8573 = vsub.f32 %v8461, %v8539
    %v8574 = vsub.f32 %v8463, %v8542
    %v8575 = vsub.f32 %v8500, %v8545
    %v8576 = vsub.f32 %v8502, %v8548
    %v8577 = vsub.f32 %v8505, %v8551
    %v8578 = vsub.f32 %v8507, %v8554
    %v8579 = vsub.f32 %v8510, %v8557
    %v8580 = vsub.f32 %v8512, %v8560
    %v8581 = vsub.f32 %v8515, %v8563
    %v8582 = vsub.f32 %v8517, %v8566
    %v8583 = vmul.f32 %v8567, 1.442695
    %v8584 = vpow.pop %v8583
    %v8585 = vmul.f32 %v8568, 1.442695
    %v8586 = vpow.pop %v8585
    %v8587 = vmul.f32 %v8569, 1.442695
    %v8588 = vpow.pop %v8587
    %v8589 = vmul.f32 %v8570, 1.442695
    %v8590 = vpow.pop %v8589
    %v8591 = vmul.f32 %v8571, 1.442695
    %v8592 = vpow.pop %v8591
    %v8593 = vmul.f32 %v8572, 1.442695
    %v8594 = vpow.pop %v8593
    %v8595 = vmul.f32 %v8573, 1.442695
    %v8596 = vpow.pop %v8595
    %v8597 = vmul.f32 %v8574, 1.442695
    %v8598 = vpow.pop %v8597
    %v8599 = vmul.f32 %v8575, 1.442695
    %v8600 = vpow.pop %v8599
    %v8601 = vmul.f32 %v8576, 1.442695
    %v8602 = vpow.pop %v8601
    %v8603 = vmul.f32 %v8577, 1.442695
    %v8604 = vpow.pop %v8603
    %v8605 = vmul.f32 %v8578, 1.442695
    %v8606 = vpow.pop %v8605
    %v8607 = vmul.f32 %v8579, 1.442695
    %v8608 = vpow.pop %v8607
    %v8609 = vmul.f32 %v8580, 1.442695
    %v8610 = vpow.pop %v8609
    %v8611 = vmul.f32 %v8581, 1.442695
    %v8612 = vpow.pop %v8611
    %v8613 = vmul.f32 %v8582, 1.442695
    %v8614 = vpow.pop %v8613
    %v8615 = vsel %vm940, %v8584, 0.0
    %8616 = vadd.xlane.f32.xlu0 %v8615
    %v8617 = vpop.xlane.xlu0 %8616
    %v8618 = vsel %vm940, %v8586, 0.0
    %8619 = vadd.xlane.f32.xlu0 %v8618
    %v8620 = vpop.xlane.xlu0 %8619
    %v8621 = vsel %vm940, %v8588, 0.0
    %8622 = vadd.xlane.f32.xlu0 %v8621
    %v8623 = vpop.xlane.xlu0 %8622
    %v8624 = vsel %vm940, %v8590, 0.0
    %8625 = vadd.xlane.f32.xlu0 %v8624
    %v8626 = vpop.xlane.xlu0 %8625
    %v8627 = vsel %vm940, %v8592, 0.0
    %8628 = vadd.xlane.f32.xlu0 %v8627
    %v8629 = vpop.xlane.xlu0 %8628
    %v8630 = vsel %vm940, %v8594, 0.0
    %8631 = vadd.xlane.f32.xlu0 %v8630
    %v8632 = vpop.xlane.xlu0 %8631
    %v8633 = vsel %vm940, %v8596, 0.0
    %8634 = vadd.xlane.f32.xlu0 %v8633
    %v8635 = vpop.xlane.xlu0 %8634
    %v8636 = vsel %vm940, %v8598, 0.0
    %8637 = vadd.xlane.f32.xlu0 %v8636
    %v8638 = vpop.xlane.xlu0 %8637
    %v8639 = vsel %vm940, %v8600, 0.0
    %8640 = vadd.xlane.f32.xlu0 %v8639
    %v8641 = vpop.xlane.xlu0 %8640
    %v8642 = vsel %vm940, %v8602, 0.0
    %8643 = vadd.xlane.f32.xlu0 %v8642
    %v8644 = vpop.xlane.xlu0 %8643
    %v8645 = vsel %vm940, %v8604, 0.0
    %8646 = vadd.xlane.f32.xlu0 %v8645
    %v8647 = vpop.xlane.xlu0 %8646
    %v8648 = vsel %vm940, %v8606, 0.0
    %8649 = vadd.xlane.f32.xlu0 %v8648
    %v8650 = vpop.xlane.xlu0 %8649
    %v8651 = vsel %vm940, %v8608, 0.0
    %8652 = vadd.xlane.f32.xlu0 %v8651
    %v8653 = vpop.xlane.xlu0 %8652
    %v8654 = vsel %vm940, %v8610, 0.0
    %8655 = vadd.xlane.f32.xlu0 %v8654
    %v8656 = vpop.xlane.xlu0 %8655
    %v8657 = vsel %vm940, %v8612, 0.0
    %8658 = vadd.xlane.f32.xlu0 %v8657
    %v8659 = vpop.xlane.xlu0 %8658
    %v8660 = vsel %vm940, %v8614, 0.0
    %8661 = vadd.xlane.f32.xlu0 %v8660
    %v8662 = vpop.xlane.xlu0 %8661
    %v8663 = vrcp.pop %v8617
    %v8664 = vrcp.pop %v8620
    %v8665 = vrcp.pop %v8623
    %v8666 = vrcp.pop %v8626
    %v8667 = vrcp.pop %v8629
    %v8668 = vrcp.pop %v8632
    %v8669 = vrcp.pop %v8635
    %v8670 = vrcp.pop %v8638
    %v8671 = vrcp.pop %v8641
    %v8672 = vrcp.pop %v8644
    %v8673 = vrcp.pop %v8647
    %v8674 = vrcp.pop %v8650
    %v8675 = vrcp.pop %v8653
    %v8676 = vrcp.pop %v8656
    %v8677 = vrcp.pop %v8659
    %v8678 = vrcp.pop %v8662
    %v8679 = vpack.c.bf16 %v8584, %v8584
    %v8680 = vpack.c.bf16 %v8586, %v8586
    %v8681 = vpack.c.bf16 %v8588, %v8588
    %v8682 = vpack.c.bf16 %v8590, %v8590
    %v8683 = vpack.c.bf16 %v8592, %v8592
    %v8684 = vpack.c.bf16 %v8594, %v8594
    %v8685 = vpack.c.bf16 %v8596, %v8596
    %v8686 = vpack.c.bf16 %v8598, %v8598
    %v8687 = vpack.c.bf16 %v8600, %v8600
    %v8688 = vpack.c.bf16 %v8602, %v8602
    %v8689 = vpack.c.bf16 %v8604, %v8604
    %v8690 = vpack.c.bf16 %v8606, %v8606
    %v8691 = vpack.c.bf16 %v8608, %v8608
    %v8692 = vpack.c.bf16 %v8610, %v8610
    %v8693 = vpack.c.bf16 %v8612, %v8612
    %v8694 = vpack.c.bf16 %v8614, %v8614
    %v8703 = vunpack.c.l.b16 %v8679
    %v8704 = vunpack.c.l.b16 %v8680
    %v8705 = vunpack.c.l.b16 %v8681
    %v8706 = vunpack.c.l.b16 %v8682
    %v8707 = vunpack.c.l.b16 %v8683
    %v8708 = vunpack.c.l.b16 %v8684
    %v8709 = vunpack.c.l.b16 %v8685
    %v8710 = vunpack.c.l.b16 %v8686
    %v8711 = vpack.c.b16 %v8704, %v8703
    %v8712 = vpack.c.b16 %v8706, %v8705
    %v8713 = vpack.c.b16 %v8708, %v8707
    %v8714 = vpack.c.b16 %v8710, %v8709
    %8715 = vrot.lane.b32.xlu0 %v7549, 80
    %v8716 = vpop.permute.xlu0 %8715
    %v8719 = vsel %vm940, %v8711, 0
    %v8722 = vsel %vm940, %v8712, 0
    %v8725 = vsel %vm940, %v8713, 0
    %v8728 = vsel %vm940, %v8714, 0
    %8730 = vmatpush.bf16.msra.mxu0 0
    %8731 = vmatpush.bf16.msra.mxu0 0
    %8732 = vmatpush.bf16.msra.mxu0 0
    %8733 = vmatpush.bf16.msra.mxu0 0
    %8734 = vmatpush.bf16.msra.mxu0 0
    %8735 = vmatpush.bf16.msra.mxu0 0
    %8736 = vmatpush.bf16.msra.mxu0 0
    %8737 = vmatpush.bf16.msra.mxu0 %v8716
    %8738 = vmatmul.bf16.gmra.mxu0 %v8719
    %v8739 = vpop.f32.mrf.mxu0
    %v8740 = vadd.f32 0.0, %v8739
    %v8741 = vpop.f32.mrf.mxu0
    %v8742 = vadd.f32 0.0, %v8741
    %8743 = vmatmul.bf16.gmra.mxu0 %v8722
    %v8744 = vpop.f32.mrf.mxu0
    %v8745 = vadd.f32 0.0, %v8744
    %v8746 = vpop.f32.mrf.mxu0
    %v8747 = vadd.f32 0.0, %v8746
    %8748 = vmatmul.bf16.gmra.mxu0 %v8725
    %v8749 = vpop.f32.mrf.mxu0
    %v8750 = vadd.f32 0.0, %v8749
    %v8751 = vpop.f32.mrf.mxu0
    %v8752 = vadd.f32 0.0, %v8751
    %8753 = vmatmul.bf16.gmra.mxu0 %v8728
    %v8754 = vpop.f32.mrf.mxu0
    %v8755 = vadd.f32 0.0, %v8754
    %v8756 = vpop.f32.mrf.mxu0
    %v8757 = vadd.f32 0.0, %v8756
    %8758 = vdwg.mxu0
    %v8767 = vunpack.c.l.b16 %v8687
    %v8768 = vunpack.c.l.b16 %v8688
    %v8769 = vunpack.c.l.b16 %v8689
    %v8770 = vunpack.c.l.b16 %v8690
    %v8771 = vunpack.c.l.b16 %v8691
    %v8772 = vunpack.c.l.b16 %v8692
    %v8773 = vunpack.c.l.b16 %v8693
    %v8774 = vunpack.c.l.b16 %v8694
    %v8775 = vpack.c.b16 %v8768, %v8767
    %v8776 = vpack.c.b16 %v8770, %v8769
    %v8777 = vpack.c.b16 %v8772, %v8771
    %v8778 = vpack.c.b16 %v8774, %v8773
    %8779 = vrot.lane.b32.xlu0 %v7618, 80
    %v8780 = vpop.permute.xlu0 %8779
    %v8783 = vsel %vm940, %v8775, 0
    %v8786 = vsel %vm940, %v8776, 0
    %v8789 = vsel %vm940, %v8777, 0
    %v8792 = vsel %vm940, %v8778, 0
    %8794 = vmatpush.bf16.msra.mxu0 0
    %8795 = vmatpush.bf16.msra.mxu0 0
    %8796 = vmatpush.bf16.msra.mxu0 0
    %8797 = vmatpush.bf16.msra.mxu0 0
    %8798 = vmatpush.bf16.msra.mxu0 0
    %8799 = vmatpush.bf16.msra.mxu0 0
    %8800 = vmatpush.bf16.msra.mxu0 0
    %8801 = vmatpush.bf16.msra.mxu0 %v8780
    %8802 = vmatmul.bf16.gmra.mxu0 %v8783
    %v8803 = vpop.f32.mrf.mxu0
    %v8804 = vadd.f32 0.0, %v8803
    %v8805 = vpop.f32.mrf.mxu0
    %v8806 = vadd.f32 0.0, %v8805
    %8807 = vmatmul.bf16.gmra.mxu0 %v8786
    %v8808 = vpop.f32.mrf.mxu0
    %v8809 = vadd.f32 0.0, %v8808
    %v8810 = vpop.f32.mrf.mxu0
    %v8811 = vadd.f32 0.0, %v8810
    %8812 = vmatmul.bf16.gmra.mxu0 %v8789
    %v8813 = vpop.f32.mrf.mxu0
    %v8814 = vadd.f32 0.0, %v8813
    %v8815 = vpop.f32.mrf.mxu0
    %v8816 = vadd.f32 0.0, %v8815
    %8817 = vmatmul.bf16.gmra.mxu0 %v8792
    %v8818 = vpop.f32.mrf.mxu0
    %v8819 = vadd.f32 0.0, %v8818
    %v8820 = vpop.f32.mrf.mxu0
    %v8821 = vadd.f32 0.0, %v8820
    %8822 = vdwg.mxu0
    %v8823 = vmul.f32 %v8740, %v8663
    %v8824 = vmul.f32 %v8742, %v8664
    %v8825 = vmul.f32 %v8745, %v8665
    %v8826 = vmul.f32 %v8747, %v8666
    %v8827 = vmul.f32 %v8750, %v8667
    %v8828 = vmul.f32 %v8752, %v8668
    %v8829 = vmul.f32 %v8755, %v8669
    %v8830 = vmul.f32 %v8757, %v8670
    %v8831 = vmul.f32 %v8804, %v8671
    %v8832 = vmul.f32 %v8806, %v8672
    %v8833 = vmul.f32 %v8809, %v8673
    %v8834 = vmul.f32 %v8811, %v8674
    %v8835 = vmul.f32 %v8814, %v8675
    %v8836 = vmul.f32 %v8816, %v8676
    %v8837 = vmul.f32 %v8819, %v8677
    %v8838 = vmul.f32 %v8821, %v8678
    %8839 = vrot.lane.b32.xlu0 %v7541, 104
    %v8840 = vpop.permute.xlu0 %8839
    %8841 = vrot.lane.b32.xlu0 %v7542, 104
    %v8842 = vpop.permute.xlu0 %8841
    %8843 = vrot.lane.b32.xlu0 %v7543, 104
    %v8844 = vpop.permute.xlu0 %8843
    %8845 = vrot.lane.b32.xlu0 %v7544, 104
    %v8846 = vpop.permute.xlu0 %8845
    %8847 = vrot.lane.b32.xlu0 %v7549, 104
    %v8848 = vpop.permute.xlu0 %8847
    %v8850 = vsel %vm892, %v8840, 0
    %v8853 = vsel %vm892, %v8842, 0
    %v8856 = vsel %vm892, %v8844, 0
    %v8859 = vsel %vm892, %v8846, 0
    %v8862 = vsel %vm892, %v8848, 0
    %8864 = vmatpush.bf16.xpose.msra.mxu0 0
    %8865 = vmatpush.bf16.xpose.msra.mxu0 0
    %8866 = vmatpush.bf16.xpose.msra.mxu0 0
    %8867 = vmatpush.bf16.xpose.msra.mxu0 0
    %8868 = vmatpush.bf16.xpose.msra.mxu0 0
    %8869 = vmatpush.bf16.xpose.msra.mxu0 0
    %8870 = vmatpush.bf16.xpose.msra.mxu0 0
    %8871 = vmatpush.bf16.xpose.msra.mxu0 %v8862
    %8872 = vmatmul.bf16.gmra.mxu0 %v8850
    %v8873 = vpop.f32.mrf.mxu0
    %v8874 = vadd.f32 %v7307, %v8873
    %v8875 = vpop.f32.mrf.mxu0
    %v8876 = vadd.f32 %v7308, %v8875
    %8877 = vmatmul.bf16.gmra.mxu0 %v8853
    %v8878 = vpop.f32.mrf.mxu0
    %v8879 = vadd.f32 %v7309, %v8878
    %v8880 = vpop.f32.mrf.mxu0
    %v8881 = vadd.f32 %v7310, %v8880
    %8882 = vmatmul.bf16.gmra.mxu0 %v8856
    %v8883 = vpop.f32.mrf.mxu0
    %v8884 = vadd.f32 %v7311, %v8883
    %v8885 = vpop.f32.mrf.mxu0
    %v8886 = vadd.f32 %v7312, %v8885
    %8887 = vmatmul.bf16.gmra.mxu0 %v8859
    %v8888 = vpop.f32.mrf.mxu0
    %v8889 = vadd.f32 %v7313, %v8888
    %v8890 = vpop.f32.mrf.mxu0
    %v8891 = vadd.f32 %v7314, %v8890
    %8892 = vdwg.mxu0
    %8893 = vrot.lane.b32.xlu0 %v7610, 104
    %v8894 = vpop.permute.xlu0 %8893
    %8895 = vrot.lane.b32.xlu0 %v7611, 104
    %v8896 = vpop.permute.xlu0 %8895
    %8897 = vrot.lane.b32.xlu0 %v7612, 104
    %v8898 = vpop.permute.xlu0 %8897
    %8899 = vrot.lane.b32.xlu0 %v7613, 104
    %v8900 = vpop.permute.xlu0 %8899
    %8901 = vrot.lane.b32.xlu0 %v7618, 104
    %v8902 = vpop.permute.xlu0 %8901
    %v8904 = vsel %vm892, %v8894, 0
    %v8907 = vsel %vm892, %v8896, 0
    %v8910 = vsel %vm892, %v8898, 0
    %v8913 = vsel %vm892, %v8900, 0
    %v8916 = vsel %vm892, %v8902, 0
    %8918 = vmatpush.bf16.xpose.msra.mxu0 0
    %8919 = vmatpush.bf16.xpose.msra.mxu0 0
    %8920 = vmatpush.bf16.xpose.msra.mxu0 0
    %8921 = vmatpush.bf16.xpose.msra.mxu0 0
    %8922 = vmatpush.bf16.xpose.msra.mxu0 0
    %8923 = vmatpush.bf16.xpose.msra.mxu0 0
    %8924 = vmatpush.bf16.xpose.msra.mxu0 0
    %8925 = vmatpush.bf16.xpose.msra.mxu0 %v8916
    %8926 = vmatmul.bf16.gmra.mxu0 %v8904
    %v8927 = vpop.f32.mrf.mxu0
    %v8928 = vadd.f32 %v7307, %v8927
    %v8929 = vpop.f32.mrf.mxu0
    %v8930 = vadd.f32 %v7308, %v8929
    %8931 = vmatmul.bf16.gmra.mxu0 %v8907
    %v8932 = vpop.f32.mrf.mxu0
    %v8933 = vadd.f32 %v7309, %v8932
    %v8934 = vpop.f32.mrf.mxu0
    %v8935 = vadd.f32 %v7310, %v8934
    %8936 = vmatmul.bf16.gmra.mxu0 %v8910
    %v8937 = vpop.f32.mrf.mxu0
    %v8938 = vadd.f32 %v7311, %v8937
    %v8939 = vpop.f32.mrf.mxu0
    %v8940 = vadd.f32 %v7312, %v8939
    %8941 = vmatmul.bf16.gmra.mxu0 %v8913
    %v8942 = vpop.f32.mrf.mxu0
    %v8943 = vadd.f32 %v7313, %v8942
    %v8944 = vpop.f32.mrf.mxu0
    %v8945 = vadd.f32 %v7314, %v8944
    %8946 = vdwg.mxu0
    %v8947 = vsel %vm940, %v8874, -inf
    %8948 = vmax.xlane.f32.xlu0 %v8947
    %v8949 = vpop.xlane.xlu0 %8948
    %v8950 = vsel %vm940, %v8876, -inf
    %8951 = vmax.xlane.f32.xlu0 %v8950
    %v8952 = vpop.xlane.xlu0 %8951
    %v8953 = vsel %vm940, %v8879, -inf
    %8954 = vmax.xlane.f32.xlu0 %v8953
    %v8955 = vpop.xlane.xlu0 %8954
    %v8956 = vsel %vm940, %v8881, -inf
    %8957 = vmax.xlane.f32.xlu0 %v8956
    %v8958 = vpop.xlane.xlu0 %8957
    %v8959 = vsel %vm940, %v8884, -inf
    %8960 = vmax.xlane.f32.xlu0 %v8959
    %v8961 = vpop.xlane.xlu0 %8960
    %v8962 = vsel %vm940, %v8886, -inf
    %8963 = vmax.xlane.f32.xlu0 %v8962
    %v8964 = vpop.xlane.xlu0 %8963
    %v8965 = vsel %vm940, %v8889, -inf
    %8966 = vmax.xlane.f32.xlu0 %v8965
    %v8967 = vpop.xlane.xlu0 %8966
    %v8968 = vsel %vm940, %v8891, -inf
    %8969 = vmax.xlane.f32.xlu0 %v8968
    %v8970 = vpop.xlane.xlu0 %8969
    %v8971 = vsel %vm940, %v8928, -inf
    %8972 = vmax.xlane.f32.xlu0 %v8971
    %v8973 = vpop.xlane.xlu0 %8972
    %v8974 = vsel %vm940, %v8930, -inf
    %8975 = vmax.xlane.f32.xlu0 %v8974
    %v8976 = vpop.xlane.xlu0 %8975
    %v8977 = vsel %vm940, %v8933, -inf
    %8978 = vmax.xlane.f32.xlu0 %v8977
    %v8979 = vpop.xlane.xlu0 %8978
    %v8980 = vsel %vm940, %v8935, -inf
    %8981 = vmax.xlane.f32.xlu0 %v8980
    %v8982 = vpop.xlane.xlu0 %8981
    %v8983 = vsel %vm940, %v8938, -inf
    %8984 = vmax.xlane.f32.xlu0 %v8983
    %v8985 = vpop.xlane.xlu0 %8984
    %v8986 = vsel %vm940, %v8940, -inf
    %8987 = vmax.xlane.f32.xlu0 %v8986
    %v8988 = vpop.xlane.xlu0 %8987
    %v8989 = vsel %vm940, %v8943, -inf
    %8990 = vmax.xlane.f32.xlu0 %v8989
    %v8991 = vpop.xlane.xlu0 %8990
    %v8992 = vsel %vm940, %v8945, -inf
    %8993 = vmax.xlane.f32.xlu0 %v8992
    %v8994 = vpop.xlane.xlu0 %8993
    %v8995 = vsub.f32 %v8874, %v8949
    %v8996 = vsub.f32 %v8876, %v8952
    %v8997 = vsub.f32 %v8879, %v8955
    %v8998 = vsub.f32 %v8881, %v8958
    %v8999 = vsub.f32 %v8884, %v8961
    %v9000 = vsub.f32 %v8886, %v8964
    %v9001 = vsub.f32 %v8889, %v8967
    %v9002 = vsub.f32 %v8891, %v8970
    %v9003 = vsub.f32 %v8928, %v8973
    %v9004 = vsub.f32 %v8930, %v8976
    %v9005 = vsub.f32 %v8933, %v8979
    %v9006 = vsub.f32 %v8935, %v8982
    %v9007 = vsub.f32 %v8938, %v8985
    %v9008 = vsub.f32 %v8940, %v8988
    %v9009 = vsub.f32 %v8943, %v8991
    %v9010 = vsub.f32 %v8945, %v8994
    %v9011 = vmul.f32 %v8995, 1.442695
    %v9012 = vpow.pop %v9011
    %v9013 = vmul.f32 %v8996, 1.442695
    %v9014 = vpow.pop %v9013
    %v9015 = vmul.f32 %v8997, 1.442695
    %v9016 = vpow.pop %v9015
    %v9017 = vmul.f32 %v8998, 1.442695
    %v9018 = vpow.pop %v9017
    %v9019 = vmul.f32 %v8999, 1.442695
    %v9020 = vpow.pop %v9019
    %v9021 = vmul.f32 %v9000, 1.442695
    %v9022 = vpow.pop %v9021
    %v9023 = vmul.f32 %v9001, 1.442695
    %v9024 = vpow.pop %v9023
    %v9025 = vmul.f32 %v9002, 1.442695
    %v9026 = vpow.pop %v9025
    %v9027 = vmul.f32 %v9003, 1.442695
    %v9028 = vpow.pop %v9027
    %v9029 = vmul.f32 %v9004, 1.442695
    %v9030 = vpow.pop %v9029
    %v9031 = vmul.f32 %v9005, 1.442695
    %v9032 = vpow.pop %v9031
    %v9033 = vmul.f32 %v9006, 1.442695
    %v9034 = vpow.pop %v9033
    %v9035 = vmul.f32 %v9007, 1.442695
    %v9036 = vpow.pop %v9035
    %v9037 = vmul.f32 %v9008, 1.442695
    %v9038 = vpow.pop %v9037
    %v9039 = vmul.f32 %v9009, 1.442695
    %v9040 = vpow.pop %v9039
    %v9041 = vmul.f32 %v9010, 1.442695
    %v9042 = vpow.pop %v9041
    %v9043 = vsel %vm940, %v9012, 0.0
    %9044 = vadd.xlane.f32.xlu0 %v9043
    %v9045 = vpop.xlane.xlu0 %9044
    %v9046 = vsel %vm940, %v9014, 0.0
    %9047 = vadd.xlane.f32.xlu0 %v9046
    %v9048 = vpop.xlane.xlu0 %9047
    %v9049 = vsel %vm940, %v9016, 0.0
    %9050 = vadd.xlane.f32.xlu0 %v9049
    %v9051 = vpop.xlane.xlu0 %9050
    %v9052 = vsel %vm940, %v9018, 0.0
    %9053 = vadd.xlane.f32.xlu0 %v9052
    %v9054 = vpop.xlane.xlu0 %9053
    %v9055 = vsel %vm940, %v9020, 0.0
    %9056 = vadd.xlane.f32.xlu0 %v9055
    %v9057 = vpop.xlane.xlu0 %9056
    %v9058 = vsel %vm940, %v9022, 0.0
    %9059 = vadd.xlane.f32.xlu0 %v9058
    %v9060 = vpop.xlane.xlu0 %9059
    %v9061 = vsel %vm940, %v9024, 0.0
    %9062 = vadd.xlane.f32.xlu0 %v9061
    %v9063 = vpop.xlane.xlu0 %9062
    %v9064 = vsel %vm940, %v9026, 0.0
    %9065 = vadd.xlane.f32.xlu0 %v9064
    %v9066 = vpop.xlane.xlu0 %9065
    %v9067 = vsel %vm940, %v9028, 0.0
    %9068 = vadd.xlane.f32.xlu0 %v9067
    %v9069 = vpop.xlane.xlu0 %9068
    %v9070 = vsel %vm940, %v9030, 0.0
    %9071 = vadd.xlane.f32.xlu0 %v9070
    %v9072 = vpop.xlane.xlu0 %9071
    %v9073 = vsel %vm940, %v9032, 0.0
    %9074 = vadd.xlane.f32.xlu0 %v9073
    %v9075 = vpop.xlane.xlu0 %9074
    %v9076 = vsel %vm940, %v9034, 0.0
    %9077 = vadd.xlane.f32.xlu0 %v9076
    %v9078 = vpop.xlane.xlu0 %9077
    %v9079 = vsel %vm940, %v9036, 0.0
    %9080 = vadd.xlane.f32.xlu0 %v9079
    %v9081 = vpop.xlane.xlu0 %9080
    %v9082 = vsel %vm940, %v9038, 0.0
    %9083 = vadd.xlane.f32.xlu0 %v9082
    %v9084 = vpop.xlane.xlu0 %9083
    %v9085 = vsel %vm940, %v9040, 0.0
    %9086 = vadd.xlane.f32.xlu0 %v9085
    %v9087 = vpop.xlane.xlu0 %9086
    %v9088 = vsel %vm940, %v9042, 0.0
    %9089 = vadd.xlane.f32.xlu0 %v9088
    %v9090 = vpop.xlane.xlu0 %9089
    %v9091 = vrcp.pop %v9045
    %v9092 = vrcp.pop %v9048
    %v9093 = vrcp.pop %v9051
    %v9094 = vrcp.pop %v9054
    %v9095 = vrcp.pop %v9057
    %v9096 = vrcp.pop %v9060
    %v9097 = vrcp.pop %v9063
    %v9098 = vrcp.pop %v9066
    %v9099 = vrcp.pop %v9069
    %v9100 = vrcp.pop %v9072
    %v9101 = vrcp.pop %v9075
    %v9102 = vrcp.pop %v9078
    %v9103 = vrcp.pop %v9081
    %v9104 = vrcp.pop %v9084
    %v9105 = vrcp.pop %v9087
    %v9106 = vrcp.pop %v9090
    %v9107 = vpack.c.bf16 %v9012, %v9012
    %v9108 = vpack.c.bf16 %v9014, %v9014
    %v9109 = vpack.c.bf16 %v9016, %v9016
    %v9110 = vpack.c.bf16 %v9018, %v9018
    %v9111 = vpack.c.bf16 %v9020, %v9020
    %v9112 = vpack.c.bf16 %v9022, %v9022
    %v9113 = vpack.c.bf16 %v9024, %v9024
    %v9114 = vpack.c.bf16 %v9026, %v9026
    %v9115 = vpack.c.bf16 %v9028, %v9028
    %v9116 = vpack.c.bf16 %v9030, %v9030
    %v9117 = vpack.c.bf16 %v9032, %v9032
    %v9118 = vpack.c.bf16 %v9034, %v9034
    %v9119 = vpack.c.bf16 %v9036, %v9036
    %v9120 = vpack.c.bf16 %v9038, %v9038
    %v9121 = vpack.c.bf16 %v9040, %v9040
    %v9122 = vpack.c.bf16 %v9042, %v9042
    %v9131 = vunpack.c.l.b16 %v9107
    %v9132 = vunpack.c.l.b16 %v9108
    %v9133 = vunpack.c.l.b16 %v9109
    %v9134 = vunpack.c.l.b16 %v9110
    %v9135 = vunpack.c.l.b16 %v9111
    %v9136 = vunpack.c.l.b16 %v9112
    %v9137 = vunpack.c.l.b16 %v9113
    %v9138 = vunpack.c.l.b16 %v9114
    %v9139 = vpack.c.b16 %v9132, %v9131
    %v9140 = vpack.c.b16 %v9134, %v9133
    %v9141 = vpack.c.b16 %v9136, %v9135
    %v9142 = vpack.c.b16 %v9138, %v9137
    %9143 = vrot.lane.b32.xlu0 %v7549, 72
    %v9144 = vpop.permute.xlu0 %9143
    %v9147 = vsel %vm940, %v9139, 0
    %v9150 = vsel %vm940, %v9140, 0
    %v9153 = vsel %vm940, %v9141, 0
    %v9156 = vsel %vm940, %v9142, 0
    %9158 = vmatpush.bf16.msra.mxu0 0
    %9159 = vmatpush.bf16.msra.mxu0 0
    %9160 = vmatpush.bf16.msra.mxu0 0
    %9161 = vmatpush.bf16.msra.mxu0 0
    %9162 = vmatpush.bf16.msra.mxu0 0
    %9163 = vmatpush.bf16.msra.mxu0 0
    %9164 = vmatpush.bf16.msra.mxu0 0
    %9165 = vmatpush.bf16.msra.mxu0 %v9144
    %9166 = vmatmul.bf16.gmra.mxu0 %v9147
    %v9167 = vpop.f32.mrf.mxu0
    %v9168 = vadd.f32 0.0, %v9167
    %v9169 = vpop.f32.mrf.mxu0
    %v9170 = vadd.f32 0.0, %v9169
    %9171 = vmatmul.bf16.gmra.mxu0 %v9150
    %v9172 = vpop.f32.mrf.mxu0
    %v9173 = vadd.f32 0.0, %v9172
    %v9174 = vpop.f32.mrf.mxu0
    %v9175 = vadd.f32 0.0, %v9174
    %9176 = vmatmul.bf16.gmra.mxu0 %v9153
    %v9177 = vpop.f32.mrf.mxu0
    %v9178 = vadd.f32 0.0, %v9177
    %v9179 = vpop.f32.mrf.mxu0
    %v9180 = vadd.f32 0.0, %v9179
    %9181 = vmatmul.bf16.gmra.mxu0 %v9156
    %v9182 = vpop.f32.mrf.mxu0
    %v9183 = vadd.f32 0.0, %v9182
    %v9184 = vpop.f32.mrf.mxu0
    %v9185 = vadd.f32 0.0, %v9184
    %9186 = vdwg.mxu0
    %v9195 = vunpack.c.l.b16 %v9115
    %v9196 = vunpack.c.l.b16 %v9116
    %v9197 = vunpack.c.l.b16 %v9117
    %v9198 = vunpack.c.l.b16 %v9118
    %v9199 = vunpack.c.l.b16 %v9119
    %v9200 = vunpack.c.l.b16 %v9120
    %v9201 = vunpack.c.l.b16 %v9121
    %v9202 = vunpack.c.l.b16 %v9122
    %v9203 = vpack.c.b16 %v9196, %v9195
    %v9204 = vpack.c.b16 %v9198, %v9197
    %v9205 = vpack.c.b16 %v9200, %v9199
    %v9206 = vpack.c.b16 %v9202, %v9201
    %9207 = vrot.lane.b32.xlu0 %v7618, 72
    %v9208 = vpop.permute.xlu0 %9207
    %v9211 = vsel %vm940, %v9203, 0
    %v9214 = vsel %vm940, %v9204, 0
    %v9217 = vsel %vm940, %v9205, 0
    %v9220 = vsel %vm940, %v9206, 0
    %9222 = vmatpush.bf16.msra.mxu0 0
    %9223 = vmatpush.bf16.msra.mxu0 0
    %9224 = vmatpush.bf16.msra.mxu0 0
    %9225 = vmatpush.bf16.msra.mxu0 0
    %9226 = vmatpush.bf16.msra.mxu0 0
    %9227 = vmatpush.bf16.msra.mxu0 0
    %9228 = vmatpush.bf16.msra.mxu0 0
    %9229 = vmatpush.bf16.msra.mxu0 %v9208
    %9230 = vmatmul.bf16.gmra.mxu0 %v9211
    %v9231 = vpop.f32.mrf.mxu0
    %v9232 = vadd.f32 0.0, %v9231
    %v9233 = vpop.f32.mrf.mxu0
    %v9234 = vadd.f32 0.0, %v9233
    %9235 = vmatmul.bf16.gmra.mxu0 %v9214
    %v9236 = vpop.f32.mrf.mxu0
    %v9237 = vadd.f32 0.0, %v9236
    %v9238 = vpop.f32.mrf.mxu0
    %v9239 = vadd.f32 0.0, %v9238
    %9240 = vmatmul.bf16.gmra.mxu0 %v9217
    %v9241 = vpop.f32.mrf.mxu0
    %v9242 = vadd.f32 0.0, %v9241
    %v9243 = vpop.f32.mrf.mxu0
    %v9244 = vadd.f32 0.0, %v9243
    %9245 = vmatmul.bf16.gmra.mxu0 %v9220
    %v9246 = vpop.f32.mrf.mxu0
    %v9247 = vadd.f32 0.0, %v9246
    %v9248 = vpop.f32.mrf.mxu0
    %v9249 = vadd.f32 0.0, %v9248
    %9250 = vdwg.mxu0
    %v9251 = vmul.f32 %v9168, %v9091
    %v9252 = vmul.f32 %v9170, %v9092
    %v9253 = vmul.f32 %v9173, %v9093
    %v9254 = vmul.f32 %v9175, %v9094
    %v9255 = vmul.f32 %v9178, %v9095
    %v9256 = vmul.f32 %v9180, %v9096
    %v9257 = vmul.f32 %v9183, %v9097
    %v9258 = vmul.f32 %v9185, %v9098
    %v9259 = vmul.f32 %v9232, %v9099
    %v9260 = vmul.f32 %v9234, %v9100
    %v9261 = vmul.f32 %v9237, %v9101
    %v9262 = vmul.f32 %v9239, %v9102
    %v9263 = vmul.f32 %v9242, %v9103
    %v9264 = vmul.f32 %v9244, %v9104
    %v9265 = vmul.f32 %v9247, %v9105
    %v9266 = vmul.f32 %v9249, %v9106
    %9283 = vrot.lane.b32.xlu0 %v8395, 8
    %v9284 = vpop.permute.xlu0 %9283
    %9285 = vrot.lane.b32.xlu0 %v8396, 8
    %v9286 = vpop.permute.xlu0 %9285
    %9287 = vrot.lane.b32.xlu0 %v8397, 8
    %v9288 = vpop.permute.xlu0 %9287
    %9289 = vrot.lane.b32.xlu0 %v8398, 8
    %v9290 = vpop.permute.xlu0 %9289
    %9291 = vrot.lane.b32.xlu0 %v8399, 8
    %v9292 = vpop.permute.xlu0 %9291
    %9293 = vrot.lane.b32.xlu0 %v8400, 8
    %v9294 = vpop.permute.xlu0 %9293
    %9295 = vrot.lane.b32.xlu0 %v8401, 8
    %v9296 = vpop.permute.xlu0 %9295
    %9297 = vrot.lane.b32.xlu0 %v8402, 8
    %v9298 = vpop.permute.xlu0 %9297
    %9299 = vrot.lane.b32.xlu0 %v8403, 8
    %v9300 = vpop.permute.xlu0 %9299
    %9301 = vrot.lane.b32.xlu0 %v8404, 8
    %v9302 = vpop.permute.xlu0 %9301
    %9303 = vrot.lane.b32.xlu0 %v8405, 8
    %v9304 = vpop.permute.xlu0 %9303
    %9305 = vrot.lane.b32.xlu0 %v8406, 8
    %v9306 = vpop.permute.xlu0 %9305
    %9307 = vrot.lane.b32.xlu0 %v8407, 8
    %v9308 = vpop.permute.xlu0 %9307
    %9309 = vrot.lane.b32.xlu0 %v8408, 8
    %v9310 = vpop.permute.xlu0 %9309
    %9311 = vrot.lane.b32.xlu0 %v8409, 8
    %v9312 = vpop.permute.xlu0 %9311
    %9313 = vrot.lane.b32.xlu0 %v8410, 8
    %v9314 = vpop.permute.xlu0 %9313
    %9347 = vrot.lane.b32.xlu0 %v8823, 16
    %v9348 = vpop.permute.xlu0 %9347
    %9349 = vrot.lane.b32.xlu0 %v8824, 16
    %v9350 = vpop.permute.xlu0 %9349
    %9351 = vrot.lane.b32.xlu0 %v8825, 16
    %v9352 = vpop.permute.xlu0 %9351
    %9353 = vrot.lane.b32.xlu0 %v8826, 16
    %v9354 = vpop.permute.xlu0 %9353
    %9355 = vrot.lane.b32.xlu0 %v8827, 16
    %v9356 = vpop.permute.xlu0 %9355
    %9357 = vrot.lane.b32.xlu0 %v8828, 16
    %v9358 = vpop.permute.xlu0 %9357
    %9359 = vrot.lane.b32.xlu0 %v8829, 16
    %v9360 = vpop.permute.xlu0 %9359
    %9361 = vrot.lane.b32.xlu0 %v8830, 16
    %v9362 = vpop.permute.xlu0 %9361
    %9363 = vrot.lane.b32.xlu0 %v8831, 16
    %v9364 = vpop.permute.xlu0 %9363
    %9365 = vrot.lane.b32.xlu0 %v8832, 16
    %v9366 = vpop.permute.xlu0 %9365
    %9367 = vrot.lane.b32.xlu0 %v8833, 16
    %v9368 = vpop.permute.xlu0 %9367
    %9369 = vrot.lane.b32.xlu0 %v8834, 16
    %v9370 = vpop.permute.xlu0 %9369
    %9371 = vrot.lane.b32.xlu0 %v8835, 16
    %v9372 = vpop.permute.xlu0 %9371
    %9373 = vrot.lane.b32.xlu0 %v8836, 16
    %v9374 = vpop.permute.xlu0 %9373
    %9375 = vrot.lane.b32.xlu0 %v8837, 16
    %v9376 = vpop.permute.xlu0 %9375
    %9377 = vrot.lane.b32.xlu0 %v8838, 16
    %v9378 = vpop.permute.xlu0 %9377
    %9411 = vrot.lane.b32.xlu0 %v9251, 24
    %v9412 = vpop.permute.xlu0 %9411
    %9413 = vrot.lane.b32.xlu0 %v9252, 24
    %v9414 = vpop.permute.xlu0 %9413
    %9415 = vrot.lane.b32.xlu0 %v9253, 24
    %v9416 = vpop.permute.xlu0 %9415
    %9417 = vrot.lane.b32.xlu0 %v9254, 24
    %v9418 = vpop.permute.xlu0 %9417
    %9419 = vrot.lane.b32.xlu0 %v9255, 24
    %v9420 = vpop.permute.xlu0 %9419
    %9421 = vrot.lane.b32.xlu0 %v9256, 24
    %v9422 = vpop.permute.xlu0 %9421
    %9423 = vrot.lane.b32.xlu0 %v9257, 24
    %v9424 = vpop.permute.xlu0 %9423
    %9425 = vrot.lane.b32.xlu0 %v9258, 24
    %v9426 = vpop.permute.xlu0 %9425
    %9427 = vrot.lane.b32.xlu0 %v9259, 24
    %v9428 = vpop.permute.xlu0 %9427
    %9429 = vrot.lane.b32.xlu0 %v9260, 24
    %v9430 = vpop.permute.xlu0 %9429
    %9431 = vrot.lane.b32.xlu0 %v9261, 24
    %v9432 = vpop.permute.xlu0 %9431
    %9433 = vrot.lane.b32.xlu0 %v9262, 24
    %v9434 = vpop.permute.xlu0 %9433
    %9435 = vrot.lane.b32.xlu0 %v9263, 24
    %v9436 = vpop.permute.xlu0 %9435
    %9437 = vrot.lane.b32.xlu0 %v9264, 24
    %v9438 = vpop.permute.xlu0 %9437
    %9439 = vrot.lane.b32.xlu0 %v9265, 24
    %v9440 = vpop.permute.xlu0 %9439
    %9441 = vrot.lane.b32.xlu0 %v9266, 24
    %v9442 = vpop.permute.xlu0 %9441
    %v9459 = vsel %vm892, %v7967, %v9284
    %v9460 = vsel %vm892, %v7968, %v9286
    %v9461 = vsel %vm892, %v7969, %v9288
    %v9462 = vsel %vm892, %v7970, %v9290
    %v9463 = vsel %vm892, %v7971, %v9292
    %v9464 = vsel %vm892, %v7972, %v9294
    %v9465 = vsel %vm892, %v7973, %v9296
    %v9466 = vsel %vm892, %v7974, %v9298
    %v9467 = vsel %vm892, %v7975, %v9300
    %v9468 = vsel %vm892, %v7976, %v9302
    %v9469 = vsel %vm892, %v7977, %v9304
    %v9470 = vsel %vm892, %v7978, %v9306
    %v9471 = vsel %vm892, %v7979, %v9308
    %v9472 = vsel %vm892, %v7980, %v9310
    %v9473 = vsel %vm892, %v7981, %v9312
    %v9474 = vsel %vm892, %v7982, %v9314
    %v9475 = vsel %vm940, %v9459, %v9348
    %v9476 = vsel %vm940, %v9460, %v9350
    %v9477 = vsel %vm940, %v9461, %v9352
    %v9478 = vsel %vm940, %v9462, %v9354
    %v9479 = vsel %vm940, %v9463, %v9356
    %v9480 = vsel %vm940, %v9464, %v9358
    %v9481 = vsel %vm940, %v9465, %v9360
    %v9482 = vsel %vm940, %v9466, %v9362
    %v9483 = vsel %vm940, %v9467, %v9364
    %v9484 = vsel %vm940, %v9468, %v9366
    %v9485 = vsel %vm940, %v9469, %v9368
    %v9486 = vsel %vm940, %v9470, %v9370
    %v9487 = vsel %vm940, %v9471, %v9372
    %v9488 = vsel %vm940, %v9472, %v9374
    %v9489 = vsel %vm940, %v9473, %v9376
    %v9490 = vsel %vm940, %v9474, %v9378
    %v9491 = vsel %vm1533, %v9475, %v9412
    %v9492 = vsel %vm1533, %v9476, %v9414
    %v9493 = vsel %vm1533, %v9477, %v9416
    %v9494 = vsel %vm1533, %v9478, %v9418
    %v9495 = vsel %vm1533, %v9479, %v9420
    %v9496 = vsel %vm1533, %v9480, %v9422
    %v9497 = vsel %vm1533, %v9481, %v9424
    %v9498 = vsel %vm1533, %v9482, %v9426
    %v9499 = vsel %vm1533, %v9483, %v9428
    %v9500 = vsel %vm1533, %v9484, %v9430
    %v9501 = vsel %vm1533, %v9485, %v9432
    %v9502 = vsel %vm1533, %v9486, %v9434
    %v9503 = vsel %vm1533, %v9487, %v9436
    %v9504 = vsel %vm1533, %v9488, %v9438
    %v9505 = vsel %vm1533, %v9489, %v9440
    %v9506 = vsel %vm1533, %v9490, %v9442
    %v9507 = vpack.c.bf16 %v9492, %v9491
    %v9508 = vpack.c.bf16 %v9494, %v9493
    %v9509 = vpack.c.bf16 %v9496, %v9495
    %v9510 = vpack.c.bf16 %v9498, %v9497
    %v9511 = vpack.c.bf16 %v9500, %v9499
    %v9512 = vpack.c.bf16 %v9502, %v9501
    %v9513 = vpack.c.bf16 %v9504, %v9503
    %v9514 = vpack.c.bf16 %v9506, %v9505
    %v9519 = vunpack.c.l.b16 %v672
    %v9520 = vunpack.c.l.b16 %v673
    %v9521 = vunpack.c.l.b16 %v674
    %v9522 = vunpack.c.l.b16 %v675
    %v9523 = vpack.c.b16 %v9520, %v9519
    %v9524 = vpack.c.b16 %v9522, %v9521
    %v9528 = vsel %vm729, %v9507, 0
    %v9531 = vsel %vm729, %v9508, 0
    %v9534 = vsel %vm729, %v9509, 0
    %v9537 = vsel %vm729, %v9510, 0
    %v9540 = vsel %vm729, %v9511, 0
    %v9543 = vsel %vm729, %v9512, 0
    %v9546 = vsel %vm729, %v9513, 0
    %v9549 = vsel %vm729, %v9514, 0
    %9551 = vmatpush.bf16.msra.mxu0 0
    %9552 = vmatpush.bf16.msra.mxu0 0
    %9553 = vmatpush.bf16.msra.mxu0 0
    %9554 = vmatpush.bf16.msra.mxu0 0
    %9555 = vmatpush.bf16.msra.mxu0 0
    %9556 = vmatpush.bf16.msra.mxu0 0
    %9557 = vmatpush.bf16.msra.mxu0 %v9524
    %9558 = vmatpush.bf16.msra.mxu0 %v9523
    %9559 = vmatmul.bf16.gmra.mxu0 %v9528
    %v9560 = vpop.f32.mrf.mxu0
    %v9561 = vadd.f32 0.0, %v9560
    %v9562 = vpop.f32.mrf.mxu0
    %v9563 = vadd.f32 0.0, %v9562
    %9564 = vmatmul.bf16.gmra.mxu0 %v9531
    %v9565 = vpop.f32.mrf.mxu0
    %v9566 = vadd.f32 0.0, %v9565
    %v9567 = vpop.f32.mrf.mxu0
    %v9568 = vadd.f32 0.0, %v9567
    %9569 = vmatmul.bf16.gmra.mxu0 %v9534
    %v9570 = vpop.f32.mrf.mxu0
    %v9571 = vadd.f32 0.0, %v9570
    %v9572 = vpop.f32.mrf.mxu0
    %v9573 = vadd.f32 0.0, %v9572
    %9574 = vmatmul.bf16.gmra.mxu0 %v9537
    %v9575 = vpop.f32.mrf.mxu0
    %v9576 = vadd.f32 0.0, %v9575
    %v9577 = vpop.f32.mrf.mxu0
    %v9578 = vadd.f32 0.0, %v9577
    %9579 = vmatmul.bf16.gmra.mxu0 %v9540
    %v9580 = vpop.f32.mrf.mxu0
    %v9581 = vadd.f32 0.0, %v9580
    %v9582 = vpop.f32.mrf.mxu0
    %v9583 = vadd.f32 0.0, %v9582
    %9584 = vmatmul.bf16.gmra.mxu0 %v9543
    %v9585 = vpop.f32.mrf.mxu0
    %v9586 = vadd.f32 0.0, %v9585
    %v9587 = vpop.f32.mrf.mxu0
    %v9588 = vadd.f32 0.0, %v9587
    %9589 = vmatmul.bf16.gmra.mxu0 %v9546
    %v9590 = vpop.f32.mrf.mxu0
    %v9591 = vadd.f32 0.0, %v9590
    %v9592 = vpop.f32.mrf.mxu0
    %v9593 = vadd.f32 0.0, %v9592
    %9594 = vmatmul.bf16.gmra.mxu0 %v9549
    %v9595 = vpop.f32.mrf.mxu0
    %v9596 = vadd.f32 0.0, %v9595
    %v9597 = vpop.f32.mrf.mxu0
    %v9598 = vadd.f32 0.0, %v9597
    %9599 = vdwg.mxu0
    %v9600 = vadd.f32 %v5433, %v9561
    %v9601 = vadd.f32 %v5434, %v9563
    %v9602 = vadd.f32 %v5435, %v9566
    %v9603 = vadd.f32 %v5436, %v9568
    %v9604 = vadd.f32 %v5437, %v9571
    %v9605 = vadd.f32 %v5438, %v9573
    %v9606 = vadd.f32 %v5439, %v9576
    %v9607 = vadd.f32 %v5440, %v9578
    %v9608 = vadd.f32 %v5441, %v9581
    %v9609 = vadd.f32 %v5442, %v9583
    %v9610 = vadd.f32 %v5443, %v9586
    %v9611 = vadd.f32 %v5444, %v9588
    %v9612 = vadd.f32 %v5445, %v9591
    %v9613 = vadd.f32 %v5446, %v9593
    %v9614 = vadd.f32 %v5447, %v9596
    %v9615 = vadd.f32 %v5448, %v9598
    %v9617 = vperm.slane %v676, 0
    %v9619 = vadd.f32 %v9600, %v9617
    %v9620 = vadd.f32 %v9601, %v9617
    %v9621 = vadd.f32 %v9602, %v9617
    %v9622 = vadd.f32 %v9603, %v9617
    %v9623 = vadd.f32 %v9604, %v9617
    %v9624 = vadd.f32 %v9605, %v9617
    %v9625 = vadd.f32 %v9606, %v9617
    %v9626 = vadd.f32 %v9607, %v9617
    %v9627 = vadd.f32 %v9608, %v9617
    %v9628 = vadd.f32 %v9609, %v9617
    %v9629 = vadd.f32 %v9610, %v9617
    %v9630 = vadd.f32 %v9611, %v9617
    %v9631 = vadd.f32 %v9612, %v9617
    %v9632 = vadd.f32 %v9613, %v9617
    %v9633 = vadd.f32 %v9614, %v9617
    %v9634 = vadd.f32 %v9615, %v9617
    %v9635 = vsel %vm729, %v9619, 0.0
    %9636 = vadd.xlane.f32.xlu0 %v9635
    %v9637 = vpop.xlane.xlu0 %9636
    %v9638 = vsel %vm729, %v9620, 0.0
    %9639 = vadd.xlane.f32.xlu0 %v9638
    %v9640 = vpop.xlane.xlu0 %9639
    %v9641 = vsel %vm729, %v9621, 0.0
    %9642 = vadd.xlane.f32.xlu0 %v9641
    %v9643 = vpop.xlane.xlu0 %9642
    %v9644 = vsel %vm729, %v9622, 0.0
    %9645 = vadd.xlane.f32.xlu0 %v9644
    %v9646 = vpop.xlane.xlu0 %9645
    %v9647 = vsel %vm729, %v9623, 0.0
    %9648 = vadd.xlane.f32.xlu0 %v9647
    %v9649 = vpop.xlane.xlu0 %9648
    %v9650 = vsel %vm729, %v9624, 0.0
    %9651 = vadd.xlane.f32.xlu0 %v9650
    %v9652 = vpop.xlane.xlu0 %9651
    %v9653 = vsel %vm729, %v9625, 0.0
    %9654 = vadd.xlane.f32.xlu0 %v9653
    %v9655 = vpop.xlane.xlu0 %9654
    %v9656 = vsel %vm729, %v9626, 0.0
    %9657 = vadd.xlane.f32.xlu0 %v9656
    %v9658 = vpop.xlane.xlu0 %9657
    %v9659 = vsel %vm729, %v9627, 0.0
    %9660 = vadd.xlane.f32.xlu0 %v9659
    %v9661 = vpop.xlane.xlu0 %9660
    %v9662 = vsel %vm729, %v9628, 0.0
    %9663 = vadd.xlane.f32.xlu0 %v9662
    %v9664 = vpop.xlane.xlu0 %9663
    %v9665 = vsel %vm729, %v9629, 0.0
    %9666 = vadd.xlane.f32.xlu0 %v9665
    %v9667 = vpop.xlane.xlu0 %9666
    %v9668 = vsel %vm729, %v9630, 0.0
    %9669 = vadd.xlane.f32.xlu0 %v9668
    %v9670 = vpop.xlane.xlu0 %9669
    %v9671 = vsel %vm729, %v9631, 0.0
    %9672 = vadd.xlane.f32.xlu0 %v9671
    %v9673 = vpop.xlane.xlu0 %9672
    %v9674 = vsel %vm729, %v9632, 0.0
    %9675 = vadd.xlane.f32.xlu0 %v9674
    %v9676 = vpop.xlane.xlu0 %9675
    %v9677 = vsel %vm729, %v9633, 0.0
    %9678 = vadd.xlane.f32.xlu0 %v9677
    %v9679 = vpop.xlane.xlu0 %9678
    %v9680 = vsel %vm729, %v9634, 0.0
    %9681 = vadd.xlane.f32.xlu0 %v9680
    %v9682 = vpop.xlane.xlu0 %9681
    %v9683 = vmul.f32 %v9637, %v748
    %v9684 = vmul.f32 %v9640, %v748
    %v9685 = vmul.f32 %v9643, %v748
    %v9686 = vmul.f32 %v9646, %v748
    %v9687 = vmul.f32 %v9649, %v748
    %v9688 = vmul.f32 %v9652, %v748
    %v9689 = vmul.f32 %v9655, %v748
    %v9690 = vmul.f32 %v9658, %v748
    %v9691 = vmul.f32 %v9661, %v748
    %v9692 = vmul.f32 %v9664, %v748
    %v9693 = vmul.f32 %v9667, %v748
    %v9694 = vmul.f32 %v9670, %v748
    %v9695 = vmul.f32 %v9673, %v748
    %v9696 = vmul.f32 %v9676, %v748
    %v9697 = vmul.f32 %v9679, %v748
    %v9698 = vmul.f32 %v9682, %v748
    %v9699 = vsub.f32 %v9619, %v9683
    %v9700 = vsub.f32 %v9620, %v9684
    %v9701 = vsub.f32 %v9621, %v9685
    %v9702 = vsub.f32 %v9622, %v9686
    %v9703 = vsub.f32 %v9623, %v9687
    %v9704 = vsub.f32 %v9624, %v9688
    %v9705 = vsub.f32 %v9625, %v9689
    %v9706 = vsub.f32 %v9626, %v9690
    %v9707 = vsub.f32 %v9627, %v9691
    %v9708 = vsub.f32 %v9628, %v9692
    %v9709 = vsub.f32 %v9629, %v9693
    %v9710 = vsub.f32 %v9630, %v9694
    %v9711 = vsub.f32 %v9631, %v9695
    %v9712 = vsub.f32 %v9632, %v9696
    %v9713 = vsub.f32 %v9633, %v9697
    %v9714 = vsub.f32 %v9634, %v9698
    %v9715 = vmul.f32 %v9699, %v9699
    %v9716 = vmul.f32 %v9700, %v9700
    %v9717 = vmul.f32 %v9701, %v9701
    %v9718 = vmul.f32 %v9702, %v9702
    %v9719 = vmul.f32 %v9703, %v9703
    %v9720 = vmul.f32 %v9704, %v9704
    %v9721 = vmul.f32 %v9705, %v9705
    %v9722 = vmul.f32 %v9706, %v9706
    %v9723 = vmul.f32 %v9707, %v9707
    %v9724 = vmul.f32 %v9708, %v9708
    %v9725 = vmul.f32 %v9709, %v9709
    %v9726 = vmul.f32 %v9710, %v9710
    %v9727 = vmul.f32 %v9711, %v9711
    %v9728 = vmul.f32 %v9712, %v9712
    %v9729 = vmul.f32 %v9713, %v9713
    %v9730 = vmul.f32 %v9714, %v9714
    %v9731 = vsel %vm729, %v9715, 0.0
    %9732 = vadd.xlane.f32.xlu0 %v9731
    %v9733 = vpop.xlane.xlu0 %9732
    %v9734 = vsel %vm729, %v9716, 0.0
    %9735 = vadd.xlane.f32.xlu0 %v9734
    %v9736 = vpop.xlane.xlu0 %9735
    %v9737 = vsel %vm729, %v9717, 0.0
    %9738 = vadd.xlane.f32.xlu0 %v9737
    %v9739 = vpop.xlane.xlu0 %9738
    %v9740 = vsel %vm729, %v9718, 0.0
    %9741 = vadd.xlane.f32.xlu0 %v9740
    %v9742 = vpop.xlane.xlu0 %9741
    %v9743 = vsel %vm729, %v9719, 0.0
    %9744 = vadd.xlane.f32.xlu0 %v9743
    %v9745 = vpop.xlane.xlu0 %9744
    %v9746 = vsel %vm729, %v9720, 0.0
    %9747 = vadd.xlane.f32.xlu0 %v9746
    %v9748 = vpop.xlane.xlu0 %9747
    %v9749 = vsel %vm729, %v9721, 0.0
    %9750 = vadd.xlane.f32.xlu0 %v9749
    %v9751 = vpop.xlane.xlu0 %9750
    %v9752 = vsel %vm729, %v9722, 0.0
    %9753 = vadd.xlane.f32.xlu0 %v9752
    %v9754 = vpop.xlane.xlu0 %9753
    %v9755 = vsel %vm729, %v9723, 0.0
    %9756 = vadd.xlane.f32.xlu0 %v9755
    %v9757 = vpop.xlane.xlu0 %9756
    %v9758 = vsel %vm729, %v9724, 0.0
    %9759 = vadd.xlane.f32.xlu0 %v9758
    %v9760 = vpop.xlane.xlu0 %9759
    %v9761 = vsel %vm729, %v9725, 0.0
    %9762 = vadd.xlane.f32.xlu0 %v9761
    %v9763 = vpop.xlane.xlu0 %9762
    %v9764 = vsel %vm729, %v9726, 0.0
    %9765 = vadd.xlane.f32.xlu0 %v9764
    %v9766 = vpop.xlane.xlu0 %9765
    %v9767 = vsel %vm729, %v9727, 0.0
    %9768 = vadd.xlane.f32.xlu0 %v9767
    %v9769 = vpop.xlane.xlu0 %9768
    %v9770 = vsel %vm729, %v9728, 0.0
    %9771 = vadd.xlane.f32.xlu0 %v9770
    %v9772 = vpop.xlane.xlu0 %9771
    %v9773 = vsel %vm729, %v9729, 0.0
    %9774 = vadd.xlane.f32.xlu0 %v9773
    %v9775 = vpop.xlane.xlu0 %9774
    %v9776 = vsel %vm729, %v9730, 0.0
    %9777 = vadd.xlane.f32.xlu0 %v9776
    %v9778 = vpop.xlane.xlu0 %9777
    %v9779 = vmul.f32 %v9733, %v748
    %v9780 = vmul.f32 %v9736, %v748
    %v9781 = vmul.f32 %v9739, %v748
    %v9782 = vmul.f32 %v9742, %v748
    %v9783 = vmul.f32 %v9745, %v748
    %v9784 = vmul.f32 %v9748, %v748
    %v9785 = vmul.f32 %v9751, %v748
    %v9786 = vmul.f32 %v9754, %v748
    %v9787 = vmul.f32 %v9757, %v748
    %v9788 = vmul.f32 %v9760, %v748
    %v9789 = vmul.f32 %v9763, %v748
    %v9790 = vmul.f32 %v9766, %v748
    %v9791 = vmul.f32 %v9769, %v748
    %v9792 = vmul.f32 %v9772, %v748
    %v9793 = vmul.f32 %v9775, %v748
    %v9794 = vmul.f32 %v9778, %v748
    %v9795 = vadd.f32 %v9779, 1e-05
    %v9796 = vadd.f32 %v9780, 1e-05
    %v9797 = vadd.f32 %v9781, 1e-05
    %v9798 = vadd.f32 %v9782, 1e-05
    %v9799 = vadd.f32 %v9783, 1e-05
    %v9800 = vadd.f32 %v9784, 1e-05
    %v9801 = vadd.f32 %v9785, 1e-05
    %v9802 = vadd.f32 %v9786, 1e-05
    %v9803 = vadd.f32 %v9787, 1e-05
    %v9804 = vadd.f32 %v9788, 1e-05
    %v9805 = vadd.f32 %v9789, 1e-05
    %v9806 = vadd.f32 %v9790, 1e-05
    %v9807 = vadd.f32 %v9791, 1e-05
    %v9808 = vadd.f32 %v9792, 1e-05
    %v9809 = vadd.f32 %v9793, 1e-05
    %v9810 = vadd.f32 %v9794, 1e-05
    %v9811 = vrsqrt.pop %v9795
    %v9812 = vmul.f32 %v9811, %v9795
    %v9813 = vmul.f32 %v9812, %v9811
    %v9814 = vmul.f32 0.5, %v9813
    %v9815 = vsub.f32 1.5, %v9814
    %v9816 = vmul.f32 %v9811, %v9815
    %vm9817 = vweird.f32 %v9795
    %vm9818 = vweird.f32 %v9811
    %vm9819 = vmor %vm9817, %vm9818
    %v9820 = vsel %vm9819, %v9811, %v9816
    %v9821 = vrsqrt.pop %v9796
    %v9822 = vmul.f32 %v9821, %v9796
    %v9823 = vmul.f32 %v9822, %v9821
    %v9824 = vmul.f32 0.5, %v9823
    %v9825 = vsub.f32 1.5, %v9824
    %v9826 = vmul.f32 %v9821, %v9825
    %vm9827 = vweird.f32 %v9796
    %vm9828 = vweird.f32 %v9821
    %vm9829 = vmor %vm9827, %vm9828
    %v9830 = vsel %vm9829, %v9821, %v9826
    %v9831 = vrsqrt.pop %v9797
    %v9832 = vmul.f32 %v9831, %v9797
    %v9833 = vmul.f32 %v9832, %v9831
    %v9834 = vmul.f32 0.5, %v9833
    %v9835 = vsub.f32 1.5, %v9834
    %v9836 = vmul.f32 %v9831, %v9835
    %vm9837 = vweird.f32 %v9797
    %vm9838 = vweird.f32 %v9831
    %vm9839 = vmor %vm9837, %vm9838
    %v9840 = vsel %vm9839, %v9831, %v9836
    %v9841 = vrsqrt.pop %v9798
    %v9842 = vmul.f32 %v9841, %v9798
    %v9843 = vmul.f32 %v9842, %v9841
    %v9844 = vmul.f32 0.5, %v9843
    %v9845 = vsub.f32 1.5, %v9844
    %v9846 = vmul.f32 %v9841, %v9845
    %vm9847 = vweird.f32 %v9798
    %vm9848 = vweird.f32 %v9841
    %vm9849 = vmor %vm9847, %vm9848
    %v9850 = vsel %vm9849, %v9841, %v9846
    %v9851 = vrsqrt.pop %v9799
    %v9852 = vmul.f32 %v9851, %v9799
    %v9853 = vmul.f32 %v9852, %v9851
    %v9854 = vmul.f32 0.5, %v9853
    %v9855 = vsub.f32 1.5, %v9854
    %v9856 = vmul.f32 %v9851, %v9855
    %vm9857 = vweird.f32 %v9799
    %vm9858 = vweird.f32 %v9851
    %vm9859 = vmor %vm9857, %vm9858
    %v9860 = vsel %vm9859, %v9851, %v9856
    %v9861 = vrsqrt.pop %v9800
    %v9862 = vmul.f32 %v9861, %v9800
    %v9863 = vmul.f32 %v9862, %v9861
    %v9864 = vmul.f32 0.5, %v9863
    %v9865 = vsub.f32 1.5, %v9864
    %v9866 = vmul.f32 %v9861, %v9865
    %vm9867 = vweird.f32 %v9800
    %vm9868 = vweird.f32 %v9861
    %vm9869 = vmor %vm9867, %vm9868
    %v9870 = vsel %vm9869, %v9861, %v9866
    %v9871 = vrsqrt.pop %v9801
    %v9872 = vmul.f32 %v9871, %v9801
    %v9873 = vmul.f32 %v9872, %v9871
    %v9874 = vmul.f32 0.5, %v9873
    %v9875 = vsub.f32 1.5, %v9874
    %v9876 = vmul.f32 %v9871, %v9875
    %vm9877 = vweird.f32 %v9801
    %vm9878 = vweird.f32 %v9871
    %vm9879 = vmor %vm9877, %vm9878
    %v9880 = vsel %vm9879, %v9871, %v9876
    %v9881 = vrsqrt.pop %v9802
    %v9882 = vmul.f32 %v9881, %v9802
    %v9883 = vmul.f32 %v9882, %v9881
    %v9884 = vmul.f32 0.5, %v9883
    %v9885 = vsub.f32 1.5, %v9884
    %v9886 = vmul.f32 %v9881, %v9885
    %vm9887 = vweird.f32 %v9802
    %vm9888 = vweird.f32 %v9881
    %vm9889 = vmor %vm9887, %vm9888
    %v9890 = vsel %vm9889, %v9881, %v9886
    %v9891 = vrsqrt.pop %v9803
    %v9892 = vmul.f32 %v9891, %v9803
    %v9893 = vmul.f32 %v9892, %v9891
    %v9894 = vmul.f32 0.5, %v9893
    %v9895 = vsub.f32 1.5, %v9894
    %v9896 = vmul.f32 %v9891, %v9895
    %vm9897 = vweird.f32 %v9803
    %vm9898 = vweird.f32 %v9891
    %vm9899 = vmor %vm9897, %vm9898
    %v9900 = vsel %vm9899, %v9891, %v9896
    %v9901 = vrsqrt.pop %v9804
    %v9902 = vmul.f32 %v9901, %v9804
    %v9903 = vmul.f32 %v9902, %v9901
    %v9904 = vmul.f32 0.5, %v9903
    %v9905 = vsub.f32 1.5, %v9904
    %v9906 = vmul.f32 %v9901, %v9905
    %vm9907 = vweird.f32 %v9804
    %vm9908 = vweird.f32 %v9901
    %vm9909 = vmor %vm9907, %vm9908
    %v9910 = vsel %vm9909, %v9901, %v9906
    %v9911 = vrsqrt.pop %v9805
    %v9912 = vmul.f32 %v9911, %v9805
    %v9913 = vmul.f32 %v9912, %v9911
    %v9914 = vmul.f32 0.5, %v9913
    %v9915 = vsub.f32 1.5, %v9914
    %v9916 = vmul.f32 %v9911, %v9915
    %vm9917 = vweird.f32 %v9805
    %vm9918 = vweird.f32 %v9911
    %vm9919 = vmor %vm9917, %vm9918
    %v9920 = vsel %vm9919, %v9911, %v9916
    %v9921 = vrsqrt.pop %v9806
    %v9922 = vmul.f32 %v9921, %v9806
    %v9923 = vmul.f32 %v9922, %v9921
    %v9924 = vmul.f32 0.5, %v9923
    %v9925 = vsub.f32 1.5, %v9924
    %v9926 = vmul.f32 %v9921, %v9925
    %vm9927 = vweird.f32 %v9806
    %vm9928 = vweird.f32 %v9921
    %vm9929 = vmor %vm9927, %vm9928
    %v9930 = vsel %vm9929, %v9921, %v9926
    %v9931 = vrsqrt.pop %v9807
    %v9932 = vmul.f32 %v9931, %v9807
    %v9933 = vmul.f32 %v9932, %v9931
    %v9934 = vmul.f32 0.5, %v9933
    %v9935 = vsub.f32 1.5, %v9934
    %v9936 = vmul.f32 %v9931, %v9935
    %vm9937 = vweird.f32 %v9807
    %vm9938 = vweird.f32 %v9931
    %vm9939 = vmor %vm9937, %vm9938
    %v9940 = vsel %vm9939, %v9931, %v9936
    %v9941 = vrsqrt.pop %v9808
    %v9942 = vmul.f32 %v9941, %v9808
    %v9943 = vmul.f32 %v9942, %v9941
    %v9944 = vmul.f32 0.5, %v9943
    %v9945 = vsub.f32 1.5, %v9944
    %v9946 = vmul.f32 %v9941, %v9945
    %vm9947 = vweird.f32 %v9808
    %vm9948 = vweird.f32 %v9941
    %vm9949 = vmor %vm9947, %vm9948
    %v9950 = vsel %vm9949, %v9941, %v9946
    %v9951 = vrsqrt.pop %v9809
    %v9952 = vmul.f32 %v9951, %v9809
    %v9953 = vmul.f32 %v9952, %v9951
    %v9954 = vmul.f32 0.5, %v9953
    %v9955 = vsub.f32 1.5, %v9954
    %v9956 = vmul.f32 %v9951, %v9955
    %vm9957 = vweird.f32 %v9809
    %vm9958 = vweird.f32 %v9951
    %vm9959 = vmor %vm9957, %vm9958
    %v9960 = vsel %vm9959, %v9951, %v9956
    %v9961 = vrsqrt.pop %v9810
    %v9962 = vmul.f32 %v9961, %v9810
    %v9963 = vmul.f32 %v9962, %v9961
    %v9964 = vmul.f32 0.5, %v9963
    %v9965 = vsub.f32 1.5, %v9964
    %v9966 = vmul.f32 %v9961, %v9965
    %vm9967 = vweird.f32 %v9810
    %vm9968 = vweird.f32 %v9961
    %vm9969 = vmor %vm9967, %vm9968
    %v9970 = vsel %vm9969, %v9961, %v9966
    %v9971 = vmul.f32 %v9699, %v9820
    %v9972 = vmul.f32 %v9700, %v9830
    %v9973 = vmul.f32 %v9701, %v9840
    %v9974 = vmul.f32 %v9702, %v9850
    %v9975 = vmul.f32 %v9703, %v9860
    %v9976 = vmul.f32 %v9704, %v9870
    %v9977 = vmul.f32 %v9705, %v9880
    %v9978 = vmul.f32 %v9706, %v9890
    %v9979 = vmul.f32 %v9707, %v9900
    %v9980 = vmul.f32 %v9708, %v9910
    %v9981 = vmul.f32 %v9709, %v9920
    %v9982 = vmul.f32 %v9710, %v9930
    %v9983 = vmul.f32 %v9711, %v9940
    %v9984 = vmul.f32 %v9712, %v9950
    %v9985 = vmul.f32 %v9713, %v9960
    %v9986 = vmul.f32 %v9714, %v9970
    %v9988 = vperm.slane %v677, 0
    %v9990 = vmul.f32 %v9971, %v9988
    %v9991 = vmul.f32 %v9972, %v9988
    %v9992 = vmul.f32 %v9973, %v9988
    %v9993 = vmul.f32 %v9974, %v9988
    %v9994 = vmul.f32 %v9975, %v9988
    %v9995 = vmul.f32 %v9976, %v9988
    %v9996 = vmul.f32 %v9977, %v9988
    %v9997 = vmul.f32 %v9978, %v9988
    %v9998 = vmul.f32 %v9979, %v9988
    %v9999 = vmul.f32 %v9980, %v9988
    %v10000 = vmul.f32 %v9981, %v9988
    %v10001 = vmul.f32 %v9982, %v9988
    %v10002 = vmul.f32 %v9983, %v9988
    %v10003 = vmul.f32 %v9984, %v9988
    %v10004 = vmul.f32 %v9985, %v9988
    %v10005 = vmul.f32 %v9986, %v9988
    %v10007 = vperm.slane %v678, 0
    %v10009 = vadd.f32 %v9990, %v10007
    %v10010 = vadd.f32 %v9991, %v10007
    %v10011 = vadd.f32 %v9992, %v10007
    %v10012 = vadd.f32 %v9993, %v10007
    %v10013 = vadd.f32 %v9994, %v10007
    %v10014 = vadd.f32 %v9995, %v10007
    %v10015 = vadd.f32 %v9996, %v10007
    %v10016 = vadd.f32 %v9997, %v10007
    %v10017 = vadd.f32 %v9998, %v10007
    %v10018 = vadd.f32 %v9999, %v10007
    %v10019 = vadd.f32 %v10000, %v10007
    %v10020 = vadd.f32 %v10001, %v10007
    %v10021 = vadd.f32 %v10002, %v10007
    %v10022 = vadd.f32 %v10003, %v10007
    %v10023 = vadd.f32 %v10004, %v10007
    %v10024 = vadd.f32 %v10005, %v10007
    %v10025 = vpack.c.bf16 %v10010, %v10009
    %v10026 = vpack.c.bf16 %v10012, %v10011
    %v10027 = vpack.c.bf16 %v10014, %v10013
    %v10028 = vpack.c.bf16 %v10016, %v10015
    %v10029 = vpack.c.bf16 %v10018, %v10017
    %v10030 = vpack.c.bf16 %v10020, %v10019
    %v10031 = vpack.c.bf16 %v10022, %v10021
    %v10032 = vpack.c.bf16 %v10024, %v10023
    %v10034 = vperm.slane %v683, 0
    %v10040 = vunpack.c.l.b16 %v679
    %v10041 = vunpack.c.l.b16 %v680
    %v10042 = vunpack.c.l.b16 %v681
    %v10043 = vunpack.c.l.b16 %v682
    %v10044 = vpack.c.b16 %v10041, %v10040
    %v10045 = vpack.c.b16 %v10043, %v10042
    %v10049 = vsel %vm729, %v10025, 0
    %v10052 = vsel %vm729, %v10026, 0
    %v10055 = vsel %vm729, %v10027, 0
    %v10058 = vsel %vm729, %v10028, 0
    %v10061 = vsel %vm729, %v10029, 0
    %v10064 = vsel %vm729, %v10030, 0
    %v10067 = vsel %vm729, %v10031, 0
    %v10070 = vsel %vm729, %v10032, 0
    %10072 = vmatpush.bf16.msra.mxu0 0
    %10073 = vmatpush.bf16.msra.mxu0 0
    %10074 = vmatpush.bf16.msra.mxu0 0
    %10075 = vmatpush.bf16.msra.mxu0 0
    %10076 = vmatpush.bf16.msra.mxu0 0
    %10077 = vmatpush.bf16.msra.mxu0 0
    %10078 = vmatpush.bf16.msra.mxu0 %v10045
    %10079 = vmatpush.bf16.msra.mxu0 %v10044
    %10080 = vmatmul.bf16.gmra.mxu0 %v10049
    %v10081 = vpop.f32.mrf.mxu0
    %v10082 = vadd.f32 %v10034, %v10081
    %v10083 = vpop.f32.mrf.mxu0
    %v10084 = vadd.f32 %v10034, %v10083
    %10085 = vmatmul.bf16.gmra.mxu0 %v10052
    %v10086 = vpop.f32.mrf.mxu0
    %v10087 = vadd.f32 %v10034, %v10086
    %v10088 = vpop.f32.mrf.mxu0
    %v10089 = vadd.f32 %v10034, %v10088
    %10090 = vmatmul.bf16.gmra.mxu0 %v10055
    %v10091 = vpop.f32.mrf.mxu0
    %v10092 = vadd.f32 %v10034, %v10091
    %v10093 = vpop.f32.mrf.mxu0
    %v10094 = vadd.f32 %v10034, %v10093
    %10095 = vmatmul.bf16.gmra.mxu0 %v10058
    %v10096 = vpop.f32.mrf.mxu0
    %v10097 = vadd.f32 %v10034, %v10096
    %v10098 = vpop.f32.mrf.mxu0
    %v10099 = vadd.f32 %v10034, %v10098
    %10100 = vmatmul.bf16.gmra.mxu0 %v10061
    %v10101 = vpop.f32.mrf.mxu0
    %v10102 = vadd.f32 %v10034, %v10101
    %v10103 = vpop.f32.mrf.mxu0
    %v10104 = vadd.f32 %v10034, %v10103
    %10105 = vmatmul.bf16.gmra.mxu0 %v10064
    %v10106 = vpop.f32.mrf.mxu0
    %v10107 = vadd.f32 %v10034, %v10106
    %v10108 = vpop.f32.mrf.mxu0
    %v10109 = vadd.f32 %v10034, %v10108
    %10110 = vmatmul.bf16.gmra.mxu0 %v10067
    %v10111 = vpop.f32.mrf.mxu0
    %v10112 = vadd.f32 %v10034, %v10111
    %v10113 = vpop.f32.mrf.mxu0
    %v10114 = vadd.f32 %v10034, %v10113
    %10115 = vmatmul.bf16.gmra.mxu0 %v10070
    %v10116 = vpop.f32.mrf.mxu0
    %v10117 = vadd.f32 %v10034, %v10116
    %v10118 = vpop.f32.mrf.mxu0
    %v10119 = vadd.f32 %v10034, %v10118
    %10120 = vdwg.mxu0
    %v10121 = vmul.f32 %v10082, 0.5
    %v10122 = vmul.f32 %v10084, 0.5
    %v10123 = vmul.f32 %v10087, 0.5
    %v10124 = vmul.f32 %v10089, 0.5
    %v10125 = vmul.f32 %v10092, 0.5
    %v10126 = vmul.f32 %v10094, 0.5
    %v10127 = vmul.f32 %v10097, 0.5
    %v10128 = vmul.f32 %v10099, 0.5
    %v10129 = vmul.f32 %v10102, 0.5
    %v10130 = vmul.f32 %v10104, 0.5
    %v10131 = vmul.f32 %v10107, 0.5
    %v10132 = vmul.f32 %v10109, 0.5
    %v10133 = vmul.f32 %v10112, 0.5
    %v10134 = vmul.f32 %v10114, 0.5
    %v10135 = vmul.f32 %v10117, 0.5
    %v10136 = vmul.f32 %v10119, 0.5
    %v10137 = vmul.f32 %v10082, 0.044715
    %v10138 = vmul.f32 %v10084, 0.044715
    %v10139 = vmul.f32 %v10087, 0.044715
    %v10140 = vmul.f32 %v10089, 0.044715
    %v10141 = vmul.f32 %v10092, 0.044715
    %v10142 = vmul.f32 %v10094, 0.044715
    %v10143 = vmul.f32 %v10097, 0.044715
    %v10144 = vmul.f32 %v10099, 0.044715
    %v10145 = vmul.f32 %v10102, 0.044715
    %v10146 = vmul.f32 %v10104, 0.044715
    %v10147 = vmul.f32 %v10107, 0.044715
    %v10148 = vmul.f32 %v10109, 0.044715
    %v10149 = vmul.f32 %v10112, 0.044715
    %v10150 = vmul.f32 %v10114, 0.044715
    %v10151 = vmul.f32 %v10117, 0.044715
    %v10152 = vmul.f32 %v10119, 0.044715
    %v10153 = vmul.f32 %v10137, %v10082
    %v10154 = vmul.f32 %v10138, %v10084
    %v10155 = vmul.f32 %v10139, %v10087
    %v10156 = vmul.f32 %v10140, %v10089
    %v10157 = vmul.f32 %v10141, %v10092
    %v10158 = vmul.f32 %v10142, %v10094
    %v10159 = vmul.f32 %v10143, %v10097
    %v10160 = vmul.f32 %v10144, %v10099
    %v10161 = vmul.f32 %v10145, %v10102
    %v10162 = vmul.f32 %v10146, %v10104
    %v10163 = vmul.f32 %v10147, %v10107
    %v10164 = vmul.f32 %v10148, %v10109
    %v10165 = vmul.f32 %v10149, %v10112
    %v10166 = vmul.f32 %v10150, %v10114
    %v10167 = vmul.f32 %v10151, %v10117
    %v10168 = vmul.f32 %v10152, %v10119
    %v10169 = vmul.f32 %v10153, %v10082
    %v10170 = vmul.f32 %v10154, %v10084
    %v10171 = vmul.f32 %v10155, %v10087
    %v10172 = vmul.f32 %v10156, %v10089
    %v10173 = vmul.f32 %v10157, %v10092
    %v10174 = vmul.f32 %v10158, %v10094
    %v10175 = vmul.f32 %v10159, %v10097
    %v10176 = vmul.f32 %v10160, %v10099
    %v10177 = vmul.f32 %v10161, %v10102
    %v10178 = vmul.f32 %v10162, %v10104
    %v10179 = vmul.f32 %v10163, %v10107
    %v10180 = vmul.f32 %v10164, %v10109
    %v10181 = vmul.f32 %v10165, %v10112
    %v10182 = vmul.f32 %v10166, %v10114
    %v10183 = vmul.f32 %v10167, %v10117
    %v10184 = vmul.f32 %v10168, %v10119
    %v10185 = vadd.f32 %v10082, %v10169
    %v10186 = vadd.f32 %v10084, %v10170
    %v10187 = vadd.f32 %v10087, %v10171
    %v10188 = vadd.f32 %v10089, %v10172
    %v10189 = vadd.f32 %v10092, %v10173
    %v10190 = vadd.f32 %v10094, %v10174
    %v10191 = vadd.f32 %v10097, %v10175
    %v10192 = vadd.f32 %v10099, %v10176
    %v10193 = vadd.f32 %v10102, %v10177
    %v10194 = vadd.f32 %v10104, %v10178
    %v10195 = vadd.f32 %v10107, %v10179
    %v10196 = vadd.f32 %v10109, %v10180
    %v10197 = vadd.f32 %v10112, %v10181
    %v10198 = vadd.f32 %v10114, %v10182
    %v10199 = vadd.f32 %v10117, %v10183
    %v10200 = vadd.f32 %v10119, %v10184
    %v10201 = vmul.f32 %v10185, 0.7978846
    %v10202 = vmul.f32 %v10186, 0.7978846
    %v10203 = vmul.f32 %v10187, 0.7978846
    %v10204 = vmul.f32 %v10188, 0.7978846
    %v10205 = vmul.f32 %v10189, 0.7978846
    %v10206 = vmul.f32 %v10190, 0.7978846
    %v10207 = vmul.f32 %v10191, 0.7978846
    %v10208 = vmul.f32 %v10192, 0.7978846
    %v10209 = vmul.f32 %v10193, 0.7978846
    %v10210 = vmul.f32 %v10194, 0.7978846
    %v10211 = vmul.f32 %v10195, 0.7978846
    %v10212 = vmul.f32 %v10196, 0.7978846
    %v10213 = vmul.f32 %v10197, 0.7978846
    %v10214 = vmul.f32 %v10198, 0.7978846
    %v10215 = vmul.f32 %v10199, 0.7978846
    %v10216 = vmul.f32 %v10200, 0.7978846
    %v10217 = vtanh.pop %v10201
    %v10218 = vtanh.pop %v10202
    %v10219 = vtanh.pop %v10203
    %v10220 = vtanh.pop %v10204
    %v10221 = vtanh.pop %v10205
    %v10222 = vtanh.pop %v10206
    %v10223 = vtanh.pop %v10207
    %v10224 = vtanh.pop %v10208
    %v10225 = vtanh.pop %v10209
    %v10226 = vtanh.pop %v10210
    %v10227 = vtanh.pop %v10211
    %v10228 = vtanh.pop %v10212
    %v10229 = vtanh.pop %v10213
    %v10230 = vtanh.pop %v10214
    %v10231 = vtanh.pop %v10215
    %v10232 = vtanh.pop %v10216
    %v10233 = vadd.f32 %v10217, 1.0
    %v10234 = vadd.f32 %v10218, 1.0
    %v10235 = vadd.f32 %v10219, 1.0
    %v10236 = vadd.f32 %v10220, 1.0
    %v10237 = vadd.f32 %v10221, 1.0
    %v10238 = vadd.f32 %v10222, 1.0
    %v10239 = vadd.f32 %v10223, 1.0
    %v10240 = vadd.f32 %v10224, 1.0
    %v10241 = vadd.f32 %v10225, 1.0
    %v10242 = vadd.f32 %v10226, 1.0
    %v10243 = vadd.f32 %v10227, 1.0
    %v10244 = vadd.f32 %v10228, 1.0
    %v10245 = vadd.f32 %v10229, 1.0
    %v10246 = vadd.f32 %v10230, 1.0
    %v10247 = vadd.f32 %v10231, 1.0
    %v10248 = vadd.f32 %v10232, 1.0
    %v10249 = vmul.f32 %v10121, %v10233
    %v10250 = vmul.f32 %v10122, %v10234
    %v10251 = vmul.f32 %v10123, %v10235
    %v10252 = vmul.f32 %v10124, %v10236
    %v10253 = vmul.f32 %v10125, %v10237
    %v10254 = vmul.f32 %v10126, %v10238
    %v10255 = vmul.f32 %v10127, %v10239
    %v10256 = vmul.f32 %v10128, %v10240
    %v10257 = vmul.f32 %v10129, %v10241
    %v10258 = vmul.f32 %v10130, %v10242
    %v10259 = vmul.f32 %v10131, %v10243
    %v10260 = vmul.f32 %v10132, %v10244
    %v10261 = vmul.f32 %v10133, %v10245
    %v10262 = vmul.f32 %v10134, %v10246
    %v10263 = vmul.f32 %v10135, %v10247
    %v10264 = vmul.f32 %v10136, %v10248
    %v10265 = vpack.c.bf16 %v10250, %v10249
    %v10266 = vpack.c.bf16 %v10252, %v10251
    %v10267 = vpack.c.bf16 %v10254, %v10253
    %v10268 = vpack.c.bf16 %v10256, %v10255
    %v10269 = vpack.c.bf16 %v10258, %v10257
    %v10270 = vpack.c.bf16 %v10260, %v10259
    %v10271 = vpack.c.bf16 %v10262, %v10261
    %v10272 = vpack.c.bf16 %v10264, %v10263
    %v10289 = vunpack.c.l.b16 %v684
    %v10290 = vunpack.c.l.b16 %v685
    %v10291 = vunpack.c.l.b16 %v686
    %v10292 = vunpack.c.l.b16 %v687
    %v10293 = vunpack.c.l.b16 %v688
    %v10294 = vunpack.c.l.b16 %v689
    %v10295 = vunpack.c.l.b16 %v690
    %v10296 = vunpack.c.l.b16 %v691
    %v10297 = vunpack.c.l.b16 %v692
    %v10298 = vunpack.c.l.b16 %v693
    %v10299 = vunpack.c.l.b16 %v694
    %v10300 = vunpack.c.l.b16 %v695
    %v10301 = vunpack.c.l.b16 %v696
    %v10302 = vunpack.c.l.b16 %v697
    %v10303 = vunpack.c.l.b16 %v698
    %v10304 = vunpack.c.l.b16 %v699
    %v10305 = vpack.c.b16 %v10290, %v10289
    %v10306 = vpack.c.b16 %v10292, %v10291
    %v10307 = vpack.c.b16 %v10294, %v10293
    %v10308 = vpack.c.b16 %v10296, %v10295
    %v10309 = vpack.c.b16 %v10298, %v10297
    %v10310 = vpack.c.b16 %v10300, %v10299
    %v10311 = vpack.c.b16 %v10302, %v10301
    %v10312 = vpack.c.b16 %v10304, %v10303
    %10321 = vmatpush.bf16.msra.mxu0 %v10312
    %10322 = vmatpush.bf16.msra.mxu0 %v10311
    %10323 = vmatpush.bf16.msra.mxu0 %v10310
    %10324 = vmatpush.bf16.msra.mxu0 %v10309
    %10325 = vmatpush.bf16.msra.mxu0 %v10308
    %10326 = vmatpush.bf16.msra.mxu0 %v10307
    %10327 = vmatpush.bf16.msra.mxu0 %v10306
    %10328 = vmatpush.bf16.msra.mxu0 %v10305
    %10329 = vmatmul.bf16.gmra.mxu0 %v10265
    %v10330 = vpop.f32.mrf.mxu0
    %v10331 = vadd.f32 0.0, %v10330
    %v10332 = vpop.f32.mrf.mxu0
    %v10333 = vadd.f32 0.0, %v10332
    %10334 = vmatmul.bf16.gmra.mxu0 %v10266
    %v10335 = vpop.f32.mrf.mxu0
    %v10336 = vadd.f32 0.0, %v10335
    %v10337 = vpop.f32.mrf.mxu0
    %v10338 = vadd.f32 0.0, %v10337
    %10339 = vmatmul.bf16.gmra.mxu0 %v10267
    %v10340 = vpop.f32.mrf.mxu0
    %v10341 = vadd.f32 0.0, %v10340
    %v10342 = vpop.f32.mrf.mxu0
    %v10343 = vadd.f32 0.0, %v10342
    %10344 = vmatmul.bf16.gmra.mxu0 %v10268
    %v10345 = vpop.f32.mrf.mxu0
    %v10346 = vadd.f32 0.0, %v10345
    %v10347 = vpop.f32.mrf.mxu0
    %v10348 = vadd.f32 0.0, %v10347
    %10349 = vmatmul.bf16.gmra.mxu0 %v10269
    %v10350 = vpop.f32.mrf.mxu0
    %v10351 = vadd.f32 0.0, %v10350
    %v10352 = vpop.f32.mrf.mxu0
    %v10353 = vadd.f32 0.0, %v10352
    %10354 = vmatmul.bf16.gmra.mxu0 %v10270
    %v10355 = vpop.f32.mrf.mxu0
    %v10356 = vadd.f32 0.0, %v10355
    %v10357 = vpop.f32.mrf.mxu0
    %v10358 = vadd.f32 0.0, %v10357
    %10359 = vmatmul.bf16.gmra.mxu0 %v10271
    %v10360 = vpop.f32.mrf.mxu0
    %v10361 = vadd.f32 0.0, %v10360
    %v10362 = vpop.f32.mrf.mxu0
    %v10363 = vadd.f32 0.0, %v10362
    %10364 = vmatmul.bf16.gmra.mxu0 %v10272
    %v10365 = vpop.f32.mrf.mxu0
    %v10366 = vadd.f32 0.0, %v10365
    %v10367 = vpop.f32.mrf.mxu0
    %v10368 = vadd.f32 0.0, %v10367
    %10369 = vdwg.mxu0
    %v10370 = vadd.f32 %v9619, %v10331
    %v10371 = vadd.f32 %v9620, %v10333
    %v10372 = vadd.f32 %v9621, %v10336
    %v10373 = vadd.f32 %v9622, %v10338
    %v10374 = vadd.f32 %v9623, %v10341
    %v10375 = vadd.f32 %v9624, %v10343
    %v10376 = vadd.f32 %v9625, %v10346
    %v10377 = vadd.f32 %v9626, %v10348
    %v10378 = vadd.f32 %v9627, %v10351
    %v10379 = vadd.f32 %v9628, %v10353
    %v10380 = vadd.f32 %v9629, %v10356
    %v10381 = vadd.f32 %v9630, %v10358
    %v10382 = vadd.f32 %v9631, %v10361
    %v10383 = vadd.f32 %v9632, %v10363
    %v10384 = vadd.f32 %v9633, %v10366
    %v10385 = vadd.f32 %v9634, %v10368
    %v10387 = vperm.slane %v700, 0
    %v10389 = vadd.f32 %v10370, %v10387
    %v10390 = vadd.f32 %v10371, %v10387
    %v10391 = vadd.f32 %v10372, %v10387
    %v10392 = vadd.f32 %v10373, %v10387
    %v10393 = vadd.f32 %v10374, %v10387
    %v10394 = vadd.f32 %v10375, %v10387
    %v10395 = vadd.f32 %v10376, %v10387
    %v10396 = vadd.f32 %v10377, %v10387
    %v10397 = vadd.f32 %v10378, %v10387
    %v10398 = vadd.f32 %v10379, %v10387
    %v10399 = vadd.f32 %v10380, %v10387
    %v10400 = vadd.f32 %v10381, %v10387
    %v10401 = vadd.f32 %v10382, %v10387
    %v10402 = vadd.f32 %v10383, %v10387
    %v10403 = vadd.f32 %v10384, %v10387
    %v10404 = vadd.f32 %v10385, %v10387
    %10405 = vst.msk [vmem:[#allocation35] sm:$0xff] %vm729, %v7279
    %10406 = vst.msk [vmem:[#allocation35 + $0x8] sm:$0xff] %vm729, %v7280
    %10407 = vst.msk [vmem:[#allocation35 + $0x10] sm:$0xff] %vm729, %v7281
    %10408 = vst.msk [vmem:[#allocation35 + $0x18] sm:$0xff] %vm729, %v7282
    %10409 = vst.msk [vmem:[%s127] sm:$0xff] %vm729, %v10389
    %10410 = vst.msk [vmem:[%s127 + $0x8] sm:$0xff] %vm729, %v10390
    %10411 = vst.msk [vmem:[%s127 + $0x10] sm:$0xff] %vm729, %v10391
    %10412 = vst.msk [vmem:[%s127 + $0x18] sm:$0xff] %vm729, %v10392
    %10413 = vst.msk [vmem:[%s127 + $0x20] sm:$0xff] %vm729, %v10393
    %10414 = vst.msk [vmem:[%s127 + $0x28] sm:$0xff] %vm729, %v10394
    %10415 = vst.msk [vmem:[%s127 + $0x30] sm:$0xff] %vm729, %v10395
    %10416 = vst.msk [vmem:[%s127 + $0x38] sm:$0xff] %vm729, %v10396
    %10417 = vst.msk [vmem:[%s127 + $0x40] sm:$0xff] %vm729, %v10397
    %10418 = vst.msk [vmem:[%s127 + $0x48] sm:$0xff] %vm729, %v10398
    %10419 = vst.msk [vmem:[%s127 + $0x50] sm:$0xff] %vm729, %v10399
    %10420 = vst.msk [vmem:[%s127 + $0x58] sm:$0xff] %vm729, %v10400
    %10421 = vst.msk [vmem:[%s127 + $0x60] sm:$0xff] %vm729, %v10401
    %10422 = vst.msk [vmem:[%s127 + $0x68] sm:$0xff] %vm729, %v10402
    %10423 = vst.msk [vmem:[%s127 + $0x70] sm:$0xff] %vm729, %v10403
    %10424 = vst.msk [vmem:[%s127 + $0x78] sm:$0xff] %vm729, %v10404
    // Predicated region
    $region334: #{encoder_forward.1} parent=1 // pred_check
      _
    $region335: #{encoder_forward.1} parent=1 // pred_check_branch
      %10426 = sbr.rel (0) target = $region337
    $region336: #{encoder_forward.1} parent=1 // pred_region
      %10428 = vsyncadd [#allocation4], 0
      %s10429 = sshll.u32 [#allocation35], 4
      %s10430 = int_to_ptr.vmem [resolvable:$true] %s10429
      %s10431 = sshll.u32 %s125, 4
      %s10432 = int_to_ptr.hbm [resolvable:$true] %s10431
      %10437 = dma.vmem_to_hbm [thread:$0]  %s10430, 512, %s10432, [#allocation4], 128, 128, 8
    $region337: #{encoder_forward.1} parent=1 // pred_fallthru
      _
    // Predicated region
    $region338: #{encoder_forward.1} parent=1 // pred_check
      _
    $region339: #{encoder_forward.1} parent=1 // pred_check_branch
      %10439 = sbr.rel (0) target = $region341
    $region340: #{encoder_forward.1} parent=1 // pred_region
      _
    $region341: #{encoder_forward.1} parent=1 // pred_fallthru
      _
    // Predicated region
    $region342: #{encoder_forward.1} parent=1 // pred_check
      _
    $region343: #{encoder_forward.1} parent=1 // pred_check_branch
      %10441 = sbr.rel (0) target = $region345
    $region344: #{encoder_forward.1} parent=1 // pred_region
      %10443 = dma.done [#allocation4], 512
    $region345: #{encoder_forward.1} parent=1 // pred_fallthru
      _
    // Predicated region
    $region346: #{encoder_forward.1} parent=1 // pred_check
      _
    $region347: #{encoder_forward.1} parent=1 // pred_check_branch
      %10445 = sbr.rel (0) target = $region349
    $region348: #{encoder_forward.1} parent=1 // pred_region
      _
    $region349: #{encoder_forward.1} parent=1 // pred_fallthru
      _
    %10446 = vsyncpa [#allocation3], 1
    %10447 = vsyncpa [#allocation6], 1
    %10448 = vsyncpa [#allocation9], 1
    %10449 = vsyncpa [#allocation12], 1
    %10450 = vsyncpa [#allocation15], 1
    %10451 = vsyncpa [#allocation18], 1
    %10452 = vsyncpa [#allocation21], 1
    %10453 = vsyncpa [#allocation24], 1
    %10454 = vsyncpa [#allocation27], 1
    %10455 = vsyncpa [#allocation30], 1
    %10456 = vsyncpa [#allocation33], 1
    %10457 = vsyncpa [#allocation4], 1

</llo_original>
